<compile_context>
chip_gen: v7x
topology: tpu7x:2x2x1
jax: 0.10.0
libtpu: 0.0.40
codegen_flags: <defaults>
</compile_context>

<pallas_src>
import functools

import jax
import jax.numpy as jnp
import numpy as np
from jax.experimental import pallas as pl
from jax.experimental.pallas import tpu as pltpu


def _attn_kernel(x_ref, pos_ref, w_ref, prm_ref, o_ref, *, heads: int):
    # x_ref:   (NB, S, E)   batch-block of x
    # pos_ref: (S, E)       position-embedding rows 0..S-1 (BlockSpec-selected)
    # w_ref:   (E, E)       fc_out weight, PyTorch layout (out_feat, in_feat)
    # prm_ref: (3, E)       row 0 = fc_out bias, row 1 = ln gamma, row 2 = ln beta
    # o_ref:   (NB*S, E)    output rows, (n, s) row-major
    NB, S, E = x_ref.shape
    D = E // heads
    scale = 1.0 / (float(E) ** 0.5)          # module scales by sqrt(embed_size)
    hi = jax.lax.Precision.HIGHEST           # keep matmuls at full f32

    # Position-embedding add (dropout is eval-mode identity).
    x2 = x_ref[...] + pos_ref[...]                     # (NB, S, E), f32
    xb = x2.reshape(NB * S, E)                         # residual rows

    w = w_ref[...]                                     # (E_out, E_in)
    prm = prm_ref[...]
    b, g, beta = prm[0:1, :], prm[1:2, :], prm[2:3, :]

    # Per-head attention; the head merge is folded into the fc_out contraction
    # (y += av_h @ W[:, h*D:(h+1)*D]^T), so there is no concat/relayout of av.
    y = jnp.zeros((NB * S, E), jnp.float32)
    for h in range(heads):
        xh = x2[:, :, h * D:(h + 1) * D]               # (NB, S, D)
        # energy[b,q,k] = sum_d xh[b,q,d] * xh[b,k,d] — contraction on the
        # minor dim, batched over NB; no explicit transpose materialized.
        e = jnp.einsum('bqd,bkd->bqk', xh, xh,
                       preferred_element_type=jnp.float32,
                       precision=hi) * scale
        m = jnp.max(e, axis=-1, keepdims=True)
        p = jnp.exp(e - m)
        attn = p / jnp.sum(p, axis=-1, keepdims=True)  # exact f32 softmax
        av = jnp.einsum('bqk,bkd->bqd', attn, xh,
                        preferred_element_type=jnp.float32,
                        precision=hi)                  # (NB, S, D)
        wh = w[:, h * D:(h + 1) * D]                   # (E, D) in-feature slice
        y = y + jax.lax.dot_general(
            av.reshape(NB * S, D), wh,
            dimension_numbers=(((1,), (1,)), ((), ())),
            preferred_element_type=jnp.float32,
            precision=hi)                              # (NB*S, E)

    # fc_out bias + residual + LayerNorm (eps = 1e-5), all NB*S rows at once.
    res = y + b + xb
    mu = jnp.mean(res, axis=-1, keepdims=True)
    var = jnp.mean((res - mu) ** 2, axis=-1, keepdims=True)
    o_ref[...] = (res - mu) * jax.lax.rsqrt(var + 1e-5) * g + beta


def attn_module_forward(x, pos_table, fc_w, fc_b, ln_gamma, ln_beta, heads,
                        *, batch_blocks: int = 1):
    """Pallas forward for AttnModule (eval mode, mask=None, query_index=None).

    batch_blocks=1 collapses the grid entirely (right call on v5e/v6e, 1 TC).
    batch_blocks=2 keeps a 2-way 'parallel' batch axis for v7x's two TCs —
    only worth it when per-TC work is well above the ~0.35us/step overhead.
    """
    N, S, E = x.shape
    assert E % heads == 0 and N % batch_blocks == 0
    D = E // heads
    NB = N // batch_blocks

    # Only zero-FLOP wrapper work: stack the three (E,) vectors into a single
    # (3, E) input so they travel in one DMA instead of three.
    prm = jnp.stack([fc_b, ln_gamma, ln_beta], axis=0)

    flops = 4 * N * heads * S * S * D + 2 * N * S * E * E          # QK + AV + fc
    transcendentals = N * heads * S * S + N * heads * S + N * S    # exp, div, rsqrt
    bytes_accessed = 4 * (N * S * E        # x
                          + S * E          # pos rows
                          + E * E + 3 * E  # fc weight, stacked params
                          + N * S * E)     # output

    kernel = functools.partial(_attn_kernel, heads=heads)
    out2d = pl.pallas_call(
        kernel,
        out_shape=jax.ShapeDtypeStruct((N * S, E), jnp.float32),
        grid=(batch_blocks,),
        in_specs=[
            pl.BlockSpec((NB, S, E), lambda i: (i, 0, 0)),    # x
            pl.BlockSpec((S, E), lambda i: (0, 0)),           # pos rows 0..S-1
            pl.BlockSpec((E, E), lambda i: (0, 0)),           # fc_out weight
            pl.BlockSpec((3, E), lambda i: (0, 0)),           # bias/gamma/beta
        ],
        out_specs=pl.BlockSpec((NB * S, E), lambda i: (i, 0)),
        compiler_params=pltpu.CompilerParams(
            dimension_semantics=("parallel",)),
        cost_estimate=pl.CostEstimate(flops=flops,
                                      transcendentals=transcendentals,
                                      bytes_accessed=bytes_accessed),
    )(x, pos_table, fc_w, prm)
    return out2d.reshape(N, S, E)


def _reference(x, pos_table, fc_w, fc_b, ln_gamma, ln_beta, heads):
    """Pure-JAX f32 reference mirroring the PyTorch forward."""
    N, S, E = x.shape
    D = E // heads
    hi = jax.lax.Precision.HIGHEST
    xb = x + pos_table[None, :S]
    xh = xb.reshape(N, S, heads, D)
    energy = jnp.einsum('nqhd,nkhd->nhqk', xh, xh, precision=hi)
    attn = jax.nn.softmax(energy / (E ** 0.5), axis=-1)
    out = jnp.einsum('nhqk,nkhd->nqhd', attn, xh,
                     precision=hi).reshape(N, S, E)
    out = jnp.dot(out, fc_w.T, precision=hi) + fc_b
    res = out + xb
    mu = res.mean(-1, keepdims=True)
    var = ((res - mu) ** 2).mean(-1, keepdims=True)
    return (res - mu) / jnp.sqrt(var + 1e-5) * ln_gamma + ln_beta


if __name__ == "__main__":
    # Small shapes consistent with the module: N=2, seq=8, embed=32, heads=4.
    N, S, E, H = 2, 8, 32, 4
    MAX_LENGTH = 16

    key = jax.random.PRNGKey(0)
    k_x, k_pos, k_w, k_b = jax.random.split(key, 4)

    x = jax.random.normal(k_x, (N, S, E), dtype=jnp.float32)
    # Deterministic synthetic parameters (not a checkpoint load):
    pos_table = 0.02 * jax.random.normal(k_pos, (MAX_LENGTH, E), jnp.float32)
    fc_w = 0.1 * jax.random.normal(k_w, (E, E), jnp.float32)  # nn.Linear (out,in)
    fc_b = 0.1 * jax.random.normal(k_b, (E,), jnp.float32)
    ln_gamma = jnp.ones((E,), jnp.float32)                    # nn.LayerNorm defaults
    ln_beta = jnp.zeros((E,), jnp.float32)

    out = attn_module_forward(x, pos_table, fc_w, fc_b, ln_gamma, ln_beta, H)
    out = jax.block_until_ready(out)

    ref = _reference(x, pos_table, fc_w, fc_b, ln_gamma, ln_beta, H)
    # All math is f32 end-to-end (exact softmax, HIGHEST-precision matmuls),
    # so the kernel matches the f32 reference tightly.
    np.testing.assert_allclose(np.asarray(out), np.asarray(ref),
                               rtol=1e-4, atol=1e-4)
    print("KERNEL_OK")
</pallas_src>

<mosaic_0001>
module attributes {stable_mosaic.version = 11 : i64} {
  func.func @_attn_kernel(%arg0: i32, %arg1: memref<2x8x32xf32, #tpu.memory_space<vmem>>, %arg2: memref<8x32xf32, #tpu.memory_space<vmem>>, %arg3: memref<32x32xf32, #tpu.memory_space<vmem>>, %arg4: memref<3x32xf32, #tpu.memory_space<vmem>>, %arg5: memref<16x32xf32, #tpu.memory_space<vmem>>) attributes {dimension_semantics = [#tpu.dimension_semantics<parallel>], iteration_bounds = array<i64: 1>, scalar_prefetch = 0 : i64, scratch_operands = 0 : i64, tpu.core_type = #tpu.core_type<tc>, window_params = [{transform_indices = @transform_0, window_bounds = array<i64: 2, 8, 32>}, {transform_indices = @transform_1, window_bounds = array<i64: 8, 32>}, {pipeline_mode = #tpu.pipeline_mode<synchronous>, transform_indices = @transform_2, window_bounds = array<i64: 32, 32>}, {pipeline_mode = #tpu.pipeline_mode<synchronous>, transform_indices = @transform_3, window_bounds = array<i64: 3, 32>}, {transform_indices = @transform_4, window_bounds = array<i64: 16, 32>}]} {
    %c0 = arith.constant 0 : index
    %c0_0 = arith.constant 0 : index
    %c0_1 = arith.constant 0 : index
    %0 = vector.load %arg1[%c0, %c0_0, %c0_1] : memref<2x8x32xf32, #tpu.memory_space<vmem>>, vector<2x8x32xf32>
    %c0_2 = arith.constant 0 : index
    %c0_3 = arith.constant 0 : index
    %1 = vector.load %arg2[%c0_2, %c0_3] : memref<8x32xf32, #tpu.memory_space<vmem>>, vector<8x32xf32>
    %2 = vector.shape_cast %1 : vector<8x32xf32> to vector<1x8x32xf32>
    %3 = vector.broadcast %2 : vector<1x8x32xf32> to vector<2x8x32xf32>
    %4 = arith.addf %0, %3 : vector<2x8x32xf32>
    %5 = vector.shape_cast %4 : vector<2x8x32xf32> to vector<16x32xf32>
    %c0_4 = arith.constant 0 : index
    %c0_5 = arith.constant 0 : index
    %6 = vector.load %arg3[%c0_4, %c0_5] : memref<32x32xf32, #tpu.memory_space<vmem>>, vector<32x32xf32>
    %c0_6 = arith.constant 0 : index
    %c0_7 = arith.constant 0 : index
    %7 = vector.load %arg4[%c0_6, %c0_7] : memref<3x32xf32, #tpu.memory_space<vmem>>, vector<3x32xf32>
    %8 = vector.extract_strided_slice %7 {offsets = [0, 0], sizes = [1, 32], strides = [1, 1]} : vector<3x32xf32> to vector<1x32xf32>
    %9 = vector.extract_strided_slice %7 {offsets = [1, 0], sizes = [1, 32], strides = [1, 1]} : vector<3x32xf32> to vector<1x32xf32>
    %10 = vector.extract_strided_slice %7 {offsets = [2, 0], sizes = [1, 32], strides = [1, 1]} : vector<3x32xf32> to vector<1x32xf32>
    %cst = arith.constant 0.000000e+00 : f32
    %11 = vector.broadcast %cst : f32 to vector<16x32xf32>
    %12 = vector.extract_strided_slice %4 {offsets = [0, 0, 0], sizes = [2, 8, 8], strides = [1, 1, 1]} : vector<2x8x32xf32> to vector<2x8x8xf32>
    "tpu.trace_start"() <{level = 10 : i32, message = "bqd,bkd->bqk"}> : () -> ()
    %cst_8 = arith.constant dense<0.000000e+00> : vector<2x8x8xf32>
    %13 = tpu.matmul %12, %12, %cst_8 {dimension_numbers = #tpu.dot_dimension_numbers<[2], [2], [1], [1], [0, 0, 0, 1, 1, 1], [0], [0]>, precision = #tpu.contract_precision<fp32>} : vector<2x8x8xf32>, vector<2x8x8xf32>, vector<2x8x8xf32> -> vector<2x8x8xf32>
    "tpu.trace_stop"() : () -> ()
    %cst_9 = arith.constant 0.176776692 : f32
    %14 = vector.broadcast %cst_9 : f32 to vector<2x8x8xf32>
    %15 = arith.mulf %13, %14 : vector<2x8x8xf32>
    %cst_10 = arith.constant dense<0xFF800000> : vector<2x8xf32>
    %16 = vector.multi_reduction <maximumf>, %15, %cst_10 [2] : vector<2x8x8xf32> to vector<2x8xf32>
    %17 = vector.shape_cast %16 : vector<2x8xf32> to vector<2x8x1xf32>
    %18 = vector.broadcast %17 : vector<2x8x1xf32> to vector<2x8x8xf32>
    %19 = arith.subf %15, %18 : vector<2x8x8xf32>
    %20 = math.exp %19 : vector<2x8x8xf32>
    %cst_11 = arith.constant dense<0.000000e+00> : vector<2x8xf32>
    %21 = vector.multi_reduction <add>, %20, %cst_11 [2] : vector<2x8x8xf32> to vector<2x8xf32>
    %22 = vector.shape_cast %21 : vector<2x8xf32> to vector<2x8x1xf32>
    %23 = vector.broadcast %22 : vector<2x8x1xf32> to vector<2x8x8xf32>
    %24 = arith.divf %20, %23 : vector<2x8x8xf32>
    "tpu.trace_start"() <{level = 10 : i32, message = "bqk,bkd->bqd"}> : () -> ()
    %cst_12 = arith.constant dense<0.000000e+00> : vector<2x8x8xf32>
    %25 = tpu.matmul %24, %12, %cst_12 {dimension_numbers = #tpu.dot_dimension_numbers<[2], [1], [1], [2], [0, 0, 0, 1, 1, 2], [0], [0]>, precision = #tpu.contract_precision<fp32>} : vector<2x8x8xf32>, vector<2x8x8xf32>, vector<2x8x8xf32> -> vector<2x8x8xf32>
    "tpu.trace_stop"() : () -> ()
    %26 = vector.extract_strided_slice %6 {offsets = [0, 0], sizes = [32, 8], strides = [1, 1]} : vector<32x32xf32> to vector<32x8xf32>
    %27 = vector.shape_cast %25 : vector<2x8x8xf32> to vector<16x8xf32>
    %cst_13 = arith.constant dense<0.000000e+00> : vector<16x32xf32>
    %28 = tpu.matmul %27, %26, %cst_13 {dimension_numbers = #tpu.dot_dimension_numbers<[1], [1], [0], [0], [0, 0, 1, 0], [], []>, precision = #tpu.contract_precision<fp32>} : vector<16x8xf32>, vector<32x8xf32>, vector<16x32xf32> -> vector<16x32xf32>
    %29 = arith.addf %11, %28 : vector<16x32xf32>
    %30 = vector.extract_strided_slice %4 {offsets = [0, 0, 8], sizes = [2, 8, 8], strides = [1, 1, 1]} : vector<2x8x32xf32> to vector<2x8x8xf32>
    "tpu.trace_start"() <{level = 10 : i32, message = "bqd,bkd->bqk"}> : () -> ()
    %cst_14 = arith.constant dense<0.000000e+00> : vector<2x8x8xf32>
    %31 = tpu.matmul %30, %30, %cst_14 {dimension_numbers = #tpu.dot_dimension_numbers<[2], [2], [1], [1], [0, 0, 0, 1, 1, 1], [0], [0]>, precision = #tpu.contract_precision<fp32>} : vector<2x8x8xf32>, vector<2x8x8xf32>, vector<2x8x8xf32> -> vector<2x8x8xf32>
    "tpu.trace_stop"() : () -> ()
    %cst_15 = arith.constant 0.176776692 : f32
    %32 = vector.broadcast %cst_15 : f32 to vector<2x8x8xf32>
    %33 = arith.mulf %31, %32 : vector<2x8x8xf32>
    %cst_16 = arith.constant dense<0xFF800000> : vector<2x8xf32>
    %34 = vector.multi_reduction <maximumf>, %33, %cst_16 [2] : vector<2x8x8xf32> to vector<2x8xf32>
    %35 = vector.shape_cast %34 : vector<2x8xf32> to vector<2x8x1xf32>
    %36 = vector.broadcast %35 : vector<2x8x1xf32> to vector<2x8x8xf32>
    %37 = arith.subf %33, %36 : vector<2x8x8xf32>
    %38 = math.exp %37 : vector<2x8x8xf32>
    %cst_17 = arith.constant dense<0.000000e+00> : vector<2x8xf32>
    %39 = vector.multi_reduction <add>, %38, %cst_17 [2] : vector<2x8x8xf32> to vector<2x8xf32>
    %40 = vector.shape_cast %39 : vector<2x8xf32> to vector<2x8x1xf32>
    %41 = vector.broadcast %40 : vector<2x8x1xf32> to vector<2x8x8xf32>
    %42 = arith.divf %38, %41 : vector<2x8x8xf32>
    "tpu.trace_start"() <{level = 10 : i32, message = "bqk,bkd->bqd"}> : () -> ()
    %cst_18 = arith.constant dense<0.000000e+00> : vector<2x8x8xf32>
    %43 = tpu.matmul %42, %30, %cst_18 {dimension_numbers = #tpu.dot_dimension_numbers<[2], [1], [1], [2], [0, 0, 0, 1, 1, 2], [0], [0]>, precision = #tpu.contract_precision<fp32>} : vector<2x8x8xf32>, vector<2x8x8xf32>, vector<2x8x8xf32> -> vector<2x8x8xf32>
    "tpu.trace_stop"() : () -> ()
    %44 = vector.extract_strided_slice %6 {offsets = [0, 8], sizes = [32, 8], strides = [1, 1]} : vector<32x32xf32> to vector<32x8xf32>
    %45 = vector.shape_cast %43 : vector<2x8x8xf32> to vector<16x8xf32>
    %cst_19 = arith.constant dense<0.000000e+00> : vector<16x32xf32>
    %46 = tpu.matmul %45, %44, %cst_19 {dimension_numbers = #tpu.dot_dimension_numbers<[1], [1], [0], [0], [0, 0, 1, 0], [], []>, precision = #tpu.contract_precision<fp32>} : vector<16x8xf32>, vector<32x8xf32>, vector<16x32xf32> -> vector<16x32xf32>
    %47 = arith.addf %29, %46 : vector<16x32xf32>
    %48 = vector.extract_strided_slice %4 {offsets = [0, 0, 16], sizes = [2, 8, 8], strides = [1, 1, 1]} : vector<2x8x32xf32> to vector<2x8x8xf32>
    "tpu.trace_start"() <{level = 10 : i32, message = "bqd,bkd->bqk"}> : () -> ()
    %cst_20 = arith.constant dense<0.000000e+00> : vector<2x8x8xf32>
    %49 = tpu.matmul %48, %48, %cst_20 {dimension_numbers = #tpu.dot_dimension_numbers<[2], [2], [1], [1], [0, 0, 0, 1, 1, 1], [0], [0]>, precision = #tpu.contract_precision<fp32>} : vector<2x8x8xf32>, vector<2x8x8xf32>, vector<2x8x8xf32> -> vector<2x8x8xf32>
    "tpu.trace_stop"() : () -> ()
    %cst_21 = arith.constant 0.176776692 : f32
    %50 = vector.broadcast %cst_21 : f32 to vector<2x8x8xf32>
    %51 = arith.mulf %49, %50 : vector<2x8x8xf32>
    %cst_22 = arith.constant dense<0xFF800000> : vector<2x8xf32>
    %52 = vector.multi_reduction <maximumf>, %51, %cst_22 [2] : vector<2x8x8xf32> to vector<2x8xf32>
    %53 = vector.shape_cast %52 : vector<2x8xf32> to vector<2x8x1xf32>
    %54 = vector.broadcast %53 : vector<2x8x1xf32> to vector<2x8x8xf32>
    %55 = arith.subf %51, %54 : vector<2x8x8xf32>
    %56 = math.exp %55 : vector<2x8x8xf32>
    %cst_23 = arith.constant dense<0.000000e+00> : vector<2x8xf32>
    %57 = vector.multi_reduction <add>, %56, %cst_23 [2] : vector<2x8x8xf32> to vector<2x8xf32>
    %58 = vector.shape_cast %57 : vector<2x8xf32> to vector<2x8x1xf32>
    %59 = vector.broadcast %58 : vector<2x8x1xf32> to vector<2x8x8xf32>
    %60 = arith.divf %56, %59 : vector<2x8x8xf32>
    "tpu.trace_start"() <{level = 10 : i32, message = "bqk,bkd->bqd"}> : () -> ()
    %cst_24 = arith.constant dense<0.000000e+00> : vector<2x8x8xf32>
    %61 = tpu.matmul %60, %48, %cst_24 {dimension_numbers = #tpu.dot_dimension_numbers<[2], [1], [1], [2], [0, 0, 0, 1, 1, 2], [0], [0]>, precision = #tpu.contract_precision<fp32>} : vector<2x8x8xf32>, vector<2x8x8xf32>, vector<2x8x8xf32> -> vector<2x8x8xf32>
    "tpu.trace_stop"() : () -> ()
    %62 = vector.extract_strided_slice %6 {offsets = [0, 16], sizes = [32, 8], strides = [1, 1]} : vector<32x32xf32> to vector<32x8xf32>
    %63 = vector.shape_cast %61 : vector<2x8x8xf32> to vector<16x8xf32>
    %cst_25 = arith.constant dense<0.000000e+00> : vector<16x32xf32>
    %64 = tpu.matmul %63, %62, %cst_25 {dimension_numbers = #tpu.dot_dimension_numbers<[1], [1], [0], [0], [0, 0, 1, 0], [], []>, precision = #tpu.contract_precision<fp32>} : vector<16x8xf32>, vector<32x8xf32>, vector<16x32xf32> -> vector<16x32xf32>
    %65 = arith.addf %47, %64 : vector<16x32xf32>
    %66 = vector.extract_strided_slice %4 {offsets = [0, 0, 24], sizes = [2, 8, 8], strides = [1, 1, 1]} : vector<2x8x32xf32> to vector<2x8x8xf32>
    "tpu.trace_start"() <{level = 10 : i32, message = "bqd,bkd->bqk"}> : () -> ()
    %cst_26 = arith.constant dense<0.000000e+00> : vector<2x8x8xf32>
    %67 = tpu.matmul %66, %66, %cst_26 {dimension_numbers = #tpu.dot_dimension_numbers<[2], [2], [1], [1], [0, 0, 0, 1, 1, 1], [0], [0]>, precision = #tpu.contract_precision<fp32>} : vector<2x8x8xf32>, vector<2x8x8xf32>, vector<2x8x8xf32> -> vector<2x8x8xf32>
    "tpu.trace_stop"() : () -> ()
    %cst_27 = arith.constant 0.176776692 : f32
    %68 = vector.broadcast %cst_27 : f32 to vector<2x8x8xf32>
    %69 = arith.mulf %67, %68 : vector<2x8x8xf32>
    %cst_28 = arith.constant dense<0xFF800000> : vector<2x8xf32>
    %70 = vector.multi_reduction <maximumf>, %69, %cst_28 [2] : vector<2x8x8xf32> to vector<2x8xf32>
    %71 = vector.shape_cast %70 : vector<2x8xf32> to vector<2x8x1xf32>
    %72 = vector.broadcast %71 : vector<2x8x1xf32> to vector<2x8x8xf32>
    %73 = arith.subf %69, %72 : vector<2x8x8xf32>
    %74 = math.exp %73 : vector<2x8x8xf32>
    %cst_29 = arith.constant dense<0.000000e+00> : vector<2x8xf32>
    %75 = vector.multi_reduction <add>, %74, %cst_29 [2] : vector<2x8x8xf32> to vector<2x8xf32>
    %76 = vector.shape_cast %75 : vector<2x8xf32> to vector<2x8x1xf32>
    %77 = vector.broadcast %76 : vector<2x8x1xf32> to vector<2x8x8xf32>
    %78 = arith.divf %74, %77 : vector<2x8x8xf32>
    "tpu.trace_start"() <{level = 10 : i32, message = "bqk,bkd->bqd"}> : () -> ()
    %cst_30 = arith.constant dense<0.000000e+00> : vector<2x8x8xf32>
    %79 = tpu.matmul %78, %66, %cst_30 {dimension_numbers = #tpu.dot_dimension_numbers<[2], [1], [1], [2], [0, 0, 0, 1, 1, 2], [0], [0]>, precision = #tpu.contract_precision<fp32>} : vector<2x8x8xf32>, vector<2x8x8xf32>, vector<2x8x8xf32> -> vector<2x8x8xf32>
    "tpu.trace_stop"() : () -> ()
    %80 = vector.extract_strided_slice %6 {offsets = [0, 24], sizes = [32, 8], strides = [1, 1]} : vector<32x32xf32> to vector<32x8xf32>
    %81 = vector.shape_cast %79 : vector<2x8x8xf32> to vector<16x8xf32>
    %cst_31 = arith.constant dense<0.000000e+00> : vector<16x32xf32>
    %82 = tpu.matmul %81, %80, %cst_31 {dimension_numbers = #tpu.dot_dimension_numbers<[1], [1], [0], [0], [0, 0, 1, 0], [], []>, precision = #tpu.contract_precision<fp32>} : vector<16x8xf32>, vector<32x8xf32>, vector<16x32xf32> -> vector<16x32xf32>
    %83 = arith.addf %65, %82 : vector<16x32xf32>
    %84 = vector.broadcast %8 : vector<1x32xf32> to vector<16x32xf32>
    %85 = arith.addf %83, %84 : vector<16x32xf32>
    %86 = arith.addf %85, %5 : vector<16x32xf32>
    %cst_32 = arith.constant dense<0.000000e+00> : vector<16xf32>
    %87 = vector.multi_reduction <add>, %86, %cst_32 [1] : vector<16x32xf32> to vector<16xf32>
    %88 = vector.shape_cast %87 : vector<16xf32> to vector<16x1xf32>
    %cst_33 = arith.constant 3.200000e+01 : f32
    %89 = vector.broadcast %cst_33 : f32 to vector<16x1xf32>
    %90 = arith.divf %88, %89 : vector<16x1xf32>
    %91 = vector.broadcast %90 : vector<16x1xf32> to vector<16x32xf32>
    %92 = arith.subf %86, %91 : vector<16x32xf32>
    %93 = arith.mulf %92, %92 : vector<16x32xf32>
    %cst_34 = arith.constant dense<0.000000e+00> : vector<16xf32>
    %94 = vector.multi_reduction <add>, %93, %cst_34 [1] : vector<16x32xf32> to vector<16xf32>
    %95 = vector.shape_cast %94 : vector<16xf32> to vector<16x1xf32>
    %cst_35 = arith.constant 3.200000e+01 : f32
    %96 = vector.broadcast %cst_35 : f32 to vector<16x1xf32>
    %97 = arith.divf %95, %96 : vector<16x1xf32>
    %98 = vector.broadcast %90 : vector<16x1xf32> to vector<16x32xf32>
    %99 = arith.subf %86, %98 : vector<16x32xf32>
    %cst_36 = arith.constant 9.99999974E-6 : f32
    %100 = vector.broadcast %cst_36 : f32 to vector<16x1xf32>
    %101 = arith.addf %97, %100 : vector<16x1xf32>
    %102 = math.rsqrt %101 : vector<16x1xf32>
    %103 = vector.broadcast %102 : vector<16x1xf32> to vector<16x32xf32>
    %104 = arith.mulf %99, %103 : vector<16x32xf32>
    %105 = vector.broadcast %9 : vector<1x32xf32> to vector<16x32xf32>
    %106 = arith.mulf %104, %105 : vector<16x32xf32>
    %107 = vector.broadcast %10 : vector<1x32xf32> to vector<16x32xf32>
    %108 = arith.addf %106, %107 : vector<16x32xf32>
    %c0_37 = arith.constant 0 : index
    %c0_38 = arith.constant 0 : index
    %109 = vector.load %arg5[%c0_37, %c0_38] : memref<16x32xf32, #tpu.memory_space<vmem>>, vector<16x32xf32>
    tpu.vector_store %arg5[%c0_37, %c0_38], %108 {strides = array<i32>} : memref<16x32xf32, #tpu.memory_space<vmem>>, vector<16x32xf32>,
    return
  }
  func.func @transform_0(%arg0: i32) -> (i32, i32, i32) {
    %c0_i32 = arith.constant 0 : i32
    %c0_i32_0 = arith.constant 0 : i32
    %c0_i32_1 = arith.constant 0 : i32
    return %arg0, %c0_i32, %c0_i32_0 : i32, i32, i32
  }
  func.func @transform_1(%arg0: i32) -> (i32, i32) {
    %c0_i32 = arith.constant 0 : i32
    %c0_i32_0 = arith.constant 0 : i32
    %c0_i32_1 = arith.constant 0 : i32
    return %c0_i32, %c0_i32_0 : i32, i32
  }
  func.func @transform_2(%arg0: i32) -> (i32, i32) {
    %c0_i32 = arith.constant 0 : i32
    %c0_i32_0 = arith.constant 0 : i32
    %c0_i32_1 = arith.constant 0 : i32
    return %c0_i32, %c0_i32_0 : i32, i32
  }
  func.func @transform_3(%arg0: i32) -> (i32, i32) {
    %c0_i32 = arith.constant 0 : i32
    %c0_i32_0 = arith.constant 0 : i32
    %c0_i32_1 = arith.constant 0 : i32
    return %c0_i32, %c0_i32_0 : i32, i32
  }
  func.func @transform_4(%arg0: i32) -> (i32, i32) {
    %c0_i32 = arith.constant 0 : i32
    %c0_i32_0 = arith.constant 0 : i32
    return %arg0, %c0_i32 : i32, i32
  }
}

</mosaic_0001>

<llo_original>
// kernel: tpu_custom_call.1
$region0: #{tpu_custom_call.1}
  #allocation0 [shape = 'u32[]', space=smem, size = 0x4, offset = 0x4, fixed_abs, tag = 'smem constant byte address 0x4 - core index']
  #allocation1 [shape = 'u32[144,128]{1,0:T(1,128)}', space=vmem, size = 0x12000, scoped, tag = 'internal scratch']
  %s0 = inlined_call_operand.hbm [shape: f32[2,8,32], index: 0, kind: input, shape index: {}]
  %s1 = inlined_call_operand.hbm [shape: f32[16,32], index: 1, kind: input, shape index: {}]
  %s2 = inlined_call_operand.hbm [shape: f32[32,32], index: 2, kind: input, shape index: {}]
  %s3 = inlined_call_operand.vmem [shape: f32[3,32], index: 3, kind: input, shape index: {}]
  %s4 = inlined_call_operand.hbm [shape: f32[16,32], index: 4, kind: output, shape index: {}]
  %s5 = sld [smem:[#allocation0]]
  $region38: #{tpu_custom_call.1} parent=0
    _
  %s7 = ssub.s32 1, %s5
  %s8 = scalar_select 0, %s7, %s5
  $region1: #{tpu_custom_call.1} parent=0
    #allocation2 [shape = 'u8[8192]{0}', space=vmem, size = 0x2000, scoped, tag = 'input window, operand 0, single buffered']
    #allocation3 [shape = 's32[1]{0}', space=sflag, size = 0x4, scoped, tag = 'scoped memory for tpu_custom_call.1']
    #allocation4 [shape = 's32[1]{0}', space=sflag, size = 0x4, scoped, tag = 'scoped memory for tpu_custom_call.1']
    #allocation5 [shape = 'u8[4096]{0}', space=vmem, size = 0x1000, scoped, tag = 'input window, operand 1, single buffered']
    #allocation6 [shape = 's32[1]{0}', space=sflag, size = 0x4, scoped, tag = 'scoped memory for tpu_custom_call.1']
    #allocation7 [shape = 'u8[16384]{0}', space=vmem, size = 0x4000, scoped, tag = 'input window, operand 2, single buffered']
    #allocation8 [shape = 'u8[8192]{0}', space=vmem, size = 0x2000, scoped, tag = 'output window, operand 0, single buffered']
    %9 = vsyncpa [#allocation3], 0
    %10 = vsyncpa [#allocation6], 0
    %11 = vsyncpa [#allocation4], 0
    // Predicated region
    $region2: #{tpu_custom_call.1} parent=1 // pred_check
      _
    $region3: #{tpu_custom_call.1} parent=1 // pred_check_branch
      %13 = sbr.rel (0) target = $region5
    $region4: #{tpu_custom_call.1} parent=1 // pred_region
      %s15 = ssub.s32 256, 256
      %16 = vsyncadd [#allocation3], %s15
      %s17 = sshll.u32 [#allocation2], 4
      %s18 = int_to_ptr.vmem [resolvable:$true] %s17
      %23 = dma.hbm_to_vmem [thread:$0]  %s0, 256, %s18, [#allocation3], 128, 128, 8
    $region5: #{tpu_custom_call.1} parent=1 // pred_fallthru
      _
    // Predicated region
    $region6: #{tpu_custom_call.1} parent=1 // pred_check
      _
    $region7: #{tpu_custom_call.1} parent=1 // pred_check_branch
      %25 = sbr.rel (0) target = $region9
    $region8: #{tpu_custom_call.1} parent=1 // pred_region
      %s27 = ssub.s32 128, 128
      %28 = vsyncadd [#allocation6], %s27
      %s30 = sshll.u32 [#allocation5], 4
      %s31 = int_to_ptr.vmem [resolvable:$true] %s30
      %33 = dma.hbm_to_vmem [thread:$0]  %s1, 128, %s31, [#allocation6]
    $region9: #{tpu_custom_call.1} parent=1 // pred_fallthru
      _
    // Predicated region
    $region10: #{tpu_custom_call.1} parent=1 // pred_check
      _
    $region11: #{tpu_custom_call.1} parent=1 // pred_check_branch
      %35 = sbr.rel (0) target = $region13
    $region12: #{tpu_custom_call.1} parent=1 // pred_region
      %s37 = ssub.s32 512, 512
      %38 = vsyncadd [#allocation6], %s37
      %s39 = sshll.u32 [#allocation7], 4
      %s40 = int_to_ptr.vmem [resolvable:$true] %s39
      %45 = dma.hbm_to_vmem [thread:$0]  %s2, 512, %s40, [#allocation6], 128, 128, 8
    $region13: #{tpu_custom_call.1} parent=1 // pred_fallthru
      _
    // Predicated region
    $region14: #{tpu_custom_call.1} parent=1 // pred_check
      _
    $region15: #{tpu_custom_call.1} parent=1 // pred_check_branch
      %47 = sbr.rel (0) target = $region17
    $region16: #{tpu_custom_call.1} parent=1 // pred_region
      _
    $region17: #{tpu_custom_call.1} parent=1 // pred_fallthru
      _
    // Predicated region
    $region18: #{tpu_custom_call.1} parent=1 // pred_check
      _
    $region19: #{tpu_custom_call.1} parent=1 // pred_check_branch
      %49 = sbr.rel (0) target = $region21
    $region20: #{tpu_custom_call.1} parent=1 // pred_region
      %50 = dma.done [#allocation3], 256
    $region21: #{tpu_custom_call.1} parent=1 // pred_fallthru
      _
    // Predicated region
    $region22: #{tpu_custom_call.1} parent=1 // pred_check
      _
    $region23: #{tpu_custom_call.1} parent=1 // pred_check_branch
      %52 = sbr.rel (0) target = $region25
    $region24: #{tpu_custom_call.1} parent=1 // pred_region
      %53 = dma.done [#allocation6], 128
    $region25: #{tpu_custom_call.1} parent=1 // pred_fallthru
      _
    // Predicated region
    $region26: #{tpu_custom_call.1} parent=1 // pred_check
      _
    $region27: #{tpu_custom_call.1} parent=1 // pred_check_branch
      %55 = sbr.rel (0) target = $region29
    $region28: #{tpu_custom_call.1} parent=1 // pred_region
      %56 = dma.done [#allocation6], 512
    $region29: #{tpu_custom_call.1} parent=1 // pred_fallthru
      _
    %v57 = vld [vmem:[#allocation2] sm:$0xff]
    %v58 = vld [vmem:[#allocation2 + $0x8] sm:$0xff]
    %v59 = vld [vmem:[#allocation5] sm:$0xff]
    %v60 = vadd.f32 %v57, %v59
    %v61 = vadd.f32 %v58, %v59
    %v62 = vld [vmem:[#allocation7] sm:$0xff]
    %v63 = vld [vmem:[#allocation7 + $0x8] sm:$0xff]
    %v64 = vld [vmem:[#allocation7 + $0x10] sm:$0xff]
    %v65 = vld [vmem:[#allocation7 + $0x18] sm:$0xff]
    %v66 = vld [vmem:[%s3] sm:$0x7]
    %vm67 = vcmask 64512
    %v69 = vsel %vm67, %v60, 0
    %71 = vmatprep.subr.mxu0 0.0
    %v72 = vand.u32 %v69, 4294901760
    %73 = vmatpush1.xpose.msra.mxu0 %v72
    %74 = vmatprep.subr.mxu0 0.0
    %75 = vmatpush1.xpose.msra.mxu0 0.0
    %76 = vmatprep.subr.mxu0 0.0
    %77 = vmatpush1.xpose.msra.mxu0 0.0
    %78 = vmatprep.subr.mxu0 0.0
    %79 = vmatpush1.xpose.msra.mxu0 0.0
    %80 = vmatprep.subr.mxu0 0.0
    %81 = vmatpush1.xpose.msra.mxu0 0.0
    %82 = vmatprep.subr.mxu0 0.0
    %83 = vmatpush1.xpose.msra.mxu0 0.0
    %84 = vmatprep.subr.mxu0 0.0
    %85 = vmatpush1.xpose.msra.mxu0 0.0
    %86 = vmatprep.subr.mxu0 0.0
    %87 = vmatpush1.xpose.msra.mxu0 0.0
    %88 = vmatprep.subr.mxu0 0.0
    %89 = vmatpush1.xpose.msra.mxu0 0.0
    %90 = vmatprep.subr.mxu0 0.0
    %91 = vmatpush1.xpose.msra.mxu0 0.0
    %92 = vmatprep.subr.mxu0 0.0
    %93 = vmatpush1.xpose.msra.mxu0 0.0
    %94 = vmatprep.subr.mxu0 0.0
    %95 = vmatpush1.xpose.msra.mxu0 0.0
    %96 = vmatprep.subr.mxu0 0.0
    %97 = vmatpush1.xpose.msra.mxu0 0.0
    %98 = vmatprep.subr.mxu0 0.0
    %99 = vmatpush1.xpose.msra.mxu0 0.0
    %100 = vmatprep.subr.mxu0 0.0
    %101 = vmatpush1.xpose.msra.mxu0 0.0
    %102 = vmatprep.subr.mxu0 0.0
    %103 = vmatpush1.xpose.msra.mxu0 0.0
    %104 = vmatprep.subr.mxu0 0.0
    %105 = vmatpush1.xpose.msra.mxu0 0.0
    %106 = vmatprep.subr.mxu0 0.0
    %107 = vmatpush1.xpose.msra.mxu0 0.0
    %108 = vmatprep.subr.mxu0 0.0
    %109 = vmatpush1.xpose.msra.mxu0 0.0
    %110 = vmatprep.subr.mxu0 0.0
    %111 = vmatpush1.xpose.msra.mxu0 0.0
    %112 = vmatprep.subr.mxu0 0.0
    %113 = vmatpush1.xpose.msra.mxu0 0.0
    %114 = vmatprep.subr.mxu0 0.0
    %115 = vmatpush1.xpose.msra.mxu0 0.0
    %116 = vmatprep.subr.mxu0 0.0
    %117 = vmatpush1.xpose.msra.mxu0 0.0
    %118 = vmatprep.subr.mxu0 0.0
    %119 = vmatpush1.xpose.msra.mxu0 0.0
    %120 = vmatprep.subr.mxu0 0.0
    %121 = vmatpush1.xpose.msra.mxu0 0.0
    %122 = vmatprep.subr.mxu0 0.0
    %123 = vmatpush1.xpose.msra.mxu0 0.0
    %124 = vmatprep.subr.mxu0 0.0
    %125 = vmatpush1.xpose.msra.mxu0 0.0
    %126 = vmatprep.subr.mxu0 0.0
    %127 = vmatpush1.xpose.msra.mxu0 0.0
    %128 = vmatprep.subr.mxu0 0.0
    %129 = vmatpush1.xpose.msra.mxu0 0.0
    %130 = vmatprep.subr.mxu0 0.0
    %131 = vmatpush1.xpose.msra.mxu0 0.0
    %132 = vmatprep.subr.mxu0 0.0
    %133 = vmatpush1.xpose.msra.mxu0 0.0
    %134 = vmatprep.subr.mxu0 0.0
    %135 = vmatpush1.xpose.msra.mxu0 0.0
    %136 = vmatprep.mubr.f32.mxu0 0.0
    %v137 = vand.u32 %v69, 4294901760
    %v138 = vsub.f32 %v69, %v137
    %v139 = vand.u32 %v138, 4294901760
    %v140 = vsub.f32 %v138, %v139
    %v141 = vand.u32 %v140, 4294901760
    %142 = vmatmul.mubr.f32.gmra.mrb[0].mxu0 %v141
    %v143 = vpop.f32.mrb[0].mxu0
    %v144 = vadd.f32 0.0, %v143
    %v145 = vpop.f32.mrb[0].mxu0
    %146 = vdwg.mxu0
    %147 = vmatprep.subr.mxu0 0.0
    %v148 = vand.u32 %v69, 4294901760
    %v149 = vsub.f32 %v69, %v148
    %v150 = vand.u32 %v149, 4294901760
    %v151 = vsub.f32 %v149, %v150
    %v152 = vand.u32 %v151, 4294901760
    %153 = vmatpush1.xpose.msra.mxu0 %v152
    %154 = vmatprep.subr.mxu0 0.0
    %155 = vmatpush1.xpose.msra.mxu0 0.0
    %156 = vmatprep.subr.mxu0 0.0
    %157 = vmatpush1.xpose.msra.mxu0 0.0
    %158 = vmatprep.subr.mxu0 0.0
    %159 = vmatpush1.xpose.msra.mxu0 0.0
    %160 = vmatprep.subr.mxu0 0.0
    %161 = vmatpush1.xpose.msra.mxu0 0.0
    %162 = vmatprep.subr.mxu0 0.0
    %163 = vmatpush1.xpose.msra.mxu0 0.0
    %164 = vmatprep.subr.mxu0 0.0
    %165 = vmatpush1.xpose.msra.mxu0 0.0
    %166 = vmatprep.subr.mxu0 0.0
    %167 = vmatpush1.xpose.msra.mxu0 0.0
    %168 = vmatprep.subr.mxu0 0.0
    %169 = vmatpush1.xpose.msra.mxu0 0.0
    %170 = vmatprep.subr.mxu0 0.0
    %171 = vmatpush1.xpose.msra.mxu0 0.0
    %172 = vmatprep.subr.mxu0 0.0
    %173 = vmatpush1.xpose.msra.mxu0 0.0
    %174 = vmatprep.subr.mxu0 0.0
    %175 = vmatpush1.xpose.msra.mxu0 0.0
    %176 = vmatprep.subr.mxu0 0.0
    %177 = vmatpush1.xpose.msra.mxu0 0.0
    %178 = vmatprep.subr.mxu0 0.0
    %179 = vmatpush1.xpose.msra.mxu0 0.0
    %180 = vmatprep.subr.mxu0 0.0
    %181 = vmatpush1.xpose.msra.mxu0 0.0
    %182 = vmatprep.subr.mxu0 0.0
    %183 = vmatpush1.xpose.msra.mxu0 0.0
    %184 = vmatprep.subr.mxu0 0.0
    %185 = vmatpush1.xpose.msra.mxu0 0.0
    %186 = vmatprep.subr.mxu0 0.0
    %187 = vmatpush1.xpose.msra.mxu0 0.0
    %188 = vmatprep.subr.mxu0 0.0
    %189 = vmatpush1.xpose.msra.mxu0 0.0
    %190 = vmatprep.subr.mxu0 0.0
    %191 = vmatpush1.xpose.msra.mxu0 0.0
    %192 = vmatprep.subr.mxu0 0.0
    %193 = vmatpush1.xpose.msra.mxu0 0.0
    %194 = vmatprep.subr.mxu0 0.0
    %195 = vmatpush1.xpose.msra.mxu0 0.0
    %196 = vmatprep.subr.mxu0 0.0
    %197 = vmatpush1.xpose.msra.mxu0 0.0
    %198 = vmatprep.subr.mxu0 0.0
    %199 = vmatpush1.xpose.msra.mxu0 0.0
    %200 = vmatprep.subr.mxu0 0.0
    %201 = vmatpush1.xpose.msra.mxu0 0.0
    %202 = vmatprep.subr.mxu0 0.0
    %203 = vmatpush1.xpose.msra.mxu0 0.0
    %204 = vmatprep.subr.mxu0 0.0
    %205 = vmatpush1.xpose.msra.mxu0 0.0
    %206 = vmatprep.subr.mxu0 0.0
    %207 = vmatpush1.xpose.msra.mxu0 0.0
    %208 = vmatprep.subr.mxu0 0.0
    %209 = vmatpush1.xpose.msra.mxu0 0.0
    %210 = vmatprep.subr.mxu0 0.0
    %211 = vmatpush1.xpose.msra.mxu0 0.0
    %212 = vmatprep.subr.mxu0 0.0
    %213 = vmatpush1.xpose.msra.mxu0 0.0
    %214 = vmatprep.subr.mxu0 0.0
    %215 = vmatpush1.xpose.msra.mxu0 0.0
    %216 = vmatprep.mubr.f32.mxu0 0.0
    %v217 = vand.u32 %v69, 4294901760
    %218 = vmatmul.mubr.f32.gmra.mrb[0].mxu0 %v217
    %v219 = vpop.f32.mrb[0].mxu0
    %v220 = vadd.f32 %v144, %v219
    %v221 = vpop.f32.mrb[0].mxu0
    %222 = vdwg.mxu0
    %223 = vmatprep.subr.mxu0 0.0
    %v224 = vand.u32 %v69, 4294901760
    %v225 = vsub.f32 %v69, %v224
    %226 = vmatpush1.xpose.msra.mxu0 %v225
    %227 = vmatprep.subr.mxu0 0.0
    %228 = vmatpush1.xpose.msra.mxu0 0.0
    %229 = vmatprep.subr.mxu0 0.0
    %230 = vmatpush1.xpose.msra.mxu0 0.0
    %231 = vmatprep.subr.mxu0 0.0
    %232 = vmatpush1.xpose.msra.mxu0 0.0
    %233 = vmatprep.subr.mxu0 0.0
    %234 = vmatpush1.xpose.msra.mxu0 0.0
    %235 = vmatprep.subr.mxu0 0.0
    %236 = vmatpush1.xpose.msra.mxu0 0.0
    %237 = vmatprep.subr.mxu0 0.0
    %238 = vmatpush1.xpose.msra.mxu0 0.0
    %239 = vmatprep.subr.mxu0 0.0
    %240 = vmatpush1.xpose.msra.mxu0 0.0
    %241 = vmatprep.subr.mxu0 0.0
    %242 = vmatpush1.xpose.msra.mxu0 0.0
    %243 = vmatprep.subr.mxu0 0.0
    %244 = vmatpush1.xpose.msra.mxu0 0.0
    %245 = vmatprep.subr.mxu0 0.0
    %246 = vmatpush1.xpose.msra.mxu0 0.0
    %247 = vmatprep.subr.mxu0 0.0
    %248 = vmatpush1.xpose.msra.mxu0 0.0
    %249 = vmatprep.subr.mxu0 0.0
    %250 = vmatpush1.xpose.msra.mxu0 0.0
    %251 = vmatprep.subr.mxu0 0.0
    %252 = vmatpush1.xpose.msra.mxu0 0.0
    %253 = vmatprep.subr.mxu0 0.0
    %254 = vmatpush1.xpose.msra.mxu0 0.0
    %255 = vmatprep.subr.mxu0 0.0
    %256 = vmatpush1.xpose.msra.mxu0 0.0
    %257 = vmatprep.subr.mxu0 0.0
    %258 = vmatpush1.xpose.msra.mxu0 0.0
    %259 = vmatprep.subr.mxu0 0.0
    %260 = vmatpush1.xpose.msra.mxu0 0.0
    %261 = vmatprep.subr.mxu0 0.0
    %262 = vmatpush1.xpose.msra.mxu0 0.0
    %263 = vmatprep.subr.mxu0 0.0
    %264 = vmatpush1.xpose.msra.mxu0 0.0
    %265 = vmatprep.subr.mxu0 0.0
    %266 = vmatpush1.xpose.msra.mxu0 0.0
    %267 = vmatprep.subr.mxu0 0.0
    %268 = vmatpush1.xpose.msra.mxu0 0.0
    %269 = vmatprep.subr.mxu0 0.0
    %270 = vmatpush1.xpose.msra.mxu0 0.0
    %271 = vmatprep.subr.mxu0 0.0
    %272 = vmatpush1.xpose.msra.mxu0 0.0
    %273 = vmatprep.subr.mxu0 0.0
    %274 = vmatpush1.xpose.msra.mxu0 0.0
    %275 = vmatprep.subr.mxu0 0.0
    %276 = vmatpush1.xpose.msra.mxu0 0.0
    %277 = vmatprep.subr.mxu0 0.0
    %278 = vmatpush1.xpose.msra.mxu0 0.0
    %279 = vmatprep.subr.mxu0 0.0
    %280 = vmatpush1.xpose.msra.mxu0 0.0
    %281 = vmatprep.subr.mxu0 0.0
    %282 = vmatpush1.xpose.msra.mxu0 0.0
    %283 = vmatprep.subr.mxu0 0.0
    %284 = vmatpush1.xpose.msra.mxu0 0.0
    %285 = vmatprep.subr.mxu0 0.0
    %286 = vmatpush1.xpose.msra.mxu0 0.0
    %287 = vmatprep.subr.mxu0 0.0
    %288 = vmatpush1.xpose.msra.mxu0 0.0
    %289 = vmatprep.mubr.f32.mxu0 0.0
    %v290 = vand.u32 %v69, 4294901760
    %v291 = vsub.f32 %v69, %v290
    %292 = vmatmul.mubr.f32.gmra.mrb[0].mxu0 %v291
    %v293 = vpop.f32.mrb[0].mxu0
    %v294 = vadd.f32 %v220, %v293
    %v295 = vpop.f32.mrb[0].mxu0
    %296 = vdwg.mxu0
    %297 = vmatprep.subr.mxu0 0.0
    %v298 = vand.u32 %v69, 4294901760
    %299 = vmatpush1.xpose.msra.mxu0 %v298
    %300 = vmatprep.subr.mxu0 0.0
    %301 = vmatpush1.xpose.msra.mxu0 0.0
    %302 = vmatprep.subr.mxu0 0.0
    %303 = vmatpush1.xpose.msra.mxu0 0.0
    %304 = vmatprep.subr.mxu0 0.0
    %305 = vmatpush1.xpose.msra.mxu0 0.0
    %306 = vmatprep.subr.mxu0 0.0
    %307 = vmatpush1.xpose.msra.mxu0 0.0
    %308 = vmatprep.subr.mxu0 0.0
    %309 = vmatpush1.xpose.msra.mxu0 0.0
    %310 = vmatprep.subr.mxu0 0.0
    %311 = vmatpush1.xpose.msra.mxu0 0.0
    %312 = vmatprep.subr.mxu0 0.0
    %313 = vmatpush1.xpose.msra.mxu0 0.0
    %314 = vmatprep.subr.mxu0 0.0
    %315 = vmatpush1.xpose.msra.mxu0 0.0
    %316 = vmatprep.subr.mxu0 0.0
    %317 = vmatpush1.xpose.msra.mxu0 0.0
    %318 = vmatprep.subr.mxu0 0.0
    %319 = vmatpush1.xpose.msra.mxu0 0.0
    %320 = vmatprep.subr.mxu0 0.0
    %321 = vmatpush1.xpose.msra.mxu0 0.0
    %322 = vmatprep.subr.mxu0 0.0
    %323 = vmatpush1.xpose.msra.mxu0 0.0
    %324 = vmatprep.subr.mxu0 0.0
    %325 = vmatpush1.xpose.msra.mxu0 0.0
    %326 = vmatprep.subr.mxu0 0.0
    %327 = vmatpush1.xpose.msra.mxu0 0.0
    %328 = vmatprep.subr.mxu0 0.0
    %329 = vmatpush1.xpose.msra.mxu0 0.0
    %330 = vmatprep.subr.mxu0 0.0
    %331 = vmatpush1.xpose.msra.mxu0 0.0
    %332 = vmatprep.subr.mxu0 0.0
    %333 = vmatpush1.xpose.msra.mxu0 0.0
    %334 = vmatprep.subr.mxu0 0.0
    %335 = vmatpush1.xpose.msra.mxu0 0.0
    %336 = vmatprep.subr.mxu0 0.0
    %337 = vmatpush1.xpose.msra.mxu0 0.0
    %338 = vmatprep.subr.mxu0 0.0
    %339 = vmatpush1.xpose.msra.mxu0 0.0
    %340 = vmatprep.subr.mxu0 0.0
    %341 = vmatpush1.xpose.msra.mxu0 0.0
    %342 = vmatprep.subr.mxu0 0.0
    %343 = vmatpush1.xpose.msra.mxu0 0.0
    %344 = vmatprep.subr.mxu0 0.0
    %345 = vmatpush1.xpose.msra.mxu0 0.0
    %346 = vmatprep.subr.mxu0 0.0
    %347 = vmatpush1.xpose.msra.mxu0 0.0
    %348 = vmatprep.subr.mxu0 0.0
    %349 = vmatpush1.xpose.msra.mxu0 0.0
    %350 = vmatprep.subr.mxu0 0.0
    %351 = vmatpush1.xpose.msra.mxu0 0.0
    %352 = vmatprep.subr.mxu0 0.0
    %353 = vmatpush1.xpose.msra.mxu0 0.0
    %354 = vmatprep.subr.mxu0 0.0
    %355 = vmatpush1.xpose.msra.mxu0 0.0
    %356 = vmatprep.subr.mxu0 0.0
    %357 = vmatpush1.xpose.msra.mxu0 0.0
    %358 = vmatprep.subr.mxu0 0.0
    %359 = vmatpush1.xpose.msra.mxu0 0.0
    %360 = vmatprep.subr.mxu0 0.0
    %361 = vmatpush1.xpose.msra.mxu0 0.0
    %362 = vmatprep.mubr.f32.mxu0 0.0
    %v363 = vand.u32 %v69, 4294901760
    %v364 = vsub.f32 %v69, %v363
    %v365 = vand.u32 %v364, 4294901760
    %366 = vmatmul.mubr.f32.gmra.mrb[0].mxu0 %v365
    %v367 = vpop.f32.mrb[0].mxu0
    %v368 = vadd.f32 %v294, %v367
    %v369 = vpop.f32.mrb[0].mxu0
    %370 = vdwg.mxu0
    %371 = vmatprep.subr.mxu0 0.0
    %v372 = vand.u32 %v69, 4294901760
    %v373 = vsub.f32 %v69, %v372
    %v374 = vand.u32 %v373, 4294901760
    %375 = vmatpush1.xpose.msra.mxu0 %v374
    %376 = vmatprep.subr.mxu0 0.0
    %377 = vmatpush1.xpose.msra.mxu0 0.0
    %378 = vmatprep.subr.mxu0 0.0
    %379 = vmatpush1.xpose.msra.mxu0 0.0
    %380 = vmatprep.subr.mxu0 0.0
    %381 = vmatpush1.xpose.msra.mxu0 0.0
    %382 = vmatprep.subr.mxu0 0.0
    %383 = vmatpush1.xpose.msra.mxu0 0.0
    %384 = vmatprep.subr.mxu0 0.0
    %385 = vmatpush1.xpose.msra.mxu0 0.0
    %386 = vmatprep.subr.mxu0 0.0
    %387 = vmatpush1.xpose.msra.mxu0 0.0
    %388 = vmatprep.subr.mxu0 0.0
    %389 = vmatpush1.xpose.msra.mxu0 0.0
    %390 = vmatprep.subr.mxu0 0.0
    %391 = vmatpush1.xpose.msra.mxu0 0.0
    %392 = vmatprep.subr.mxu0 0.0
    %393 = vmatpush1.xpose.msra.mxu0 0.0
    %394 = vmatprep.subr.mxu0 0.0
    %395 = vmatpush1.xpose.msra.mxu0 0.0
    %396 = vmatprep.subr.mxu0 0.0
    %397 = vmatpush1.xpose.msra.mxu0 0.0
    %398 = vmatprep.subr.mxu0 0.0
    %399 = vmatpush1.xpose.msra.mxu0 0.0
    %400 = vmatprep.subr.mxu0 0.0
    %401 = vmatpush1.xpose.msra.mxu0 0.0
    %402 = vmatprep.subr.mxu0 0.0
    %403 = vmatpush1.xpose.msra.mxu0 0.0
    %404 = vmatprep.subr.mxu0 0.0
    %405 = vmatpush1.xpose.msra.mxu0 0.0
    %406 = vmatprep.subr.mxu0 0.0
    %407 = vmatpush1.xpose.msra.mxu0 0.0
    %408 = vmatprep.subr.mxu0 0.0
    %409 = vmatpush1.xpose.msra.mxu0 0.0
    %410 = vmatprep.subr.mxu0 0.0
    %411 = vmatpush1.xpose.msra.mxu0 0.0
    %412 = vmatprep.subr.mxu0 0.0
    %413 = vmatpush1.xpose.msra.mxu0 0.0
    %414 = vmatprep.subr.mxu0 0.0
    %415 = vmatpush1.xpose.msra.mxu0 0.0
    %416 = vmatprep.subr.mxu0 0.0
    %417 = vmatpush1.xpose.msra.mxu0 0.0
    %418 = vmatprep.subr.mxu0 0.0
    %419 = vmatpush1.xpose.msra.mxu0 0.0
    %420 = vmatprep.subr.mxu0 0.0
    %421 = vmatpush1.xpose.msra.mxu0 0.0
    %422 = vmatprep.subr.mxu0 0.0
    %423 = vmatpush1.xpose.msra.mxu0 0.0
    %424 = vmatprep.subr.mxu0 0.0
    %425 = vmatpush1.xpose.msra.mxu0 0.0
    %426 = vmatprep.subr.mxu0 0.0
    %427 = vmatpush1.xpose.msra.mxu0 0.0
    %428 = vmatprep.subr.mxu0 0.0
    %429 = vmatpush1.xpose.msra.mxu0 0.0
    %430 = vmatprep.subr.mxu0 0.0
    %431 = vmatpush1.xpose.msra.mxu0 0.0
    %432 = vmatprep.subr.mxu0 0.0
    %433 = vmatpush1.xpose.msra.mxu0 0.0
    %434 = vmatprep.subr.mxu0 0.0
    %435 = vmatpush1.xpose.msra.mxu0 0.0
    %436 = vmatprep.subr.mxu0 0.0
    %437 = vmatpush1.xpose.msra.mxu0 0.0
    %438 = vmatprep.mubr.f32.mxu0 0.0
    %v439 = vand.u32 %v69, 4294901760
    %440 = vmatmul.mubr.f32.gmra.mrb[0].mxu0 %v439
    %v441 = vpop.f32.mrb[0].mxu0
    %v442 = vadd.f32 %v368, %v441
    %v443 = vpop.f32.mrb[0].mxu0
    %444 = vdwg.mxu0
    %445 = vmatprep.subr.mxu0 0.0
    %v446 = vand.u32 %v69, 4294901760
    %447 = vmatpush1.xpose.msra.mxu0 %v446
    %448 = vmatprep.subr.mxu0 0.0
    %449 = vmatpush1.xpose.msra.mxu0 0.0
    %450 = vmatprep.subr.mxu0 0.0
    %451 = vmatpush1.xpose.msra.mxu0 0.0
    %452 = vmatprep.subr.mxu0 0.0
    %453 = vmatpush1.xpose.msra.mxu0 0.0
    %454 = vmatprep.subr.mxu0 0.0
    %455 = vmatpush1.xpose.msra.mxu0 0.0
    %456 = vmatprep.subr.mxu0 0.0
    %457 = vmatpush1.xpose.msra.mxu0 0.0
    %458 = vmatprep.subr.mxu0 0.0
    %459 = vmatpush1.xpose.msra.mxu0 0.0
    %460 = vmatprep.subr.mxu0 0.0
    %461 = vmatpush1.xpose.msra.mxu0 0.0
    %462 = vmatprep.subr.mxu0 0.0
    %463 = vmatpush1.xpose.msra.mxu0 0.0
    %464 = vmatprep.subr.mxu0 0.0
    %465 = vmatpush1.xpose.msra.mxu0 0.0
    %466 = vmatprep.subr.mxu0 0.0
    %467 = vmatpush1.xpose.msra.mxu0 0.0
    %468 = vmatprep.subr.mxu0 0.0
    %469 = vmatpush1.xpose.msra.mxu0 0.0
    %470 = vmatprep.subr.mxu0 0.0
    %471 = vmatpush1.xpose.msra.mxu0 0.0
    %472 = vmatprep.subr.mxu0 0.0
    %473 = vmatpush1.xpose.msra.mxu0 0.0
    %474 = vmatprep.subr.mxu0 0.0
    %475 = vmatpush1.xpose.msra.mxu0 0.0
    %476 = vmatprep.subr.mxu0 0.0
    %477 = vmatpush1.xpose.msra.mxu0 0.0
    %478 = vmatprep.subr.mxu0 0.0
    %479 = vmatpush1.xpose.msra.mxu0 0.0
    %480 = vmatprep.subr.mxu0 0.0
    %481 = vmatpush1.xpose.msra.mxu0 0.0
    %482 = vmatprep.subr.mxu0 0.0
    %483 = vmatpush1.xpose.msra.mxu0 0.0
    %484 = vmatprep.subr.mxu0 0.0
    %485 = vmatpush1.xpose.msra.mxu0 0.0
    %486 = vmatprep.subr.mxu0 0.0
    %487 = vmatpush1.xpose.msra.mxu0 0.0
    %488 = vmatprep.subr.mxu0 0.0
    %489 = vmatpush1.xpose.msra.mxu0 0.0
    %490 = vmatprep.subr.mxu0 0.0
    %491 = vmatpush1.xpose.msra.mxu0 0.0
    %492 = vmatprep.subr.mxu0 0.0
    %493 = vmatpush1.xpose.msra.mxu0 0.0
    %494 = vmatprep.subr.mxu0 0.0
    %495 = vmatpush1.xpose.msra.mxu0 0.0
    %496 = vmatprep.subr.mxu0 0.0
    %497 = vmatpush1.xpose.msra.mxu0 0.0
    %498 = vmatprep.subr.mxu0 0.0
    %499 = vmatpush1.xpose.msra.mxu0 0.0
    %500 = vmatprep.subr.mxu0 0.0
    %501 = vmatpush1.xpose.msra.mxu0 0.0
    %502 = vmatprep.subr.mxu0 0.0
    %503 = vmatpush1.xpose.msra.mxu0 0.0
    %504 = vmatprep.subr.mxu0 0.0
    %505 = vmatpush1.xpose.msra.mxu0 0.0
    %506 = vmatprep.subr.mxu0 0.0
    %507 = vmatpush1.xpose.msra.mxu0 0.0
    %508 = vmatprep.subr.mxu0 0.0
    %509 = vmatpush1.xpose.msra.mxu0 0.0
    %510 = vmatprep.mubr.f32.mxu0 0.0
    %v511 = vand.u32 %v69, 4294901760
    %512 = vmatmul.mubr.f32.gmra.mrb[0].mxu0 %v511
    %v513 = vpop.f32.mrb[0].mxu0
    %v514 = vadd.f32 %v442, %v513
    %v515 = vpop.f32.mrb[0].mxu0
    %516 = vdwg.mxu0
    %v518 = vsel %vm67, %v61, 0
    %520 = vmatprep.subr.mxu0 0.0
    %v521 = vand.u32 %v518, 4294901760
    %522 = vmatpush1.xpose.msra.mxu0 %v521
    %523 = vmatprep.subr.mxu0 0.0
    %524 = vmatpush1.xpose.msra.mxu0 0.0
    %525 = vmatprep.subr.mxu0 0.0
    %526 = vmatpush1.xpose.msra.mxu0 0.0
    %527 = vmatprep.subr.mxu0 0.0
    %528 = vmatpush1.xpose.msra.mxu0 0.0
    %529 = vmatprep.subr.mxu0 0.0
    %530 = vmatpush1.xpose.msra.mxu0 0.0
    %531 = vmatprep.subr.mxu0 0.0
    %532 = vmatpush1.xpose.msra.mxu0 0.0
    %533 = vmatprep.subr.mxu0 0.0
    %534 = vmatpush1.xpose.msra.mxu0 0.0
    %535 = vmatprep.subr.mxu0 0.0
    %536 = vmatpush1.xpose.msra.mxu0 0.0
    %537 = vmatprep.subr.mxu0 0.0
    %538 = vmatpush1.xpose.msra.mxu0 0.0
    %539 = vmatprep.subr.mxu0 0.0
    %540 = vmatpush1.xpose.msra.mxu0 0.0
    %541 = vmatprep.subr.mxu0 0.0
    %542 = vmatpush1.xpose.msra.mxu0 0.0
    %543 = vmatprep.subr.mxu0 0.0
    %544 = vmatpush1.xpose.msra.mxu0 0.0
    %545 = vmatprep.subr.mxu0 0.0
    %546 = vmatpush1.xpose.msra.mxu0 0.0
    %547 = vmatprep.subr.mxu0 0.0
    %548 = vmatpush1.xpose.msra.mxu0 0.0
    %549 = vmatprep.subr.mxu0 0.0
    %550 = vmatpush1.xpose.msra.mxu0 0.0
    %551 = vmatprep.subr.mxu0 0.0
    %552 = vmatpush1.xpose.msra.mxu0 0.0
    %553 = vmatprep.subr.mxu0 0.0
    %554 = vmatpush1.xpose.msra.mxu0 0.0
    %555 = vmatprep.subr.mxu0 0.0
    %556 = vmatpush1.xpose.msra.mxu0 0.0
    %557 = vmatprep.subr.mxu0 0.0
    %558 = vmatpush1.xpose.msra.mxu0 0.0
    %559 = vmatprep.subr.mxu0 0.0
    %560 = vmatpush1.xpose.msra.mxu0 0.0
    %561 = vmatprep.subr.mxu0 0.0
    %562 = vmatpush1.xpose.msra.mxu0 0.0
    %563 = vmatprep.subr.mxu0 0.0
    %564 = vmatpush1.xpose.msra.mxu0 0.0
    %565 = vmatprep.subr.mxu0 0.0
    %566 = vmatpush1.xpose.msra.mxu0 0.0
    %567 = vmatprep.subr.mxu0 0.0
    %568 = vmatpush1.xpose.msra.mxu0 0.0
    %569 = vmatprep.subr.mxu0 0.0
    %570 = vmatpush1.xpose.msra.mxu0 0.0
    %571 = vmatprep.subr.mxu0 0.0
    %572 = vmatpush1.xpose.msra.mxu0 0.0
    %573 = vmatprep.subr.mxu0 0.0
    %574 = vmatpush1.xpose.msra.mxu0 0.0
    %575 = vmatprep.subr.mxu0 0.0
    %576 = vmatpush1.xpose.msra.mxu0 0.0
    %577 = vmatprep.subr.mxu0 0.0
    %578 = vmatpush1.xpose.msra.mxu0 0.0
    %579 = vmatprep.subr.mxu0 0.0
    %580 = vmatpush1.xpose.msra.mxu0 0.0
    %581 = vmatprep.subr.mxu0 0.0
    %582 = vmatpush1.xpose.msra.mxu0 0.0
    %583 = vmatprep.subr.mxu0 0.0
    %584 = vmatpush1.xpose.msra.mxu0 0.0
    %585 = vmatprep.mubr.f32.mxu0 0.0
    %v586 = vand.u32 %v518, 4294901760
    %v587 = vsub.f32 %v518, %v586
    %v588 = vand.u32 %v587, 4294901760
    %v589 = vsub.f32 %v587, %v588
    %v590 = vand.u32 %v589, 4294901760
    %591 = vmatmul.mubr.f32.gmra.mrb[0].mxu0 %v590
    %v592 = vpop.f32.mrb[0].mxu0
    %v593 = vadd.f32 0.0, %v592
    %v594 = vpop.f32.mrb[0].mxu0
    %595 = vdwg.mxu0
    %596 = vmatprep.subr.mxu0 0.0
    %v597 = vand.u32 %v518, 4294901760
    %v598 = vsub.f32 %v518, %v597
    %v599 = vand.u32 %v598, 4294901760
    %v600 = vsub.f32 %v598, %v599
    %v601 = vand.u32 %v600, 4294901760
    %602 = vmatpush1.xpose.msra.mxu0 %v601
    %603 = vmatprep.subr.mxu0 0.0
    %604 = vmatpush1.xpose.msra.mxu0 0.0
    %605 = vmatprep.subr.mxu0 0.0
    %606 = vmatpush1.xpose.msra.mxu0 0.0
    %607 = vmatprep.subr.mxu0 0.0
    %608 = vmatpush1.xpose.msra.mxu0 0.0
    %609 = vmatprep.subr.mxu0 0.0
    %610 = vmatpush1.xpose.msra.mxu0 0.0
    %611 = vmatprep.subr.mxu0 0.0
    %612 = vmatpush1.xpose.msra.mxu0 0.0
    %613 = vmatprep.subr.mxu0 0.0
    %614 = vmatpush1.xpose.msra.mxu0 0.0
    %615 = vmatprep.subr.mxu0 0.0
    %616 = vmatpush1.xpose.msra.mxu0 0.0
    %617 = vmatprep.subr.mxu0 0.0
    %618 = vmatpush1.xpose.msra.mxu0 0.0
    %619 = vmatprep.subr.mxu0 0.0
    %620 = vmatpush1.xpose.msra.mxu0 0.0
    %621 = vmatprep.subr.mxu0 0.0
    %622 = vmatpush1.xpose.msra.mxu0 0.0
    %623 = vmatprep.subr.mxu0 0.0
    %624 = vmatpush1.xpose.msra.mxu0 0.0
    %625 = vmatprep.subr.mxu0 0.0
    %626 = vmatpush1.xpose.msra.mxu0 0.0
    %627 = vmatprep.subr.mxu0 0.0
    %628 = vmatpush1.xpose.msra.mxu0 0.0
    %629 = vmatprep.subr.mxu0 0.0
    %630 = vmatpush1.xpose.msra.mxu0 0.0
    %631 = vmatprep.subr.mxu0 0.0
    %632 = vmatpush1.xpose.msra.mxu0 0.0
    %633 = vmatprep.subr.mxu0 0.0
    %634 = vmatpush1.xpose.msra.mxu0 0.0
    %635 = vmatprep.subr.mxu0 0.0
    %636 = vmatpush1.xpose.msra.mxu0 0.0
    %637 = vmatprep.subr.mxu0 0.0
    %638 = vmatpush1.xpose.msra.mxu0 0.0
    %639 = vmatprep.subr.mxu0 0.0
    %640 = vmatpush1.xpose.msra.mxu0 0.0
    %641 = vmatprep.subr.mxu0 0.0
    %642 = vmatpush1.xpose.msra.mxu0 0.0
    %643 = vmatprep.subr.mxu0 0.0
    %644 = vmatpush1.xpose.msra.mxu0 0.0
    %645 = vmatprep.subr.mxu0 0.0
    %646 = vmatpush1.xpose.msra.mxu0 0.0
    %647 = vmatprep.subr.mxu0 0.0
    %648 = vmatpush1.xpose.msra.mxu0 0.0
    %649 = vmatprep.subr.mxu0 0.0
    %650 = vmatpush1.xpose.msra.mxu0 0.0
    %651 = vmatprep.subr.mxu0 0.0
    %652 = vmatpush1.xpose.msra.mxu0 0.0
    %653 = vmatprep.subr.mxu0 0.0
    %654 = vmatpush1.xpose.msra.mxu0 0.0
    %655 = vmatprep.subr.mxu0 0.0
    %656 = vmatpush1.xpose.msra.mxu0 0.0
    %657 = vmatprep.subr.mxu0 0.0
    %658 = vmatpush1.xpose.msra.mxu0 0.0
    %659 = vmatprep.subr.mxu0 0.0
    %660 = vmatpush1.xpose.msra.mxu0 0.0
    %661 = vmatprep.subr.mxu0 0.0
    %662 = vmatpush1.xpose.msra.mxu0 0.0
    %663 = vmatprep.subr.mxu0 0.0
    %664 = vmatpush1.xpose.msra.mxu0 0.0
    %665 = vmatprep.mubr.f32.mxu0 0.0
    %v666 = vand.u32 %v518, 4294901760
    %667 = vmatmul.mubr.f32.gmra.mrb[0].mxu0 %v666
    %v668 = vpop.f32.mrb[0].mxu0
    %v669 = vadd.f32 %v593, %v668
    %v670 = vpop.f32.mrb[0].mxu0
    %671 = vdwg.mxu0
    %672 = vmatprep.subr.mxu0 0.0
    %v673 = vand.u32 %v518, 4294901760
    %v674 = vsub.f32 %v518, %v673
    %675 = vmatpush1.xpose.msra.mxu0 %v674
    %676 = vmatprep.subr.mxu0 0.0
    %677 = vmatpush1.xpose.msra.mxu0 0.0
    %678 = vmatprep.subr.mxu0 0.0
    %679 = vmatpush1.xpose.msra.mxu0 0.0
    %680 = vmatprep.subr.mxu0 0.0
    %681 = vmatpush1.xpose.msra.mxu0 0.0
    %682 = vmatprep.subr.mxu0 0.0
    %683 = vmatpush1.xpose.msra.mxu0 0.0
    %684 = vmatprep.subr.mxu0 0.0
    %685 = vmatpush1.xpose.msra.mxu0 0.0
    %686 = vmatprep.subr.mxu0 0.0
    %687 = vmatpush1.xpose.msra.mxu0 0.0
    %688 = vmatprep.subr.mxu0 0.0
    %689 = vmatpush1.xpose.msra.mxu0 0.0
    %690 = vmatprep.subr.mxu0 0.0
    %691 = vmatpush1.xpose.msra.mxu0 0.0
    %692 = vmatprep.subr.mxu0 0.0
    %693 = vmatpush1.xpose.msra.mxu0 0.0
    %694 = vmatprep.subr.mxu0 0.0
    %695 = vmatpush1.xpose.msra.mxu0 0.0
    %696 = vmatprep.subr.mxu0 0.0
    %697 = vmatpush1.xpose.msra.mxu0 0.0
    %698 = vmatprep.subr.mxu0 0.0
    %699 = vmatpush1.xpose.msra.mxu0 0.0
    %700 = vmatprep.subr.mxu0 0.0
    %701 = vmatpush1.xpose.msra.mxu0 0.0
    %702 = vmatprep.subr.mxu0 0.0
    %703 = vmatpush1.xpose.msra.mxu0 0.0
    %704 = vmatprep.subr.mxu0 0.0
    %705 = vmatpush1.xpose.msra.mxu0 0.0
    %706 = vmatprep.subr.mxu0 0.0
    %707 = vmatpush1.xpose.msra.mxu0 0.0
    %708 = vmatprep.subr.mxu0 0.0
    %709 = vmatpush1.xpose.msra.mxu0 0.0
    %710 = vmatprep.subr.mxu0 0.0
    %711 = vmatpush1.xpose.msra.mxu0 0.0
    %712 = vmatprep.subr.mxu0 0.0
    %713 = vmatpush1.xpose.msra.mxu0 0.0
    %714 = vmatprep.subr.mxu0 0.0
    %715 = vmatpush1.xpose.msra.mxu0 0.0
    %716 = vmatprep.subr.mxu0 0.0
    %717 = vmatpush1.xpose.msra.mxu0 0.0
    %718 = vmatprep.subr.mxu0 0.0
    %719 = vmatpush1.xpose.msra.mxu0 0.0
    %720 = vmatprep.subr.mxu0 0.0
    %721 = vmatpush1.xpose.msra.mxu0 0.0
    %722 = vmatprep.subr.mxu0 0.0
    %723 = vmatpush1.xpose.msra.mxu0 0.0
    %724 = vmatprep.subr.mxu0 0.0
    %725 = vmatpush1.xpose.msra.mxu0 0.0
    %726 = vmatprep.subr.mxu0 0.0
    %727 = vmatpush1.xpose.msra.mxu0 0.0
    %728 = vmatprep.subr.mxu0 0.0
    %729 = vmatpush1.xpose.msra.mxu0 0.0
    %730 = vmatprep.subr.mxu0 0.0
    %731 = vmatpush1.xpose.msra.mxu0 0.0
    %732 = vmatprep.subr.mxu0 0.0
    %733 = vmatpush1.xpose.msra.mxu0 0.0
    %734 = vmatprep.subr.mxu0 0.0
    %735 = vmatpush1.xpose.msra.mxu0 0.0
    %736 = vmatprep.subr.mxu0 0.0
    %737 = vmatpush1.xpose.msra.mxu0 0.0
    %738 = vmatprep.mubr.f32.mxu0 0.0
    %v739 = vand.u32 %v518, 4294901760
    %v740 = vsub.f32 %v518, %v739
    %741 = vmatmul.mubr.f32.gmra.mrb[0].mxu0 %v740
    %v742 = vpop.f32.mrb[0].mxu0
    %v743 = vadd.f32 %v669, %v742
    %v744 = vpop.f32.mrb[0].mxu0
    %745 = vdwg.mxu0
    %746 = vmatprep.subr.mxu0 0.0
    %v747 = vand.u32 %v518, 4294901760
    %748 = vmatpush1.xpose.msra.mxu0 %v747
    %749 = vmatprep.subr.mxu0 0.0
    %750 = vmatpush1.xpose.msra.mxu0 0.0
    %751 = vmatprep.subr.mxu0 0.0
    %752 = vmatpush1.xpose.msra.mxu0 0.0
    %753 = vmatprep.subr.mxu0 0.0
    %754 = vmatpush1.xpose.msra.mxu0 0.0
    %755 = vmatprep.subr.mxu0 0.0
    %756 = vmatpush1.xpose.msra.mxu0 0.0
    %757 = vmatprep.subr.mxu0 0.0
    %758 = vmatpush1.xpose.msra.mxu0 0.0
    %759 = vmatprep.subr.mxu0 0.0
    %760 = vmatpush1.xpose.msra.mxu0 0.0
    %761 = vmatprep.subr.mxu0 0.0
    %762 = vmatpush1.xpose.msra.mxu0 0.0
    %763 = vmatprep.subr.mxu0 0.0
    %764 = vmatpush1.xpose.msra.mxu0 0.0
    %765 = vmatprep.subr.mxu0 0.0
    %766 = vmatpush1.xpose.msra.mxu0 0.0
    %767 = vmatprep.subr.mxu0 0.0
    %768 = vmatpush1.xpose.msra.mxu0 0.0
    %769 = vmatprep.subr.mxu0 0.0
    %770 = vmatpush1.xpose.msra.mxu0 0.0
    %771 = vmatprep.subr.mxu0 0.0
    %772 = vmatpush1.xpose.msra.mxu0 0.0
    %773 = vmatprep.subr.mxu0 0.0
    %774 = vmatpush1.xpose.msra.mxu0 0.0
    %775 = vmatprep.subr.mxu0 0.0
    %776 = vmatpush1.xpose.msra.mxu0 0.0
    %777 = vmatprep.subr.mxu0 0.0
    %778 = vmatpush1.xpose.msra.mxu0 0.0
    %779 = vmatprep.subr.mxu0 0.0
    %780 = vmatpush1.xpose.msra.mxu0 0.0
    %781 = vmatprep.subr.mxu0 0.0
    %782 = vmatpush1.xpose.msra.mxu0 0.0
    %783 = vmatprep.subr.mxu0 0.0
    %784 = vmatpush1.xpose.msra.mxu0 0.0
    %785 = vmatprep.subr.mxu0 0.0
    %786 = vmatpush1.xpose.msra.mxu0 0.0
    %787 = vmatprep.subr.mxu0 0.0
    %788 = vmatpush1.xpose.msra.mxu0 0.0
    %789 = vmatprep.subr.mxu0 0.0
    %790 = vmatpush1.xpose.msra.mxu0 0.0
    %791 = vmatprep.subr.mxu0 0.0
    %792 = vmatpush1.xpose.msra.mxu0 0.0
    %793 = vmatprep.subr.mxu0 0.0
    %794 = vmatpush1.xpose.msra.mxu0 0.0
    %795 = vmatprep.subr.mxu0 0.0
    %796 = vmatpush1.xpose.msra.mxu0 0.0
    %797 = vmatprep.subr.mxu0 0.0
    %798 = vmatpush1.xpose.msra.mxu0 0.0
    %799 = vmatprep.subr.mxu0 0.0
    %800 = vmatpush1.xpose.msra.mxu0 0.0
    %801 = vmatprep.subr.mxu0 0.0
    %802 = vmatpush1.xpose.msra.mxu0 0.0
    %803 = vmatprep.subr.mxu0 0.0
    %804 = vmatpush1.xpose.msra.mxu0 0.0
    %805 = vmatprep.subr.mxu0 0.0
    %806 = vmatpush1.xpose.msra.mxu0 0.0
    %807 = vmatprep.subr.mxu0 0.0
    %808 = vmatpush1.xpose.msra.mxu0 0.0
    %809 = vmatprep.subr.mxu0 0.0
    %810 = vmatpush1.xpose.msra.mxu0 0.0
    %811 = vmatprep.mubr.f32.mxu0 0.0
    %v812 = vand.u32 %v518, 4294901760
    %v813 = vsub.f32 %v518, %v812
    %v814 = vand.u32 %v813, 4294901760
    %815 = vmatmul.mubr.f32.gmra.mrb[0].mxu0 %v814
    %v816 = vpop.f32.mrb[0].mxu0
    %v817 = vadd.f32 %v743, %v816
    %v818 = vpop.f32.mrb[0].mxu0
    %819 = vdwg.mxu0
    %820 = vmatprep.subr.mxu0 0.0
    %v821 = vand.u32 %v518, 4294901760
    %v822 = vsub.f32 %v518, %v821
    %v823 = vand.u32 %v822, 4294901760
    %824 = vmatpush1.xpose.msra.mxu0 %v823
    %825 = vmatprep.subr.mxu0 0.0
    %826 = vmatpush1.xpose.msra.mxu0 0.0
    %827 = vmatprep.subr.mxu0 0.0
    %828 = vmatpush1.xpose.msra.mxu0 0.0
    %829 = vmatprep.subr.mxu0 0.0
    %830 = vmatpush1.xpose.msra.mxu0 0.0
    %831 = vmatprep.subr.mxu0 0.0
    %832 = vmatpush1.xpose.msra.mxu0 0.0
    %833 = vmatprep.subr.mxu0 0.0
    %834 = vmatpush1.xpose.msra.mxu0 0.0
    %835 = vmatprep.subr.mxu0 0.0
    %836 = vmatpush1.xpose.msra.mxu0 0.0
    %837 = vmatprep.subr.mxu0 0.0
    %838 = vmatpush1.xpose.msra.mxu0 0.0
    %839 = vmatprep.subr.mxu0 0.0
    %840 = vmatpush1.xpose.msra.mxu0 0.0
    %841 = vmatprep.subr.mxu0 0.0
    %842 = vmatpush1.xpose.msra.mxu0 0.0
    %843 = vmatprep.subr.mxu0 0.0
    %844 = vmatpush1.xpose.msra.mxu0 0.0
    %845 = vmatprep.subr.mxu0 0.0
    %846 = vmatpush1.xpose.msra.mxu0 0.0
    %847 = vmatprep.subr.mxu0 0.0
    %848 = vmatpush1.xpose.msra.mxu0 0.0
    %849 = vmatprep.subr.mxu0 0.0
    %850 = vmatpush1.xpose.msra.mxu0 0.0
    %851 = vmatprep.subr.mxu0 0.0
    %852 = vmatpush1.xpose.msra.mxu0 0.0
    %853 = vmatprep.subr.mxu0 0.0
    %854 = vmatpush1.xpose.msra.mxu0 0.0
    %855 = vmatprep.subr.mxu0 0.0
    %856 = vmatpush1.xpose.msra.mxu0 0.0
    %857 = vmatprep.subr.mxu0 0.0
    %858 = vmatpush1.xpose.msra.mxu0 0.0
    %859 = vmatprep.subr.mxu0 0.0
    %860 = vmatpush1.xpose.msra.mxu0 0.0
    %861 = vmatprep.subr.mxu0 0.0
    %862 = vmatpush1.xpose.msra.mxu0 0.0
    %863 = vmatprep.subr.mxu0 0.0
    %864 = vmatpush1.xpose.msra.mxu0 0.0
    %865 = vmatprep.subr.mxu0 0.0
    %866 = vmatpush1.xpose.msra.mxu0 0.0
    %867 = vmatprep.subr.mxu0 0.0
    %868 = vmatpush1.xpose.msra.mxu0 0.0
    %869 = vmatprep.subr.mxu0 0.0
    %870 = vmatpush1.xpose.msra.mxu0 0.0
    %871 = vmatprep.subr.mxu0 0.0
    %872 = vmatpush1.xpose.msra.mxu0 0.0
    %873 = vmatprep.subr.mxu0 0.0
    %874 = vmatpush1.xpose.msra.mxu0 0.0
    %875 = vmatprep.subr.mxu0 0.0
    %876 = vmatpush1.xpose.msra.mxu0 0.0
    %877 = vmatprep.subr.mxu0 0.0
    %878 = vmatpush1.xpose.msra.mxu0 0.0
    %879 = vmatprep.subr.mxu0 0.0
    %880 = vmatpush1.xpose.msra.mxu0 0.0
    %881 = vmatprep.subr.mxu0 0.0
    %882 = vmatpush1.xpose.msra.mxu0 0.0
    %883 = vmatprep.subr.mxu0 0.0
    %884 = vmatpush1.xpose.msra.mxu0 0.0
    %885 = vmatprep.subr.mxu0 0.0
    %886 = vmatpush1.xpose.msra.mxu0 0.0
    %887 = vmatprep.mubr.f32.mxu0 0.0
    %v888 = vand.u32 %v518, 4294901760
    %889 = vmatmul.mubr.f32.gmra.mrb[0].mxu0 %v888
    %v890 = vpop.f32.mrb[0].mxu0
    %v891 = vadd.f32 %v817, %v890
    %v892 = vpop.f32.mrb[0].mxu0
    %893 = vdwg.mxu0
    %894 = vmatprep.subr.mxu0 0.0
    %v895 = vand.u32 %v518, 4294901760
    %896 = vmatpush1.xpose.msra.mxu0 %v895
    %897 = vmatprep.subr.mxu0 0.0
    %898 = vmatpush1.xpose.msra.mxu0 0.0
    %899 = vmatprep.subr.mxu0 0.0
    %900 = vmatpush1.xpose.msra.mxu0 0.0
    %901 = vmatprep.subr.mxu0 0.0
    %902 = vmatpush1.xpose.msra.mxu0 0.0
    %903 = vmatprep.subr.mxu0 0.0
    %904 = vmatpush1.xpose.msra.mxu0 0.0
    %905 = vmatprep.subr.mxu0 0.0
    %906 = vmatpush1.xpose.msra.mxu0 0.0
    %907 = vmatprep.subr.mxu0 0.0
    %908 = vmatpush1.xpose.msra.mxu0 0.0
    %909 = vmatprep.subr.mxu0 0.0
    %910 = vmatpush1.xpose.msra.mxu0 0.0
    %911 = vmatprep.subr.mxu0 0.0
    %912 = vmatpush1.xpose.msra.mxu0 0.0
    %913 = vmatprep.subr.mxu0 0.0
    %914 = vmatpush1.xpose.msra.mxu0 0.0
    %915 = vmatprep.subr.mxu0 0.0
    %916 = vmatpush1.xpose.msra.mxu0 0.0
    %917 = vmatprep.subr.mxu0 0.0
    %918 = vmatpush1.xpose.msra.mxu0 0.0
    %919 = vmatprep.subr.mxu0 0.0
    %920 = vmatpush1.xpose.msra.mxu0 0.0
    %921 = vmatprep.subr.mxu0 0.0
    %922 = vmatpush1.xpose.msra.mxu0 0.0
    %923 = vmatprep.subr.mxu0 0.0
    %924 = vmatpush1.xpose.msra.mxu0 0.0
    %925 = vmatprep.subr.mxu0 0.0
    %926 = vmatpush1.xpose.msra.mxu0 0.0
    %927 = vmatprep.subr.mxu0 0.0
    %928 = vmatpush1.xpose.msra.mxu0 0.0
    %929 = vmatprep.subr.mxu0 0.0
    %930 = vmatpush1.xpose.msra.mxu0 0.0
    %931 = vmatprep.subr.mxu0 0.0
    %932 = vmatpush1.xpose.msra.mxu0 0.0
    %933 = vmatprep.subr.mxu0 0.0
    %934 = vmatpush1.xpose.msra.mxu0 0.0
    %935 = vmatprep.subr.mxu0 0.0
    %936 = vmatpush1.xpose.msra.mxu0 0.0
    %937 = vmatprep.subr.mxu0 0.0
    %938 = vmatpush1.xpose.msra.mxu0 0.0
    %939 = vmatprep.subr.mxu0 0.0
    %940 = vmatpush1.xpose.msra.mxu0 0.0
    %941 = vmatprep.subr.mxu0 0.0
    %942 = vmatpush1.xpose.msra.mxu0 0.0
    %943 = vmatprep.subr.mxu0 0.0
    %944 = vmatpush1.xpose.msra.mxu0 0.0
    %945 = vmatprep.subr.mxu0 0.0
    %946 = vmatpush1.xpose.msra.mxu0 0.0
    %947 = vmatprep.subr.mxu0 0.0
    %948 = vmatpush1.xpose.msra.mxu0 0.0
    %949 = vmatprep.subr.mxu0 0.0
    %950 = vmatpush1.xpose.msra.mxu0 0.0
    %951 = vmatprep.subr.mxu0 0.0
    %952 = vmatpush1.xpose.msra.mxu0 0.0
    %953 = vmatprep.subr.mxu0 0.0
    %954 = vmatpush1.xpose.msra.mxu0 0.0
    %955 = vmatprep.subr.mxu0 0.0
    %956 = vmatpush1.xpose.msra.mxu0 0.0
    %957 = vmatprep.subr.mxu0 0.0
    %958 = vmatpush1.xpose.msra.mxu0 0.0
    %959 = vmatprep.mubr.f32.mxu0 0.0
    %v960 = vand.u32 %v518, 4294901760
    %961 = vmatmul.mubr.f32.gmra.mrb[0].mxu0 %v960
    %v962 = vpop.f32.mrb[0].mxu0
    %v963 = vadd.f32 %v891, %v962
    %v964 = vpop.f32.mrb[0].mxu0
    %965 = vdwg.mxu0
    %v966 = vmul.f32 %v514, 0.17677669
    %v967 = vmul.f32 %v963, 0.17677669
    %v968 = vsel %vm67, %v966, -inf
    %969 = vmax.xlane.f32.xlu0 %v968
    %v970 = vpop.xlane.xlu0 %969
    %v971 = vsel %vm67, %v967, -inf
    %972 = vmax.xlane.f32.xlu0 %v971
    %v973 = vpop.xlane.xlu0 %972
    %v974 = vsub.f32 %v966, %v970
    %v975 = vsub.f32 %v967, %v973
    %v976 = vmul.f32 %v974, 1.442695
    %v977 = vpow.pop %v976
    %v978 = vmul.f32 %v975, 1.442695
    %v979 = vpow.pop %v978
    %v980 = vsel %vm67, %v977, 0.0
    %981 = vadd.xlane.f32.xlu0 %v980
    %v982 = vpop.xlane.xlu0 %981
    %v983 = vsel %vm67, %v979, 0.0
    %984 = vadd.xlane.f32.xlu0 %v983
    %v985 = vpop.xlane.xlu0 %984
    %v986 = vrcp.pop %v982
    %v987 = vmul.f32 %v977, %v986
    %v988 = vrcp.pop %v985
    %v989 = vmul.f32 %v979, %v988
    %v991 = vsel %vm67, %v987, 0
    %993 = vmatprep.subr.mxu0 0.0
    %v994 = vand.u32 %v60, 4294901760
    %995 = vmatpush1.msra.mxu0 %v994
    %996 = vmatprep.subr.mxu0 0.0
    %997 = vmatpush1.msra.mxu0 0.0
    %998 = vmatprep.subr.mxu0 0.0
    %999 = vmatpush1.msra.mxu0 0.0
    %1000 = vmatprep.subr.mxu0 0.0
    %1001 = vmatpush1.msra.mxu0 0.0
    %1002 = vmatprep.subr.mxu0 0.0
    %1003 = vmatpush1.msra.mxu0 0.0
    %1004 = vmatprep.subr.mxu0 0.0
    %1005 = vmatpush1.msra.mxu0 0.0
    %1006 = vmatprep.subr.mxu0 0.0
    %1007 = vmatpush1.msra.mxu0 0.0
    %1008 = vmatprep.subr.mxu0 0.0
    %1009 = vmatpush1.msra.mxu0 0.0
    %1010 = vmatprep.subr.mxu0 0.0
    %1011 = vmatpush1.msra.mxu0 0.0
    %1012 = vmatprep.subr.mxu0 0.0
    %1013 = vmatpush1.msra.mxu0 0.0
    %1014 = vmatprep.subr.mxu0 0.0
    %1015 = vmatpush1.msra.mxu0 0.0
    %1016 = vmatprep.subr.mxu0 0.0
    %1017 = vmatpush1.msra.mxu0 0.0
    %1018 = vmatprep.subr.mxu0 0.0
    %1019 = vmatpush1.msra.mxu0 0.0
    %1020 = vmatprep.subr.mxu0 0.0
    %1021 = vmatpush1.msra.mxu0 0.0
    %1022 = vmatprep.subr.mxu0 0.0
    %1023 = vmatpush1.msra.mxu0 0.0
    %1024 = vmatprep.subr.mxu0 0.0
    %1025 = vmatpush1.msra.mxu0 0.0
    %1026 = vmatprep.subr.mxu0 0.0
    %1027 = vmatpush1.msra.mxu0 0.0
    %1028 = vmatprep.subr.mxu0 0.0
    %1029 = vmatpush1.msra.mxu0 0.0
    %1030 = vmatprep.subr.mxu0 0.0
    %1031 = vmatpush1.msra.mxu0 0.0
    %1032 = vmatprep.subr.mxu0 0.0
    %1033 = vmatpush1.msra.mxu0 0.0
    %1034 = vmatprep.subr.mxu0 0.0
    %1035 = vmatpush1.msra.mxu0 0.0
    %1036 = vmatprep.subr.mxu0 0.0
    %1037 = vmatpush1.msra.mxu0 0.0
    %1038 = vmatprep.subr.mxu0 0.0
    %1039 = vmatpush1.msra.mxu0 0.0
    %1040 = vmatprep.subr.mxu0 0.0
    %1041 = vmatpush1.msra.mxu0 0.0
    %1042 = vmatprep.subr.mxu0 0.0
    %1043 = vmatpush1.msra.mxu0 0.0
    %1044 = vmatprep.subr.mxu0 0.0
    %1045 = vmatpush1.msra.mxu0 0.0
    %1046 = vmatprep.subr.mxu0 0.0
    %1047 = vmatpush1.msra.mxu0 0.0
    %1048 = vmatprep.subr.mxu0 0.0
    %1049 = vmatpush1.msra.mxu0 0.0
    %1050 = vmatprep.subr.mxu0 0.0
    %1051 = vmatpush1.msra.mxu0 0.0
    %1052 = vmatprep.subr.mxu0 0.0
    %1053 = vmatpush1.msra.mxu0 0.0
    %1054 = vmatprep.subr.mxu0 0.0
    %1055 = vmatpush1.msra.mxu0 0.0
    %1056 = vmatprep.subr.mxu0 0.0
    %1057 = vmatpush1.msra.mxu0 0.0
    %1058 = vmatprep.mubr.f32.mxu0 0.0
    %v1059 = vand.u32 %v991, 4294901760
    %v1060 = vsub.f32 %v991, %v1059
    %v1061 = vand.u32 %v1060, 4294901760
    %v1062 = vsub.f32 %v1060, %v1061
    %v1063 = vand.u32 %v1062, 4294901760
    %1064 = vmatmul.mubr.f32.gmra.mrb[0].mxu0 %v1063
    %v1065 = vpop.f32.mrb[0].mxu0
    %v1066 = vadd.f32 0.0, %v1065
    %v1067 = vpop.f32.mrb[0].mxu0
    %1068 = vdwg.mxu0
    %1069 = vmatprep.subr.mxu0 0.0
    %v1070 = vand.u32 %v60, 4294901760
    %v1071 = vsub.f32 %v60, %v1070
    %v1072 = vand.u32 %v1071, 4294901760
    %v1073 = vsub.f32 %v1071, %v1072
    %v1074 = vand.u32 %v1073, 4294901760
    %1075 = vmatpush1.msra.mxu0 %v1074
    %1076 = vmatprep.subr.mxu0 0.0
    %1077 = vmatpush1.msra.mxu0 0.0
    %1078 = vmatprep.subr.mxu0 0.0
    %1079 = vmatpush1.msra.mxu0 0.0
    %1080 = vmatprep.subr.mxu0 0.0
    %1081 = vmatpush1.msra.mxu0 0.0
    %1082 = vmatprep.subr.mxu0 0.0
    %1083 = vmatpush1.msra.mxu0 0.0
    %1084 = vmatprep.subr.mxu0 0.0
    %1085 = vmatpush1.msra.mxu0 0.0
    %1086 = vmatprep.subr.mxu0 0.0
    %1087 = vmatpush1.msra.mxu0 0.0
    %1088 = vmatprep.subr.mxu0 0.0
    %1089 = vmatpush1.msra.mxu0 0.0
    %1090 = vmatprep.subr.mxu0 0.0
    %1091 = vmatpush1.msra.mxu0 0.0
    %1092 = vmatprep.subr.mxu0 0.0
    %1093 = vmatpush1.msra.mxu0 0.0
    %1094 = vmatprep.subr.mxu0 0.0
    %1095 = vmatpush1.msra.mxu0 0.0
    %1096 = vmatprep.subr.mxu0 0.0
    %1097 = vmatpush1.msra.mxu0 0.0
    %1098 = vmatprep.subr.mxu0 0.0
    %1099 = vmatpush1.msra.mxu0 0.0
    %1100 = vmatprep.subr.mxu0 0.0
    %1101 = vmatpush1.msra.mxu0 0.0
    %1102 = vmatprep.subr.mxu0 0.0
    %1103 = vmatpush1.msra.mxu0 0.0
    %1104 = vmatprep.subr.mxu0 0.0
    %1105 = vmatpush1.msra.mxu0 0.0
    %1106 = vmatprep.subr.mxu0 0.0
    %1107 = vmatpush1.msra.mxu0 0.0
    %1108 = vmatprep.subr.mxu0 0.0
    %1109 = vmatpush1.msra.mxu0 0.0
    %1110 = vmatprep.subr.mxu0 0.0
    %1111 = vmatpush1.msra.mxu0 0.0
    %1112 = vmatprep.subr.mxu0 0.0
    %1113 = vmatpush1.msra.mxu0 0.0
    %1114 = vmatprep.subr.mxu0 0.0
    %1115 = vmatpush1.msra.mxu0 0.0
    %1116 = vmatprep.subr.mxu0 0.0
    %1117 = vmatpush1.msra.mxu0 0.0
    %1118 = vmatprep.subr.mxu0 0.0
    %1119 = vmatpush1.msra.mxu0 0.0
    %1120 = vmatprep.subr.mxu0 0.0
    %1121 = vmatpush1.msra.mxu0 0.0
    %1122 = vmatprep.subr.mxu0 0.0
    %1123 = vmatpush1.msra.mxu0 0.0
    %1124 = vmatprep.subr.mxu0 0.0
    %1125 = vmatpush1.msra.mxu0 0.0
    %1126 = vmatprep.subr.mxu0 0.0
    %1127 = vmatpush1.msra.mxu0 0.0
    %1128 = vmatprep.subr.mxu0 0.0
    %1129 = vmatpush1.msra.mxu0 0.0
    %1130 = vmatprep.subr.mxu0 0.0
    %1131 = vmatpush1.msra.mxu0 0.0
    %1132 = vmatprep.subr.mxu0 0.0
    %1133 = vmatpush1.msra.mxu0 0.0
    %1134 = vmatprep.subr.mxu0 0.0
    %1135 = vmatpush1.msra.mxu0 0.0
    %1136 = vmatprep.subr.mxu0 0.0
    %1137 = vmatpush1.msra.mxu0 0.0
    %1138 = vmatprep.mubr.f32.mxu0 0.0
    %v1139 = vand.u32 %v991, 4294901760
    %1140 = vmatmul.mubr.f32.gmra.mrb[0].mxu0 %v1139
    %v1141 = vpop.f32.mrb[0].mxu0
    %v1142 = vadd.f32 %v1066, %v1141
    %v1143 = vpop.f32.mrb[0].mxu0
    %1144 = vdwg.mxu0
    %1145 = vmatprep.subr.mxu0 0.0
    %v1146 = vand.u32 %v60, 4294901760
    %v1147 = vsub.f32 %v60, %v1146
    %1148 = vmatpush1.msra.mxu0 %v1147
    %1149 = vmatprep.subr.mxu0 0.0
    %1150 = vmatpush1.msra.mxu0 0.0
    %1151 = vmatprep.subr.mxu0 0.0
    %1152 = vmatpush1.msra.mxu0 0.0
    %1153 = vmatprep.subr.mxu0 0.0
    %1154 = vmatpush1.msra.mxu0 0.0
    %1155 = vmatprep.subr.mxu0 0.0
    %1156 = vmatpush1.msra.mxu0 0.0
    %1157 = vmatprep.subr.mxu0 0.0
    %1158 = vmatpush1.msra.mxu0 0.0
    %1159 = vmatprep.subr.mxu0 0.0
    %1160 = vmatpush1.msra.mxu0 0.0
    %1161 = vmatprep.subr.mxu0 0.0
    %1162 = vmatpush1.msra.mxu0 0.0
    %1163 = vmatprep.subr.mxu0 0.0
    %1164 = vmatpush1.msra.mxu0 0.0
    %1165 = vmatprep.subr.mxu0 0.0
    %1166 = vmatpush1.msra.mxu0 0.0
    %1167 = vmatprep.subr.mxu0 0.0
    %1168 = vmatpush1.msra.mxu0 0.0
    %1169 = vmatprep.subr.mxu0 0.0
    %1170 = vmatpush1.msra.mxu0 0.0
    %1171 = vmatprep.subr.mxu0 0.0
    %1172 = vmatpush1.msra.mxu0 0.0
    %1173 = vmatprep.subr.mxu0 0.0
    %1174 = vmatpush1.msra.mxu0 0.0
    %1175 = vmatprep.subr.mxu0 0.0
    %1176 = vmatpush1.msra.mxu0 0.0
    %1177 = vmatprep.subr.mxu0 0.0
    %1178 = vmatpush1.msra.mxu0 0.0
    %1179 = vmatprep.subr.mxu0 0.0
    %1180 = vmatpush1.msra.mxu0 0.0
    %1181 = vmatprep.subr.mxu0 0.0
    %1182 = vmatpush1.msra.mxu0 0.0
    %1183 = vmatprep.subr.mxu0 0.0
    %1184 = vmatpush1.msra.mxu0 0.0
    %1185 = vmatprep.subr.mxu0 0.0
    %1186 = vmatpush1.msra.mxu0 0.0
    %1187 = vmatprep.subr.mxu0 0.0
    %1188 = vmatpush1.msra.mxu0 0.0
    %1189 = vmatprep.subr.mxu0 0.0
    %1190 = vmatpush1.msra.mxu0 0.0
    %1191 = vmatprep.subr.mxu0 0.0
    %1192 = vmatpush1.msra.mxu0 0.0
    %1193 = vmatprep.subr.mxu0 0.0
    %1194 = vmatpush1.msra.mxu0 0.0
    %1195 = vmatprep.subr.mxu0 0.0
    %1196 = vmatpush1.msra.mxu0 0.0
    %1197 = vmatprep.subr.mxu0 0.0
    %1198 = vmatpush1.msra.mxu0 0.0
    %1199 = vmatprep.subr.mxu0 0.0
    %1200 = vmatpush1.msra.mxu0 0.0
    %1201 = vmatprep.subr.mxu0 0.0
    %1202 = vmatpush1.msra.mxu0 0.0
    %1203 = vmatprep.subr.mxu0 0.0
    %1204 = vmatpush1.msra.mxu0 0.0
    %1205 = vmatprep.subr.mxu0 0.0
    %1206 = vmatpush1.msra.mxu0 0.0
    %1207 = vmatprep.subr.mxu0 0.0
    %1208 = vmatpush1.msra.mxu0 0.0
    %1209 = vmatprep.subr.mxu0 0.0
    %1210 = vmatpush1.msra.mxu0 0.0
    %1211 = vmatprep.mubr.f32.mxu0 0.0
    %v1212 = vand.u32 %v991, 4294901760
    %v1213 = vsub.f32 %v991, %v1212
    %1214 = vmatmul.mubr.f32.gmra.mrb[0].mxu0 %v1213
    %v1215 = vpop.f32.mrb[0].mxu0
    %v1216 = vadd.f32 %v1142, %v1215
    %v1217 = vpop.f32.mrb[0].mxu0
    %1218 = vdwg.mxu0
    %1219 = vmatprep.subr.mxu0 0.0
    %v1220 = vand.u32 %v60, 4294901760
    %1221 = vmatpush1.msra.mxu0 %v1220
    %1222 = vmatprep.subr.mxu0 0.0
    %1223 = vmatpush1.msra.mxu0 0.0
    %1224 = vmatprep.subr.mxu0 0.0
    %1225 = vmatpush1.msra.mxu0 0.0
    %1226 = vmatprep.subr.mxu0 0.0
    %1227 = vmatpush1.msra.mxu0 0.0
    %1228 = vmatprep.subr.mxu0 0.0
    %1229 = vmatpush1.msra.mxu0 0.0
    %1230 = vmatprep.subr.mxu0 0.0
    %1231 = vmatpush1.msra.mxu0 0.0
    %1232 = vmatprep.subr.mxu0 0.0
    %1233 = vmatpush1.msra.mxu0 0.0
    %1234 = vmatprep.subr.mxu0 0.0
    %1235 = vmatpush1.msra.mxu0 0.0
    %1236 = vmatprep.subr.mxu0 0.0
    %1237 = vmatpush1.msra.mxu0 0.0
    %1238 = vmatprep.subr.mxu0 0.0
    %1239 = vmatpush1.msra.mxu0 0.0
    %1240 = vmatprep.subr.mxu0 0.0
    %1241 = vmatpush1.msra.mxu0 0.0
    %1242 = vmatprep.subr.mxu0 0.0
    %1243 = vmatpush1.msra.mxu0 0.0
    %1244 = vmatprep.subr.mxu0 0.0
    %1245 = vmatpush1.msra.mxu0 0.0
    %1246 = vmatprep.subr.mxu0 0.0
    %1247 = vmatpush1.msra.mxu0 0.0
    %1248 = vmatprep.subr.mxu0 0.0
    %1249 = vmatpush1.msra.mxu0 0.0
    %1250 = vmatprep.subr.mxu0 0.0
    %1251 = vmatpush1.msra.mxu0 0.0
    %1252 = vmatprep.subr.mxu0 0.0
    %1253 = vmatpush1.msra.mxu0 0.0
    %1254 = vmatprep.subr.mxu0 0.0
    %1255 = vmatpush1.msra.mxu0 0.0
    %1256 = vmatprep.subr.mxu0 0.0
    %1257 = vmatpush1.msra.mxu0 0.0
    %1258 = vmatprep.subr.mxu0 0.0
    %1259 = vmatpush1.msra.mxu0 0.0
    %1260 = vmatprep.subr.mxu0 0.0
    %1261 = vmatpush1.msra.mxu0 0.0
    %1262 = vmatprep.subr.mxu0 0.0
    %1263 = vmatpush1.msra.mxu0 0.0
    %1264 = vmatprep.subr.mxu0 0.0
    %1265 = vmatpush1.msra.mxu0 0.0
    %1266 = vmatprep.subr.mxu0 0.0
    %1267 = vmatpush1.msra.mxu0 0.0
    %1268 = vmatprep.subr.mxu0 0.0
    %1269 = vmatpush1.msra.mxu0 0.0
    %1270 = vmatprep.subr.mxu0 0.0
    %1271 = vmatpush1.msra.mxu0 0.0
    %1272 = vmatprep.subr.mxu0 0.0
    %1273 = vmatpush1.msra.mxu0 0.0
    %1274 = vmatprep.subr.mxu0 0.0
    %1275 = vmatpush1.msra.mxu0 0.0
    %1276 = vmatprep.subr.mxu0 0.0
    %1277 = vmatpush1.msra.mxu0 0.0
    %1278 = vmatprep.subr.mxu0 0.0
    %1279 = vmatpush1.msra.mxu0 0.0
    %1280 = vmatprep.subr.mxu0 0.0
    %1281 = vmatpush1.msra.mxu0 0.0
    %1282 = vmatprep.subr.mxu0 0.0
    %1283 = vmatpush1.msra.mxu0 0.0
    %1284 = vmatprep.mubr.f32.mxu0 0.0
    %v1285 = vand.u32 %v991, 4294901760
    %v1286 = vsub.f32 %v991, %v1285
    %v1287 = vand.u32 %v1286, 4294901760
    %1288 = vmatmul.mubr.f32.gmra.mrb[0].mxu0 %v1287
    %v1289 = vpop.f32.mrb[0].mxu0
    %v1290 = vadd.f32 %v1216, %v1289
    %v1291 = vpop.f32.mrb[0].mxu0
    %1292 = vdwg.mxu0
    %1293 = vmatprep.subr.mxu0 0.0
    %v1294 = vand.u32 %v60, 4294901760
    %v1295 = vsub.f32 %v60, %v1294
    %v1296 = vand.u32 %v1295, 4294901760
    %1297 = vmatpush1.msra.mxu0 %v1296
    %1298 = vmatprep.subr.mxu0 0.0
    %1299 = vmatpush1.msra.mxu0 0.0
    %1300 = vmatprep.subr.mxu0 0.0
    %1301 = vmatpush1.msra.mxu0 0.0
    %1302 = vmatprep.subr.mxu0 0.0
    %1303 = vmatpush1.msra.mxu0 0.0
    %1304 = vmatprep.subr.mxu0 0.0
    %1305 = vmatpush1.msra.mxu0 0.0
    %1306 = vmatprep.subr.mxu0 0.0
    %1307 = vmatpush1.msra.mxu0 0.0
    %1308 = vmatprep.subr.mxu0 0.0
    %1309 = vmatpush1.msra.mxu0 0.0
    %1310 = vmatprep.subr.mxu0 0.0
    %1311 = vmatpush1.msra.mxu0 0.0
    %1312 = vmatprep.subr.mxu0 0.0
    %1313 = vmatpush1.msra.mxu0 0.0
    %1314 = vmatprep.subr.mxu0 0.0
    %1315 = vmatpush1.msra.mxu0 0.0
    %1316 = vmatprep.subr.mxu0 0.0
    %1317 = vmatpush1.msra.mxu0 0.0
    %1318 = vmatprep.subr.mxu0 0.0
    %1319 = vmatpush1.msra.mxu0 0.0
    %1320 = vmatprep.subr.mxu0 0.0
    %1321 = vmatpush1.msra.mxu0 0.0
    %1322 = vmatprep.subr.mxu0 0.0
    %1323 = vmatpush1.msra.mxu0 0.0
    %1324 = vmatprep.subr.mxu0 0.0
    %1325 = vmatpush1.msra.mxu0 0.0
    %1326 = vmatprep.subr.mxu0 0.0
    %1327 = vmatpush1.msra.mxu0 0.0
    %1328 = vmatprep.subr.mxu0 0.0
    %1329 = vmatpush1.msra.mxu0 0.0
    %1330 = vmatprep.subr.mxu0 0.0
    %1331 = vmatpush1.msra.mxu0 0.0
    %1332 = vmatprep.subr.mxu0 0.0
    %1333 = vmatpush1.msra.mxu0 0.0
    %1334 = vmatprep.subr.mxu0 0.0
    %1335 = vmatpush1.msra.mxu0 0.0
    %1336 = vmatprep.subr.mxu0 0.0
    %1337 = vmatpush1.msra.mxu0 0.0
    %1338 = vmatprep.subr.mxu0 0.0
    %1339 = vmatpush1.msra.mxu0 0.0
    %1340 = vmatprep.subr.mxu0 0.0
    %1341 = vmatpush1.msra.mxu0 0.0
    %1342 = vmatprep.subr.mxu0 0.0
    %1343 = vmatpush1.msra.mxu0 0.0
    %1344 = vmatprep.subr.mxu0 0.0
    %1345 = vmatpush1.msra.mxu0 0.0
    %1346 = vmatprep.subr.mxu0 0.0
    %1347 = vmatpush1.msra.mxu0 0.0
    %1348 = vmatprep.subr.mxu0 0.0
    %1349 = vmatpush1.msra.mxu0 0.0
    %1350 = vmatprep.subr.mxu0 0.0
    %1351 = vmatpush1.msra.mxu0 0.0
    %1352 = vmatprep.subr.mxu0 0.0
    %1353 = vmatpush1.msra.mxu0 0.0
    %1354 = vmatprep.subr.mxu0 0.0
    %1355 = vmatpush1.msra.mxu0 0.0
    %1356 = vmatprep.subr.mxu0 0.0
    %1357 = vmatpush1.msra.mxu0 0.0
    %1358 = vmatprep.subr.mxu0 0.0
    %1359 = vmatpush1.msra.mxu0 0.0
    %1360 = vmatprep.mubr.f32.mxu0 0.0
    %v1361 = vand.u32 %v991, 4294901760
    %1362 = vmatmul.mubr.f32.gmra.mrb[0].mxu0 %v1361
    %v1363 = vpop.f32.mrb[0].mxu0
    %v1364 = vadd.f32 %v1290, %v1363
    %v1365 = vpop.f32.mrb[0].mxu0
    %1366 = vdwg.mxu0
    %1367 = vmatprep.subr.mxu0 0.0
    %v1368 = vand.u32 %v60, 4294901760
    %1369 = vmatpush1.msra.mxu0 %v1368
    %1370 = vmatprep.subr.mxu0 0.0
    %1371 = vmatpush1.msra.mxu0 0.0
    %1372 = vmatprep.subr.mxu0 0.0
    %1373 = vmatpush1.msra.mxu0 0.0
    %1374 = vmatprep.subr.mxu0 0.0
    %1375 = vmatpush1.msra.mxu0 0.0
    %1376 = vmatprep.subr.mxu0 0.0
    %1377 = vmatpush1.msra.mxu0 0.0
    %1378 = vmatprep.subr.mxu0 0.0
    %1379 = vmatpush1.msra.mxu0 0.0
    %1380 = vmatprep.subr.mxu0 0.0
    %1381 = vmatpush1.msra.mxu0 0.0
    %1382 = vmatprep.subr.mxu0 0.0
    %1383 = vmatpush1.msra.mxu0 0.0
    %1384 = vmatprep.subr.mxu0 0.0
    %1385 = vmatpush1.msra.mxu0 0.0
    %1386 = vmatprep.subr.mxu0 0.0
    %1387 = vmatpush1.msra.mxu0 0.0
    %1388 = vmatprep.subr.mxu0 0.0
    %1389 = vmatpush1.msra.mxu0 0.0
    %1390 = vmatprep.subr.mxu0 0.0
    %1391 = vmatpush1.msra.mxu0 0.0
    %1392 = vmatprep.subr.mxu0 0.0
    %1393 = vmatpush1.msra.mxu0 0.0
    %1394 = vmatprep.subr.mxu0 0.0
    %1395 = vmatpush1.msra.mxu0 0.0
    %1396 = vmatprep.subr.mxu0 0.0
    %1397 = vmatpush1.msra.mxu0 0.0
    %1398 = vmatprep.subr.mxu0 0.0
    %1399 = vmatpush1.msra.mxu0 0.0
    %1400 = vmatprep.subr.mxu0 0.0
    %1401 = vmatpush1.msra.mxu0 0.0
    %1402 = vmatprep.subr.mxu0 0.0
    %1403 = vmatpush1.msra.mxu0 0.0
    %1404 = vmatprep.subr.mxu0 0.0
    %1405 = vmatpush1.msra.mxu0 0.0
    %1406 = vmatprep.subr.mxu0 0.0
    %1407 = vmatpush1.msra.mxu0 0.0
    %1408 = vmatprep.subr.mxu0 0.0
    %1409 = vmatpush1.msra.mxu0 0.0
    %1410 = vmatprep.subr.mxu0 0.0
    %1411 = vmatpush1.msra.mxu0 0.0
    %1412 = vmatprep.subr.mxu0 0.0
    %1413 = vmatpush1.msra.mxu0 0.0
    %1414 = vmatprep.subr.mxu0 0.0
    %1415 = vmatpush1.msra.mxu0 0.0
    %1416 = vmatprep.subr.mxu0 0.0
    %1417 = vmatpush1.msra.mxu0 0.0
    %1418 = vmatprep.subr.mxu0 0.0
    %1419 = vmatpush1.msra.mxu0 0.0
    %1420 = vmatprep.subr.mxu0 0.0
    %1421 = vmatpush1.msra.mxu0 0.0
    %1422 = vmatprep.subr.mxu0 0.0
    %1423 = vmatpush1.msra.mxu0 0.0
    %1424 = vmatprep.subr.mxu0 0.0
    %1425 = vmatpush1.msra.mxu0 0.0
    %1426 = vmatprep.subr.mxu0 0.0
    %1427 = vmatpush1.msra.mxu0 0.0
    %1428 = vmatprep.subr.mxu0 0.0
    %1429 = vmatpush1.msra.mxu0 0.0
    %1430 = vmatprep.subr.mxu0 0.0
    %1431 = vmatpush1.msra.mxu0 0.0
    %1432 = vmatprep.mubr.f32.mxu0 0.0
    %v1433 = vand.u32 %v991, 4294901760
    %1434 = vmatmul.mubr.f32.gmra.mrb[0].mxu0 %v1433
    %v1435 = vpop.f32.mrb[0].mxu0
    %v1436 = vadd.f32 %v1364, %v1435
    %v1437 = vpop.f32.mrb[0].mxu0
    %1438 = vdwg.mxu0
    %v1440 = vsel %vm67, %v989, 0
    %1442 = vmatprep.subr.mxu0 0.0
    %v1443 = vand.u32 %v61, 4294901760
    %1444 = vmatpush1.msra.mxu0 %v1443
    %1445 = vmatprep.subr.mxu0 0.0
    %1446 = vmatpush1.msra.mxu0 0.0
    %1447 = vmatprep.subr.mxu0 0.0
    %1448 = vmatpush1.msra.mxu0 0.0
    %1449 = vmatprep.subr.mxu0 0.0
    %1450 = vmatpush1.msra.mxu0 0.0
    %1451 = vmatprep.subr.mxu0 0.0
    %1452 = vmatpush1.msra.mxu0 0.0
    %1453 = vmatprep.subr.mxu0 0.0
    %1454 = vmatpush1.msra.mxu0 0.0
    %1455 = vmatprep.subr.mxu0 0.0
    %1456 = vmatpush1.msra.mxu0 0.0
    %1457 = vmatprep.subr.mxu0 0.0
    %1458 = vmatpush1.msra.mxu0 0.0
    %1459 = vmatprep.subr.mxu0 0.0
    %1460 = vmatpush1.msra.mxu0 0.0
    %1461 = vmatprep.subr.mxu0 0.0
    %1462 = vmatpush1.msra.mxu0 0.0
    %1463 = vmatprep.subr.mxu0 0.0
    %1464 = vmatpush1.msra.mxu0 0.0
    %1465 = vmatprep.subr.mxu0 0.0
    %1466 = vmatpush1.msra.mxu0 0.0
    %1467 = vmatprep.subr.mxu0 0.0
    %1468 = vmatpush1.msra.mxu0 0.0
    %1469 = vmatprep.subr.mxu0 0.0
    %1470 = vmatpush1.msra.mxu0 0.0
    %1471 = vmatprep.subr.mxu0 0.0
    %1472 = vmatpush1.msra.mxu0 0.0
    %1473 = vmatprep.subr.mxu0 0.0
    %1474 = vmatpush1.msra.mxu0 0.0
    %1475 = vmatprep.subr.mxu0 0.0
    %1476 = vmatpush1.msra.mxu0 0.0
    %1477 = vmatprep.subr.mxu0 0.0
    %1478 = vmatpush1.msra.mxu0 0.0
    %1479 = vmatprep.subr.mxu0 0.0
    %1480 = vmatpush1.msra.mxu0 0.0
    %1481 = vmatprep.subr.mxu0 0.0
    %1482 = vmatpush1.msra.mxu0 0.0
    %1483 = vmatprep.subr.mxu0 0.0
    %1484 = vmatpush1.msra.mxu0 0.0
    %1485 = vmatprep.subr.mxu0 0.0
    %1486 = vmatpush1.msra.mxu0 0.0
    %1487 = vmatprep.subr.mxu0 0.0
    %1488 = vmatpush1.msra.mxu0 0.0
    %1489 = vmatprep.subr.mxu0 0.0
    %1490 = vmatpush1.msra.mxu0 0.0
    %1491 = vmatprep.subr.mxu0 0.0
    %1492 = vmatpush1.msra.mxu0 0.0
    %1493 = vmatprep.subr.mxu0 0.0
    %1494 = vmatpush1.msra.mxu0 0.0
    %1495 = vmatprep.subr.mxu0 0.0
    %1496 = vmatpush1.msra.mxu0 0.0
    %1497 = vmatprep.subr.mxu0 0.0
    %1498 = vmatpush1.msra.mxu0 0.0
    %1499 = vmatprep.subr.mxu0 0.0
    %1500 = vmatpush1.msra.mxu0 0.0
    %1501 = vmatprep.subr.mxu0 0.0
    %1502 = vmatpush1.msra.mxu0 0.0
    %1503 = vmatprep.subr.mxu0 0.0
    %1504 = vmatpush1.msra.mxu0 0.0
    %1505 = vmatprep.subr.mxu0 0.0
    %1506 = vmatpush1.msra.mxu0 0.0
    %1507 = vmatprep.mubr.f32.mxu0 0.0
    %v1508 = vand.u32 %v1440, 4294901760
    %v1509 = vsub.f32 %v1440, %v1508
    %v1510 = vand.u32 %v1509, 4294901760
    %v1511 = vsub.f32 %v1509, %v1510
    %v1512 = vand.u32 %v1511, 4294901760
    %1513 = vmatmul.mubr.f32.gmra.mrb[0].mxu0 %v1512
    %v1514 = vpop.f32.mrb[0].mxu0
    %v1515 = vadd.f32 0.0, %v1514
    %v1516 = vpop.f32.mrb[0].mxu0
    %1517 = vdwg.mxu0
    %1518 = vmatprep.subr.mxu0 0.0
    %v1519 = vand.u32 %v61, 4294901760
    %v1520 = vsub.f32 %v61, %v1519
    %v1521 = vand.u32 %v1520, 4294901760
    %v1522 = vsub.f32 %v1520, %v1521
    %v1523 = vand.u32 %v1522, 4294901760
    %1524 = vmatpush1.msra.mxu0 %v1523
    %1525 = vmatprep.subr.mxu0 0.0
    %1526 = vmatpush1.msra.mxu0 0.0
    %1527 = vmatprep.subr.mxu0 0.0
    %1528 = vmatpush1.msra.mxu0 0.0
    %1529 = vmatprep.subr.mxu0 0.0
    %1530 = vmatpush1.msra.mxu0 0.0
    %1531 = vmatprep.subr.mxu0 0.0
    %1532 = vmatpush1.msra.mxu0 0.0
    %1533 = vmatprep.subr.mxu0 0.0
    %1534 = vmatpush1.msra.mxu0 0.0
    %1535 = vmatprep.subr.mxu0 0.0
    %1536 = vmatpush1.msra.mxu0 0.0
    %1537 = vmatprep.subr.mxu0 0.0
    %1538 = vmatpush1.msra.mxu0 0.0
    %1539 = vmatprep.subr.mxu0 0.0
    %1540 = vmatpush1.msra.mxu0 0.0
    %1541 = vmatprep.subr.mxu0 0.0
    %1542 = vmatpush1.msra.mxu0 0.0
    %1543 = vmatprep.subr.mxu0 0.0
    %1544 = vmatpush1.msra.mxu0 0.0
    %1545 = vmatprep.subr.mxu0 0.0
    %1546 = vmatpush1.msra.mxu0 0.0
    %1547 = vmatprep.subr.mxu0 0.0
    %1548 = vmatpush1.msra.mxu0 0.0
    %1549 = vmatprep.subr.mxu0 0.0
    %1550 = vmatpush1.msra.mxu0 0.0
    %1551 = vmatprep.subr.mxu0 0.0
    %1552 = vmatpush1.msra.mxu0 0.0
    %1553 = vmatprep.subr.mxu0 0.0
    %1554 = vmatpush1.msra.mxu0 0.0
    %1555 = vmatprep.subr.mxu0 0.0
    %1556 = vmatpush1.msra.mxu0 0.0
    %1557 = vmatprep.subr.mxu0 0.0
    %1558 = vmatpush1.msra.mxu0 0.0
    %1559 = vmatprep.subr.mxu0 0.0
    %1560 = vmatpush1.msra.mxu0 0.0
    %1561 = vmatprep.subr.mxu0 0.0
    %1562 = vmatpush1.msra.mxu0 0.0
    %1563 = vmatprep.subr.mxu0 0.0
    %1564 = vmatpush1.msra.mxu0 0.0
    %1565 = vmatprep.subr.mxu0 0.0
    %1566 = vmatpush1.msra.mxu0 0.0
    %1567 = vmatprep.subr.mxu0 0.0
    %1568 = vmatpush1.msra.mxu0 0.0
    %1569 = vmatprep.subr.mxu0 0.0
    %1570 = vmatpush1.msra.mxu0 0.0
    %1571 = vmatprep.subr.mxu0 0.0
    %1572 = vmatpush1.msra.mxu0 0.0
    %1573 = vmatprep.subr.mxu0 0.0
    %1574 = vmatpush1.msra.mxu0 0.0
    %1575 = vmatprep.subr.mxu0 0.0
    %1576 = vmatpush1.msra.mxu0 0.0
    %1577 = vmatprep.subr.mxu0 0.0
    %1578 = vmatpush1.msra.mxu0 0.0
    %1579 = vmatprep.subr.mxu0 0.0
    %1580 = vmatpush1.msra.mxu0 0.0
    %1581 = vmatprep.subr.mxu0 0.0
    %1582 = vmatpush1.msra.mxu0 0.0
    %1583 = vmatprep.subr.mxu0 0.0
    %1584 = vmatpush1.msra.mxu0 0.0
    %1585 = vmatprep.subr.mxu0 0.0
    %1586 = vmatpush1.msra.mxu0 0.0
    %1587 = vmatprep.mubr.f32.mxu0 0.0
    %v1588 = vand.u32 %v1440, 4294901760
    %1589 = vmatmul.mubr.f32.gmra.mrb[0].mxu0 %v1588
    %v1590 = vpop.f32.mrb[0].mxu0
    %v1591 = vadd.f32 %v1515, %v1590
    %v1592 = vpop.f32.mrb[0].mxu0
    %1593 = vdwg.mxu0
    %1594 = vmatprep.subr.mxu0 0.0
    %v1595 = vand.u32 %v61, 4294901760
    %v1596 = vsub.f32 %v61, %v1595
    %1597 = vmatpush1.msra.mxu0 %v1596
    %1598 = vmatprep.subr.mxu0 0.0
    %1599 = vmatpush1.msra.mxu0 0.0
    %1600 = vmatprep.subr.mxu0 0.0
    %1601 = vmatpush1.msra.mxu0 0.0
    %1602 = vmatprep.subr.mxu0 0.0
    %1603 = vmatpush1.msra.mxu0 0.0
    %1604 = vmatprep.subr.mxu0 0.0
    %1605 = vmatpush1.msra.mxu0 0.0
    %1606 = vmatprep.subr.mxu0 0.0
    %1607 = vmatpush1.msra.mxu0 0.0
    %1608 = vmatprep.subr.mxu0 0.0
    %1609 = vmatpush1.msra.mxu0 0.0
    %1610 = vmatprep.subr.mxu0 0.0
    %1611 = vmatpush1.msra.mxu0 0.0
    %1612 = vmatprep.subr.mxu0 0.0
    %1613 = vmatpush1.msra.mxu0 0.0
    %1614 = vmatprep.subr.mxu0 0.0
    %1615 = vmatpush1.msra.mxu0 0.0
    %1616 = vmatprep.subr.mxu0 0.0
    %1617 = vmatpush1.msra.mxu0 0.0
    %1618 = vmatprep.subr.mxu0 0.0
    %1619 = vmatpush1.msra.mxu0 0.0
    %1620 = vmatprep.subr.mxu0 0.0
    %1621 = vmatpush1.msra.mxu0 0.0
    %1622 = vmatprep.subr.mxu0 0.0
    %1623 = vmatpush1.msra.mxu0 0.0
    %1624 = vmatprep.subr.mxu0 0.0
    %1625 = vmatpush1.msra.mxu0 0.0
    %1626 = vmatprep.subr.mxu0 0.0
    %1627 = vmatpush1.msra.mxu0 0.0
    %1628 = vmatprep.subr.mxu0 0.0
    %1629 = vmatpush1.msra.mxu0 0.0
    %1630 = vmatprep.subr.mxu0 0.0
    %1631 = vmatpush1.msra.mxu0 0.0
    %1632 = vmatprep.subr.mxu0 0.0
    %1633 = vmatpush1.msra.mxu0 0.0
    %1634 = vmatprep.subr.mxu0 0.0
    %1635 = vmatpush1.msra.mxu0 0.0
    %1636 = vmatprep.subr.mxu0 0.0
    %1637 = vmatpush1.msra.mxu0 0.0
    %1638 = vmatprep.subr.mxu0 0.0
    %1639 = vmatpush1.msra.mxu0 0.0
    %1640 = vmatprep.subr.mxu0 0.0
    %1641 = vmatpush1.msra.mxu0 0.0
    %1642 = vmatprep.subr.mxu0 0.0
    %1643 = vmatpush1.msra.mxu0 0.0
    %1644 = vmatprep.subr.mxu0 0.0
    %1645 = vmatpush1.msra.mxu0 0.0
    %1646 = vmatprep.subr.mxu0 0.0
    %1647 = vmatpush1.msra.mxu0 0.0
    %1648 = vmatprep.subr.mxu0 0.0
    %1649 = vmatpush1.msra.mxu0 0.0
    %1650 = vmatprep.subr.mxu0 0.0
    %1651 = vmatpush1.msra.mxu0 0.0
    %1652 = vmatprep.subr.mxu0 0.0
    %1653 = vmatpush1.msra.mxu0 0.0
    %1654 = vmatprep.subr.mxu0 0.0
    %1655 = vmatpush1.msra.mxu0 0.0
    %1656 = vmatprep.subr.mxu0 0.0
    %1657 = vmatpush1.msra.mxu0 0.0
    %1658 = vmatprep.subr.mxu0 0.0
    %1659 = vmatpush1.msra.mxu0 0.0
    %1660 = vmatprep.mubr.f32.mxu0 0.0
    %v1661 = vand.u32 %v1440, 4294901760
    %v1662 = vsub.f32 %v1440, %v1661
    %1663 = vmatmul.mubr.f32.gmra.mrb[0].mxu0 %v1662
    %v1664 = vpop.f32.mrb[0].mxu0
    %v1665 = vadd.f32 %v1591, %v1664
    %v1666 = vpop.f32.mrb[0].mxu0
    %1667 = vdwg.mxu0
    %1668 = vmatprep.subr.mxu0 0.0
    %v1669 = vand.u32 %v61, 4294901760
    %1670 = vmatpush1.msra.mxu0 %v1669
    %1671 = vmatprep.subr.mxu0 0.0
    %1672 = vmatpush1.msra.mxu0 0.0
    %1673 = vmatprep.subr.mxu0 0.0
    %1674 = vmatpush1.msra.mxu0 0.0
    %1675 = vmatprep.subr.mxu0 0.0
    %1676 = vmatpush1.msra.mxu0 0.0
    %1677 = vmatprep.subr.mxu0 0.0
    %1678 = vmatpush1.msra.mxu0 0.0
    %1679 = vmatprep.subr.mxu0 0.0
    %1680 = vmatpush1.msra.mxu0 0.0
    %1681 = vmatprep.subr.mxu0 0.0
    %1682 = vmatpush1.msra.mxu0 0.0
    %1683 = vmatprep.subr.mxu0 0.0
    %1684 = vmatpush1.msra.mxu0 0.0
    %1685 = vmatprep.subr.mxu0 0.0
    %1686 = vmatpush1.msra.mxu0 0.0
    %1687 = vmatprep.subr.mxu0 0.0
    %1688 = vmatpush1.msra.mxu0 0.0
    %1689 = vmatprep.subr.mxu0 0.0
    %1690 = vmatpush1.msra.mxu0 0.0
    %1691 = vmatprep.subr.mxu0 0.0
    %1692 = vmatpush1.msra.mxu0 0.0
    %1693 = vmatprep.subr.mxu0 0.0
    %1694 = vmatpush1.msra.mxu0 0.0
    %1695 = vmatprep.subr.mxu0 0.0
    %1696 = vmatpush1.msra.mxu0 0.0
    %1697 = vmatprep.subr.mxu0 0.0
    %1698 = vmatpush1.msra.mxu0 0.0
    %1699 = vmatprep.subr.mxu0 0.0
    %1700 = vmatpush1.msra.mxu0 0.0
    %1701 = vmatprep.subr.mxu0 0.0
    %1702 = vmatpush1.msra.mxu0 0.0
    %1703 = vmatprep.subr.mxu0 0.0
    %1704 = vmatpush1.msra.mxu0 0.0
    %1705 = vmatprep.subr.mxu0 0.0
    %1706 = vmatpush1.msra.mxu0 0.0
    %1707 = vmatprep.subr.mxu0 0.0
    %1708 = vmatpush1.msra.mxu0 0.0
    %1709 = vmatprep.subr.mxu0 0.0
    %1710 = vmatpush1.msra.mxu0 0.0
    %1711 = vmatprep.subr.mxu0 0.0
    %1712 = vmatpush1.msra.mxu0 0.0
    %1713 = vmatprep.subr.mxu0 0.0
    %1714 = vmatpush1.msra.mxu0 0.0
    %1715 = vmatprep.subr.mxu0 0.0
    %1716 = vmatpush1.msra.mxu0 0.0
    %1717 = vmatprep.subr.mxu0 0.0
    %1718 = vmatpush1.msra.mxu0 0.0
    %1719 = vmatprep.subr.mxu0 0.0
    %1720 = vmatpush1.msra.mxu0 0.0
    %1721 = vmatprep.subr.mxu0 0.0
    %1722 = vmatpush1.msra.mxu0 0.0
    %1723 = vmatprep.subr.mxu0 0.0
    %1724 = vmatpush1.msra.mxu0 0.0
    %1725 = vmatprep.subr.mxu0 0.0
    %1726 = vmatpush1.msra.mxu0 0.0
    %1727 = vmatprep.subr.mxu0 0.0
    %1728 = vmatpush1.msra.mxu0 0.0
    %1729 = vmatprep.subr.mxu0 0.0
    %1730 = vmatpush1.msra.mxu0 0.0
    %1731 = vmatprep.subr.mxu0 0.0
    %1732 = vmatpush1.msra.mxu0 0.0
    %1733 = vmatprep.mubr.f32.mxu0 0.0
    %v1734 = vand.u32 %v1440, 4294901760
    %v1735 = vsub.f32 %v1440, %v1734
    %v1736 = vand.u32 %v1735, 4294901760
    %1737 = vmatmul.mubr.f32.gmra.mrb[0].mxu0 %v1736
    %v1738 = vpop.f32.mrb[0].mxu0
    %v1739 = vadd.f32 %v1665, %v1738
    %v1740 = vpop.f32.mrb[0].mxu0
    %1741 = vdwg.mxu0
    %1742 = vmatprep.subr.mxu0 0.0
    %v1743 = vand.u32 %v61, 4294901760
    %v1744 = vsub.f32 %v61, %v1743
    %v1745 = vand.u32 %v1744, 4294901760
    %1746 = vmatpush1.msra.mxu0 %v1745
    %1747 = vmatprep.subr.mxu0 0.0
    %1748 = vmatpush1.msra.mxu0 0.0
    %1749 = vmatprep.subr.mxu0 0.0
    %1750 = vmatpush1.msra.mxu0 0.0
    %1751 = vmatprep.subr.mxu0 0.0
    %1752 = vmatpush1.msra.mxu0 0.0
    %1753 = vmatprep.subr.mxu0 0.0
    %1754 = vmatpush1.msra.mxu0 0.0
    %1755 = vmatprep.subr.mxu0 0.0
    %1756 = vmatpush1.msra.mxu0 0.0
    %1757 = vmatprep.subr.mxu0 0.0
    %1758 = vmatpush1.msra.mxu0 0.0
    %1759 = vmatprep.subr.mxu0 0.0
    %1760 = vmatpush1.msra.mxu0 0.0
    %1761 = vmatprep.subr.mxu0 0.0
    %1762 = vmatpush1.msra.mxu0 0.0
    %1763 = vmatprep.subr.mxu0 0.0
    %1764 = vmatpush1.msra.mxu0 0.0
    %1765 = vmatprep.subr.mxu0 0.0
    %1766 = vmatpush1.msra.mxu0 0.0
    %1767 = vmatprep.subr.mxu0 0.0
    %1768 = vmatpush1.msra.mxu0 0.0
    %1769 = vmatprep.subr.mxu0 0.0
    %1770 = vmatpush1.msra.mxu0 0.0
    %1771 = vmatprep.subr.mxu0 0.0
    %1772 = vmatpush1.msra.mxu0 0.0
    %1773 = vmatprep.subr.mxu0 0.0
    %1774 = vmatpush1.msra.mxu0 0.0
    %1775 = vmatprep.subr.mxu0 0.0
    %1776 = vmatpush1.msra.mxu0 0.0
    %1777 = vmatprep.subr.mxu0 0.0
    %1778 = vmatpush1.msra.mxu0 0.0
    %1779 = vmatprep.subr.mxu0 0.0
    %1780 = vmatpush1.msra.mxu0 0.0
    %1781 = vmatprep.subr.mxu0 0.0
    %1782 = vmatpush1.msra.mxu0 0.0
    %1783 = vmatprep.subr.mxu0 0.0
    %1784 = vmatpush1.msra.mxu0 0.0
    %1785 = vmatprep.subr.mxu0 0.0
    %1786 = vmatpush1.msra.mxu0 0.0
    %1787 = vmatprep.subr.mxu0 0.0
    %1788 = vmatpush1.msra.mxu0 0.0
    %1789 = vmatprep.subr.mxu0 0.0
    %1790 = vmatpush1.msra.mxu0 0.0
    %1791 = vmatprep.subr.mxu0 0.0
    %1792 = vmatpush1.msra.mxu0 0.0
    %1793 = vmatprep.subr.mxu0 0.0
    %1794 = vmatpush1.msra.mxu0 0.0
    %1795 = vmatprep.subr.mxu0 0.0
    %1796 = vmatpush1.msra.mxu0 0.0
    %1797 = vmatprep.subr.mxu0 0.0
    %1798 = vmatpush1.msra.mxu0 0.0
    %1799 = vmatprep.subr.mxu0 0.0
    %1800 = vmatpush1.msra.mxu0 0.0
    %1801 = vmatprep.subr.mxu0 0.0
    %1802 = vmatpush1.msra.mxu0 0.0
    %1803 = vmatprep.subr.mxu0 0.0
    %1804 = vmatpush1.msra.mxu0 0.0
    %1805 = vmatprep.subr.mxu0 0.0
    %1806 = vmatpush1.msra.mxu0 0.0
    %1807 = vmatprep.subr.mxu0 0.0
    %1808 = vmatpush1.msra.mxu0 0.0
    %1809 = vmatprep.mubr.f32.mxu0 0.0
    %v1810 = vand.u32 %v1440, 4294901760
    %1811 = vmatmul.mubr.f32.gmra.mrb[0].mxu0 %v1810
    %v1812 = vpop.f32.mrb[0].mxu0
    %v1813 = vadd.f32 %v1739, %v1812
    %v1814 = vpop.f32.mrb[0].mxu0
    %1815 = vdwg.mxu0
    %1816 = vmatprep.subr.mxu0 0.0
    %v1817 = vand.u32 %v61, 4294901760
    %1818 = vmatpush1.msra.mxu0 %v1817
    %1819 = vmatprep.subr.mxu0 0.0
    %1820 = vmatpush1.msra.mxu0 0.0
    %1821 = vmatprep.subr.mxu0 0.0
    %1822 = vmatpush1.msra.mxu0 0.0
    %1823 = vmatprep.subr.mxu0 0.0
    %1824 = vmatpush1.msra.mxu0 0.0
    %1825 = vmatprep.subr.mxu0 0.0
    %1826 = vmatpush1.msra.mxu0 0.0
    %1827 = vmatprep.subr.mxu0 0.0
    %1828 = vmatpush1.msra.mxu0 0.0
    %1829 = vmatprep.subr.mxu0 0.0
    %1830 = vmatpush1.msra.mxu0 0.0
    %1831 = vmatprep.subr.mxu0 0.0
    %1832 = vmatpush1.msra.mxu0 0.0
    %1833 = vmatprep.subr.mxu0 0.0
    %1834 = vmatpush1.msra.mxu0 0.0
    %1835 = vmatprep.subr.mxu0 0.0
    %1836 = vmatpush1.msra.mxu0 0.0
    %1837 = vmatprep.subr.mxu0 0.0
    %1838 = vmatpush1.msra.mxu0 0.0
    %1839 = vmatprep.subr.mxu0 0.0
    %1840 = vmatpush1.msra.mxu0 0.0
    %1841 = vmatprep.subr.mxu0 0.0
    %1842 = vmatpush1.msra.mxu0 0.0
    %1843 = vmatprep.subr.mxu0 0.0
    %1844 = vmatpush1.msra.mxu0 0.0
    %1845 = vmatprep.subr.mxu0 0.0
    %1846 = vmatpush1.msra.mxu0 0.0
    %1847 = vmatprep.subr.mxu0 0.0
    %1848 = vmatpush1.msra.mxu0 0.0
    %1849 = vmatprep.subr.mxu0 0.0
    %1850 = vmatpush1.msra.mxu0 0.0
    %1851 = vmatprep.subr.mxu0 0.0
    %1852 = vmatpush1.msra.mxu0 0.0
    %1853 = vmatprep.subr.mxu0 0.0
    %1854 = vmatpush1.msra.mxu0 0.0
    %1855 = vmatprep.subr.mxu0 0.0
    %1856 = vmatpush1.msra.mxu0 0.0
    %1857 = vmatprep.subr.mxu0 0.0
    %1858 = vmatpush1.msra.mxu0 0.0
    %1859 = vmatprep.subr.mxu0 0.0
    %1860 = vmatpush1.msra.mxu0 0.0
    %1861 = vmatprep.subr.mxu0 0.0
    %1862 = vmatpush1.msra.mxu0 0.0
    %1863 = vmatprep.subr.mxu0 0.0
    %1864 = vmatpush1.msra.mxu0 0.0
    %1865 = vmatprep.subr.mxu0 0.0
    %1866 = vmatpush1.msra.mxu0 0.0
    %1867 = vmatprep.subr.mxu0 0.0
    %1868 = vmatpush1.msra.mxu0 0.0
    %1869 = vmatprep.subr.mxu0 0.0
    %1870 = vmatpush1.msra.mxu0 0.0
    %1871 = vmatprep.subr.mxu0 0.0
    %1872 = vmatpush1.msra.mxu0 0.0
    %1873 = vmatprep.subr.mxu0 0.0
    %1874 = vmatpush1.msra.mxu0 0.0
    %1875 = vmatprep.subr.mxu0 0.0
    %1876 = vmatpush1.msra.mxu0 0.0
    %1877 = vmatprep.subr.mxu0 0.0
    %1878 = vmatpush1.msra.mxu0 0.0
    %1879 = vmatprep.subr.mxu0 0.0
    %1880 = vmatpush1.msra.mxu0 0.0
    %1881 = vmatprep.mubr.f32.mxu0 0.0
    %v1882 = vand.u32 %v1440, 4294901760
    %1883 = vmatmul.mubr.f32.gmra.mrb[0].mxu0 %v1882
    %v1884 = vpop.f32.mrb[0].mxu0
    %v1885 = vadd.f32 %v1813, %v1884
    %v1886 = vpop.f32.mrb[0].mxu0
    %1887 = vdwg.mxu0
    %1888 = vrot.lane.b32.xlu0 %v60, 120
    %v1889 = vpop.permute.xlu0 %1888
    %v1890 = vsel %vm67, %v1889, 0
    %1892 = vmatprep.subr.mxu0 0.0
    %v1893 = vand.u32 %v1890, 4294901760
    %1894 = vmatpush1.xpose.msra.mxu0 %v1893
    %1895 = vmatprep.subr.mxu0 0.0
    %1896 = vmatpush1.xpose.msra.mxu0 0.0
    %1897 = vmatprep.subr.mxu0 0.0
    %1898 = vmatpush1.xpose.msra.mxu0 0.0
    %1899 = vmatprep.subr.mxu0 0.0
    %1900 = vmatpush1.xpose.msra.mxu0 0.0
    %1901 = vmatprep.subr.mxu0 0.0
    %1902 = vmatpush1.xpose.msra.mxu0 0.0
    %1903 = vmatprep.subr.mxu0 0.0
    %1904 = vmatpush1.xpose.msra.mxu0 0.0
    %1905 = vmatprep.subr.mxu0 0.0
    %1906 = vmatpush1.xpose.msra.mxu0 0.0
    %1907 = vmatprep.subr.mxu0 0.0
    %1908 = vmatpush1.xpose.msra.mxu0 0.0
    %1909 = vmatprep.subr.mxu0 0.0
    %1910 = vmatpush1.xpose.msra.mxu0 0.0
    %1911 = vmatprep.subr.mxu0 0.0
    %1912 = vmatpush1.xpose.msra.mxu0 0.0
    %1913 = vmatprep.subr.mxu0 0.0
    %1914 = vmatpush1.xpose.msra.mxu0 0.0
    %1915 = vmatprep.subr.mxu0 0.0
    %1916 = vmatpush1.xpose.msra.mxu0 0.0
    %1917 = vmatprep.subr.mxu0 0.0
    %1918 = vmatpush1.xpose.msra.mxu0 0.0
    %1919 = vmatprep.subr.mxu0 0.0
    %1920 = vmatpush1.xpose.msra.mxu0 0.0
    %1921 = vmatprep.subr.mxu0 0.0
    %1922 = vmatpush1.xpose.msra.mxu0 0.0
    %1923 = vmatprep.subr.mxu0 0.0
    %1924 = vmatpush1.xpose.msra.mxu0 0.0
    %1925 = vmatprep.subr.mxu0 0.0
    %1926 = vmatpush1.xpose.msra.mxu0 0.0
    %1927 = vmatprep.subr.mxu0 0.0
    %1928 = vmatpush1.xpose.msra.mxu0 0.0
    %1929 = vmatprep.subr.mxu0 0.0
    %1930 = vmatpush1.xpose.msra.mxu0 0.0
    %1931 = vmatprep.subr.mxu0 0.0
    %1932 = vmatpush1.xpose.msra.mxu0 0.0
    %1933 = vmatprep.subr.mxu0 0.0
    %1934 = vmatpush1.xpose.msra.mxu0 0.0
    %1935 = vmatprep.subr.mxu0 0.0
    %1936 = vmatpush1.xpose.msra.mxu0 0.0
    %1937 = vmatprep.subr.mxu0 0.0
    %1938 = vmatpush1.xpose.msra.mxu0 0.0
    %1939 = vmatprep.subr.mxu0 0.0
    %1940 = vmatpush1.xpose.msra.mxu0 0.0
    %1941 = vmatprep.subr.mxu0 0.0
    %1942 = vmatpush1.xpose.msra.mxu0 0.0
    %1943 = vmatprep.subr.mxu0 0.0
    %1944 = vmatpush1.xpose.msra.mxu0 0.0
    %1945 = vmatprep.subr.mxu0 0.0
    %1946 = vmatpush1.xpose.msra.mxu0 0.0
    %1947 = vmatprep.subr.mxu0 0.0
    %1948 = vmatpush1.xpose.msra.mxu0 0.0
    %1949 = vmatprep.subr.mxu0 0.0
    %1950 = vmatpush1.xpose.msra.mxu0 0.0
    %1951 = vmatprep.subr.mxu0 0.0
    %1952 = vmatpush1.xpose.msra.mxu0 0.0
    %1953 = vmatprep.subr.mxu0 0.0
    %1954 = vmatpush1.xpose.msra.mxu0 0.0
    %1955 = vmatprep.subr.mxu0 0.0
    %1956 = vmatpush1.xpose.msra.mxu0 0.0
    %1957 = vmatprep.mubr.f32.mxu0 0.0
    %v1958 = vand.u32 %v1890, 4294901760
    %v1959 = vsub.f32 %v1890, %v1958
    %v1960 = vand.u32 %v1959, 4294901760
    %v1961 = vsub.f32 %v1959, %v1960
    %v1962 = vand.u32 %v1961, 4294901760
    %1963 = vmatmul.mubr.f32.gmra.mrb[0].mxu0 %v1962
    %v1964 = vpop.f32.mrb[0].mxu0
    %v1965 = vadd.f32 0.0, %v1964
    %v1966 = vpop.f32.mrb[0].mxu0
    %1967 = vdwg.mxu0
    %1968 = vmatprep.subr.mxu0 0.0
    %v1969 = vand.u32 %v1890, 4294901760
    %v1970 = vsub.f32 %v1890, %v1969
    %v1971 = vand.u32 %v1970, 4294901760
    %v1972 = vsub.f32 %v1970, %v1971
    %v1973 = vand.u32 %v1972, 4294901760
    %1974 = vmatpush1.xpose.msra.mxu0 %v1973
    %1975 = vmatprep.subr.mxu0 0.0
    %1976 = vmatpush1.xpose.msra.mxu0 0.0
    %1977 = vmatprep.subr.mxu0 0.0
    %1978 = vmatpush1.xpose.msra.mxu0 0.0
    %1979 = vmatprep.subr.mxu0 0.0
    %1980 = vmatpush1.xpose.msra.mxu0 0.0
    %1981 = vmatprep.subr.mxu0 0.0
    %1982 = vmatpush1.xpose.msra.mxu0 0.0
    %1983 = vmatprep.subr.mxu0 0.0
    %1984 = vmatpush1.xpose.msra.mxu0 0.0
    %1985 = vmatprep.subr.mxu0 0.0
    %1986 = vmatpush1.xpose.msra.mxu0 0.0
    %1987 = vmatprep.subr.mxu0 0.0
    %1988 = vmatpush1.xpose.msra.mxu0 0.0
    %1989 = vmatprep.subr.mxu0 0.0
    %1990 = vmatpush1.xpose.msra.mxu0 0.0
    %1991 = vmatprep.subr.mxu0 0.0
    %1992 = vmatpush1.xpose.msra.mxu0 0.0
    %1993 = vmatprep.subr.mxu0 0.0
    %1994 = vmatpush1.xpose.msra.mxu0 0.0
    %1995 = vmatprep.subr.mxu0 0.0
    %1996 = vmatpush1.xpose.msra.mxu0 0.0
    %1997 = vmatprep.subr.mxu0 0.0
    %1998 = vmatpush1.xpose.msra.mxu0 0.0
    %1999 = vmatprep.subr.mxu0 0.0
    %2000 = vmatpush1.xpose.msra.mxu0 0.0
    %2001 = vmatprep.subr.mxu0 0.0
    %2002 = vmatpush1.xpose.msra.mxu0 0.0
    %2003 = vmatprep.subr.mxu0 0.0
    %2004 = vmatpush1.xpose.msra.mxu0 0.0
    %2005 = vmatprep.subr.mxu0 0.0
    %2006 = vmatpush1.xpose.msra.mxu0 0.0
    %2007 = vmatprep.subr.mxu0 0.0
    %2008 = vmatpush1.xpose.msra.mxu0 0.0
    %2009 = vmatprep.subr.mxu0 0.0
    %2010 = vmatpush1.xpose.msra.mxu0 0.0
    %2011 = vmatprep.subr.mxu0 0.0
    %2012 = vmatpush1.xpose.msra.mxu0 0.0
    %2013 = vmatprep.subr.mxu0 0.0
    %2014 = vmatpush1.xpose.msra.mxu0 0.0
    %2015 = vmatprep.subr.mxu0 0.0
    %2016 = vmatpush1.xpose.msra.mxu0 0.0
    %2017 = vmatprep.subr.mxu0 0.0
    %2018 = vmatpush1.xpose.msra.mxu0 0.0
    %2019 = vmatprep.subr.mxu0 0.0
    %2020 = vmatpush1.xpose.msra.mxu0 0.0
    %2021 = vmatprep.subr.mxu0 0.0
    %2022 = vmatpush1.xpose.msra.mxu0 0.0
    %2023 = vmatprep.subr.mxu0 0.0
    %2024 = vmatpush1.xpose.msra.mxu0 0.0
    %2025 = vmatprep.subr.mxu0 0.0
    %2026 = vmatpush1.xpose.msra.mxu0 0.0
    %2027 = vmatprep.subr.mxu0 0.0
    %2028 = vmatpush1.xpose.msra.mxu0 0.0
    %2029 = vmatprep.subr.mxu0 0.0
    %2030 = vmatpush1.xpose.msra.mxu0 0.0
    %2031 = vmatprep.subr.mxu0 0.0
    %2032 = vmatpush1.xpose.msra.mxu0 0.0
    %2033 = vmatprep.subr.mxu0 0.0
    %2034 = vmatpush1.xpose.msra.mxu0 0.0
    %2035 = vmatprep.subr.mxu0 0.0
    %2036 = vmatpush1.xpose.msra.mxu0 0.0
    %2037 = vmatprep.mubr.f32.mxu0 0.0
    %v2038 = vand.u32 %v1890, 4294901760
    %2039 = vmatmul.mubr.f32.gmra.mrb[0].mxu0 %v2038
    %v2040 = vpop.f32.mrb[0].mxu0
    %v2041 = vadd.f32 %v1965, %v2040
    %v2042 = vpop.f32.mrb[0].mxu0
    %2043 = vdwg.mxu0
    %2044 = vmatprep.subr.mxu0 0.0
    %v2045 = vand.u32 %v1890, 4294901760
    %v2046 = vsub.f32 %v1890, %v2045
    %2047 = vmatpush1.xpose.msra.mxu0 %v2046
    %2048 = vmatprep.subr.mxu0 0.0
    %2049 = vmatpush1.xpose.msra.mxu0 0.0
    %2050 = vmatprep.subr.mxu0 0.0
    %2051 = vmatpush1.xpose.msra.mxu0 0.0
    %2052 = vmatprep.subr.mxu0 0.0
    %2053 = vmatpush1.xpose.msra.mxu0 0.0
    %2054 = vmatprep.subr.mxu0 0.0
    %2055 = vmatpush1.xpose.msra.mxu0 0.0
    %2056 = vmatprep.subr.mxu0 0.0
    %2057 = vmatpush1.xpose.msra.mxu0 0.0
    %2058 = vmatprep.subr.mxu0 0.0
    %2059 = vmatpush1.xpose.msra.mxu0 0.0
    %2060 = vmatprep.subr.mxu0 0.0
    %2061 = vmatpush1.xpose.msra.mxu0 0.0
    %2062 = vmatprep.subr.mxu0 0.0
    %2063 = vmatpush1.xpose.msra.mxu0 0.0
    %2064 = vmatprep.subr.mxu0 0.0
    %2065 = vmatpush1.xpose.msra.mxu0 0.0
    %2066 = vmatprep.subr.mxu0 0.0
    %2067 = vmatpush1.xpose.msra.mxu0 0.0
    %2068 = vmatprep.subr.mxu0 0.0
    %2069 = vmatpush1.xpose.msra.mxu0 0.0
    %2070 = vmatprep.subr.mxu0 0.0
    %2071 = vmatpush1.xpose.msra.mxu0 0.0
    %2072 = vmatprep.subr.mxu0 0.0
    %2073 = vmatpush1.xpose.msra.mxu0 0.0
    %2074 = vmatprep.subr.mxu0 0.0
    %2075 = vmatpush1.xpose.msra.mxu0 0.0
    %2076 = vmatprep.subr.mxu0 0.0
    %2077 = vmatpush1.xpose.msra.mxu0 0.0
    %2078 = vmatprep.subr.mxu0 0.0
    %2079 = vmatpush1.xpose.msra.mxu0 0.0
    %2080 = vmatprep.subr.mxu0 0.0
    %2081 = vmatpush1.xpose.msra.mxu0 0.0
    %2082 = vmatprep.subr.mxu0 0.0
    %2083 = vmatpush1.xpose.msra.mxu0 0.0
    %2084 = vmatprep.subr.mxu0 0.0
    %2085 = vmatpush1.xpose.msra.mxu0 0.0
    %2086 = vmatprep.subr.mxu0 0.0
    %2087 = vmatpush1.xpose.msra.mxu0 0.0
    %2088 = vmatprep.subr.mxu0 0.0
    %2089 = vmatpush1.xpose.msra.mxu0 0.0
    %2090 = vmatprep.subr.mxu0 0.0
    %2091 = vmatpush1.xpose.msra.mxu0 0.0
    %2092 = vmatprep.subr.mxu0 0.0
    %2093 = vmatpush1.xpose.msra.mxu0 0.0
    %2094 = vmatprep.subr.mxu0 0.0
    %2095 = vmatpush1.xpose.msra.mxu0 0.0
    %2096 = vmatprep.subr.mxu0 0.0
    %2097 = vmatpush1.xpose.msra.mxu0 0.0
    %2098 = vmatprep.subr.mxu0 0.0
    %2099 = vmatpush1.xpose.msra.mxu0 0.0
    %2100 = vmatprep.subr.mxu0 0.0
    %2101 = vmatpush1.xpose.msra.mxu0 0.0
    %2102 = vmatprep.subr.mxu0 0.0
    %2103 = vmatpush1.xpose.msra.mxu0 0.0
    %2104 = vmatprep.subr.mxu0 0.0
    %2105 = vmatpush1.xpose.msra.mxu0 0.0
    %2106 = vmatprep.subr.mxu0 0.0
    %2107 = vmatpush1.xpose.msra.mxu0 0.0
    %2108 = vmatprep.subr.mxu0 0.0
    %2109 = vmatpush1.xpose.msra.mxu0 0.0
    %2110 = vmatprep.mubr.f32.mxu0 0.0
    %v2111 = vand.u32 %v1890, 4294901760
    %v2112 = vsub.f32 %v1890, %v2111
    %2113 = vmatmul.mubr.f32.gmra.mrb[0].mxu0 %v2112
    %v2114 = vpop.f32.mrb[0].mxu0
    %v2115 = vadd.f32 %v2041, %v2114
    %v2116 = vpop.f32.mrb[0].mxu0
    %2117 = vdwg.mxu0
    %2118 = vmatprep.subr.mxu0 0.0
    %v2119 = vand.u32 %v1890, 4294901760
    %2120 = vmatpush1.xpose.msra.mxu0 %v2119
    %2121 = vmatprep.subr.mxu0 0.0
    %2122 = vmatpush1.xpose.msra.mxu0 0.0
    %2123 = vmatprep.subr.mxu0 0.0
    %2124 = vmatpush1.xpose.msra.mxu0 0.0
    %2125 = vmatprep.subr.mxu0 0.0
    %2126 = vmatpush1.xpose.msra.mxu0 0.0
    %2127 = vmatprep.subr.mxu0 0.0
    %2128 = vmatpush1.xpose.msra.mxu0 0.0
    %2129 = vmatprep.subr.mxu0 0.0
    %2130 = vmatpush1.xpose.msra.mxu0 0.0
    %2131 = vmatprep.subr.mxu0 0.0
    %2132 = vmatpush1.xpose.msra.mxu0 0.0
    %2133 = vmatprep.subr.mxu0 0.0
    %2134 = vmatpush1.xpose.msra.mxu0 0.0
    %2135 = vmatprep.subr.mxu0 0.0
    %2136 = vmatpush1.xpose.msra.mxu0 0.0
    %2137 = vmatprep.subr.mxu0 0.0
    %2138 = vmatpush1.xpose.msra.mxu0 0.0
    %2139 = vmatprep.subr.mxu0 0.0
    %2140 = vmatpush1.xpose.msra.mxu0 0.0
    %2141 = vmatprep.subr.mxu0 0.0
    %2142 = vmatpush1.xpose.msra.mxu0 0.0
    %2143 = vmatprep.subr.mxu0 0.0
    %2144 = vmatpush1.xpose.msra.mxu0 0.0
    %2145 = vmatprep.subr.mxu0 0.0
    %2146 = vmatpush1.xpose.msra.mxu0 0.0
    %2147 = vmatprep.subr.mxu0 0.0
    %2148 = vmatpush1.xpose.msra.mxu0 0.0
    %2149 = vmatprep.subr.mxu0 0.0
    %2150 = vmatpush1.xpose.msra.mxu0 0.0
    %2151 = vmatprep.subr.mxu0 0.0
    %2152 = vmatpush1.xpose.msra.mxu0 0.0
    %2153 = vmatprep.subr.mxu0 0.0
    %2154 = vmatpush1.xpose.msra.mxu0 0.0
    %2155 = vmatprep.subr.mxu0 0.0
    %2156 = vmatpush1.xpose.msra.mxu0 0.0
    %2157 = vmatprep.subr.mxu0 0.0
    %2158 = vmatpush1.xpose.msra.mxu0 0.0
    %2159 = vmatprep.subr.mxu0 0.0
    %2160 = vmatpush1.xpose.msra.mxu0 0.0
    %2161 = vmatprep.subr.mxu0 0.0
    %2162 = vmatpush1.xpose.msra.mxu0 0.0
    %2163 = vmatprep.subr.mxu0 0.0
    %2164 = vmatpush1.xpose.msra.mxu0 0.0
    %2165 = vmatprep.subr.mxu0 0.0
    %2166 = vmatpush1.xpose.msra.mxu0 0.0
    %2167 = vmatprep.subr.mxu0 0.0
    %2168 = vmatpush1.xpose.msra.mxu0 0.0
    %2169 = vmatprep.subr.mxu0 0.0
    %2170 = vmatpush1.xpose.msra.mxu0 0.0
    %2171 = vmatprep.subr.mxu0 0.0
    %2172 = vmatpush1.xpose.msra.mxu0 0.0
    %2173 = vmatprep.subr.mxu0 0.0
    %2174 = vmatpush1.xpose.msra.mxu0 0.0
    %2175 = vmatprep.subr.mxu0 0.0
    %2176 = vmatpush1.xpose.msra.mxu0 0.0
    %2177 = vmatprep.subr.mxu0 0.0
    %2178 = vmatpush1.xpose.msra.mxu0 0.0
    %2179 = vmatprep.subr.mxu0 0.0
    %2180 = vmatpush1.xpose.msra.mxu0 0.0
    %2181 = vmatprep.subr.mxu0 0.0
    %2182 = vmatpush1.xpose.msra.mxu0 0.0
    %2183 = vmatprep.mubr.f32.mxu0 0.0
    %v2184 = vand.u32 %v1890, 4294901760
    %v2185 = vsub.f32 %v1890, %v2184
    %v2186 = vand.u32 %v2185, 4294901760
    %2187 = vmatmul.mubr.f32.gmra.mrb[0].mxu0 %v2186
    %v2188 = vpop.f32.mrb[0].mxu0
    %v2189 = vadd.f32 %v2115, %v2188
    %v2190 = vpop.f32.mrb[0].mxu0
    %2191 = vdwg.mxu0
    %2192 = vmatprep.subr.mxu0 0.0
    %v2193 = vand.u32 %v1890, 4294901760
    %v2194 = vsub.f32 %v1890, %v2193
    %v2195 = vand.u32 %v2194, 4294901760
    %2196 = vmatpush1.xpose.msra.mxu0 %v2195
    %2197 = vmatprep.subr.mxu0 0.0
    %2198 = vmatpush1.xpose.msra.mxu0 0.0
    %2199 = vmatprep.subr.mxu0 0.0
    %2200 = vmatpush1.xpose.msra.mxu0 0.0
    %2201 = vmatprep.subr.mxu0 0.0
    %2202 = vmatpush1.xpose.msra.mxu0 0.0
    %2203 = vmatprep.subr.mxu0 0.0
    %2204 = vmatpush1.xpose.msra.mxu0 0.0
    %2205 = vmatprep.subr.mxu0 0.0
    %2206 = vmatpush1.xpose.msra.mxu0 0.0
    %2207 = vmatprep.subr.mxu0 0.0
    %2208 = vmatpush1.xpose.msra.mxu0 0.0
    %2209 = vmatprep.subr.mxu0 0.0
    %2210 = vmatpush1.xpose.msra.mxu0 0.0
    %2211 = vmatprep.subr.mxu0 0.0
    %2212 = vmatpush1.xpose.msra.mxu0 0.0
    %2213 = vmatprep.subr.mxu0 0.0
    %2214 = vmatpush1.xpose.msra.mxu0 0.0
    %2215 = vmatprep.subr.mxu0 0.0
    %2216 = vmatpush1.xpose.msra.mxu0 0.0
    %2217 = vmatprep.subr.mxu0 0.0
    %2218 = vmatpush1.xpose.msra.mxu0 0.0
    %2219 = vmatprep.subr.mxu0 0.0
    %2220 = vmatpush1.xpose.msra.mxu0 0.0
    %2221 = vmatprep.subr.mxu0 0.0
    %2222 = vmatpush1.xpose.msra.mxu0 0.0
    %2223 = vmatprep.subr.mxu0 0.0
    %2224 = vmatpush1.xpose.msra.mxu0 0.0
    %2225 = vmatprep.subr.mxu0 0.0
    %2226 = vmatpush1.xpose.msra.mxu0 0.0
    %2227 = vmatprep.subr.mxu0 0.0
    %2228 = vmatpush1.xpose.msra.mxu0 0.0
    %2229 = vmatprep.subr.mxu0 0.0
    %2230 = vmatpush1.xpose.msra.mxu0 0.0
    %2231 = vmatprep.subr.mxu0 0.0
    %2232 = vmatpush1.xpose.msra.mxu0 0.0
    %2233 = vmatprep.subr.mxu0 0.0
    %2234 = vmatpush1.xpose.msra.mxu0 0.0
    %2235 = vmatprep.subr.mxu0 0.0
    %2236 = vmatpush1.xpose.msra.mxu0 0.0
    %2237 = vmatprep.subr.mxu0 0.0
    %2238 = vmatpush1.xpose.msra.mxu0 0.0
    %2239 = vmatprep.subr.mxu0 0.0
    %2240 = vmatpush1.xpose.msra.mxu0 0.0
    %2241 = vmatprep.subr.mxu0 0.0
    %2242 = vmatpush1.xpose.msra.mxu0 0.0
    %2243 = vmatprep.subr.mxu0 0.0
    %2244 = vmatpush1.xpose.msra.mxu0 0.0
    %2245 = vmatprep.subr.mxu0 0.0
    %2246 = vmatpush1.xpose.msra.mxu0 0.0
    %2247 = vmatprep.subr.mxu0 0.0
    %2248 = vmatpush1.xpose.msra.mxu0 0.0
    %2249 = vmatprep.subr.mxu0 0.0
    %2250 = vmatpush1.xpose.msra.mxu0 0.0
    %2251 = vmatprep.subr.mxu0 0.0
    %2252 = vmatpush1.xpose.msra.mxu0 0.0
    %2253 = vmatprep.subr.mxu0 0.0
    %2254 = vmatpush1.xpose.msra.mxu0 0.0
    %2255 = vmatprep.subr.mxu0 0.0
    %2256 = vmatpush1.xpose.msra.mxu0 0.0
    %2257 = vmatprep.subr.mxu0 0.0
    %2258 = vmatpush1.xpose.msra.mxu0 0.0
    %2259 = vmatprep.mubr.f32.mxu0 0.0
    %v2260 = vand.u32 %v1890, 4294901760
    %2261 = vmatmul.mubr.f32.gmra.mrb[0].mxu0 %v2260
    %v2262 = vpop.f32.mrb[0].mxu0
    %v2263 = vadd.f32 %v2189, %v2262
    %v2264 = vpop.f32.mrb[0].mxu0
    %2265 = vdwg.mxu0
    %2266 = vmatprep.subr.mxu0 0.0
    %v2267 = vand.u32 %v1890, 4294901760
    %2268 = vmatpush1.xpose.msra.mxu0 %v2267
    %2269 = vmatprep.subr.mxu0 0.0
    %2270 = vmatpush1.xpose.msra.mxu0 0.0
    %2271 = vmatprep.subr.mxu0 0.0
    %2272 = vmatpush1.xpose.msra.mxu0 0.0
    %2273 = vmatprep.subr.mxu0 0.0
    %2274 = vmatpush1.xpose.msra.mxu0 0.0
    %2275 = vmatprep.subr.mxu0 0.0
    %2276 = vmatpush1.xpose.msra.mxu0 0.0
    %2277 = vmatprep.subr.mxu0 0.0
    %2278 = vmatpush1.xpose.msra.mxu0 0.0
    %2279 = vmatprep.subr.mxu0 0.0
    %2280 = vmatpush1.xpose.msra.mxu0 0.0
    %2281 = vmatprep.subr.mxu0 0.0
    %2282 = vmatpush1.xpose.msra.mxu0 0.0
    %2283 = vmatprep.subr.mxu0 0.0
    %2284 = vmatpush1.xpose.msra.mxu0 0.0
    %2285 = vmatprep.subr.mxu0 0.0
    %2286 = vmatpush1.xpose.msra.mxu0 0.0
    %2287 = vmatprep.subr.mxu0 0.0
    %2288 = vmatpush1.xpose.msra.mxu0 0.0
    %2289 = vmatprep.subr.mxu0 0.0
    %2290 = vmatpush1.xpose.msra.mxu0 0.0
    %2291 = vmatprep.subr.mxu0 0.0
    %2292 = vmatpush1.xpose.msra.mxu0 0.0
    %2293 = vmatprep.subr.mxu0 0.0
    %2294 = vmatpush1.xpose.msra.mxu0 0.0
    %2295 = vmatprep.subr.mxu0 0.0
    %2296 = vmatpush1.xpose.msra.mxu0 0.0
    %2297 = vmatprep.subr.mxu0 0.0
    %2298 = vmatpush1.xpose.msra.mxu0 0.0
    %2299 = vmatprep.subr.mxu0 0.0
    %2300 = vmatpush1.xpose.msra.mxu0 0.0
    %2301 = vmatprep.subr.mxu0 0.0
    %2302 = vmatpush1.xpose.msra.mxu0 0.0
    %2303 = vmatprep.subr.mxu0 0.0
    %2304 = vmatpush1.xpose.msra.mxu0 0.0
    %2305 = vmatprep.subr.mxu0 0.0
    %2306 = vmatpush1.xpose.msra.mxu0 0.0
    %2307 = vmatprep.subr.mxu0 0.0
    %2308 = vmatpush1.xpose.msra.mxu0 0.0
    %2309 = vmatprep.subr.mxu0 0.0
    %2310 = vmatpush1.xpose.msra.mxu0 0.0
    %2311 = vmatprep.subr.mxu0 0.0
    %2312 = vmatpush1.xpose.msra.mxu0 0.0
    %2313 = vmatprep.subr.mxu0 0.0
    %2314 = vmatpush1.xpose.msra.mxu0 0.0
    %2315 = vmatprep.subr.mxu0 0.0
    %2316 = vmatpush1.xpose.msra.mxu0 0.0
    %2317 = vmatprep.subr.mxu0 0.0
    %2318 = vmatpush1.xpose.msra.mxu0 0.0
    %2319 = vmatprep.subr.mxu0 0.0
    %2320 = vmatpush1.xpose.msra.mxu0 0.0
    %2321 = vmatprep.subr.mxu0 0.0
    %2322 = vmatpush1.xpose.msra.mxu0 0.0
    %2323 = vmatprep.subr.mxu0 0.0
    %2324 = vmatpush1.xpose.msra.mxu0 0.0
    %2325 = vmatprep.subr.mxu0 0.0
    %2326 = vmatpush1.xpose.msra.mxu0 0.0
    %2327 = vmatprep.subr.mxu0 0.0
    %2328 = vmatpush1.xpose.msra.mxu0 0.0
    %2329 = vmatprep.subr.mxu0 0.0
    %2330 = vmatpush1.xpose.msra.mxu0 0.0
    %2331 = vmatprep.mubr.f32.mxu0 0.0
    %v2332 = vand.u32 %v1890, 4294901760
    %2333 = vmatmul.mubr.f32.gmra.mrb[0].mxu0 %v2332
    %v2334 = vpop.f32.mrb[0].mxu0
    %v2335 = vadd.f32 %v2263, %v2334
    %v2336 = vpop.f32.mrb[0].mxu0
    %2337 = vdwg.mxu0
    %2338 = vrot.lane.b32.xlu0 %v61, 120
    %v2339 = vpop.permute.xlu0 %2338
    %v2340 = vsel %vm67, %v2339, 0
    %2342 = vmatprep.subr.mxu0 0.0
    %v2343 = vand.u32 %v2340, 4294901760
    %2344 = vmatpush1.xpose.msra.mxu0 %v2343
    %2345 = vmatprep.subr.mxu0 0.0
    %2346 = vmatpush1.xpose.msra.mxu0 0.0
    %2347 = vmatprep.subr.mxu0 0.0
    %2348 = vmatpush1.xpose.msra.mxu0 0.0
    %2349 = vmatprep.subr.mxu0 0.0
    %2350 = vmatpush1.xpose.msra.mxu0 0.0
    %2351 = vmatprep.subr.mxu0 0.0
    %2352 = vmatpush1.xpose.msra.mxu0 0.0
    %2353 = vmatprep.subr.mxu0 0.0
    %2354 = vmatpush1.xpose.msra.mxu0 0.0
    %2355 = vmatprep.subr.mxu0 0.0
    %2356 = vmatpush1.xpose.msra.mxu0 0.0
    %2357 = vmatprep.subr.mxu0 0.0
    %2358 = vmatpush1.xpose.msra.mxu0 0.0
    %2359 = vmatprep.subr.mxu0 0.0
    %2360 = vmatpush1.xpose.msra.mxu0 0.0
    %2361 = vmatprep.subr.mxu0 0.0
    %2362 = vmatpush1.xpose.msra.mxu0 0.0
    %2363 = vmatprep.subr.mxu0 0.0
    %2364 = vmatpush1.xpose.msra.mxu0 0.0
    %2365 = vmatprep.subr.mxu0 0.0
    %2366 = vmatpush1.xpose.msra.mxu0 0.0
    %2367 = vmatprep.subr.mxu0 0.0
    %2368 = vmatpush1.xpose.msra.mxu0 0.0
    %2369 = vmatprep.subr.mxu0 0.0
    %2370 = vmatpush1.xpose.msra.mxu0 0.0
    %2371 = vmatprep.subr.mxu0 0.0
    %2372 = vmatpush1.xpose.msra.mxu0 0.0
    %2373 = vmatprep.subr.mxu0 0.0
    %2374 = vmatpush1.xpose.msra.mxu0 0.0
    %2375 = vmatprep.subr.mxu0 0.0
    %2376 = vmatpush1.xpose.msra.mxu0 0.0
    %2377 = vmatprep.subr.mxu0 0.0
    %2378 = vmatpush1.xpose.msra.mxu0 0.0
    %2379 = vmatprep.subr.mxu0 0.0
    %2380 = vmatpush1.xpose.msra.mxu0 0.0
    %2381 = vmatprep.subr.mxu0 0.0
    %2382 = vmatpush1.xpose.msra.mxu0 0.0
    %2383 = vmatprep.subr.mxu0 0.0
    %2384 = vmatpush1.xpose.msra.mxu0 0.0
    %2385 = vmatprep.subr.mxu0 0.0
    %2386 = vmatpush1.xpose.msra.mxu0 0.0
    %2387 = vmatprep.subr.mxu0 0.0
    %2388 = vmatpush1.xpose.msra.mxu0 0.0
    %2389 = vmatprep.subr.mxu0 0.0
    %2390 = vmatpush1.xpose.msra.mxu0 0.0
    %2391 = vmatprep.subr.mxu0 0.0
    %2392 = vmatpush1.xpose.msra.mxu0 0.0
    %2393 = vmatprep.subr.mxu0 0.0
    %2394 = vmatpush1.xpose.msra.mxu0 0.0
    %2395 = vmatprep.subr.mxu0 0.0
    %2396 = vmatpush1.xpose.msra.mxu0 0.0
    %2397 = vmatprep.subr.mxu0 0.0
    %2398 = vmatpush1.xpose.msra.mxu0 0.0
    %2399 = vmatprep.subr.mxu0 0.0
    %2400 = vmatpush1.xpose.msra.mxu0 0.0
    %2401 = vmatprep.subr.mxu0 0.0
    %2402 = vmatpush1.xpose.msra.mxu0 0.0
    %2403 = vmatprep.subr.mxu0 0.0
    %2404 = vmatpush1.xpose.msra.mxu0 0.0
    %2405 = vmatprep.subr.mxu0 0.0
    %2406 = vmatpush1.xpose.msra.mxu0 0.0
    %2407 = vmatprep.mubr.f32.mxu0 0.0
    %v2408 = vand.u32 %v2340, 4294901760
    %v2409 = vsub.f32 %v2340, %v2408
    %v2410 = vand.u32 %v2409, 4294901760
    %v2411 = vsub.f32 %v2409, %v2410
    %v2412 = vand.u32 %v2411, 4294901760
    %2413 = vmatmul.mubr.f32.gmra.mrb[0].mxu0 %v2412
    %v2414 = vpop.f32.mrb[0].mxu0
    %v2415 = vadd.f32 0.0, %v2414
    %v2416 = vpop.f32.mrb[0].mxu0
    %2417 = vdwg.mxu0
    %2418 = vmatprep.subr.mxu0 0.0
    %v2419 = vand.u32 %v2340, 4294901760
    %v2420 = vsub.f32 %v2340, %v2419
    %v2421 = vand.u32 %v2420, 4294901760
    %v2422 = vsub.f32 %v2420, %v2421
    %v2423 = vand.u32 %v2422, 4294901760
    %2424 = vmatpush1.xpose.msra.mxu0 %v2423
    %2425 = vmatprep.subr.mxu0 0.0
    %2426 = vmatpush1.xpose.msra.mxu0 0.0
    %2427 = vmatprep.subr.mxu0 0.0
    %2428 = vmatpush1.xpose.msra.mxu0 0.0
    %2429 = vmatprep.subr.mxu0 0.0
    %2430 = vmatpush1.xpose.msra.mxu0 0.0
    %2431 = vmatprep.subr.mxu0 0.0
    %2432 = vmatpush1.xpose.msra.mxu0 0.0
    %2433 = vmatprep.subr.mxu0 0.0
    %2434 = vmatpush1.xpose.msra.mxu0 0.0
    %2435 = vmatprep.subr.mxu0 0.0
    %2436 = vmatpush1.xpose.msra.mxu0 0.0
    %2437 = vmatprep.subr.mxu0 0.0
    %2438 = vmatpush1.xpose.msra.mxu0 0.0
    %2439 = vmatprep.subr.mxu0 0.0
    %2440 = vmatpush1.xpose.msra.mxu0 0.0
    %2441 = vmatprep.subr.mxu0 0.0
    %2442 = vmatpush1.xpose.msra.mxu0 0.0
    %2443 = vmatprep.subr.mxu0 0.0
    %2444 = vmatpush1.xpose.msra.mxu0 0.0
    %2445 = vmatprep.subr.mxu0 0.0
    %2446 = vmatpush1.xpose.msra.mxu0 0.0
    %2447 = vmatprep.subr.mxu0 0.0
    %2448 = vmatpush1.xpose.msra.mxu0 0.0
    %2449 = vmatprep.subr.mxu0 0.0
    %2450 = vmatpush1.xpose.msra.mxu0 0.0
    %2451 = vmatprep.subr.mxu0 0.0
    %2452 = vmatpush1.xpose.msra.mxu0 0.0
    %2453 = vmatprep.subr.mxu0 0.0
    %2454 = vmatpush1.xpose.msra.mxu0 0.0
    %2455 = vmatprep.subr.mxu0 0.0
    %2456 = vmatpush1.xpose.msra.mxu0 0.0
    %2457 = vmatprep.subr.mxu0 0.0
    %2458 = vmatpush1.xpose.msra.mxu0 0.0
    %2459 = vmatprep.subr.mxu0 0.0
    %2460 = vmatpush1.xpose.msra.mxu0 0.0
    %2461 = vmatprep.subr.mxu0 0.0
    %2462 = vmatpush1.xpose.msra.mxu0 0.0
    %2463 = vmatprep.subr.mxu0 0.0
    %2464 = vmatpush1.xpose.msra.mxu0 0.0
    %2465 = vmatprep.subr.mxu0 0.0
    %2466 = vmatpush1.xpose.msra.mxu0 0.0
    %2467 = vmatprep.subr.mxu0 0.0
    %2468 = vmatpush1.xpose.msra.mxu0 0.0
    %2469 = vmatprep.subr.mxu0 0.0
    %2470 = vmatpush1.xpose.msra.mxu0 0.0
    %2471 = vmatprep.subr.mxu0 0.0
    %2472 = vmatpush1.xpose.msra.mxu0 0.0
    %2473 = vmatprep.subr.mxu0 0.0
    %2474 = vmatpush1.xpose.msra.mxu0 0.0
    %2475 = vmatprep.subr.mxu0 0.0
    %2476 = vmatpush1.xpose.msra.mxu0 0.0
    %2477 = vmatprep.subr.mxu0 0.0
    %2478 = vmatpush1.xpose.msra.mxu0 0.0
    %2479 = vmatprep.subr.mxu0 0.0
    %2480 = vmatpush1.xpose.msra.mxu0 0.0
    %2481 = vmatprep.subr.mxu0 0.0
    %2482 = vmatpush1.xpose.msra.mxu0 0.0
    %2483 = vmatprep.subr.mxu0 0.0
    %2484 = vmatpush1.xpose.msra.mxu0 0.0
    %2485 = vmatprep.subr.mxu0 0.0
    %2486 = vmatpush1.xpose.msra.mxu0 0.0
    %2487 = vmatprep.mubr.f32.mxu0 0.0
    %v2488 = vand.u32 %v2340, 4294901760
    %2489 = vmatmul.mubr.f32.gmra.mrb[0].mxu0 %v2488
    %v2490 = vpop.f32.mrb[0].mxu0
    %v2491 = vadd.f32 %v2415, %v2490
    %v2492 = vpop.f32.mrb[0].mxu0
    %2493 = vdwg.mxu0
    %2494 = vmatprep.subr.mxu0 0.0
    %v2495 = vand.u32 %v2340, 4294901760
    %v2496 = vsub.f32 %v2340, %v2495
    %2497 = vmatpush1.xpose.msra.mxu0 %v2496
    %2498 = vmatprep.subr.mxu0 0.0
    %2499 = vmatpush1.xpose.msra.mxu0 0.0
    %2500 = vmatprep.subr.mxu0 0.0
    %2501 = vmatpush1.xpose.msra.mxu0 0.0
    %2502 = vmatprep.subr.mxu0 0.0
    %2503 = vmatpush1.xpose.msra.mxu0 0.0
    %2504 = vmatprep.subr.mxu0 0.0
    %2505 = vmatpush1.xpose.msra.mxu0 0.0
    %2506 = vmatprep.subr.mxu0 0.0
    %2507 = vmatpush1.xpose.msra.mxu0 0.0
    %2508 = vmatprep.subr.mxu0 0.0
    %2509 = vmatpush1.xpose.msra.mxu0 0.0
    %2510 = vmatprep.subr.mxu0 0.0
    %2511 = vmatpush1.xpose.msra.mxu0 0.0
    %2512 = vmatprep.subr.mxu0 0.0
    %2513 = vmatpush1.xpose.msra.mxu0 0.0
    %2514 = vmatprep.subr.mxu0 0.0
    %2515 = vmatpush1.xpose.msra.mxu0 0.0
    %2516 = vmatprep.subr.mxu0 0.0
    %2517 = vmatpush1.xpose.msra.mxu0 0.0
    %2518 = vmatprep.subr.mxu0 0.0
    %2519 = vmatpush1.xpose.msra.mxu0 0.0
    %2520 = vmatprep.subr.mxu0 0.0
    %2521 = vmatpush1.xpose.msra.mxu0 0.0
    %2522 = vmatprep.subr.mxu0 0.0
    %2523 = vmatpush1.xpose.msra.mxu0 0.0
    %2524 = vmatprep.subr.mxu0 0.0
    %2525 = vmatpush1.xpose.msra.mxu0 0.0
    %2526 = vmatprep.subr.mxu0 0.0
    %2527 = vmatpush1.xpose.msra.mxu0 0.0
    %2528 = vmatprep.subr.mxu0 0.0
    %2529 = vmatpush1.xpose.msra.mxu0 0.0
    %2530 = vmatprep.subr.mxu0 0.0
    %2531 = vmatpush1.xpose.msra.mxu0 0.0
    %2532 = vmatprep.subr.mxu0 0.0
    %2533 = vmatpush1.xpose.msra.mxu0 0.0
    %2534 = vmatprep.subr.mxu0 0.0
    %2535 = vmatpush1.xpose.msra.mxu0 0.0
    %2536 = vmatprep.subr.mxu0 0.0
    %2537 = vmatpush1.xpose.msra.mxu0 0.0
    %2538 = vmatprep.subr.mxu0 0.0
    %2539 = vmatpush1.xpose.msra.mxu0 0.0
    %2540 = vmatprep.subr.mxu0 0.0
    %2541 = vmatpush1.xpose.msra.mxu0 0.0
    %2542 = vmatprep.subr.mxu0 0.0
    %2543 = vmatpush1.xpose.msra.mxu0 0.0
    %2544 = vmatprep.subr.mxu0 0.0
    %2545 = vmatpush1.xpose.msra.mxu0 0.0
    %2546 = vmatprep.subr.mxu0 0.0
    %2547 = vmatpush1.xpose.msra.mxu0 0.0
    %2548 = vmatprep.subr.mxu0 0.0
    %2549 = vmatpush1.xpose.msra.mxu0 0.0
    %2550 = vmatprep.subr.mxu0 0.0
    %2551 = vmatpush1.xpose.msra.mxu0 0.0
    %2552 = vmatprep.subr.mxu0 0.0
    %2553 = vmatpush1.xpose.msra.mxu0 0.0
    %2554 = vmatprep.subr.mxu0 0.0
    %2555 = vmatpush1.xpose.msra.mxu0 0.0
    %2556 = vmatprep.subr.mxu0 0.0
    %2557 = vmatpush1.xpose.msra.mxu0 0.0
    %2558 = vmatprep.subr.mxu0 0.0
    %2559 = vmatpush1.xpose.msra.mxu0 0.0
    %2560 = vmatprep.mubr.f32.mxu0 0.0
    %v2561 = vand.u32 %v2340, 4294901760
    %v2562 = vsub.f32 %v2340, %v2561
    %2563 = vmatmul.mubr.f32.gmra.mrb[0].mxu0 %v2562
    %v2564 = vpop.f32.mrb[0].mxu0
    %v2565 = vadd.f32 %v2491, %v2564
    %v2566 = vpop.f32.mrb[0].mxu0
    %2567 = vdwg.mxu0
    %2568 = vmatprep.subr.mxu0 0.0
    %v2569 = vand.u32 %v2340, 4294901760
    %2570 = vmatpush1.xpose.msra.mxu0 %v2569
    %2571 = vmatprep.subr.mxu0 0.0
    %2572 = vmatpush1.xpose.msra.mxu0 0.0
    %2573 = vmatprep.subr.mxu0 0.0
    %2574 = vmatpush1.xpose.msra.mxu0 0.0
    %2575 = vmatprep.subr.mxu0 0.0
    %2576 = vmatpush1.xpose.msra.mxu0 0.0
    %2577 = vmatprep.subr.mxu0 0.0
    %2578 = vmatpush1.xpose.msra.mxu0 0.0
    %2579 = vmatprep.subr.mxu0 0.0
    %2580 = vmatpush1.xpose.msra.mxu0 0.0
    %2581 = vmatprep.subr.mxu0 0.0
    %2582 = vmatpush1.xpose.msra.mxu0 0.0
    %2583 = vmatprep.subr.mxu0 0.0
    %2584 = vmatpush1.xpose.msra.mxu0 0.0
    %2585 = vmatprep.subr.mxu0 0.0
    %2586 = vmatpush1.xpose.msra.mxu0 0.0
    %2587 = vmatprep.subr.mxu0 0.0
    %2588 = vmatpush1.xpose.msra.mxu0 0.0
    %2589 = vmatprep.subr.mxu0 0.0
    %2590 = vmatpush1.xpose.msra.mxu0 0.0
    %2591 = vmatprep.subr.mxu0 0.0
    %2592 = vmatpush1.xpose.msra.mxu0 0.0
    %2593 = vmatprep.subr.mxu0 0.0
    %2594 = vmatpush1.xpose.msra.mxu0 0.0
    %2595 = vmatprep.subr.mxu0 0.0
    %2596 = vmatpush1.xpose.msra.mxu0 0.0
    %2597 = vmatprep.subr.mxu0 0.0
    %2598 = vmatpush1.xpose.msra.mxu0 0.0
    %2599 = vmatprep.subr.mxu0 0.0
    %2600 = vmatpush1.xpose.msra.mxu0 0.0
    %2601 = vmatprep.subr.mxu0 0.0
    %2602 = vmatpush1.xpose.msra.mxu0 0.0
    %2603 = vmatprep.subr.mxu0 0.0
    %2604 = vmatpush1.xpose.msra.mxu0 0.0
    %2605 = vmatprep.subr.mxu0 0.0
    %2606 = vmatpush1.xpose.msra.mxu0 0.0
    %2607 = vmatprep.subr.mxu0 0.0
    %2608 = vmatpush1.xpose.msra.mxu0 0.0
    %2609 = vmatprep.subr.mxu0 0.0
    %2610 = vmatpush1.xpose.msra.mxu0 0.0
    %2611 = vmatprep.subr.mxu0 0.0
    %2612 = vmatpush1.xpose.msra.mxu0 0.0
    %2613 = vmatprep.subr.mxu0 0.0
    %2614 = vmatpush1.xpose.msra.mxu0 0.0
    %2615 = vmatprep.subr.mxu0 0.0
    %2616 = vmatpush1.xpose.msra.mxu0 0.0
    %2617 = vmatprep.subr.mxu0 0.0
    %2618 = vmatpush1.xpose.msra.mxu0 0.0
    %2619 = vmatprep.subr.mxu0 0.0
    %2620 = vmatpush1.xpose.msra.mxu0 0.0
    %2621 = vmatprep.subr.mxu0 0.0
    %2622 = vmatpush1.xpose.msra.mxu0 0.0
    %2623 = vmatprep.subr.mxu0 0.0
    %2624 = vmatpush1.xpose.msra.mxu0 0.0
    %2625 = vmatprep.subr.mxu0 0.0
    %2626 = vmatpush1.xpose.msra.mxu0 0.0
    %2627 = vmatprep.subr.mxu0 0.0
    %2628 = vmatpush1.xpose.msra.mxu0 0.0
    %2629 = vmatprep.subr.mxu0 0.0
    %2630 = vmatpush1.xpose.msra.mxu0 0.0
    %2631 = vmatprep.subr.mxu0 0.0
    %2632 = vmatpush1.xpose.msra.mxu0 0.0
    %2633 = vmatprep.mubr.f32.mxu0 0.0
    %v2634 = vand.u32 %v2340, 4294901760
    %v2635 = vsub.f32 %v2340, %v2634
    %v2636 = vand.u32 %v2635, 4294901760
    %2637 = vmatmul.mubr.f32.gmra.mrb[0].mxu0 %v2636
    %v2638 = vpop.f32.mrb[0].mxu0
    %v2639 = vadd.f32 %v2565, %v2638
    %v2640 = vpop.f32.mrb[0].mxu0
    %2641 = vdwg.mxu0
    %2642 = vmatprep.subr.mxu0 0.0
    %v2643 = vand.u32 %v2340, 4294901760
    %v2644 = vsub.f32 %v2340, %v2643
    %v2645 = vand.u32 %v2644, 4294901760
    %2646 = vmatpush1.xpose.msra.mxu0 %v2645
    %2647 = vmatprep.subr.mxu0 0.0
    %2648 = vmatpush1.xpose.msra.mxu0 0.0
    %2649 = vmatprep.subr.mxu0 0.0
    %2650 = vmatpush1.xpose.msra.mxu0 0.0
    %2651 = vmatprep.subr.mxu0 0.0
    %2652 = vmatpush1.xpose.msra.mxu0 0.0
    %2653 = vmatprep.subr.mxu0 0.0
    %2654 = vmatpush1.xpose.msra.mxu0 0.0
    %2655 = vmatprep.subr.mxu0 0.0
    %2656 = vmatpush1.xpose.msra.mxu0 0.0
    %2657 = vmatprep.subr.mxu0 0.0
    %2658 = vmatpush1.xpose.msra.mxu0 0.0
    %2659 = vmatprep.subr.mxu0 0.0
    %2660 = vmatpush1.xpose.msra.mxu0 0.0
    %2661 = vmatprep.subr.mxu0 0.0
    %2662 = vmatpush1.xpose.msra.mxu0 0.0
    %2663 = vmatprep.subr.mxu0 0.0
    %2664 = vmatpush1.xpose.msra.mxu0 0.0
    %2665 = vmatprep.subr.mxu0 0.0
    %2666 = vmatpush1.xpose.msra.mxu0 0.0
    %2667 = vmatprep.subr.mxu0 0.0
    %2668 = vmatpush1.xpose.msra.mxu0 0.0
    %2669 = vmatprep.subr.mxu0 0.0
    %2670 = vmatpush1.xpose.msra.mxu0 0.0
    %2671 = vmatprep.subr.mxu0 0.0
    %2672 = vmatpush1.xpose.msra.mxu0 0.0
    %2673 = vmatprep.subr.mxu0 0.0
    %2674 = vmatpush1.xpose.msra.mxu0 0.0
    %2675 = vmatprep.subr.mxu0 0.0
    %2676 = vmatpush1.xpose.msra.mxu0 0.0
    %2677 = vmatprep.subr.mxu0 0.0
    %2678 = vmatpush1.xpose.msra.mxu0 0.0
    %2679 = vmatprep.subr.mxu0 0.0
    %2680 = vmatpush1.xpose.msra.mxu0 0.0
    %2681 = vmatprep.subr.mxu0 0.0
    %2682 = vmatpush1.xpose.msra.mxu0 0.0
    %2683 = vmatprep.subr.mxu0 0.0
    %2684 = vmatpush1.xpose.msra.mxu0 0.0
    %2685 = vmatprep.subr.mxu0 0.0
    %2686 = vmatpush1.xpose.msra.mxu0 0.0
    %2687 = vmatprep.subr.mxu0 0.0
    %2688 = vmatpush1.xpose.msra.mxu0 0.0
    %2689 = vmatprep.subr.mxu0 0.0
    %2690 = vmatpush1.xpose.msra.mxu0 0.0
    %2691 = vmatprep.subr.mxu0 0.0
    %2692 = vmatpush1.xpose.msra.mxu0 0.0
    %2693 = vmatprep.subr.mxu0 0.0
    %2694 = vmatpush1.xpose.msra.mxu0 0.0
    %2695 = vmatprep.subr.mxu0 0.0
    %2696 = vmatpush1.xpose.msra.mxu0 0.0
    %2697 = vmatprep.subr.mxu0 0.0
    %2698 = vmatpush1.xpose.msra.mxu0 0.0
    %2699 = vmatprep.subr.mxu0 0.0
    %2700 = vmatpush1.xpose.msra.mxu0 0.0
    %2701 = vmatprep.subr.mxu0 0.0
    %2702 = vmatpush1.xpose.msra.mxu0 0.0
    %2703 = vmatprep.subr.mxu0 0.0
    %2704 = vmatpush1.xpose.msra.mxu0 0.0
    %2705 = vmatprep.subr.mxu0 0.0
    %2706 = vmatpush1.xpose.msra.mxu0 0.0
    %2707 = vmatprep.subr.mxu0 0.0
    %2708 = vmatpush1.xpose.msra.mxu0 0.0
    %2709 = vmatprep.mubr.f32.mxu0 0.0
    %v2710 = vand.u32 %v2340, 4294901760
    %2711 = vmatmul.mubr.f32.gmra.mrb[0].mxu0 %v2710
    %v2712 = vpop.f32.mrb[0].mxu0
    %v2713 = vadd.f32 %v2639, %v2712
    %v2714 = vpop.f32.mrb[0].mxu0
    %2715 = vdwg.mxu0
    %2716 = vmatprep.subr.mxu0 0.0
    %v2717 = vand.u32 %v2340, 4294901760
    %2718 = vmatpush1.xpose.msra.mxu0 %v2717
    %2719 = vmatprep.subr.mxu0 0.0
    %2720 = vmatpush1.xpose.msra.mxu0 0.0
    %2721 = vmatprep.subr.mxu0 0.0
    %2722 = vmatpush1.xpose.msra.mxu0 0.0
    %2723 = vmatprep.subr.mxu0 0.0
    %2724 = vmatpush1.xpose.msra.mxu0 0.0
    %2725 = vmatprep.subr.mxu0 0.0
    %2726 = vmatpush1.xpose.msra.mxu0 0.0
    %2727 = vmatprep.subr.mxu0 0.0
    %2728 = vmatpush1.xpose.msra.mxu0 0.0
    %2729 = vmatprep.subr.mxu0 0.0
    %2730 = vmatpush1.xpose.msra.mxu0 0.0
    %2731 = vmatprep.subr.mxu0 0.0
    %2732 = vmatpush1.xpose.msra.mxu0 0.0
    %2733 = vmatprep.subr.mxu0 0.0
    %2734 = vmatpush1.xpose.msra.mxu0 0.0
    %2735 = vmatprep.subr.mxu0 0.0
    %2736 = vmatpush1.xpose.msra.mxu0 0.0
    %2737 = vmatprep.subr.mxu0 0.0
    %2738 = vmatpush1.xpose.msra.mxu0 0.0
    %2739 = vmatprep.subr.mxu0 0.0
    %2740 = vmatpush1.xpose.msra.mxu0 0.0
    %2741 = vmatprep.subr.mxu0 0.0
    %2742 = vmatpush1.xpose.msra.mxu0 0.0
    %2743 = vmatprep.subr.mxu0 0.0
    %2744 = vmatpush1.xpose.msra.mxu0 0.0
    %2745 = vmatprep.subr.mxu0 0.0
    %2746 = vmatpush1.xpose.msra.mxu0 0.0
    %2747 = vmatprep.subr.mxu0 0.0
    %2748 = vmatpush1.xpose.msra.mxu0 0.0
    %2749 = vmatprep.subr.mxu0 0.0
    %2750 = vmatpush1.xpose.msra.mxu0 0.0
    %2751 = vmatprep.subr.mxu0 0.0
    %2752 = vmatpush1.xpose.msra.mxu0 0.0
    %2753 = vmatprep.subr.mxu0 0.0
    %2754 = vmatpush1.xpose.msra.mxu0 0.0
    %2755 = vmatprep.subr.mxu0 0.0
    %2756 = vmatpush1.xpose.msra.mxu0 0.0
    %2757 = vmatprep.subr.mxu0 0.0
    %2758 = vmatpush1.xpose.msra.mxu0 0.0
    %2759 = vmatprep.subr.mxu0 0.0
    %2760 = vmatpush1.xpose.msra.mxu0 0.0
    %2761 = vmatprep.subr.mxu0 0.0
    %2762 = vmatpush1.xpose.msra.mxu0 0.0
    %2763 = vmatprep.subr.mxu0 0.0
    %2764 = vmatpush1.xpose.msra.mxu0 0.0
    %2765 = vmatprep.subr.mxu0 0.0
    %2766 = vmatpush1.xpose.msra.mxu0 0.0
    %2767 = vmatprep.subr.mxu0 0.0
    %2768 = vmatpush1.xpose.msra.mxu0 0.0
    %2769 = vmatprep.subr.mxu0 0.0
    %2770 = vmatpush1.xpose.msra.mxu0 0.0
    %2771 = vmatprep.subr.mxu0 0.0
    %2772 = vmatpush1.xpose.msra.mxu0 0.0
    %2773 = vmatprep.subr.mxu0 0.0
    %2774 = vmatpush1.xpose.msra.mxu0 0.0
    %2775 = vmatprep.subr.mxu0 0.0
    %2776 = vmatpush1.xpose.msra.mxu0 0.0
    %2777 = vmatprep.subr.mxu0 0.0
    %2778 = vmatpush1.xpose.msra.mxu0 0.0
    %2779 = vmatprep.subr.mxu0 0.0
    %2780 = vmatpush1.xpose.msra.mxu0 0.0
    %2781 = vmatprep.mubr.f32.mxu0 0.0
    %v2782 = vand.u32 %v2340, 4294901760
    %2783 = vmatmul.mubr.f32.gmra.mrb[0].mxu0 %v2782
    %v2784 = vpop.f32.mrb[0].mxu0
    %v2785 = vadd.f32 %v2713, %v2784
    %v2786 = vpop.f32.mrb[0].mxu0
    %2787 = vdwg.mxu0
    %v2788 = vmul.f32 %v2335, 0.17677669
    %v2789 = vmul.f32 %v2785, 0.17677669
    %v2790 = vsel %vm67, %v2788, -inf
    %2791 = vmax.xlane.f32.xlu0 %v2790
    %v2792 = vpop.xlane.xlu0 %2791
    %v2793 = vsel %vm67, %v2789, -inf
    %2794 = vmax.xlane.f32.xlu0 %v2793
    %v2795 = vpop.xlane.xlu0 %2794
    %v2796 = vsub.f32 %v2788, %v2792
    %v2797 = vsub.f32 %v2789, %v2795
    %v2798 = vmul.f32 %v2796, 1.442695
    %v2799 = vpow.pop %v2798
    %v2800 = vmul.f32 %v2797, 1.442695
    %v2801 = vpow.pop %v2800
    %v2802 = vsel %vm67, %v2799, 0.0
    %2803 = vadd.xlane.f32.xlu0 %v2802
    %v2804 = vpop.xlane.xlu0 %2803
    %v2805 = vsel %vm67, %v2801, 0.0
    %2806 = vadd.xlane.f32.xlu0 %v2805
    %v2807 = vpop.xlane.xlu0 %2806
    %v2808 = vrcp.pop %v2804
    %v2809 = vmul.f32 %v2799, %v2808
    %v2810 = vrcp.pop %v2807
    %v2811 = vmul.f32 %v2801, %v2810
    %v2814 = vsel %vm67, %v2809, 0
    %2816 = vmatprep.subr.mxu0 0.0
    %v2817 = vand.u32 %v1889, 4294901760
    %2818 = vmatpush1.msra.mxu0 %v2817
    %2819 = vmatprep.subr.mxu0 0.0
    %2820 = vmatpush1.msra.mxu0 0.0
    %2821 = vmatprep.subr.mxu0 0.0
    %2822 = vmatpush1.msra.mxu0 0.0
    %2823 = vmatprep.subr.mxu0 0.0
    %2824 = vmatpush1.msra.mxu0 0.0
    %2825 = vmatprep.subr.mxu0 0.0
    %2826 = vmatpush1.msra.mxu0 0.0
    %2827 = vmatprep.subr.mxu0 0.0
    %2828 = vmatpush1.msra.mxu0 0.0
    %2829 = vmatprep.subr.mxu0 0.0
    %2830 = vmatpush1.msra.mxu0 0.0
    %2831 = vmatprep.subr.mxu0 0.0
    %2832 = vmatpush1.msra.mxu0 0.0
    %2833 = vmatprep.subr.mxu0 0.0
    %2834 = vmatpush1.msra.mxu0 0.0
    %2835 = vmatprep.subr.mxu0 0.0
    %2836 = vmatpush1.msra.mxu0 0.0
    %2837 = vmatprep.subr.mxu0 0.0
    %2838 = vmatpush1.msra.mxu0 0.0
    %2839 = vmatprep.subr.mxu0 0.0
    %2840 = vmatpush1.msra.mxu0 0.0
    %2841 = vmatprep.subr.mxu0 0.0
    %2842 = vmatpush1.msra.mxu0 0.0
    %2843 = vmatprep.subr.mxu0 0.0
    %2844 = vmatpush1.msra.mxu0 0.0
    %2845 = vmatprep.subr.mxu0 0.0
    %2846 = vmatpush1.msra.mxu0 0.0
    %2847 = vmatprep.subr.mxu0 0.0
    %2848 = vmatpush1.msra.mxu0 0.0
    %2849 = vmatprep.subr.mxu0 0.0
    %2850 = vmatpush1.msra.mxu0 0.0
    %2851 = vmatprep.subr.mxu0 0.0
    %2852 = vmatpush1.msra.mxu0 0.0
    %2853 = vmatprep.subr.mxu0 0.0
    %2854 = vmatpush1.msra.mxu0 0.0
    %2855 = vmatprep.subr.mxu0 0.0
    %2856 = vmatpush1.msra.mxu0 0.0
    %2857 = vmatprep.subr.mxu0 0.0
    %2858 = vmatpush1.msra.mxu0 0.0
    %2859 = vmatprep.subr.mxu0 0.0
    %2860 = vmatpush1.msra.mxu0 0.0
    %2861 = vmatprep.subr.mxu0 0.0
    %2862 = vmatpush1.msra.mxu0 0.0
    %2863 = vmatprep.subr.mxu0 0.0
    %2864 = vmatpush1.msra.mxu0 0.0
    %2865 = vmatprep.subr.mxu0 0.0
    %2866 = vmatpush1.msra.mxu0 0.0
    %2867 = vmatprep.subr.mxu0 0.0
    %2868 = vmatpush1.msra.mxu0 0.0
    %2869 = vmatprep.subr.mxu0 0.0
    %2870 = vmatpush1.msra.mxu0 0.0
    %2871 = vmatprep.subr.mxu0 0.0
    %2872 = vmatpush1.msra.mxu0 0.0
    %2873 = vmatprep.subr.mxu0 0.0
    %2874 = vmatpush1.msra.mxu0 0.0
    %2875 = vmatprep.subr.mxu0 0.0
    %2876 = vmatpush1.msra.mxu0 0.0
    %2877 = vmatprep.subr.mxu0 0.0
    %2878 = vmatpush1.msra.mxu0 0.0
    %2879 = vmatprep.subr.mxu0 0.0
    %2880 = vmatpush1.msra.mxu0 0.0
    %2881 = vmatprep.mubr.f32.mxu0 0.0
    %v2882 = vand.u32 %v2814, 4294901760
    %v2883 = vsub.f32 %v2814, %v2882
    %v2884 = vand.u32 %v2883, 4294901760
    %v2885 = vsub.f32 %v2883, %v2884
    %v2886 = vand.u32 %v2885, 4294901760
    %2887 = vmatmul.mubr.f32.gmra.mrb[0].mxu0 %v2886
    %v2888 = vpop.f32.mrb[0].mxu0
    %v2889 = vadd.f32 0.0, %v2888
    %v2890 = vpop.f32.mrb[0].mxu0
    %2891 = vdwg.mxu0
    %2892 = vmatprep.subr.mxu0 0.0
    %v2893 = vand.u32 %v1889, 4294901760
    %v2894 = vsub.f32 %v1889, %v2893
    %v2895 = vand.u32 %v2894, 4294901760
    %v2896 = vsub.f32 %v2894, %v2895
    %v2897 = vand.u32 %v2896, 4294901760
    %2898 = vmatpush1.msra.mxu0 %v2897
    %2899 = vmatprep.subr.mxu0 0.0
    %2900 = vmatpush1.msra.mxu0 0.0
    %2901 = vmatprep.subr.mxu0 0.0
    %2902 = vmatpush1.msra.mxu0 0.0
    %2903 = vmatprep.subr.mxu0 0.0
    %2904 = vmatpush1.msra.mxu0 0.0
    %2905 = vmatprep.subr.mxu0 0.0
    %2906 = vmatpush1.msra.mxu0 0.0
    %2907 = vmatprep.subr.mxu0 0.0
    %2908 = vmatpush1.msra.mxu0 0.0
    %2909 = vmatprep.subr.mxu0 0.0
    %2910 = vmatpush1.msra.mxu0 0.0
    %2911 = vmatprep.subr.mxu0 0.0
    %2912 = vmatpush1.msra.mxu0 0.0
    %2913 = vmatprep.subr.mxu0 0.0
    %2914 = vmatpush1.msra.mxu0 0.0
    %2915 = vmatprep.subr.mxu0 0.0
    %2916 = vmatpush1.msra.mxu0 0.0
    %2917 = vmatprep.subr.mxu0 0.0
    %2918 = vmatpush1.msra.mxu0 0.0
    %2919 = vmatprep.subr.mxu0 0.0
    %2920 = vmatpush1.msra.mxu0 0.0
    %2921 = vmatprep.subr.mxu0 0.0
    %2922 = vmatpush1.msra.mxu0 0.0
    %2923 = vmatprep.subr.mxu0 0.0
    %2924 = vmatpush1.msra.mxu0 0.0
    %2925 = vmatprep.subr.mxu0 0.0
    %2926 = vmatpush1.msra.mxu0 0.0
    %2927 = vmatprep.subr.mxu0 0.0
    %2928 = vmatpush1.msra.mxu0 0.0
    %2929 = vmatprep.subr.mxu0 0.0
    %2930 = vmatpush1.msra.mxu0 0.0
    %2931 = vmatprep.subr.mxu0 0.0
    %2932 = vmatpush1.msra.mxu0 0.0
    %2933 = vmatprep.subr.mxu0 0.0
    %2934 = vmatpush1.msra.mxu0 0.0
    %2935 = vmatprep.subr.mxu0 0.0
    %2936 = vmatpush1.msra.mxu0 0.0
    %2937 = vmatprep.subr.mxu0 0.0
    %2938 = vmatpush1.msra.mxu0 0.0
    %2939 = vmatprep.subr.mxu0 0.0
    %2940 = vmatpush1.msra.mxu0 0.0
    %2941 = vmatprep.subr.mxu0 0.0
    %2942 = vmatpush1.msra.mxu0 0.0
    %2943 = vmatprep.subr.mxu0 0.0
    %2944 = vmatpush1.msra.mxu0 0.0
    %2945 = vmatprep.subr.mxu0 0.0
    %2946 = vmatpush1.msra.mxu0 0.0
    %2947 = vmatprep.subr.mxu0 0.0
    %2948 = vmatpush1.msra.mxu0 0.0
    %2949 = vmatprep.subr.mxu0 0.0
    %2950 = vmatpush1.msra.mxu0 0.0
    %2951 = vmatprep.subr.mxu0 0.0
    %2952 = vmatpush1.msra.mxu0 0.0
    %2953 = vmatprep.subr.mxu0 0.0
    %2954 = vmatpush1.msra.mxu0 0.0
    %2955 = vmatprep.subr.mxu0 0.0
    %2956 = vmatpush1.msra.mxu0 0.0
    %2957 = vmatprep.subr.mxu0 0.0
    %2958 = vmatpush1.msra.mxu0 0.0
    %2959 = vmatprep.subr.mxu0 0.0
    %2960 = vmatpush1.msra.mxu0 0.0
    %2961 = vmatprep.mubr.f32.mxu0 0.0
    %v2962 = vand.u32 %v2814, 4294901760
    %2963 = vmatmul.mubr.f32.gmra.mrb[0].mxu0 %v2962
    %v2964 = vpop.f32.mrb[0].mxu0
    %v2965 = vadd.f32 %v2889, %v2964
    %v2966 = vpop.f32.mrb[0].mxu0
    %2967 = vdwg.mxu0
    %2968 = vmatprep.subr.mxu0 0.0
    %v2969 = vand.u32 %v1889, 4294901760
    %v2970 = vsub.f32 %v1889, %v2969
    %2971 = vmatpush1.msra.mxu0 %v2970
    %2972 = vmatprep.subr.mxu0 0.0
    %2973 = vmatpush1.msra.mxu0 0.0
    %2974 = vmatprep.subr.mxu0 0.0
    %2975 = vmatpush1.msra.mxu0 0.0
    %2976 = vmatprep.subr.mxu0 0.0
    %2977 = vmatpush1.msra.mxu0 0.0
    %2978 = vmatprep.subr.mxu0 0.0
    %2979 = vmatpush1.msra.mxu0 0.0
    %2980 = vmatprep.subr.mxu0 0.0
    %2981 = vmatpush1.msra.mxu0 0.0
    %2982 = vmatprep.subr.mxu0 0.0
    %2983 = vmatpush1.msra.mxu0 0.0
    %2984 = vmatprep.subr.mxu0 0.0
    %2985 = vmatpush1.msra.mxu0 0.0
    %2986 = vmatprep.subr.mxu0 0.0
    %2987 = vmatpush1.msra.mxu0 0.0
    %2988 = vmatprep.subr.mxu0 0.0
    %2989 = vmatpush1.msra.mxu0 0.0
    %2990 = vmatprep.subr.mxu0 0.0
    %2991 = vmatpush1.msra.mxu0 0.0
    %2992 = vmatprep.subr.mxu0 0.0
    %2993 = vmatpush1.msra.mxu0 0.0
    %2994 = vmatprep.subr.mxu0 0.0
    %2995 = vmatpush1.msra.mxu0 0.0
    %2996 = vmatprep.subr.mxu0 0.0
    %2997 = vmatpush1.msra.mxu0 0.0
    %2998 = vmatprep.subr.mxu0 0.0
    %2999 = vmatpush1.msra.mxu0 0.0
    %3000 = vmatprep.subr.mxu0 0.0
    %3001 = vmatpush1.msra.mxu0 0.0
    %3002 = vmatprep.subr.mxu0 0.0
    %3003 = vmatpush1.msra.mxu0 0.0
    %3004 = vmatprep.subr.mxu0 0.0
    %3005 = vmatpush1.msra.mxu0 0.0
    %3006 = vmatprep.subr.mxu0 0.0
    %3007 = vmatpush1.msra.mxu0 0.0
    %3008 = vmatprep.subr.mxu0 0.0
    %3009 = vmatpush1.msra.mxu0 0.0
    %3010 = vmatprep.subr.mxu0 0.0
    %3011 = vmatpush1.msra.mxu0 0.0
    %3012 = vmatprep.subr.mxu0 0.0
    %3013 = vmatpush1.msra.mxu0 0.0
    %3014 = vmatprep.subr.mxu0 0.0
    %3015 = vmatpush1.msra.mxu0 0.0
    %3016 = vmatprep.subr.mxu0 0.0
    %3017 = vmatpush1.msra.mxu0 0.0
    %3018 = vmatprep.subr.mxu0 0.0
    %3019 = vmatpush1.msra.mxu0 0.0
    %3020 = vmatprep.subr.mxu0 0.0
    %3021 = vmatpush1.msra.mxu0 0.0
    %3022 = vmatprep.subr.mxu0 0.0
    %3023 = vmatpush1.msra.mxu0 0.0
    %3024 = vmatprep.subr.mxu0 0.0
    %3025 = vmatpush1.msra.mxu0 0.0
    %3026 = vmatprep.subr.mxu0 0.0
    %3027 = vmatpush1.msra.mxu0 0.0
    %3028 = vmatprep.subr.mxu0 0.0
    %3029 = vmatpush1.msra.mxu0 0.0
    %3030 = vmatprep.subr.mxu0 0.0
    %3031 = vmatpush1.msra.mxu0 0.0
    %3032 = vmatprep.subr.mxu0 0.0
    %3033 = vmatpush1.msra.mxu0 0.0
    %3034 = vmatprep.mubr.f32.mxu0 0.0
    %v3035 = vand.u32 %v2814, 4294901760
    %v3036 = vsub.f32 %v2814, %v3035
    %3037 = vmatmul.mubr.f32.gmra.mrb[0].mxu0 %v3036
    %v3038 = vpop.f32.mrb[0].mxu0
    %v3039 = vadd.f32 %v2965, %v3038
    %v3040 = vpop.f32.mrb[0].mxu0
    %3041 = vdwg.mxu0
    %3042 = vmatprep.subr.mxu0 0.0
    %v3043 = vand.u32 %v1889, 4294901760
    %3044 = vmatpush1.msra.mxu0 %v3043
    %3045 = vmatprep.subr.mxu0 0.0
    %3046 = vmatpush1.msra.mxu0 0.0
    %3047 = vmatprep.subr.mxu0 0.0
    %3048 = vmatpush1.msra.mxu0 0.0
    %3049 = vmatprep.subr.mxu0 0.0
    %3050 = vmatpush1.msra.mxu0 0.0
    %3051 = vmatprep.subr.mxu0 0.0
    %3052 = vmatpush1.msra.mxu0 0.0
    %3053 = vmatprep.subr.mxu0 0.0
    %3054 = vmatpush1.msra.mxu0 0.0
    %3055 = vmatprep.subr.mxu0 0.0
    %3056 = vmatpush1.msra.mxu0 0.0
    %3057 = vmatprep.subr.mxu0 0.0
    %3058 = vmatpush1.msra.mxu0 0.0
    %3059 = vmatprep.subr.mxu0 0.0
    %3060 = vmatpush1.msra.mxu0 0.0
    %3061 = vmatprep.subr.mxu0 0.0
    %3062 = vmatpush1.msra.mxu0 0.0
    %3063 = vmatprep.subr.mxu0 0.0
    %3064 = vmatpush1.msra.mxu0 0.0
    %3065 = vmatprep.subr.mxu0 0.0
    %3066 = vmatpush1.msra.mxu0 0.0
    %3067 = vmatprep.subr.mxu0 0.0
    %3068 = vmatpush1.msra.mxu0 0.0
    %3069 = vmatprep.subr.mxu0 0.0
    %3070 = vmatpush1.msra.mxu0 0.0
    %3071 = vmatprep.subr.mxu0 0.0
    %3072 = vmatpush1.msra.mxu0 0.0
    %3073 = vmatprep.subr.mxu0 0.0
    %3074 = vmatpush1.msra.mxu0 0.0
    %3075 = vmatprep.subr.mxu0 0.0
    %3076 = vmatpush1.msra.mxu0 0.0
    %3077 = vmatprep.subr.mxu0 0.0
    %3078 = vmatpush1.msra.mxu0 0.0
    %3079 = vmatprep.subr.mxu0 0.0
    %3080 = vmatpush1.msra.mxu0 0.0
    %3081 = vmatprep.subr.mxu0 0.0
    %3082 = vmatpush1.msra.mxu0 0.0
    %3083 = vmatprep.subr.mxu0 0.0
    %3084 = vmatpush1.msra.mxu0 0.0
    %3085 = vmatprep.subr.mxu0 0.0
    %3086 = vmatpush1.msra.mxu0 0.0
    %3087 = vmatprep.subr.mxu0 0.0
    %3088 = vmatpush1.msra.mxu0 0.0
    %3089 = vmatprep.subr.mxu0 0.0
    %3090 = vmatpush1.msra.mxu0 0.0
    %3091 = vmatprep.subr.mxu0 0.0
    %3092 = vmatpush1.msra.mxu0 0.0
    %3093 = vmatprep.subr.mxu0 0.0
    %3094 = vmatpush1.msra.mxu0 0.0
    %3095 = vmatprep.subr.mxu0 0.0
    %3096 = vmatpush1.msra.mxu0 0.0
    %3097 = vmatprep.subr.mxu0 0.0
    %3098 = vmatpush1.msra.mxu0 0.0
    %3099 = vmatprep.subr.mxu0 0.0
    %3100 = vmatpush1.msra.mxu0 0.0
    %3101 = vmatprep.subr.mxu0 0.0
    %3102 = vmatpush1.msra.mxu0 0.0
    %3103 = vmatprep.subr.mxu0 0.0
    %3104 = vmatpush1.msra.mxu0 0.0
    %3105 = vmatprep.subr.mxu0 0.0
    %3106 = vmatpush1.msra.mxu0 0.0
    %3107 = vmatprep.mubr.f32.mxu0 0.0
    %v3108 = vand.u32 %v2814, 4294901760
    %v3109 = vsub.f32 %v2814, %v3108
    %v3110 = vand.u32 %v3109, 4294901760
    %3111 = vmatmul.mubr.f32.gmra.mrb[0].mxu0 %v3110
    %v3112 = vpop.f32.mrb[0].mxu0
    %v3113 = vadd.f32 %v3039, %v3112
    %v3114 = vpop.f32.mrb[0].mxu0
    %3115 = vdwg.mxu0
    %3116 = vmatprep.subr.mxu0 0.0
    %v3117 = vand.u32 %v1889, 4294901760
    %v3118 = vsub.f32 %v1889, %v3117
    %v3119 = vand.u32 %v3118, 4294901760
    %3120 = vmatpush1.msra.mxu0 %v3119
    %3121 = vmatprep.subr.mxu0 0.0
    %3122 = vmatpush1.msra.mxu0 0.0
    %3123 = vmatprep.subr.mxu0 0.0
    %3124 = vmatpush1.msra.mxu0 0.0
    %3125 = vmatprep.subr.mxu0 0.0
    %3126 = vmatpush1.msra.mxu0 0.0
    %3127 = vmatprep.subr.mxu0 0.0
    %3128 = vmatpush1.msra.mxu0 0.0
    %3129 = vmatprep.subr.mxu0 0.0
    %3130 = vmatpush1.msra.mxu0 0.0
    %3131 = vmatprep.subr.mxu0 0.0
    %3132 = vmatpush1.msra.mxu0 0.0
    %3133 = vmatprep.subr.mxu0 0.0
    %3134 = vmatpush1.msra.mxu0 0.0
    %3135 = vmatprep.subr.mxu0 0.0
    %3136 = vmatpush1.msra.mxu0 0.0
    %3137 = vmatprep.subr.mxu0 0.0
    %3138 = vmatpush1.msra.mxu0 0.0
    %3139 = vmatprep.subr.mxu0 0.0
    %3140 = vmatpush1.msra.mxu0 0.0
    %3141 = vmatprep.subr.mxu0 0.0
    %3142 = vmatpush1.msra.mxu0 0.0
    %3143 = vmatprep.subr.mxu0 0.0
    %3144 = vmatpush1.msra.mxu0 0.0
    %3145 = vmatprep.subr.mxu0 0.0
    %3146 = vmatpush1.msra.mxu0 0.0
    %3147 = vmatprep.subr.mxu0 0.0
    %3148 = vmatpush1.msra.mxu0 0.0
    %3149 = vmatprep.subr.mxu0 0.0
    %3150 = vmatpush1.msra.mxu0 0.0
    %3151 = vmatprep.subr.mxu0 0.0
    %3152 = vmatpush1.msra.mxu0 0.0
    %3153 = vmatprep.subr.mxu0 0.0
    %3154 = vmatpush1.msra.mxu0 0.0
    %3155 = vmatprep.subr.mxu0 0.0
    %3156 = vmatpush1.msra.mxu0 0.0
    %3157 = vmatprep.subr.mxu0 0.0
    %3158 = vmatpush1.msra.mxu0 0.0
    %3159 = vmatprep.subr.mxu0 0.0
    %3160 = vmatpush1.msra.mxu0 0.0
    %3161 = vmatprep.subr.mxu0 0.0
    %3162 = vmatpush1.msra.mxu0 0.0
    %3163 = vmatprep.subr.mxu0 0.0
    %3164 = vmatpush1.msra.mxu0 0.0
    %3165 = vmatprep.subr.mxu0 0.0
    %3166 = vmatpush1.msra.mxu0 0.0
    %3167 = vmatprep.subr.mxu0 0.0
    %3168 = vmatpush1.msra.mxu0 0.0
    %3169 = vmatprep.subr.mxu0 0.0
    %3170 = vmatpush1.msra.mxu0 0.0
    %3171 = vmatprep.subr.mxu0 0.0
    %3172 = vmatpush1.msra.mxu0 0.0
    %3173 = vmatprep.subr.mxu0 0.0
    %3174 = vmatpush1.msra.mxu0 0.0
    %3175 = vmatprep.subr.mxu0 0.0
    %3176 = vmatpush1.msra.mxu0 0.0
    %3177 = vmatprep.subr.mxu0 0.0
    %3178 = vmatpush1.msra.mxu0 0.0
    %3179 = vmatprep.subr.mxu0 0.0
    %3180 = vmatpush1.msra.mxu0 0.0
    %3181 = vmatprep.subr.mxu0 0.0
    %3182 = vmatpush1.msra.mxu0 0.0
    %3183 = vmatprep.mubr.f32.mxu0 0.0
    %v3184 = vand.u32 %v2814, 4294901760
    %3185 = vmatmul.mubr.f32.gmra.mrb[0].mxu0 %v3184
    %v3186 = vpop.f32.mrb[0].mxu0
    %v3187 = vadd.f32 %v3113, %v3186
    %v3188 = vpop.f32.mrb[0].mxu0
    %3189 = vdwg.mxu0
    %3190 = vmatprep.subr.mxu0 0.0
    %v3191 = vand.u32 %v1889, 4294901760
    %3192 = vmatpush1.msra.mxu0 %v3191
    %3193 = vmatprep.subr.mxu0 0.0
    %3194 = vmatpush1.msra.mxu0 0.0
    %3195 = vmatprep.subr.mxu0 0.0
    %3196 = vmatpush1.msra.mxu0 0.0
    %3197 = vmatprep.subr.mxu0 0.0
    %3198 = vmatpush1.msra.mxu0 0.0
    %3199 = vmatprep.subr.mxu0 0.0
    %3200 = vmatpush1.msra.mxu0 0.0
    %3201 = vmatprep.subr.mxu0 0.0
    %3202 = vmatpush1.msra.mxu0 0.0
    %3203 = vmatprep.subr.mxu0 0.0
    %3204 = vmatpush1.msra.mxu0 0.0
    %3205 = vmatprep.subr.mxu0 0.0
    %3206 = vmatpush1.msra.mxu0 0.0
    %3207 = vmatprep.subr.mxu0 0.0
    %3208 = vmatpush1.msra.mxu0 0.0
    %3209 = vmatprep.subr.mxu0 0.0
    %3210 = vmatpush1.msra.mxu0 0.0
    %3211 = vmatprep.subr.mxu0 0.0
    %3212 = vmatpush1.msra.mxu0 0.0
    %3213 = vmatprep.subr.mxu0 0.0
    %3214 = vmatpush1.msra.mxu0 0.0
    %3215 = vmatprep.subr.mxu0 0.0
    %3216 = vmatpush1.msra.mxu0 0.0
    %3217 = vmatprep.subr.mxu0 0.0
    %3218 = vmatpush1.msra.mxu0 0.0
    %3219 = vmatprep.subr.mxu0 0.0
    %3220 = vmatpush1.msra.mxu0 0.0
    %3221 = vmatprep.subr.mxu0 0.0
    %3222 = vmatpush1.msra.mxu0 0.0
    %3223 = vmatprep.subr.mxu0 0.0
    %3224 = vmatpush1.msra.mxu0 0.0
    %3225 = vmatprep.subr.mxu0 0.0
    %3226 = vmatpush1.msra.mxu0 0.0
    %3227 = vmatprep.subr.mxu0 0.0
    %3228 = vmatpush1.msra.mxu0 0.0
    %3229 = vmatprep.subr.mxu0 0.0
    %3230 = vmatpush1.msra.mxu0 0.0
    %3231 = vmatprep.subr.mxu0 0.0
    %3232 = vmatpush1.msra.mxu0 0.0
    %3233 = vmatprep.subr.mxu0 0.0
    %3234 = vmatpush1.msra.mxu0 0.0
    %3235 = vmatprep.subr.mxu0 0.0
    %3236 = vmatpush1.msra.mxu0 0.0
    %3237 = vmatprep.subr.mxu0 0.0
    %3238 = vmatpush1.msra.mxu0 0.0
    %3239 = vmatprep.subr.mxu0 0.0
    %3240 = vmatpush1.msra.mxu0 0.0
    %3241 = vmatprep.subr.mxu0 0.0
    %3242 = vmatpush1.msra.mxu0 0.0
    %3243 = vmatprep.subr.mxu0 0.0
    %3244 = vmatpush1.msra.mxu0 0.0
    %3245 = vmatprep.subr.mxu0 0.0
    %3246 = vmatpush1.msra.mxu0 0.0
    %3247 = vmatprep.subr.mxu0 0.0
    %3248 = vmatpush1.msra.mxu0 0.0
    %3249 = vmatprep.subr.mxu0 0.0
    %3250 = vmatpush1.msra.mxu0 0.0
    %3251 = vmatprep.subr.mxu0 0.0
    %3252 = vmatpush1.msra.mxu0 0.0
    %3253 = vmatprep.subr.mxu0 0.0
    %3254 = vmatpush1.msra.mxu0 0.0
    %3255 = vmatprep.mubr.f32.mxu0 0.0
    %v3256 = vand.u32 %v2814, 4294901760
    %3257 = vmatmul.mubr.f32.gmra.mrb[0].mxu0 %v3256
    %v3258 = vpop.f32.mrb[0].mxu0
    %v3259 = vadd.f32 %v3187, %v3258
    %v3260 = vpop.f32.mrb[0].mxu0
    %3261 = vdwg.mxu0
    %v3264 = vsel %vm67, %v2811, 0
    %3266 = vmatprep.subr.mxu0 0.0
    %v3267 = vand.u32 %v2339, 4294901760
    %3268 = vmatpush1.msra.mxu0 %v3267
    %3269 = vmatprep.subr.mxu0 0.0
    %3270 = vmatpush1.msra.mxu0 0.0
    %3271 = vmatprep.subr.mxu0 0.0
    %3272 = vmatpush1.msra.mxu0 0.0
    %3273 = vmatprep.subr.mxu0 0.0
    %3274 = vmatpush1.msra.mxu0 0.0
    %3275 = vmatprep.subr.mxu0 0.0
    %3276 = vmatpush1.msra.mxu0 0.0
    %3277 = vmatprep.subr.mxu0 0.0
    %3278 = vmatpush1.msra.mxu0 0.0
    %3279 = vmatprep.subr.mxu0 0.0
    %3280 = vmatpush1.msra.mxu0 0.0
    %3281 = vmatprep.subr.mxu0 0.0
    %3282 = vmatpush1.msra.mxu0 0.0
    %3283 = vmatprep.subr.mxu0 0.0
    %3284 = vmatpush1.msra.mxu0 0.0
    %3285 = vmatprep.subr.mxu0 0.0
    %3286 = vmatpush1.msra.mxu0 0.0
    %3287 = vmatprep.subr.mxu0 0.0
    %3288 = vmatpush1.msra.mxu0 0.0
    %3289 = vmatprep.subr.mxu0 0.0
    %3290 = vmatpush1.msra.mxu0 0.0
    %3291 = vmatprep.subr.mxu0 0.0
    %3292 = vmatpush1.msra.mxu0 0.0
    %3293 = vmatprep.subr.mxu0 0.0
    %3294 = vmatpush1.msra.mxu0 0.0
    %3295 = vmatprep.subr.mxu0 0.0
    %3296 = vmatpush1.msra.mxu0 0.0
    %3297 = vmatprep.subr.mxu0 0.0
    %3298 = vmatpush1.msra.mxu0 0.0
    %3299 = vmatprep.subr.mxu0 0.0
    %3300 = vmatpush1.msra.mxu0 0.0
    %3301 = vmatprep.subr.mxu0 0.0
    %3302 = vmatpush1.msra.mxu0 0.0
    %3303 = vmatprep.subr.mxu0 0.0
    %3304 = vmatpush1.msra.mxu0 0.0
    %3305 = vmatprep.subr.mxu0 0.0
    %3306 = vmatpush1.msra.mxu0 0.0
    %3307 = vmatprep.subr.mxu0 0.0
    %3308 = vmatpush1.msra.mxu0 0.0
    %3309 = vmatprep.subr.mxu0 0.0
    %3310 = vmatpush1.msra.mxu0 0.0
    %3311 = vmatprep.subr.mxu0 0.0
    %3312 = vmatpush1.msra.mxu0 0.0
    %3313 = vmatprep.subr.mxu0 0.0
    %3314 = vmatpush1.msra.mxu0 0.0
    %3315 = vmatprep.subr.mxu0 0.0
    %3316 = vmatpush1.msra.mxu0 0.0
    %3317 = vmatprep.subr.mxu0 0.0
    %3318 = vmatpush1.msra.mxu0 0.0
    %3319 = vmatprep.subr.mxu0 0.0
    %3320 = vmatpush1.msra.mxu0 0.0
    %3321 = vmatprep.subr.mxu0 0.0
    %3322 = vmatpush1.msra.mxu0 0.0
    %3323 = vmatprep.subr.mxu0 0.0
    %3324 = vmatpush1.msra.mxu0 0.0
    %3325 = vmatprep.subr.mxu0 0.0
    %3326 = vmatpush1.msra.mxu0 0.0
    %3327 = vmatprep.subr.mxu0 0.0
    %3328 = vmatpush1.msra.mxu0 0.0
    %3329 = vmatprep.subr.mxu0 0.0
    %3330 = vmatpush1.msra.mxu0 0.0
    %3331 = vmatprep.mubr.f32.mxu0 0.0
    %v3332 = vand.u32 %v3264, 4294901760
    %v3333 = vsub.f32 %v3264, %v3332
    %v3334 = vand.u32 %v3333, 4294901760
    %v3335 = vsub.f32 %v3333, %v3334
    %v3336 = vand.u32 %v3335, 4294901760
    %3337 = vmatmul.mubr.f32.gmra.mrb[0].mxu0 %v3336
    %v3338 = vpop.f32.mrb[0].mxu0
    %v3339 = vadd.f32 0.0, %v3338
    %v3340 = vpop.f32.mrb[0].mxu0
    %3341 = vdwg.mxu0
    %3342 = vmatprep.subr.mxu0 0.0
    %v3343 = vand.u32 %v2339, 4294901760
    %v3344 = vsub.f32 %v2339, %v3343
    %v3345 = vand.u32 %v3344, 4294901760
    %v3346 = vsub.f32 %v3344, %v3345
    %v3347 = vand.u32 %v3346, 4294901760
    %3348 = vmatpush1.msra.mxu0 %v3347
    %3349 = vmatprep.subr.mxu0 0.0
    %3350 = vmatpush1.msra.mxu0 0.0
    %3351 = vmatprep.subr.mxu0 0.0
    %3352 = vmatpush1.msra.mxu0 0.0
    %3353 = vmatprep.subr.mxu0 0.0
    %3354 = vmatpush1.msra.mxu0 0.0
    %3355 = vmatprep.subr.mxu0 0.0
    %3356 = vmatpush1.msra.mxu0 0.0
    %3357 = vmatprep.subr.mxu0 0.0
    %3358 = vmatpush1.msra.mxu0 0.0
    %3359 = vmatprep.subr.mxu0 0.0
    %3360 = vmatpush1.msra.mxu0 0.0
    %3361 = vmatprep.subr.mxu0 0.0
    %3362 = vmatpush1.msra.mxu0 0.0
    %3363 = vmatprep.subr.mxu0 0.0
    %3364 = vmatpush1.msra.mxu0 0.0
    %3365 = vmatprep.subr.mxu0 0.0
    %3366 = vmatpush1.msra.mxu0 0.0
    %3367 = vmatprep.subr.mxu0 0.0
    %3368 = vmatpush1.msra.mxu0 0.0
    %3369 = vmatprep.subr.mxu0 0.0
    %3370 = vmatpush1.msra.mxu0 0.0
    %3371 = vmatprep.subr.mxu0 0.0
    %3372 = vmatpush1.msra.mxu0 0.0
    %3373 = vmatprep.subr.mxu0 0.0
    %3374 = vmatpush1.msra.mxu0 0.0
    %3375 = vmatprep.subr.mxu0 0.0
    %3376 = vmatpush1.msra.mxu0 0.0
    %3377 = vmatprep.subr.mxu0 0.0
    %3378 = vmatpush1.msra.mxu0 0.0
    %3379 = vmatprep.subr.mxu0 0.0
    %3380 = vmatpush1.msra.mxu0 0.0
    %3381 = vmatprep.subr.mxu0 0.0
    %3382 = vmatpush1.msra.mxu0 0.0
    %3383 = vmatprep.subr.mxu0 0.0
    %3384 = vmatpush1.msra.mxu0 0.0
    %3385 = vmatprep.subr.mxu0 0.0
    %3386 = vmatpush1.msra.mxu0 0.0
    %3387 = vmatprep.subr.mxu0 0.0
    %3388 = vmatpush1.msra.mxu0 0.0
    %3389 = vmatprep.subr.mxu0 0.0
    %3390 = vmatpush1.msra.mxu0 0.0
    %3391 = vmatprep.subr.mxu0 0.0
    %3392 = vmatpush1.msra.mxu0 0.0
    %3393 = vmatprep.subr.mxu0 0.0
    %3394 = vmatpush1.msra.mxu0 0.0
    %3395 = vmatprep.subr.mxu0 0.0
    %3396 = vmatpush1.msra.mxu0 0.0
    %3397 = vmatprep.subr.mxu0 0.0
    %3398 = vmatpush1.msra.mxu0 0.0
    %3399 = vmatprep.subr.mxu0 0.0
    %3400 = vmatpush1.msra.mxu0 0.0
    %3401 = vmatprep.subr.mxu0 0.0
    %3402 = vmatpush1.msra.mxu0 0.0
    %3403 = vmatprep.subr.mxu0 0.0
    %3404 = vmatpush1.msra.mxu0 0.0
    %3405 = vmatprep.subr.mxu0 0.0
    %3406 = vmatpush1.msra.mxu0 0.0
    %3407 = vmatprep.subr.mxu0 0.0
    %3408 = vmatpush1.msra.mxu0 0.0
    %3409 = vmatprep.subr.mxu0 0.0
    %3410 = vmatpush1.msra.mxu0 0.0
    %3411 = vmatprep.mubr.f32.mxu0 0.0
    %v3412 = vand.u32 %v3264, 4294901760
    %3413 = vmatmul.mubr.f32.gmra.mrb[0].mxu0 %v3412
    %v3414 = vpop.f32.mrb[0].mxu0
    %v3415 = vadd.f32 %v3339, %v3414
    %v3416 = vpop.f32.mrb[0].mxu0
    %3417 = vdwg.mxu0
    %3418 = vmatprep.subr.mxu0 0.0
    %v3419 = vand.u32 %v2339, 4294901760
    %v3420 = vsub.f32 %v2339, %v3419
    %3421 = vmatpush1.msra.mxu0 %v3420
    %3422 = vmatprep.subr.mxu0 0.0
    %3423 = vmatpush1.msra.mxu0 0.0
    %3424 = vmatprep.subr.mxu0 0.0
    %3425 = vmatpush1.msra.mxu0 0.0
    %3426 = vmatprep.subr.mxu0 0.0
    %3427 = vmatpush1.msra.mxu0 0.0
    %3428 = vmatprep.subr.mxu0 0.0
    %3429 = vmatpush1.msra.mxu0 0.0
    %3430 = vmatprep.subr.mxu0 0.0
    %3431 = vmatpush1.msra.mxu0 0.0
    %3432 = vmatprep.subr.mxu0 0.0
    %3433 = vmatpush1.msra.mxu0 0.0
    %3434 = vmatprep.subr.mxu0 0.0
    %3435 = vmatpush1.msra.mxu0 0.0
    %3436 = vmatprep.subr.mxu0 0.0
    %3437 = vmatpush1.msra.mxu0 0.0
    %3438 = vmatprep.subr.mxu0 0.0
    %3439 = vmatpush1.msra.mxu0 0.0
    %3440 = vmatprep.subr.mxu0 0.0
    %3441 = vmatpush1.msra.mxu0 0.0
    %3442 = vmatprep.subr.mxu0 0.0
    %3443 = vmatpush1.msra.mxu0 0.0
    %3444 = vmatprep.subr.mxu0 0.0
    %3445 = vmatpush1.msra.mxu0 0.0
    %3446 = vmatprep.subr.mxu0 0.0
    %3447 = vmatpush1.msra.mxu0 0.0
    %3448 = vmatprep.subr.mxu0 0.0
    %3449 = vmatpush1.msra.mxu0 0.0
    %3450 = vmatprep.subr.mxu0 0.0
    %3451 = vmatpush1.msra.mxu0 0.0
    %3452 = vmatprep.subr.mxu0 0.0
    %3453 = vmatpush1.msra.mxu0 0.0
    %3454 = vmatprep.subr.mxu0 0.0
    %3455 = vmatpush1.msra.mxu0 0.0
    %3456 = vmatprep.subr.mxu0 0.0
    %3457 = vmatpush1.msra.mxu0 0.0
    %3458 = vmatprep.subr.mxu0 0.0
    %3459 = vmatpush1.msra.mxu0 0.0
    %3460 = vmatprep.subr.mxu0 0.0
    %3461 = vmatpush1.msra.mxu0 0.0
    %3462 = vmatprep.subr.mxu0 0.0
    %3463 = vmatpush1.msra.mxu0 0.0
    %3464 = vmatprep.subr.mxu0 0.0
    %3465 = vmatpush1.msra.mxu0 0.0
    %3466 = vmatprep.subr.mxu0 0.0
    %3467 = vmatpush1.msra.mxu0 0.0
    %3468 = vmatprep.subr.mxu0 0.0
    %3469 = vmatpush1.msra.mxu0 0.0
    %3470 = vmatprep.subr.mxu0 0.0
    %3471 = vmatpush1.msra.mxu0 0.0
    %3472 = vmatprep.subr.mxu0 0.0
    %3473 = vmatpush1.msra.mxu0 0.0
    %3474 = vmatprep.subr.mxu0 0.0
    %3475 = vmatpush1.msra.mxu0 0.0
    %3476 = vmatprep.subr.mxu0 0.0
    %3477 = vmatpush1.msra.mxu0 0.0
    %3478 = vmatprep.subr.mxu0 0.0
    %3479 = vmatpush1.msra.mxu0 0.0
    %3480 = vmatprep.subr.mxu0 0.0
    %3481 = vmatpush1.msra.mxu0 0.0
    %3482 = vmatprep.subr.mxu0 0.0
    %3483 = vmatpush1.msra.mxu0 0.0
    %3484 = vmatprep.mubr.f32.mxu0 0.0
    %v3485 = vand.u32 %v3264, 4294901760
    %v3486 = vsub.f32 %v3264, %v3485
    %3487 = vmatmul.mubr.f32.gmra.mrb[0].mxu0 %v3486
    %v3488 = vpop.f32.mrb[0].mxu0
    %v3489 = vadd.f32 %v3415, %v3488
    %v3490 = vpop.f32.mrb[0].mxu0
    %3491 = vdwg.mxu0
    %3492 = vmatprep.subr.mxu0 0.0
    %v3493 = vand.u32 %v2339, 4294901760
    %3494 = vmatpush1.msra.mxu0 %v3493
    %3495 = vmatprep.subr.mxu0 0.0
    %3496 = vmatpush1.msra.mxu0 0.0
    %3497 = vmatprep.subr.mxu0 0.0
    %3498 = vmatpush1.msra.mxu0 0.0
    %3499 = vmatprep.subr.mxu0 0.0
    %3500 = vmatpush1.msra.mxu0 0.0
    %3501 = vmatprep.subr.mxu0 0.0
    %3502 = vmatpush1.msra.mxu0 0.0
    %3503 = vmatprep.subr.mxu0 0.0
    %3504 = vmatpush1.msra.mxu0 0.0
    %3505 = vmatprep.subr.mxu0 0.0
    %3506 = vmatpush1.msra.mxu0 0.0
    %3507 = vmatprep.subr.mxu0 0.0
    %3508 = vmatpush1.msra.mxu0 0.0
    %3509 = vmatprep.subr.mxu0 0.0
    %3510 = vmatpush1.msra.mxu0 0.0
    %3511 = vmatprep.subr.mxu0 0.0
    %3512 = vmatpush1.msra.mxu0 0.0
    %3513 = vmatprep.subr.mxu0 0.0
    %3514 = vmatpush1.msra.mxu0 0.0
    %3515 = vmatprep.subr.mxu0 0.0
    %3516 = vmatpush1.msra.mxu0 0.0
    %3517 = vmatprep.subr.mxu0 0.0
    %3518 = vmatpush1.msra.mxu0 0.0
    %3519 = vmatprep.subr.mxu0 0.0
    %3520 = vmatpush1.msra.mxu0 0.0
    %3521 = vmatprep.subr.mxu0 0.0
    %3522 = vmatpush1.msra.mxu0 0.0
    %3523 = vmatprep.subr.mxu0 0.0
    %3524 = vmatpush1.msra.mxu0 0.0
    %3525 = vmatprep.subr.mxu0 0.0
    %3526 = vmatpush1.msra.mxu0 0.0
    %3527 = vmatprep.subr.mxu0 0.0
    %3528 = vmatpush1.msra.mxu0 0.0
    %3529 = vmatprep.subr.mxu0 0.0
    %3530 = vmatpush1.msra.mxu0 0.0
    %3531 = vmatprep.subr.mxu0 0.0
    %3532 = vmatpush1.msra.mxu0 0.0
    %3533 = vmatprep.subr.mxu0 0.0
    %3534 = vmatpush1.msra.mxu0 0.0
    %3535 = vmatprep.subr.mxu0 0.0
    %3536 = vmatpush1.msra.mxu0 0.0
    %3537 = vmatprep.subr.mxu0 0.0
    %3538 = vmatpush1.msra.mxu0 0.0
    %3539 = vmatprep.subr.mxu0 0.0
    %3540 = vmatpush1.msra.mxu0 0.0
    %3541 = vmatprep.subr.mxu0 0.0
    %3542 = vmatpush1.msra.mxu0 0.0
    %3543 = vmatprep.subr.mxu0 0.0
    %3544 = vmatpush1.msra.mxu0 0.0
    %3545 = vmatprep.subr.mxu0 0.0
    %3546 = vmatpush1.msra.mxu0 0.0
    %3547 = vmatprep.subr.mxu0 0.0
    %3548 = vmatpush1.msra.mxu0 0.0
    %3549 = vmatprep.subr.mxu0 0.0
    %3550 = vmatpush1.msra.mxu0 0.0
    %3551 = vmatprep.subr.mxu0 0.0
    %3552 = vmatpush1.msra.mxu0 0.0
    %3553 = vmatprep.subr.mxu0 0.0
    %3554 = vmatpush1.msra.mxu0 0.0
    %3555 = vmatprep.subr.mxu0 0.0
    %3556 = vmatpush1.msra.mxu0 0.0
    %3557 = vmatprep.mubr.f32.mxu0 0.0
    %v3558 = vand.u32 %v3264, 4294901760
    %v3559 = vsub.f32 %v3264, %v3558
    %v3560 = vand.u32 %v3559, 4294901760
    %3561 = vmatmul.mubr.f32.gmra.mrb[0].mxu0 %v3560
    %v3562 = vpop.f32.mrb[0].mxu0
    %v3563 = vadd.f32 %v3489, %v3562
    %v3564 = vpop.f32.mrb[0].mxu0
    %3565 = vdwg.mxu0
    %3566 = vmatprep.subr.mxu0 0.0
    %v3567 = vand.u32 %v2339, 4294901760
    %v3568 = vsub.f32 %v2339, %v3567
    %v3569 = vand.u32 %v3568, 4294901760
    %3570 = vmatpush1.msra.mxu0 %v3569
    %3571 = vmatprep.subr.mxu0 0.0
    %3572 = vmatpush1.msra.mxu0 0.0
    %3573 = vmatprep.subr.mxu0 0.0
    %3574 = vmatpush1.msra.mxu0 0.0
    %3575 = vmatprep.subr.mxu0 0.0
    %3576 = vmatpush1.msra.mxu0 0.0
    %3577 = vmatprep.subr.mxu0 0.0
    %3578 = vmatpush1.msra.mxu0 0.0
    %3579 = vmatprep.subr.mxu0 0.0
    %3580 = vmatpush1.msra.mxu0 0.0
    %3581 = vmatprep.subr.mxu0 0.0
    %3582 = vmatpush1.msra.mxu0 0.0
    %3583 = vmatprep.subr.mxu0 0.0
    %3584 = vmatpush1.msra.mxu0 0.0
    %3585 = vmatprep.subr.mxu0 0.0
    %3586 = vmatpush1.msra.mxu0 0.0
    %3587 = vmatprep.subr.mxu0 0.0
    %3588 = vmatpush1.msra.mxu0 0.0
    %3589 = vmatprep.subr.mxu0 0.0
    %3590 = vmatpush1.msra.mxu0 0.0
    %3591 = vmatprep.subr.mxu0 0.0
    %3592 = vmatpush1.msra.mxu0 0.0
    %3593 = vmatprep.subr.mxu0 0.0
    %3594 = vmatpush1.msra.mxu0 0.0
    %3595 = vmatprep.subr.mxu0 0.0
    %3596 = vmatpush1.msra.mxu0 0.0
    %3597 = vmatprep.subr.mxu0 0.0
    %3598 = vmatpush1.msra.mxu0 0.0
    %3599 = vmatprep.subr.mxu0 0.0
    %3600 = vmatpush1.msra.mxu0 0.0
    %3601 = vmatprep.subr.mxu0 0.0
    %3602 = vmatpush1.msra.mxu0 0.0
    %3603 = vmatprep.subr.mxu0 0.0
    %3604 = vmatpush1.msra.mxu0 0.0
    %3605 = vmatprep.subr.mxu0 0.0
    %3606 = vmatpush1.msra.mxu0 0.0
    %3607 = vmatprep.subr.mxu0 0.0
    %3608 = vmatpush1.msra.mxu0 0.0
    %3609 = vmatprep.subr.mxu0 0.0
    %3610 = vmatpush1.msra.mxu0 0.0
    %3611 = vmatprep.subr.mxu0 0.0
    %3612 = vmatpush1.msra.mxu0 0.0
    %3613 = vmatprep.subr.mxu0 0.0
    %3614 = vmatpush1.msra.mxu0 0.0
    %3615 = vmatprep.subr.mxu0 0.0
    %3616 = vmatpush1.msra.mxu0 0.0
    %3617 = vmatprep.subr.mxu0 0.0
    %3618 = vmatpush1.msra.mxu0 0.0
    %3619 = vmatprep.subr.mxu0 0.0
    %3620 = vmatpush1.msra.mxu0 0.0
    %3621 = vmatprep.subr.mxu0 0.0
    %3622 = vmatpush1.msra.mxu0 0.0
    %3623 = vmatprep.subr.mxu0 0.0
    %3624 = vmatpush1.msra.mxu0 0.0
    %3625 = vmatprep.subr.mxu0 0.0
    %3626 = vmatpush1.msra.mxu0 0.0
    %3627 = vmatprep.subr.mxu0 0.0
    %3628 = vmatpush1.msra.mxu0 0.0
    %3629 = vmatprep.subr.mxu0 0.0
    %3630 = vmatpush1.msra.mxu0 0.0
    %3631 = vmatprep.subr.mxu0 0.0
    %3632 = vmatpush1.msra.mxu0 0.0
    %3633 = vmatprep.mubr.f32.mxu0 0.0
    %v3634 = vand.u32 %v3264, 4294901760
    %3635 = vmatmul.mubr.f32.gmra.mrb[0].mxu0 %v3634
    %v3636 = vpop.f32.mrb[0].mxu0
    %v3637 = vadd.f32 %v3563, %v3636
    %v3638 = vpop.f32.mrb[0].mxu0
    %3639 = vdwg.mxu0
    %3640 = vmatprep.subr.mxu0 0.0
    %v3641 = vand.u32 %v2339, 4294901760
    %3642 = vmatpush1.msra.mxu0 %v3641
    %3643 = vmatprep.subr.mxu0 0.0
    %3644 = vmatpush1.msra.mxu0 0.0
    %3645 = vmatprep.subr.mxu0 0.0
    %3646 = vmatpush1.msra.mxu0 0.0
    %3647 = vmatprep.subr.mxu0 0.0
    %3648 = vmatpush1.msra.mxu0 0.0
    %3649 = vmatprep.subr.mxu0 0.0
    %3650 = vmatpush1.msra.mxu0 0.0
    %3651 = vmatprep.subr.mxu0 0.0
    %3652 = vmatpush1.msra.mxu0 0.0
    %3653 = vmatprep.subr.mxu0 0.0
    %3654 = vmatpush1.msra.mxu0 0.0
    %3655 = vmatprep.subr.mxu0 0.0
    %3656 = vmatpush1.msra.mxu0 0.0
    %3657 = vmatprep.subr.mxu0 0.0
    %3658 = vmatpush1.msra.mxu0 0.0
    %3659 = vmatprep.subr.mxu0 0.0
    %3660 = vmatpush1.msra.mxu0 0.0
    %3661 = vmatprep.subr.mxu0 0.0
    %3662 = vmatpush1.msra.mxu0 0.0
    %3663 = vmatprep.subr.mxu0 0.0
    %3664 = vmatpush1.msra.mxu0 0.0
    %3665 = vmatprep.subr.mxu0 0.0
    %3666 = vmatpush1.msra.mxu0 0.0
    %3667 = vmatprep.subr.mxu0 0.0
    %3668 = vmatpush1.msra.mxu0 0.0
    %3669 = vmatprep.subr.mxu0 0.0
    %3670 = vmatpush1.msra.mxu0 0.0
    %3671 = vmatprep.subr.mxu0 0.0
    %3672 = vmatpush1.msra.mxu0 0.0
    %3673 = vmatprep.subr.mxu0 0.0
    %3674 = vmatpush1.msra.mxu0 0.0
    %3675 = vmatprep.subr.mxu0 0.0
    %3676 = vmatpush1.msra.mxu0 0.0
    %3677 = vmatprep.subr.mxu0 0.0
    %3678 = vmatpush1.msra.mxu0 0.0
    %3679 = vmatprep.subr.mxu0 0.0
    %3680 = vmatpush1.msra.mxu0 0.0
    %3681 = vmatprep.subr.mxu0 0.0
    %3682 = vmatpush1.msra.mxu0 0.0
    %3683 = vmatprep.subr.mxu0 0.0
    %3684 = vmatpush1.msra.mxu0 0.0
    %3685 = vmatprep.subr.mxu0 0.0
    %3686 = vmatpush1.msra.mxu0 0.0
    %3687 = vmatprep.subr.mxu0 0.0
    %3688 = vmatpush1.msra.mxu0 0.0
    %3689 = vmatprep.subr.mxu0 0.0
    %3690 = vmatpush1.msra.mxu0 0.0
    %3691 = vmatprep.subr.mxu0 0.0
    %3692 = vmatpush1.msra.mxu0 0.0
    %3693 = vmatprep.subr.mxu0 0.0
    %3694 = vmatpush1.msra.mxu0 0.0
    %3695 = vmatprep.subr.mxu0 0.0
    %3696 = vmatpush1.msra.mxu0 0.0
    %3697 = vmatprep.subr.mxu0 0.0
    %3698 = vmatpush1.msra.mxu0 0.0
    %3699 = vmatprep.subr.mxu0 0.0
    %3700 = vmatpush1.msra.mxu0 0.0
    %3701 = vmatprep.subr.mxu0 0.0
    %3702 = vmatpush1.msra.mxu0 0.0
    %3703 = vmatprep.subr.mxu0 0.0
    %3704 = vmatpush1.msra.mxu0 0.0
    %3705 = vmatprep.mubr.f32.mxu0 0.0
    %v3706 = vand.u32 %v3264, 4294901760
    %3707 = vmatmul.mubr.f32.gmra.mrb[0].mxu0 %v3706
    %v3708 = vpop.f32.mrb[0].mxu0
    %v3709 = vadd.f32 %v3637, %v3708
    %v3710 = vpop.f32.mrb[0].mxu0
    %3711 = vdwg.mxu0
    %3716 = vrot.lane.b32.xlu0 %v62, 120
    %v3717 = vpop.permute.xlu0 %3716
    %3718 = vrot.lane.b32.xlu0 %v63, 120
    %v3719 = vpop.permute.xlu0 %3718
    %3720 = vrot.lane.b32.xlu0 %v64, 120
    %v3721 = vpop.permute.xlu0 %3720
    %3722 = vrot.lane.b32.xlu0 %v65, 120
    %v3723 = vpop.permute.xlu0 %3722
    %v3725 = vsel %vm67, %v3259, 0
    %v3728 = vsel %vm67, %v3709, 0
    %v3730 = vsel %vm67, %v3717, 0
    %v3732 = vsel %vm67, %v3719, 0
    %v3734 = vsel %vm67, %v3721, 0
    %v3736 = vsel %vm67, %v3723, 0
    %3738 = vmatprep.subr.mxu0 0.0
    %v3739 = vand.u32 %v3730, 4294901760
    %3740 = vmatpush1.xpose.msra.mxu0 %v3739
    %3741 = vmatprep.subr.mxu0 0.0
    %v3742 = vand.u32 %v3732, 4294901760
    %3743 = vmatpush1.xpose.msra.mxu0 %v3742
    %3744 = vmatprep.subr.mxu0 0.0
    %v3745 = vand.u32 %v3734, 4294901760
    %3746 = vmatpush1.xpose.msra.mxu0 %v3745
    %3747 = vmatprep.subr.mxu0 0.0
    %v3748 = vand.u32 %v3736, 4294901760
    %3749 = vmatpush1.xpose.msra.mxu0 %v3748
    %3750 = vmatprep.subr.mxu0 0.0
    %3751 = vmatpush1.xpose.msra.mxu0 0.0
    %3752 = vmatprep.subr.mxu0 0.0
    %3753 = vmatpush1.xpose.msra.mxu0 0.0
    %3754 = vmatprep.subr.mxu0 0.0
    %3755 = vmatpush1.xpose.msra.mxu0 0.0
    %3756 = vmatprep.subr.mxu0 0.0
    %3757 = vmatpush1.xpose.msra.mxu0 0.0
    %3758 = vmatprep.subr.mxu0 0.0
    %3759 = vmatpush1.xpose.msra.mxu0 0.0
    %3760 = vmatprep.subr.mxu0 0.0
    %3761 = vmatpush1.xpose.msra.mxu0 0.0
    %3762 = vmatprep.subr.mxu0 0.0
    %3763 = vmatpush1.xpose.msra.mxu0 0.0
    %3764 = vmatprep.subr.mxu0 0.0
    %3765 = vmatpush1.xpose.msra.mxu0 0.0
    %3766 = vmatprep.subr.mxu0 0.0
    %3767 = vmatpush1.xpose.msra.mxu0 0.0
    %3768 = vmatprep.subr.mxu0 0.0
    %3769 = vmatpush1.xpose.msra.mxu0 0.0
    %3770 = vmatprep.subr.mxu0 0.0
    %3771 = vmatpush1.xpose.msra.mxu0 0.0
    %3772 = vmatprep.subr.mxu0 0.0
    %3773 = vmatpush1.xpose.msra.mxu0 0.0
    %3774 = vmatprep.subr.mxu0 0.0
    %3775 = vmatpush1.xpose.msra.mxu0 0.0
    %3776 = vmatprep.subr.mxu0 0.0
    %3777 = vmatpush1.xpose.msra.mxu0 0.0
    %3778 = vmatprep.subr.mxu0 0.0
    %3779 = vmatpush1.xpose.msra.mxu0 0.0
    %3780 = vmatprep.subr.mxu0 0.0
    %3781 = vmatpush1.xpose.msra.mxu0 0.0
    %3782 = vmatprep.subr.mxu0 0.0
    %3783 = vmatpush1.xpose.msra.mxu0 0.0
    %3784 = vmatprep.subr.mxu0 0.0
    %3785 = vmatpush1.xpose.msra.mxu0 0.0
    %3786 = vmatprep.subr.mxu0 0.0
    %3787 = vmatpush1.xpose.msra.mxu0 0.0
    %3788 = vmatprep.subr.mxu0 0.0
    %3789 = vmatpush1.xpose.msra.mxu0 0.0
    %3790 = vmatprep.subr.mxu0 0.0
    %3791 = vmatpush1.xpose.msra.mxu0 0.0
    %3792 = vmatprep.subr.mxu0 0.0
    %3793 = vmatpush1.xpose.msra.mxu0 0.0
    %3794 = vmatprep.subr.mxu0 0.0
    %3795 = vmatpush1.xpose.msra.mxu0 0.0
    %3796 = vmatprep.subr.mxu0 0.0
    %3797 = vmatpush1.xpose.msra.mxu0 0.0
    %3798 = vmatprep.subr.mxu0 0.0
    %3799 = vmatpush1.xpose.msra.mxu0 0.0
    %3800 = vmatprep.subr.mxu0 0.0
    %3801 = vmatpush1.xpose.msra.mxu0 0.0
    %3802 = vmatprep.subr.mxu0 0.0
    %3803 = vmatpush1.xpose.msra.mxu0 0.0
    %3804 = vmatprep.subr.mxu0 0.0
    %3805 = vmatpush1.xpose.msra.mxu0 0.0
    %3806 = vmatprep.mubr.f32.mxu0 0.0
    %v3807 = vand.u32 %v3725, 4294901760
    %v3808 = vsub.f32 %v3725, %v3807
    %v3809 = vand.u32 %v3808, 4294901760
    %v3810 = vsub.f32 %v3808, %v3809
    %v3811 = vand.u32 %v3810, 4294901760
    %3812 = vmatmul.mubr.f32.gmra.mrb[0].mxu0 %v3811
    %v3813 = vpop.f32.mrb[0].mxu0
    %v3814 = vadd.f32 0.0, %v3813
    %v3815 = vpop.f32.mrb[0].mxu0
    %3816 = vmatprep.mubr.f32.mxu0 0.0
    %v3817 = vand.u32 %v3728, 4294901760
    %v3818 = vsub.f32 %v3728, %v3817
    %v3819 = vand.u32 %v3818, 4294901760
    %v3820 = vsub.f32 %v3818, %v3819
    %v3821 = vand.u32 %v3820, 4294901760
    %3822 = vmatmul.mubr.f32.gmra.mrb[0].mxu0 %v3821
    %v3823 = vpop.f32.mrb[0].mxu0
    %v3824 = vadd.f32 0.0, %v3823
    %v3825 = vpop.f32.mrb[0].mxu0
    %3826 = vdwg.mxu0
    %3827 = vmatprep.subr.mxu0 0.0
    %v3828 = vand.u32 %v3730, 4294901760
    %v3829 = vsub.f32 %v3730, %v3828
    %v3830 = vand.u32 %v3829, 4294901760
    %v3831 = vsub.f32 %v3829, %v3830
    %v3832 = vand.u32 %v3831, 4294901760
    %3833 = vmatpush1.xpose.msra.mxu0 %v3832
    %3834 = vmatprep.subr.mxu0 0.0
    %v3835 = vand.u32 %v3732, 4294901760
    %v3836 = vsub.f32 %v3732, %v3835
    %v3837 = vand.u32 %v3836, 4294901760
    %v3838 = vsub.f32 %v3836, %v3837
    %v3839 = vand.u32 %v3838, 4294901760
    %3840 = vmatpush1.xpose.msra.mxu0 %v3839
    %3841 = vmatprep.subr.mxu0 0.0
    %v3842 = vand.u32 %v3734, 4294901760
    %v3843 = vsub.f32 %v3734, %v3842
    %v3844 = vand.u32 %v3843, 4294901760
    %v3845 = vsub.f32 %v3843, %v3844
    %v3846 = vand.u32 %v3845, 4294901760
    %3847 = vmatpush1.xpose.msra.mxu0 %v3846
    %3848 = vmatprep.subr.mxu0 0.0
    %v3849 = vand.u32 %v3736, 4294901760
    %v3850 = vsub.f32 %v3736, %v3849
    %v3851 = vand.u32 %v3850, 4294901760
    %v3852 = vsub.f32 %v3850, %v3851
    %v3853 = vand.u32 %v3852, 4294901760
    %3854 = vmatpush1.xpose.msra.mxu0 %v3853
    %3855 = vmatprep.subr.mxu0 0.0
    %3856 = vmatpush1.xpose.msra.mxu0 0.0
    %3857 = vmatprep.subr.mxu0 0.0
    %3858 = vmatpush1.xpose.msra.mxu0 0.0
    %3859 = vmatprep.subr.mxu0 0.0
    %3860 = vmatpush1.xpose.msra.mxu0 0.0
    %3861 = vmatprep.subr.mxu0 0.0
    %3862 = vmatpush1.xpose.msra.mxu0 0.0
    %3863 = vmatprep.subr.mxu0 0.0
    %3864 = vmatpush1.xpose.msra.mxu0 0.0
    %3865 = vmatprep.subr.mxu0 0.0
    %3866 = vmatpush1.xpose.msra.mxu0 0.0
    %3867 = vmatprep.subr.mxu0 0.0
    %3868 = vmatpush1.xpose.msra.mxu0 0.0
    %3869 = vmatprep.subr.mxu0 0.0
    %3870 = vmatpush1.xpose.msra.mxu0 0.0
    %3871 = vmatprep.subr.mxu0 0.0
    %3872 = vmatpush1.xpose.msra.mxu0 0.0
    %3873 = vmatprep.subr.mxu0 0.0
    %3874 = vmatpush1.xpose.msra.mxu0 0.0
    %3875 = vmatprep.subr.mxu0 0.0
    %3876 = vmatpush1.xpose.msra.mxu0 0.0
    %3877 = vmatprep.subr.mxu0 0.0
    %3878 = vmatpush1.xpose.msra.mxu0 0.0
    %3879 = vmatprep.subr.mxu0 0.0
    %3880 = vmatpush1.xpose.msra.mxu0 0.0
    %3881 = vmatprep.subr.mxu0 0.0
    %3882 = vmatpush1.xpose.msra.mxu0 0.0
    %3883 = vmatprep.subr.mxu0 0.0
    %3884 = vmatpush1.xpose.msra.mxu0 0.0
    %3885 = vmatprep.subr.mxu0 0.0
    %3886 = vmatpush1.xpose.msra.mxu0 0.0
    %3887 = vmatprep.subr.mxu0 0.0
    %3888 = vmatpush1.xpose.msra.mxu0 0.0
    %3889 = vmatprep.subr.mxu0 0.0
    %3890 = vmatpush1.xpose.msra.mxu0 0.0
    %3891 = vmatprep.subr.mxu0 0.0
    %3892 = vmatpush1.xpose.msra.mxu0 0.0
    %3893 = vmatprep.subr.mxu0 0.0
    %3894 = vmatpush1.xpose.msra.mxu0 0.0
    %3895 = vmatprep.subr.mxu0 0.0
    %3896 = vmatpush1.xpose.msra.mxu0 0.0
    %3897 = vmatprep.subr.mxu0 0.0
    %3898 = vmatpush1.xpose.msra.mxu0 0.0
    %3899 = vmatprep.subr.mxu0 0.0
    %3900 = vmatpush1.xpose.msra.mxu0 0.0
    %3901 = vmatprep.subr.mxu0 0.0
    %3902 = vmatpush1.xpose.msra.mxu0 0.0
    %3903 = vmatprep.subr.mxu0 0.0
    %3904 = vmatpush1.xpose.msra.mxu0 0.0
    %3905 = vmatprep.subr.mxu0 0.0
    %3906 = vmatpush1.xpose.msra.mxu0 0.0
    %3907 = vmatprep.subr.mxu0 0.0
    %3908 = vmatpush1.xpose.msra.mxu0 0.0
    %3909 = vmatprep.subr.mxu0 0.0
    %3910 = vmatpush1.xpose.msra.mxu0 0.0
    %3911 = vmatprep.mubr.f32.mxu0 0.0
    %v3912 = vand.u32 %v3725, 4294901760
    %3913 = vmatmul.mubr.f32.gmra.mrb[0].mxu0 %v3912
    %v3914 = vpop.f32.mrb[0].mxu0
    %v3915 = vadd.f32 %v3814, %v3914
    %v3916 = vpop.f32.mrb[0].mxu0
    %3917 = vmatprep.mubr.f32.mxu0 0.0
    %v3918 = vand.u32 %v3728, 4294901760
    %3919 = vmatmul.mubr.f32.gmra.mrb[0].mxu0 %v3918
    %v3920 = vpop.f32.mrb[0].mxu0
    %v3921 = vadd.f32 %v3824, %v3920
    %v3922 = vpop.f32.mrb[0].mxu0
    %3923 = vdwg.mxu0
    %3924 = vmatprep.subr.mxu0 0.0
    %v3925 = vand.u32 %v3730, 4294901760
    %v3926 = vsub.f32 %v3730, %v3925
    %3927 = vmatpush1.xpose.msra.mxu0 %v3926
    %3928 = vmatprep.subr.mxu0 0.0
    %v3929 = vand.u32 %v3732, 4294901760
    %v3930 = vsub.f32 %v3732, %v3929
    %3931 = vmatpush1.xpose.msra.mxu0 %v3930
    %3932 = vmatprep.subr.mxu0 0.0
    %v3933 = vand.u32 %v3734, 4294901760
    %v3934 = vsub.f32 %v3734, %v3933
    %3935 = vmatpush1.xpose.msra.mxu0 %v3934
    %3936 = vmatprep.subr.mxu0 0.0
    %v3937 = vand.u32 %v3736, 4294901760
    %v3938 = vsub.f32 %v3736, %v3937
    %3939 = vmatpush1.xpose.msra.mxu0 %v3938
    %3940 = vmatprep.subr.mxu0 0.0
    %3941 = vmatpush1.xpose.msra.mxu0 0.0
    %3942 = vmatprep.subr.mxu0 0.0
    %3943 = vmatpush1.xpose.msra.mxu0 0.0
    %3944 = vmatprep.subr.mxu0 0.0
    %3945 = vmatpush1.xpose.msra.mxu0 0.0
    %3946 = vmatprep.subr.mxu0 0.0
    %3947 = vmatpush1.xpose.msra.mxu0 0.0
    %3948 = vmatprep.subr.mxu0 0.0
    %3949 = vmatpush1.xpose.msra.mxu0 0.0
    %3950 = vmatprep.subr.mxu0 0.0
    %3951 = vmatpush1.xpose.msra.mxu0 0.0
    %3952 = vmatprep.subr.mxu0 0.0
    %3953 = vmatpush1.xpose.msra.mxu0 0.0
    %3954 = vmatprep.subr.mxu0 0.0
    %3955 = vmatpush1.xpose.msra.mxu0 0.0
    %3956 = vmatprep.subr.mxu0 0.0
    %3957 = vmatpush1.xpose.msra.mxu0 0.0
    %3958 = vmatprep.subr.mxu0 0.0
    %3959 = vmatpush1.xpose.msra.mxu0 0.0
    %3960 = vmatprep.subr.mxu0 0.0
    %3961 = vmatpush1.xpose.msra.mxu0 0.0
    %3962 = vmatprep.subr.mxu0 0.0
    %3963 = vmatpush1.xpose.msra.mxu0 0.0
    %3964 = vmatprep.subr.mxu0 0.0
    %3965 = vmatpush1.xpose.msra.mxu0 0.0
    %3966 = vmatprep.subr.mxu0 0.0
    %3967 = vmatpush1.xpose.msra.mxu0 0.0
    %3968 = vmatprep.subr.mxu0 0.0
    %3969 = vmatpush1.xpose.msra.mxu0 0.0
    %3970 = vmatprep.subr.mxu0 0.0
    %3971 = vmatpush1.xpose.msra.mxu0 0.0
    %3972 = vmatprep.subr.mxu0 0.0
    %3973 = vmatpush1.xpose.msra.mxu0 0.0
    %3974 = vmatprep.subr.mxu0 0.0
    %3975 = vmatpush1.xpose.msra.mxu0 0.0
    %3976 = vmatprep.subr.mxu0 0.0
    %3977 = vmatpush1.xpose.msra.mxu0 0.0
    %3978 = vmatprep.subr.mxu0 0.0
    %3979 = vmatpush1.xpose.msra.mxu0 0.0
    %3980 = vmatprep.subr.mxu0 0.0
    %3981 = vmatpush1.xpose.msra.mxu0 0.0
    %3982 = vmatprep.subr.mxu0 0.0
    %3983 = vmatpush1.xpose.msra.mxu0 0.0
    %3984 = vmatprep.subr.mxu0 0.0
    %3985 = vmatpush1.xpose.msra.mxu0 0.0
    %3986 = vmatprep.subr.mxu0 0.0
    %3987 = vmatpush1.xpose.msra.mxu0 0.0
    %3988 = vmatprep.subr.mxu0 0.0
    %3989 = vmatpush1.xpose.msra.mxu0 0.0
    %3990 = vmatprep.subr.mxu0 0.0
    %3991 = vmatpush1.xpose.msra.mxu0 0.0
    %3992 = vmatprep.subr.mxu0 0.0
    %3993 = vmatpush1.xpose.msra.mxu0 0.0
    %3994 = vmatprep.subr.mxu0 0.0
    %3995 = vmatpush1.xpose.msra.mxu0 0.0
    %3996 = vmatprep.mubr.f32.mxu0 0.0
    %v3997 = vand.u32 %v3725, 4294901760
    %v3998 = vsub.f32 %v3725, %v3997
    %3999 = vmatmul.mubr.f32.gmra.mrb[0].mxu0 %v3998
    %v4000 = vpop.f32.mrb[0].mxu0
    %v4001 = vadd.f32 %v3915, %v4000
    %v4002 = vpop.f32.mrb[0].mxu0
    %4003 = vmatprep.mubr.f32.mxu0 0.0
    %v4004 = vand.u32 %v3728, 4294901760
    %v4005 = vsub.f32 %v3728, %v4004
    %4006 = vmatmul.mubr.f32.gmra.mrb[0].mxu0 %v4005
    %v4007 = vpop.f32.mrb[0].mxu0
    %v4008 = vadd.f32 %v3921, %v4007
    %v4009 = vpop.f32.mrb[0].mxu0
    %4010 = vdwg.mxu0
    %4011 = vmatprep.subr.mxu0 0.0
    %v4012 = vand.u32 %v3730, 4294901760
    %4013 = vmatpush1.xpose.msra.mxu0 %v4012
    %4014 = vmatprep.subr.mxu0 0.0
    %v4015 = vand.u32 %v3732, 4294901760
    %4016 = vmatpush1.xpose.msra.mxu0 %v4015
    %4017 = vmatprep.subr.mxu0 0.0
    %v4018 = vand.u32 %v3734, 4294901760
    %4019 = vmatpush1.xpose.msra.mxu0 %v4018
    %4020 = vmatprep.subr.mxu0 0.0
    %v4021 = vand.u32 %v3736, 4294901760
    %4022 = vmatpush1.xpose.msra.mxu0 %v4021
    %4023 = vmatprep.subr.mxu0 0.0
    %4024 = vmatpush1.xpose.msra.mxu0 0.0
    %4025 = vmatprep.subr.mxu0 0.0
    %4026 = vmatpush1.xpose.msra.mxu0 0.0
    %4027 = vmatprep.subr.mxu0 0.0
    %4028 = vmatpush1.xpose.msra.mxu0 0.0
    %4029 = vmatprep.subr.mxu0 0.0
    %4030 = vmatpush1.xpose.msra.mxu0 0.0
    %4031 = vmatprep.subr.mxu0 0.0
    %4032 = vmatpush1.xpose.msra.mxu0 0.0
    %4033 = vmatprep.subr.mxu0 0.0
    %4034 = vmatpush1.xpose.msra.mxu0 0.0
    %4035 = vmatprep.subr.mxu0 0.0
    %4036 = vmatpush1.xpose.msra.mxu0 0.0
    %4037 = vmatprep.subr.mxu0 0.0
    %4038 = vmatpush1.xpose.msra.mxu0 0.0
    %4039 = vmatprep.subr.mxu0 0.0
    %4040 = vmatpush1.xpose.msra.mxu0 0.0
    %4041 = vmatprep.subr.mxu0 0.0
    %4042 = vmatpush1.xpose.msra.mxu0 0.0
    %4043 = vmatprep.subr.mxu0 0.0
    %4044 = vmatpush1.xpose.msra.mxu0 0.0
    %4045 = vmatprep.subr.mxu0 0.0
    %4046 = vmatpush1.xpose.msra.mxu0 0.0
    %4047 = vmatprep.subr.mxu0 0.0
    %4048 = vmatpush1.xpose.msra.mxu0 0.0
    %4049 = vmatprep.subr.mxu0 0.0
    %4050 = vmatpush1.xpose.msra.mxu0 0.0
    %4051 = vmatprep.subr.mxu0 0.0
    %4052 = vmatpush1.xpose.msra.mxu0 0.0
    %4053 = vmatprep.subr.mxu0 0.0
    %4054 = vmatpush1.xpose.msra.mxu0 0.0
    %4055 = vmatprep.subr.mxu0 0.0
    %4056 = vmatpush1.xpose.msra.mxu0 0.0
    %4057 = vmatprep.subr.mxu0 0.0
    %4058 = vmatpush1.xpose.msra.mxu0 0.0
    %4059 = vmatprep.subr.mxu0 0.0
    %4060 = vmatpush1.xpose.msra.mxu0 0.0
    %4061 = vmatprep.subr.mxu0 0.0
    %4062 = vmatpush1.xpose.msra.mxu0 0.0
    %4063 = vmatprep.subr.mxu0 0.0
    %4064 = vmatpush1.xpose.msra.mxu0 0.0
    %4065 = vmatprep.subr.mxu0 0.0
    %4066 = vmatpush1.xpose.msra.mxu0 0.0
    %4067 = vmatprep.subr.mxu0 0.0
    %4068 = vmatpush1.xpose.msra.mxu0 0.0
    %4069 = vmatprep.subr.mxu0 0.0
    %4070 = vmatpush1.xpose.msra.mxu0 0.0
    %4071 = vmatprep.subr.mxu0 0.0
    %4072 = vmatpush1.xpose.msra.mxu0 0.0
    %4073 = vmatprep.subr.mxu0 0.0
    %4074 = vmatpush1.xpose.msra.mxu0 0.0
    %4075 = vmatprep.subr.mxu0 0.0
    %4076 = vmatpush1.xpose.msra.mxu0 0.0
    %4077 = vmatprep.subr.mxu0 0.0
    %4078 = vmatpush1.xpose.msra.mxu0 0.0
    %4079 = vmatprep.mubr.f32.mxu0 0.0
    %v4080 = vand.u32 %v3725, 4294901760
    %v4081 = vsub.f32 %v3725, %v4080
    %v4082 = vand.u32 %v4081, 4294901760
    %4083 = vmatmul.mubr.f32.gmra.mrb[0].mxu0 %v4082
    %v4084 = vpop.f32.mrb[0].mxu0
    %v4085 = vadd.f32 %v4001, %v4084
    %v4086 = vpop.f32.mrb[0].mxu0
    %4087 = vmatprep.mubr.f32.mxu0 0.0
    %v4088 = vand.u32 %v3728, 4294901760
    %v4089 = vsub.f32 %v3728, %v4088
    %v4090 = vand.u32 %v4089, 4294901760
    %4091 = vmatmul.mubr.f32.gmra.mrb[0].mxu0 %v4090
    %v4092 = vpop.f32.mrb[0].mxu0
    %v4093 = vadd.f32 %v4008, %v4092
    %v4094 = vpop.f32.mrb[0].mxu0
    %4095 = vdwg.mxu0
    %4096 = vmatprep.subr.mxu0 0.0
    %v4097 = vand.u32 %v3730, 4294901760
    %v4098 = vsub.f32 %v3730, %v4097
    %v4099 = vand.u32 %v4098, 4294901760
    %4100 = vmatpush1.xpose.msra.mxu0 %v4099
    %4101 = vmatprep.subr.mxu0 0.0
    %v4102 = vand.u32 %v3732, 4294901760
    %v4103 = vsub.f32 %v3732, %v4102
    %v4104 = vand.u32 %v4103, 4294901760
    %4105 = vmatpush1.xpose.msra.mxu0 %v4104
    %4106 = vmatprep.subr.mxu0 0.0
    %v4107 = vand.u32 %v3734, 4294901760
    %v4108 = vsub.f32 %v3734, %v4107
    %v4109 = vand.u32 %v4108, 4294901760
    %4110 = vmatpush1.xpose.msra.mxu0 %v4109
    %4111 = vmatprep.subr.mxu0 0.0
    %v4112 = vand.u32 %v3736, 4294901760
    %v4113 = vsub.f32 %v3736, %v4112
    %v4114 = vand.u32 %v4113, 4294901760
    %4115 = vmatpush1.xpose.msra.mxu0 %v4114
    %4116 = vmatprep.subr.mxu0 0.0
    %4117 = vmatpush1.xpose.msra.mxu0 0.0
    %4118 = vmatprep.subr.mxu0 0.0
    %4119 = vmatpush1.xpose.msra.mxu0 0.0
    %4120 = vmatprep.subr.mxu0 0.0
    %4121 = vmatpush1.xpose.msra.mxu0 0.0
    %4122 = vmatprep.subr.mxu0 0.0
    %4123 = vmatpush1.xpose.msra.mxu0 0.0
    %4124 = vmatprep.subr.mxu0 0.0
    %4125 = vmatpush1.xpose.msra.mxu0 0.0
    %4126 = vmatprep.subr.mxu0 0.0
    %4127 = vmatpush1.xpose.msra.mxu0 0.0
    %4128 = vmatprep.subr.mxu0 0.0
    %4129 = vmatpush1.xpose.msra.mxu0 0.0
    %4130 = vmatprep.subr.mxu0 0.0
    %4131 = vmatpush1.xpose.msra.mxu0 0.0
    %4132 = vmatprep.subr.mxu0 0.0
    %4133 = vmatpush1.xpose.msra.mxu0 0.0
    %4134 = vmatprep.subr.mxu0 0.0
    %4135 = vmatpush1.xpose.msra.mxu0 0.0
    %4136 = vmatprep.subr.mxu0 0.0
    %4137 = vmatpush1.xpose.msra.mxu0 0.0
    %4138 = vmatprep.subr.mxu0 0.0
    %4139 = vmatpush1.xpose.msra.mxu0 0.0
    %4140 = vmatprep.subr.mxu0 0.0
    %4141 = vmatpush1.xpose.msra.mxu0 0.0
    %4142 = vmatprep.subr.mxu0 0.0
    %4143 = vmatpush1.xpose.msra.mxu0 0.0
    %4144 = vmatprep.subr.mxu0 0.0
    %4145 = vmatpush1.xpose.msra.mxu0 0.0
    %4146 = vmatprep.subr.mxu0 0.0
    %4147 = vmatpush1.xpose.msra.mxu0 0.0
    %4148 = vmatprep.subr.mxu0 0.0
    %4149 = vmatpush1.xpose.msra.mxu0 0.0
    %4150 = vmatprep.subr.mxu0 0.0
    %4151 = vmatpush1.xpose.msra.mxu0 0.0
    %4152 = vmatprep.subr.mxu0 0.0
    %4153 = vmatpush1.xpose.msra.mxu0 0.0
    %4154 = vmatprep.subr.mxu0 0.0
    %4155 = vmatpush1.xpose.msra.mxu0 0.0
    %4156 = vmatprep.subr.mxu0 0.0
    %4157 = vmatpush1.xpose.msra.mxu0 0.0
    %4158 = vmatprep.subr.mxu0 0.0
    %4159 = vmatpush1.xpose.msra.mxu0 0.0
    %4160 = vmatprep.subr.mxu0 0.0
    %4161 = vmatpush1.xpose.msra.mxu0 0.0
    %4162 = vmatprep.subr.mxu0 0.0
    %4163 = vmatpush1.xpose.msra.mxu0 0.0
    %4164 = vmatprep.subr.mxu0 0.0
    %4165 = vmatpush1.xpose.msra.mxu0 0.0
    %4166 = vmatprep.subr.mxu0 0.0
    %4167 = vmatpush1.xpose.msra.mxu0 0.0
    %4168 = vmatprep.subr.mxu0 0.0
    %4169 = vmatpush1.xpose.msra.mxu0 0.0
    %4170 = vmatprep.subr.mxu0 0.0
    %4171 = vmatpush1.xpose.msra.mxu0 0.0
    %4172 = vmatprep.mubr.f32.mxu0 0.0
    %v4173 = vand.u32 %v3725, 4294901760
    %4174 = vmatmul.mubr.f32.gmra.mrb[0].mxu0 %v4173
    %v4175 = vpop.f32.mrb[0].mxu0
    %v4176 = vadd.f32 %v4085, %v4175
    %v4177 = vpop.f32.mrb[0].mxu0
    %4178 = vmatprep.mubr.f32.mxu0 0.0
    %v4179 = vand.u32 %v3728, 4294901760
    %4180 = vmatmul.mubr.f32.gmra.mrb[0].mxu0 %v4179
    %v4181 = vpop.f32.mrb[0].mxu0
    %v4182 = vadd.f32 %v4093, %v4181
    %v4183 = vpop.f32.mrb[0].mxu0
    %4184 = vdwg.mxu0
    %4185 = vmatprep.subr.mxu0 0.0
    %v4186 = vand.u32 %v3730, 4294901760
    %4187 = vmatpush1.xpose.msra.mxu0 %v4186
    %4188 = vmatprep.subr.mxu0 0.0
    %v4189 = vand.u32 %v3732, 4294901760
    %4190 = vmatpush1.xpose.msra.mxu0 %v4189
    %4191 = vmatprep.subr.mxu0 0.0
    %v4192 = vand.u32 %v3734, 4294901760
    %4193 = vmatpush1.xpose.msra.mxu0 %v4192
    %4194 = vmatprep.subr.mxu0 0.0
    %v4195 = vand.u32 %v3736, 4294901760
    %4196 = vmatpush1.xpose.msra.mxu0 %v4195
    %4197 = vmatprep.subr.mxu0 0.0
    %4198 = vmatpush1.xpose.msra.mxu0 0.0
    %4199 = vmatprep.subr.mxu0 0.0
    %4200 = vmatpush1.xpose.msra.mxu0 0.0
    %4201 = vmatprep.subr.mxu0 0.0
    %4202 = vmatpush1.xpose.msra.mxu0 0.0
    %4203 = vmatprep.subr.mxu0 0.0
    %4204 = vmatpush1.xpose.msra.mxu0 0.0
    %4205 = vmatprep.subr.mxu0 0.0
    %4206 = vmatpush1.xpose.msra.mxu0 0.0
    %4207 = vmatprep.subr.mxu0 0.0
    %4208 = vmatpush1.xpose.msra.mxu0 0.0
    %4209 = vmatprep.subr.mxu0 0.0
    %4210 = vmatpush1.xpose.msra.mxu0 0.0
    %4211 = vmatprep.subr.mxu0 0.0
    %4212 = vmatpush1.xpose.msra.mxu0 0.0
    %4213 = vmatprep.subr.mxu0 0.0
    %4214 = vmatpush1.xpose.msra.mxu0 0.0
    %4215 = vmatprep.subr.mxu0 0.0
    %4216 = vmatpush1.xpose.msra.mxu0 0.0
    %4217 = vmatprep.subr.mxu0 0.0
    %4218 = vmatpush1.xpose.msra.mxu0 0.0
    %4219 = vmatprep.subr.mxu0 0.0
    %4220 = vmatpush1.xpose.msra.mxu0 0.0
    %4221 = vmatprep.subr.mxu0 0.0
    %4222 = vmatpush1.xpose.msra.mxu0 0.0
    %4223 = vmatprep.subr.mxu0 0.0
    %4224 = vmatpush1.xpose.msra.mxu0 0.0
    %4225 = vmatprep.subr.mxu0 0.0
    %4226 = vmatpush1.xpose.msra.mxu0 0.0
    %4227 = vmatprep.subr.mxu0 0.0
    %4228 = vmatpush1.xpose.msra.mxu0 0.0
    %4229 = vmatprep.subr.mxu0 0.0
    %4230 = vmatpush1.xpose.msra.mxu0 0.0
    %4231 = vmatprep.subr.mxu0 0.0
    %4232 = vmatpush1.xpose.msra.mxu0 0.0
    %4233 = vmatprep.subr.mxu0 0.0
    %4234 = vmatpush1.xpose.msra.mxu0 0.0
    %4235 = vmatprep.subr.mxu0 0.0
    %4236 = vmatpush1.xpose.msra.mxu0 0.0
    %4237 = vmatprep.subr.mxu0 0.0
    %4238 = vmatpush1.xpose.msra.mxu0 0.0
    %4239 = vmatprep.subr.mxu0 0.0
    %4240 = vmatpush1.xpose.msra.mxu0 0.0
    %4241 = vmatprep.subr.mxu0 0.0
    %4242 = vmatpush1.xpose.msra.mxu0 0.0
    %4243 = vmatprep.subr.mxu0 0.0
    %4244 = vmatpush1.xpose.msra.mxu0 0.0
    %4245 = vmatprep.subr.mxu0 0.0
    %4246 = vmatpush1.xpose.msra.mxu0 0.0
    %4247 = vmatprep.subr.mxu0 0.0
    %4248 = vmatpush1.xpose.msra.mxu0 0.0
    %4249 = vmatprep.subr.mxu0 0.0
    %4250 = vmatpush1.xpose.msra.mxu0 0.0
    %4251 = vmatprep.subr.mxu0 0.0
    %4252 = vmatpush1.xpose.msra.mxu0 0.0
    %4253 = vmatprep.mubr.f32.mxu0 0.0
    %v4254 = vand.u32 %v3725, 4294901760
    %4255 = vmatmul.mubr.f32.gmra.mrb[0].mxu0 %v4254
    %v4256 = vpop.f32.mrb[0].mxu0
    %v4257 = vadd.f32 %v4176, %v4256
    %v4258 = vpop.f32.mrb[0].mxu0
    %4259 = vmatprep.mubr.f32.mxu0 0.0
    %v4260 = vand.u32 %v3728, 4294901760
    %4261 = vmatmul.mubr.f32.gmra.mrb[0].mxu0 %v4260
    %v4262 = vpop.f32.mrb[0].mxu0
    %v4263 = vadd.f32 %v4182, %v4262
    %v4264 = vpop.f32.mrb[0].mxu0
    %4265 = vdwg.mxu0
    %v4267 = vsel %vm67, %v1436, 0
    %v4270 = vsel %vm67, %v1885, 0
    %v4272 = vsel %vm67, %v62, 0
    %v4274 = vsel %vm67, %v63, 0
    %v4276 = vsel %vm67, %v64, 0
    %v4278 = vsel %vm67, %v65, 0
    %4280 = vmatprep.subr.mxu0 0.0
    %v4281 = vand.u32 %v4272, 4294901760
    %4282 = vmatpush1.xpose.msra.mxu0 %v4281
    %4283 = vmatprep.subr.mxu0 0.0
    %v4284 = vand.u32 %v4274, 4294901760
    %4285 = vmatpush1.xpose.msra.mxu0 %v4284
    %4286 = vmatprep.subr.mxu0 0.0
    %v4287 = vand.u32 %v4276, 4294901760
    %4288 = vmatpush1.xpose.msra.mxu0 %v4287
    %4289 = vmatprep.subr.mxu0 0.0
    %v4290 = vand.u32 %v4278, 4294901760
    %4291 = vmatpush1.xpose.msra.mxu0 %v4290
    %4292 = vmatprep.subr.mxu0 0.0
    %4293 = vmatpush1.xpose.msra.mxu0 0.0
    %4294 = vmatprep.subr.mxu0 0.0
    %4295 = vmatpush1.xpose.msra.mxu0 0.0
    %4296 = vmatprep.subr.mxu0 0.0
    %4297 = vmatpush1.xpose.msra.mxu0 0.0
    %4298 = vmatprep.subr.mxu0 0.0
    %4299 = vmatpush1.xpose.msra.mxu0 0.0
    %4300 = vmatprep.subr.mxu0 0.0
    %4301 = vmatpush1.xpose.msra.mxu0 0.0
    %4302 = vmatprep.subr.mxu0 0.0
    %4303 = vmatpush1.xpose.msra.mxu0 0.0
    %4304 = vmatprep.subr.mxu0 0.0
    %4305 = vmatpush1.xpose.msra.mxu0 0.0
    %4306 = vmatprep.subr.mxu0 0.0
    %4307 = vmatpush1.xpose.msra.mxu0 0.0
    %4308 = vmatprep.subr.mxu0 0.0
    %4309 = vmatpush1.xpose.msra.mxu0 0.0
    %4310 = vmatprep.subr.mxu0 0.0
    %4311 = vmatpush1.xpose.msra.mxu0 0.0
    %4312 = vmatprep.subr.mxu0 0.0
    %4313 = vmatpush1.xpose.msra.mxu0 0.0
    %4314 = vmatprep.subr.mxu0 0.0
    %4315 = vmatpush1.xpose.msra.mxu0 0.0
    %4316 = vmatprep.subr.mxu0 0.0
    %4317 = vmatpush1.xpose.msra.mxu0 0.0
    %4318 = vmatprep.subr.mxu0 0.0
    %4319 = vmatpush1.xpose.msra.mxu0 0.0
    %4320 = vmatprep.subr.mxu0 0.0
    %4321 = vmatpush1.xpose.msra.mxu0 0.0
    %4322 = vmatprep.subr.mxu0 0.0
    %4323 = vmatpush1.xpose.msra.mxu0 0.0
    %4324 = vmatprep.subr.mxu0 0.0
    %4325 = vmatpush1.xpose.msra.mxu0 0.0
    %4326 = vmatprep.subr.mxu0 0.0
    %4327 = vmatpush1.xpose.msra.mxu0 0.0
    %4328 = vmatprep.subr.mxu0 0.0
    %4329 = vmatpush1.xpose.msra.mxu0 0.0
    %4330 = vmatprep.subr.mxu0 0.0
    %4331 = vmatpush1.xpose.msra.mxu0 0.0
    %4332 = vmatprep.subr.mxu0 0.0
    %4333 = vmatpush1.xpose.msra.mxu0 0.0
    %4334 = vmatprep.subr.mxu0 0.0
    %4335 = vmatpush1.xpose.msra.mxu0 0.0
    %4336 = vmatprep.subr.mxu0 0.0
    %4337 = vmatpush1.xpose.msra.mxu0 0.0
    %4338 = vmatprep.subr.mxu0 0.0
    %4339 = vmatpush1.xpose.msra.mxu0 0.0
    %4340 = vmatprep.subr.mxu0 0.0
    %4341 = vmatpush1.xpose.msra.mxu0 0.0
    %4342 = vmatprep.subr.mxu0 0.0
    %4343 = vmatpush1.xpose.msra.mxu0 0.0
    %4344 = vmatprep.subr.mxu0 0.0
    %4345 = vmatpush1.xpose.msra.mxu0 0.0
    %4346 = vmatprep.subr.mxu0 0.0
    %4347 = vmatpush1.xpose.msra.mxu0 0.0
    %4348 = vmatprep.mubr.f32.mxu0 0.0
    %v4349 = vand.u32 %v4267, 4294901760
    %v4350 = vsub.f32 %v4267, %v4349
    %v4351 = vand.u32 %v4350, 4294901760
    %v4352 = vsub.f32 %v4350, %v4351
    %v4353 = vand.u32 %v4352, 4294901760
    %4354 = vmatmul.mubr.f32.gmra.mrb[0].mxu0 %v4353
    %v4355 = vpop.f32.mrb[0].mxu0
    %v4356 = vadd.f32 %v4257, %v4355
    %v4357 = vpop.f32.mrb[0].mxu0
    %4358 = vmatprep.mubr.f32.mxu0 0.0
    %v4359 = vand.u32 %v4270, 4294901760
    %v4360 = vsub.f32 %v4270, %v4359
    %v4361 = vand.u32 %v4360, 4294901760
    %v4362 = vsub.f32 %v4360, %v4361
    %v4363 = vand.u32 %v4362, 4294901760
    %4364 = vmatmul.mubr.f32.gmra.mrb[0].mxu0 %v4363
    %v4365 = vpop.f32.mrb[0].mxu0
    %v4366 = vadd.f32 %v4263, %v4365
    %v4367 = vpop.f32.mrb[0].mxu0
    %4368 = vdwg.mxu0
    %4369 = vmatprep.subr.mxu0 0.0
    %v4370 = vand.u32 %v4272, 4294901760
    %v4371 = vsub.f32 %v4272, %v4370
    %v4372 = vand.u32 %v4371, 4294901760
    %v4373 = vsub.f32 %v4371, %v4372
    %v4374 = vand.u32 %v4373, 4294901760
    %4375 = vmatpush1.xpose.msra.mxu0 %v4374
    %4376 = vmatprep.subr.mxu0 0.0
    %v4377 = vand.u32 %v4274, 4294901760
    %v4378 = vsub.f32 %v4274, %v4377
    %v4379 = vand.u32 %v4378, 4294901760
    %v4380 = vsub.f32 %v4378, %v4379
    %v4381 = vand.u32 %v4380, 4294901760
    %4382 = vmatpush1.xpose.msra.mxu0 %v4381
    %4383 = vmatprep.subr.mxu0 0.0
    %v4384 = vand.u32 %v4276, 4294901760
    %v4385 = vsub.f32 %v4276, %v4384
    %v4386 = vand.u32 %v4385, 4294901760
    %v4387 = vsub.f32 %v4385, %v4386
    %v4388 = vand.u32 %v4387, 4294901760
    %4389 = vmatpush1.xpose.msra.mxu0 %v4388
    %4390 = vmatprep.subr.mxu0 0.0
    %v4391 = vand.u32 %v4278, 4294901760
    %v4392 = vsub.f32 %v4278, %v4391
    %v4393 = vand.u32 %v4392, 4294901760
    %v4394 = vsub.f32 %v4392, %v4393
    %v4395 = vand.u32 %v4394, 4294901760
    %4396 = vmatpush1.xpose.msra.mxu0 %v4395
    %4397 = vmatprep.subr.mxu0 0.0
    %4398 = vmatpush1.xpose.msra.mxu0 0.0
    %4399 = vmatprep.subr.mxu0 0.0
    %4400 = vmatpush1.xpose.msra.mxu0 0.0
    %4401 = vmatprep.subr.mxu0 0.0
    %4402 = vmatpush1.xpose.msra.mxu0 0.0
    %4403 = vmatprep.subr.mxu0 0.0
    %4404 = vmatpush1.xpose.msra.mxu0 0.0
    %4405 = vmatprep.subr.mxu0 0.0
    %4406 = vmatpush1.xpose.msra.mxu0 0.0
    %4407 = vmatprep.subr.mxu0 0.0
    %4408 = vmatpush1.xpose.msra.mxu0 0.0
    %4409 = vmatprep.subr.mxu0 0.0
    %4410 = vmatpush1.xpose.msra.mxu0 0.0
    %4411 = vmatprep.subr.mxu0 0.0
    %4412 = vmatpush1.xpose.msra.mxu0 0.0
    %4413 = vmatprep.subr.mxu0 0.0
    %4414 = vmatpush1.xpose.msra.mxu0 0.0
    %4415 = vmatprep.subr.mxu0 0.0
    %4416 = vmatpush1.xpose.msra.mxu0 0.0
    %4417 = vmatprep.subr.mxu0 0.0
    %4418 = vmatpush1.xpose.msra.mxu0 0.0
    %4419 = vmatprep.subr.mxu0 0.0
    %4420 = vmatpush1.xpose.msra.mxu0 0.0
    %4421 = vmatprep.subr.mxu0 0.0
    %4422 = vmatpush1.xpose.msra.mxu0 0.0
    %4423 = vmatprep.subr.mxu0 0.0
    %4424 = vmatpush1.xpose.msra.mxu0 0.0
    %4425 = vmatprep.subr.mxu0 0.0
    %4426 = vmatpush1.xpose.msra.mxu0 0.0
    %4427 = vmatprep.subr.mxu0 0.0
    %4428 = vmatpush1.xpose.msra.mxu0 0.0
    %4429 = vmatprep.subr.mxu0 0.0
    %4430 = vmatpush1.xpose.msra.mxu0 0.0
    %4431 = vmatprep.subr.mxu0 0.0
    %4432 = vmatpush1.xpose.msra.mxu0 0.0
    %4433 = vmatprep.subr.mxu0 0.0
    %4434 = vmatpush1.xpose.msra.mxu0 0.0
    %4435 = vmatprep.subr.mxu0 0.0
    %4436 = vmatpush1.xpose.msra.mxu0 0.0
    %4437 = vmatprep.subr.mxu0 0.0
    %4438 = vmatpush1.xpose.msra.mxu0 0.0
    %4439 = vmatprep.subr.mxu0 0.0
    %4440 = vmatpush1.xpose.msra.mxu0 0.0
    %4441 = vmatprep.subr.mxu0 0.0
    %4442 = vmatpush1.xpose.msra.mxu0 0.0
    %4443 = vmatprep.subr.mxu0 0.0
    %4444 = vmatpush1.xpose.msra.mxu0 0.0
    %4445 = vmatprep.subr.mxu0 0.0
    %4446 = vmatpush1.xpose.msra.mxu0 0.0
    %4447 = vmatprep.subr.mxu0 0.0
    %4448 = vmatpush1.xpose.msra.mxu0 0.0
    %4449 = vmatprep.subr.mxu0 0.0
    %4450 = vmatpush1.xpose.msra.mxu0 0.0
    %4451 = vmatprep.subr.mxu0 0.0
    %4452 = vmatpush1.xpose.msra.mxu0 0.0
    %4453 = vmatprep.mubr.f32.mxu0 0.0
    %v4454 = vand.u32 %v4267, 4294901760
    %4455 = vmatmul.mubr.f32.gmra.mrb[0].mxu0 %v4454
    %v4456 = vpop.f32.mrb[0].mxu0
    %v4457 = vadd.f32 %v4356, %v4456
    %v4458 = vpop.f32.mrb[0].mxu0
    %4459 = vmatprep.mubr.f32.mxu0 0.0
    %v4460 = vand.u32 %v4270, 4294901760
    %4461 = vmatmul.mubr.f32.gmra.mrb[0].mxu0 %v4460
    %v4462 = vpop.f32.mrb[0].mxu0
    %v4463 = vadd.f32 %v4366, %v4462
    %v4464 = vpop.f32.mrb[0].mxu0
    %4465 = vdwg.mxu0
    %4466 = vmatprep.subr.mxu0 0.0
    %v4467 = vand.u32 %v4272, 4294901760
    %v4468 = vsub.f32 %v4272, %v4467
    %4469 = vmatpush1.xpose.msra.mxu0 %v4468
    %4470 = vmatprep.subr.mxu0 0.0
    %v4471 = vand.u32 %v4274, 4294901760
    %v4472 = vsub.f32 %v4274, %v4471
    %4473 = vmatpush1.xpose.msra.mxu0 %v4472
    %4474 = vmatprep.subr.mxu0 0.0
    %v4475 = vand.u32 %v4276, 4294901760
    %v4476 = vsub.f32 %v4276, %v4475
    %4477 = vmatpush1.xpose.msra.mxu0 %v4476
    %4478 = vmatprep.subr.mxu0 0.0
    %v4479 = vand.u32 %v4278, 4294901760
    %v4480 = vsub.f32 %v4278, %v4479
    %4481 = vmatpush1.xpose.msra.mxu0 %v4480
    %4482 = vmatprep.subr.mxu0 0.0
    %4483 = vmatpush1.xpose.msra.mxu0 0.0
    %4484 = vmatprep.subr.mxu0 0.0
    %4485 = vmatpush1.xpose.msra.mxu0 0.0
    %4486 = vmatprep.subr.mxu0 0.0
    %4487 = vmatpush1.xpose.msra.mxu0 0.0
    %4488 = vmatprep.subr.mxu0 0.0
    %4489 = vmatpush1.xpose.msra.mxu0 0.0
    %4490 = vmatprep.subr.mxu0 0.0
    %4491 = vmatpush1.xpose.msra.mxu0 0.0
    %4492 = vmatprep.subr.mxu0 0.0
    %4493 = vmatpush1.xpose.msra.mxu0 0.0
    %4494 = vmatprep.subr.mxu0 0.0
    %4495 = vmatpush1.xpose.msra.mxu0 0.0
    %4496 = vmatprep.subr.mxu0 0.0
    %4497 = vmatpush1.xpose.msra.mxu0 0.0
    %4498 = vmatprep.subr.mxu0 0.0
    %4499 = vmatpush1.xpose.msra.mxu0 0.0
    %4500 = vmatprep.subr.mxu0 0.0
    %4501 = vmatpush1.xpose.msra.mxu0 0.0
    %4502 = vmatprep.subr.mxu0 0.0
    %4503 = vmatpush1.xpose.msra.mxu0 0.0
    %4504 = vmatprep.subr.mxu0 0.0
    %4505 = vmatpush1.xpose.msra.mxu0 0.0
    %4506 = vmatprep.subr.mxu0 0.0
    %4507 = vmatpush1.xpose.msra.mxu0 0.0
    %4508 = vmatprep.subr.mxu0 0.0
    %4509 = vmatpush1.xpose.msra.mxu0 0.0
    %4510 = vmatprep.subr.mxu0 0.0
    %4511 = vmatpush1.xpose.msra.mxu0 0.0
    %4512 = vmatprep.subr.mxu0 0.0
    %4513 = vmatpush1.xpose.msra.mxu0 0.0
    %4514 = vmatprep.subr.mxu0 0.0
    %4515 = vmatpush1.xpose.msra.mxu0 0.0
    %4516 = vmatprep.subr.mxu0 0.0
    %4517 = vmatpush1.xpose.msra.mxu0 0.0
    %4518 = vmatprep.subr.mxu0 0.0
    %4519 = vmatpush1.xpose.msra.mxu0 0.0
    %4520 = vmatprep.subr.mxu0 0.0
    %4521 = vmatpush1.xpose.msra.mxu0 0.0
    %4522 = vmatprep.subr.mxu0 0.0
    %4523 = vmatpush1.xpose.msra.mxu0 0.0
    %4524 = vmatprep.subr.mxu0 0.0
    %4525 = vmatpush1.xpose.msra.mxu0 0.0
    %4526 = vmatprep.subr.mxu0 0.0
    %4527 = vmatpush1.xpose.msra.mxu0 0.0
    %4528 = vmatprep.subr.mxu0 0.0
    %4529 = vmatpush1.xpose.msra.mxu0 0.0
    %4530 = vmatprep.subr.mxu0 0.0
    %4531 = vmatpush1.xpose.msra.mxu0 0.0
    %4532 = vmatprep.subr.mxu0 0.0
    %4533 = vmatpush1.xpose.msra.mxu0 0.0
    %4534 = vmatprep.subr.mxu0 0.0
    %4535 = vmatpush1.xpose.msra.mxu0 0.0
    %4536 = vmatprep.subr.mxu0 0.0
    %4537 = vmatpush1.xpose.msra.mxu0 0.0
    %4538 = vmatprep.mubr.f32.mxu0 0.0
    %v4539 = vand.u32 %v4267, 4294901760
    %v4540 = vsub.f32 %v4267, %v4539
    %4541 = vmatmul.mubr.f32.gmra.mrb[0].mxu0 %v4540
    %v4542 = vpop.f32.mrb[0].mxu0
    %v4543 = vadd.f32 %v4457, %v4542
    %v4544 = vpop.f32.mrb[0].mxu0
    %4545 = vmatprep.mubr.f32.mxu0 0.0
    %v4546 = vand.u32 %v4270, 4294901760
    %v4547 = vsub.f32 %v4270, %v4546
    %4548 = vmatmul.mubr.f32.gmra.mrb[0].mxu0 %v4547
    %v4549 = vpop.f32.mrb[0].mxu0
    %v4550 = vadd.f32 %v4463, %v4549
    %v4551 = vpop.f32.mrb[0].mxu0
    %4552 = vdwg.mxu0
    %4553 = vmatprep.subr.mxu0 0.0
    %v4554 = vand.u32 %v4272, 4294901760
    %4555 = vmatpush1.xpose.msra.mxu0 %v4554
    %4556 = vmatprep.subr.mxu0 0.0
    %v4557 = vand.u32 %v4274, 4294901760
    %4558 = vmatpush1.xpose.msra.mxu0 %v4557
    %4559 = vmatprep.subr.mxu0 0.0
    %v4560 = vand.u32 %v4276, 4294901760
    %4561 = vmatpush1.xpose.msra.mxu0 %v4560
    %4562 = vmatprep.subr.mxu0 0.0
    %v4563 = vand.u32 %v4278, 4294901760
    %4564 = vmatpush1.xpose.msra.mxu0 %v4563
    %4565 = vmatprep.subr.mxu0 0.0
    %4566 = vmatpush1.xpose.msra.mxu0 0.0
    %4567 = vmatprep.subr.mxu0 0.0
    %4568 = vmatpush1.xpose.msra.mxu0 0.0
    %4569 = vmatprep.subr.mxu0 0.0
    %4570 = vmatpush1.xpose.msra.mxu0 0.0
    %4571 = vmatprep.subr.mxu0 0.0
    %4572 = vmatpush1.xpose.msra.mxu0 0.0
    %4573 = vmatprep.subr.mxu0 0.0
    %4574 = vmatpush1.xpose.msra.mxu0 0.0
    %4575 = vmatprep.subr.mxu0 0.0
    %4576 = vmatpush1.xpose.msra.mxu0 0.0
    %4577 = vmatprep.subr.mxu0 0.0
    %4578 = vmatpush1.xpose.msra.mxu0 0.0
    %4579 = vmatprep.subr.mxu0 0.0
    %4580 = vmatpush1.xpose.msra.mxu0 0.0
    %4581 = vmatprep.subr.mxu0 0.0
    %4582 = vmatpush1.xpose.msra.mxu0 0.0
    %4583 = vmatprep.subr.mxu0 0.0
    %4584 = vmatpush1.xpose.msra.mxu0 0.0
    %4585 = vmatprep.subr.mxu0 0.0
    %4586 = vmatpush1.xpose.msra.mxu0 0.0
    %4587 = vmatprep.subr.mxu0 0.0
    %4588 = vmatpush1.xpose.msra.mxu0 0.0
    %4589 = vmatprep.subr.mxu0 0.0
    %4590 = vmatpush1.xpose.msra.mxu0 0.0
    %4591 = vmatprep.subr.mxu0 0.0
    %4592 = vmatpush1.xpose.msra.mxu0 0.0
    %4593 = vmatprep.subr.mxu0 0.0
    %4594 = vmatpush1.xpose.msra.mxu0 0.0
    %4595 = vmatprep.subr.mxu0 0.0
    %4596 = vmatpush1.xpose.msra.mxu0 0.0
    %4597 = vmatprep.subr.mxu0 0.0
    %4598 = vmatpush1.xpose.msra.mxu0 0.0
    %4599 = vmatprep.subr.mxu0 0.0
    %4600 = vmatpush1.xpose.msra.mxu0 0.0
    %4601 = vmatprep.subr.mxu0 0.0
    %4602 = vmatpush1.xpose.msra.mxu0 0.0
    %4603 = vmatprep.subr.mxu0 0.0
    %4604 = vmatpush1.xpose.msra.mxu0 0.0
    %4605 = vmatprep.subr.mxu0 0.0
    %4606 = vmatpush1.xpose.msra.mxu0 0.0
    %4607 = vmatprep.subr.mxu0 0.0
    %4608 = vmatpush1.xpose.msra.mxu0 0.0
    %4609 = vmatprep.subr.mxu0 0.0
    %4610 = vmatpush1.xpose.msra.mxu0 0.0
    %4611 = vmatprep.subr.mxu0 0.0
    %4612 = vmatpush1.xpose.msra.mxu0 0.0
    %4613 = vmatprep.subr.mxu0 0.0
    %4614 = vmatpush1.xpose.msra.mxu0 0.0
    %4615 = vmatprep.subr.mxu0 0.0
    %4616 = vmatpush1.xpose.msra.mxu0 0.0
    %4617 = vmatprep.subr.mxu0 0.0
    %4618 = vmatpush1.xpose.msra.mxu0 0.0
    %4619 = vmatprep.subr.mxu0 0.0
    %4620 = vmatpush1.xpose.msra.mxu0 0.0
    %4621 = vmatprep.mubr.f32.mxu0 0.0
    %v4622 = vand.u32 %v4267, 4294901760
    %v4623 = vsub.f32 %v4267, %v4622
    %v4624 = vand.u32 %v4623, 4294901760
    %4625 = vmatmul.mubr.f32.gmra.mrb[0].mxu0 %v4624
    %v4626 = vpop.f32.mrb[0].mxu0
    %v4627 = vadd.f32 %v4543, %v4626
    %v4628 = vpop.f32.mrb[0].mxu0
    %4629 = vmatprep.mubr.f32.mxu0 0.0
    %v4630 = vand.u32 %v4270, 4294901760
    %v4631 = vsub.f32 %v4270, %v4630
    %v4632 = vand.u32 %v4631, 4294901760
    %4633 = vmatmul.mubr.f32.gmra.mrb[0].mxu0 %v4632
    %v4634 = vpop.f32.mrb[0].mxu0
    %v4635 = vadd.f32 %v4550, %v4634
    %v4636 = vpop.f32.mrb[0].mxu0
    %4637 = vdwg.mxu0
    %4638 = vmatprep.subr.mxu0 0.0
    %v4639 = vand.u32 %v4272, 4294901760
    %v4640 = vsub.f32 %v4272, %v4639
    %v4641 = vand.u32 %v4640, 4294901760
    %4642 = vmatpush1.xpose.msra.mxu0 %v4641
    %4643 = vmatprep.subr.mxu0 0.0
    %v4644 = vand.u32 %v4274, 4294901760
    %v4645 = vsub.f32 %v4274, %v4644
    %v4646 = vand.u32 %v4645, 4294901760
    %4647 = vmatpush1.xpose.msra.mxu0 %v4646
    %4648 = vmatprep.subr.mxu0 0.0
    %v4649 = vand.u32 %v4276, 4294901760
    %v4650 = vsub.f32 %v4276, %v4649
    %v4651 = vand.u32 %v4650, 4294901760
    %4652 = vmatpush1.xpose.msra.mxu0 %v4651
    %4653 = vmatprep.subr.mxu0 0.0
    %v4654 = vand.u32 %v4278, 4294901760
    %v4655 = vsub.f32 %v4278, %v4654
    %v4656 = vand.u32 %v4655, 4294901760
    %4657 = vmatpush1.xpose.msra.mxu0 %v4656
    %4658 = vmatprep.subr.mxu0 0.0
    %4659 = vmatpush1.xpose.msra.mxu0 0.0
    %4660 = vmatprep.subr.mxu0 0.0
    %4661 = vmatpush1.xpose.msra.mxu0 0.0
    %4662 = vmatprep.subr.mxu0 0.0
    %4663 = vmatpush1.xpose.msra.mxu0 0.0
    %4664 = vmatprep.subr.mxu0 0.0
    %4665 = vmatpush1.xpose.msra.mxu0 0.0
    %4666 = vmatprep.subr.mxu0 0.0
    %4667 = vmatpush1.xpose.msra.mxu0 0.0
    %4668 = vmatprep.subr.mxu0 0.0
    %4669 = vmatpush1.xpose.msra.mxu0 0.0
    %4670 = vmatprep.subr.mxu0 0.0
    %4671 = vmatpush1.xpose.msra.mxu0 0.0
    %4672 = vmatprep.subr.mxu0 0.0
    %4673 = vmatpush1.xpose.msra.mxu0 0.0
    %4674 = vmatprep.subr.mxu0 0.0
    %4675 = vmatpush1.xpose.msra.mxu0 0.0
    %4676 = vmatprep.subr.mxu0 0.0
    %4677 = vmatpush1.xpose.msra.mxu0 0.0
    %4678 = vmatprep.subr.mxu0 0.0
    %4679 = vmatpush1.xpose.msra.mxu0 0.0
    %4680 = vmatprep.subr.mxu0 0.0
    %4681 = vmatpush1.xpose.msra.mxu0 0.0
    %4682 = vmatprep.subr.mxu0 0.0
    %4683 = vmatpush1.xpose.msra.mxu0 0.0
    %4684 = vmatprep.subr.mxu0 0.0
    %4685 = vmatpush1.xpose.msra.mxu0 0.0
    %4686 = vmatprep.subr.mxu0 0.0
    %4687 = vmatpush1.xpose.msra.mxu0 0.0
    %4688 = vmatprep.subr.mxu0 0.0
    %4689 = vmatpush1.xpose.msra.mxu0 0.0
    %4690 = vmatprep.subr.mxu0 0.0
    %4691 = vmatpush1.xpose.msra.mxu0 0.0
    %4692 = vmatprep.subr.mxu0 0.0
    %4693 = vmatpush1.xpose.msra.mxu0 0.0
    %4694 = vmatprep.subr.mxu0 0.0
    %4695 = vmatpush1.xpose.msra.mxu0 0.0
    %4696 = vmatprep.subr.mxu0 0.0
    %4697 = vmatpush1.xpose.msra.mxu0 0.0
    %4698 = vmatprep.subr.mxu0 0.0
    %4699 = vmatpush1.xpose.msra.mxu0 0.0
    %4700 = vmatprep.subr.mxu0 0.0
    %4701 = vmatpush1.xpose.msra.mxu0 0.0
    %4702 = vmatprep.subr.mxu0 0.0
    %4703 = vmatpush1.xpose.msra.mxu0 0.0
    %4704 = vmatprep.subr.mxu0 0.0
    %4705 = vmatpush1.xpose.msra.mxu0 0.0
    %4706 = vmatprep.subr.mxu0 0.0
    %4707 = vmatpush1.xpose.msra.mxu0 0.0
    %4708 = vmatprep.subr.mxu0 0.0
    %4709 = vmatpush1.xpose.msra.mxu0 0.0
    %4710 = vmatprep.subr.mxu0 0.0
    %4711 = vmatpush1.xpose.msra.mxu0 0.0
    %4712 = vmatprep.subr.mxu0 0.0
    %4713 = vmatpush1.xpose.msra.mxu0 0.0
    %4714 = vmatprep.mubr.f32.mxu0 0.0
    %v4715 = vand.u32 %v4267, 4294901760
    %4716 = vmatmul.mubr.f32.gmra.mrb[0].mxu0 %v4715
    %v4717 = vpop.f32.mrb[0].mxu0
    %v4718 = vadd.f32 %v4627, %v4717
    %v4719 = vpop.f32.mrb[0].mxu0
    %4720 = vmatprep.mubr.f32.mxu0 0.0
    %v4721 = vand.u32 %v4270, 4294901760
    %4722 = vmatmul.mubr.f32.gmra.mrb[0].mxu0 %v4721
    %v4723 = vpop.f32.mrb[0].mxu0
    %v4724 = vadd.f32 %v4635, %v4723
    %v4725 = vpop.f32.mrb[0].mxu0
    %4726 = vdwg.mxu0
    %4727 = vmatprep.subr.mxu0 0.0
    %v4728 = vand.u32 %v4272, 4294901760
    %4729 = vmatpush1.xpose.msra.mxu0 %v4728
    %4730 = vmatprep.subr.mxu0 0.0
    %v4731 = vand.u32 %v4274, 4294901760
    %4732 = vmatpush1.xpose.msra.mxu0 %v4731
    %4733 = vmatprep.subr.mxu0 0.0
    %v4734 = vand.u32 %v4276, 4294901760
    %4735 = vmatpush1.xpose.msra.mxu0 %v4734
    %4736 = vmatprep.subr.mxu0 0.0
    %v4737 = vand.u32 %v4278, 4294901760
    %4738 = vmatpush1.xpose.msra.mxu0 %v4737
    %4739 = vmatprep.subr.mxu0 0.0
    %4740 = vmatpush1.xpose.msra.mxu0 0.0
    %4741 = vmatprep.subr.mxu0 0.0
    %4742 = vmatpush1.xpose.msra.mxu0 0.0
    %4743 = vmatprep.subr.mxu0 0.0
    %4744 = vmatpush1.xpose.msra.mxu0 0.0
    %4745 = vmatprep.subr.mxu0 0.0
    %4746 = vmatpush1.xpose.msra.mxu0 0.0
    %4747 = vmatprep.subr.mxu0 0.0
    %4748 = vmatpush1.xpose.msra.mxu0 0.0
    %4749 = vmatprep.subr.mxu0 0.0
    %4750 = vmatpush1.xpose.msra.mxu0 0.0
    %4751 = vmatprep.subr.mxu0 0.0
    %4752 = vmatpush1.xpose.msra.mxu0 0.0
    %4753 = vmatprep.subr.mxu0 0.0
    %4754 = vmatpush1.xpose.msra.mxu0 0.0
    %4755 = vmatprep.subr.mxu0 0.0
    %4756 = vmatpush1.xpose.msra.mxu0 0.0
    %4757 = vmatprep.subr.mxu0 0.0
    %4758 = vmatpush1.xpose.msra.mxu0 0.0
    %4759 = vmatprep.subr.mxu0 0.0
    %4760 = vmatpush1.xpose.msra.mxu0 0.0
    %4761 = vmatprep.subr.mxu0 0.0
    %4762 = vmatpush1.xpose.msra.mxu0 0.0
    %4763 = vmatprep.subr.mxu0 0.0
    %4764 = vmatpush1.xpose.msra.mxu0 0.0
    %4765 = vmatprep.subr.mxu0 0.0
    %4766 = vmatpush1.xpose.msra.mxu0 0.0
    %4767 = vmatprep.subr.mxu0 0.0
    %4768 = vmatpush1.xpose.msra.mxu0 0.0
    %4769 = vmatprep.subr.mxu0 0.0
    %4770 = vmatpush1.xpose.msra.mxu0 0.0
    %4771 = vmatprep.subr.mxu0 0.0
    %4772 = vmatpush1.xpose.msra.mxu0 0.0
    %4773 = vmatprep.subr.mxu0 0.0
    %4774 = vmatpush1.xpose.msra.mxu0 0.0
    %4775 = vmatprep.subr.mxu0 0.0
    %4776 = vmatpush1.xpose.msra.mxu0 0.0
    %4777 = vmatprep.subr.mxu0 0.0
    %4778 = vmatpush1.xpose.msra.mxu0 0.0
    %4779 = vmatprep.subr.mxu0 0.0
    %4780 = vmatpush1.xpose.msra.mxu0 0.0
    %4781 = vmatprep.subr.mxu0 0.0
    %4782 = vmatpush1.xpose.msra.mxu0 0.0
    %4783 = vmatprep.subr.mxu0 0.0
    %4784 = vmatpush1.xpose.msra.mxu0 0.0
    %4785 = vmatprep.subr.mxu0 0.0
    %4786 = vmatpush1.xpose.msra.mxu0 0.0
    %4787 = vmatprep.subr.mxu0 0.0
    %4788 = vmatpush1.xpose.msra.mxu0 0.0
    %4789 = vmatprep.subr.mxu0 0.0
    %4790 = vmatpush1.xpose.msra.mxu0 0.0
    %4791 = vmatprep.subr.mxu0 0.0
    %4792 = vmatpush1.xpose.msra.mxu0 0.0
    %4793 = vmatprep.subr.mxu0 0.0
    %4794 = vmatpush1.xpose.msra.mxu0 0.0
    %4795 = vmatprep.mubr.f32.mxu0 0.0
    %v4796 = vand.u32 %v4267, 4294901760
    %4797 = vmatmul.mubr.f32.gmra.mrb[0].mxu0 %v4796
    %v4798 = vpop.f32.mrb[0].mxu0
    %v4799 = vadd.f32 %v4718, %v4798
    %v4800 = vpop.f32.mrb[0].mxu0
    %4801 = vmatprep.mubr.f32.mxu0 0.0
    %v4802 = vand.u32 %v4270, 4294901760
    %4803 = vmatmul.mubr.f32.gmra.mrb[0].mxu0 %v4802
    %v4804 = vpop.f32.mrb[0].mxu0
    %v4805 = vadd.f32 %v4724, %v4804
    %v4806 = vpop.f32.mrb[0].mxu0
    %4807 = vdwg.mxu0
    %4808 = vrot.lane.b32.xlu0 %v60, 112
    %v4809 = vpop.permute.xlu0 %4808
    %v4810 = vsel %vm67, %v4809, 0
    %4812 = vmatprep.subr.mxu0 0.0
    %v4813 = vand.u32 %v4810, 4294901760
    %4814 = vmatpush1.xpose.msra.mxu0 %v4813
    %4815 = vmatprep.subr.mxu0 0.0
    %4816 = vmatpush1.xpose.msra.mxu0 0.0
    %4817 = vmatprep.subr.mxu0 0.0
    %4818 = vmatpush1.xpose.msra.mxu0 0.0
    %4819 = vmatprep.subr.mxu0 0.0
    %4820 = vmatpush1.xpose.msra.mxu0 0.0
    %4821 = vmatprep.subr.mxu0 0.0
    %4822 = vmatpush1.xpose.msra.mxu0 0.0
    %4823 = vmatprep.subr.mxu0 0.0
    %4824 = vmatpush1.xpose.msra.mxu0 0.0
    %4825 = vmatprep.subr.mxu0 0.0
    %4826 = vmatpush1.xpose.msra.mxu0 0.0
    %4827 = vmatprep.subr.mxu0 0.0
    %4828 = vmatpush1.xpose.msra.mxu0 0.0
    %4829 = vmatprep.subr.mxu0 0.0
    %4830 = vmatpush1.xpose.msra.mxu0 0.0
    %4831 = vmatprep.subr.mxu0 0.0
    %4832 = vmatpush1.xpose.msra.mxu0 0.0
    %4833 = vmatprep.subr.mxu0 0.0
    %4834 = vmatpush1.xpose.msra.mxu0 0.0
    %4835 = vmatprep.subr.mxu0 0.0
    %4836 = vmatpush1.xpose.msra.mxu0 0.0
    %4837 = vmatprep.subr.mxu0 0.0
    %4838 = vmatpush1.xpose.msra.mxu0 0.0
    %4839 = vmatprep.subr.mxu0 0.0
    %4840 = vmatpush1.xpose.msra.mxu0 0.0
    %4841 = vmatprep.subr.mxu0 0.0
    %4842 = vmatpush1.xpose.msra.mxu0 0.0
    %4843 = vmatprep.subr.mxu0 0.0
    %4844 = vmatpush1.xpose.msra.mxu0 0.0
    %4845 = vmatprep.subr.mxu0 0.0
    %4846 = vmatpush1.xpose.msra.mxu0 0.0
    %4847 = vmatprep.subr.mxu0 0.0
    %4848 = vmatpush1.xpose.msra.mxu0 0.0
    %4849 = vmatprep.subr.mxu0 0.0
    %4850 = vmatpush1.xpose.msra.mxu0 0.0
    %4851 = vmatprep.subr.mxu0 0.0
    %4852 = vmatpush1.xpose.msra.mxu0 0.0
    %4853 = vmatprep.subr.mxu0 0.0
    %4854 = vmatpush1.xpose.msra.mxu0 0.0
    %4855 = vmatprep.subr.mxu0 0.0
    %4856 = vmatpush1.xpose.msra.mxu0 0.0
    %4857 = vmatprep.subr.mxu0 0.0
    %4858 = vmatpush1.xpose.msra.mxu0 0.0
    %4859 = vmatprep.subr.mxu0 0.0
    %4860 = vmatpush1.xpose.msra.mxu0 0.0
    %4861 = vmatprep.subr.mxu0 0.0
    %4862 = vmatpush1.xpose.msra.mxu0 0.0
    %4863 = vmatprep.subr.mxu0 0.0
    %4864 = vmatpush1.xpose.msra.mxu0 0.0
    %4865 = vmatprep.subr.mxu0 0.0
    %4866 = vmatpush1.xpose.msra.mxu0 0.0
    %4867 = vmatprep.subr.mxu0 0.0
    %4868 = vmatpush1.xpose.msra.mxu0 0.0
    %4869 = vmatprep.subr.mxu0 0.0
    %4870 = vmatpush1.xpose.msra.mxu0 0.0
    %4871 = vmatprep.subr.mxu0 0.0
    %4872 = vmatpush1.xpose.msra.mxu0 0.0
    %4873 = vmatprep.subr.mxu0 0.0
    %4874 = vmatpush1.xpose.msra.mxu0 0.0
    %4875 = vmatprep.subr.mxu0 0.0
    %4876 = vmatpush1.xpose.msra.mxu0 0.0
    %4877 = vmatprep.mubr.f32.mxu0 0.0
    %v4878 = vand.u32 %v4810, 4294901760
    %v4879 = vsub.f32 %v4810, %v4878
    %v4880 = vand.u32 %v4879, 4294901760
    %v4881 = vsub.f32 %v4879, %v4880
    %v4882 = vand.u32 %v4881, 4294901760
    %4883 = vmatmul.mubr.f32.gmra.mrb[0].mxu0 %v4882
    %v4884 = vpop.f32.mrb[0].mxu0
    %v4885 = vadd.f32 0.0, %v4884
    %v4886 = vpop.f32.mrb[0].mxu0
    %4887 = vdwg.mxu0
    %4888 = vmatprep.subr.mxu0 0.0
    %v4889 = vand.u32 %v4810, 4294901760
    %v4890 = vsub.f32 %v4810, %v4889
    %v4891 = vand.u32 %v4890, 4294901760
    %v4892 = vsub.f32 %v4890, %v4891
    %v4893 = vand.u32 %v4892, 4294901760
    %4894 = vmatpush1.xpose.msra.mxu0 %v4893
    %4895 = vmatprep.subr.mxu0 0.0
    %4896 = vmatpush1.xpose.msra.mxu0 0.0
    %4897 = vmatprep.subr.mxu0 0.0
    %4898 = vmatpush1.xpose.msra.mxu0 0.0
    %4899 = vmatprep.subr.mxu0 0.0
    %4900 = vmatpush1.xpose.msra.mxu0 0.0
    %4901 = vmatprep.subr.mxu0 0.0
    %4902 = vmatpush1.xpose.msra.mxu0 0.0
    %4903 = vmatprep.subr.mxu0 0.0
    %4904 = vmatpush1.xpose.msra.mxu0 0.0
    %4905 = vmatprep.subr.mxu0 0.0
    %4906 = vmatpush1.xpose.msra.mxu0 0.0
    %4907 = vmatprep.subr.mxu0 0.0
    %4908 = vmatpush1.xpose.msra.mxu0 0.0
    %4909 = vmatprep.subr.mxu0 0.0
    %4910 = vmatpush1.xpose.msra.mxu0 0.0
    %4911 = vmatprep.subr.mxu0 0.0
    %4912 = vmatpush1.xpose.msra.mxu0 0.0
    %4913 = vmatprep.subr.mxu0 0.0
    %4914 = vmatpush1.xpose.msra.mxu0 0.0
    %4915 = vmatprep.subr.mxu0 0.0
    %4916 = vmatpush1.xpose.msra.mxu0 0.0
    %4917 = vmatprep.subr.mxu0 0.0
    %4918 = vmatpush1.xpose.msra.mxu0 0.0
    %4919 = vmatprep.subr.mxu0 0.0
    %4920 = vmatpush1.xpose.msra.mxu0 0.0
    %4921 = vmatprep.subr.mxu0 0.0
    %4922 = vmatpush1.xpose.msra.mxu0 0.0
    %4923 = vmatprep.subr.mxu0 0.0
    %4924 = vmatpush1.xpose.msra.mxu0 0.0
    %4925 = vmatprep.subr.mxu0 0.0
    %4926 = vmatpush1.xpose.msra.mxu0 0.0
    %4927 = vmatprep.subr.mxu0 0.0
    %4928 = vmatpush1.xpose.msra.mxu0 0.0
    %4929 = vmatprep.subr.mxu0 0.0
    %4930 = vmatpush1.xpose.msra.mxu0 0.0
    %4931 = vmatprep.subr.mxu0 0.0
    %4932 = vmatpush1.xpose.msra.mxu0 0.0
    %4933 = vmatprep.subr.mxu0 0.0
    %4934 = vmatpush1.xpose.msra.mxu0 0.0
    %4935 = vmatprep.subr.mxu0 0.0
    %4936 = vmatpush1.xpose.msra.mxu0 0.0
    %4937 = vmatprep.subr.mxu0 0.0
    %4938 = vmatpush1.xpose.msra.mxu0 0.0
    %4939 = vmatprep.subr.mxu0 0.0
    %4940 = vmatpush1.xpose.msra.mxu0 0.0
    %4941 = vmatprep.subr.mxu0 0.0
    %4942 = vmatpush1.xpose.msra.mxu0 0.0
    %4943 = vmatprep.subr.mxu0 0.0
    %4944 = vmatpush1.xpose.msra.mxu0 0.0
    %4945 = vmatprep.subr.mxu0 0.0
    %4946 = vmatpush1.xpose.msra.mxu0 0.0
    %4947 = vmatprep.subr.mxu0 0.0
    %4948 = vmatpush1.xpose.msra.mxu0 0.0
    %4949 = vmatprep.subr.mxu0 0.0
    %4950 = vmatpush1.xpose.msra.mxu0 0.0
    %4951 = vmatprep.subr.mxu0 0.0
    %4952 = vmatpush1.xpose.msra.mxu0 0.0
    %4953 = vmatprep.subr.mxu0 0.0
    %4954 = vmatpush1.xpose.msra.mxu0 0.0
    %4955 = vmatprep.subr.mxu0 0.0
    %4956 = vmatpush1.xpose.msra.mxu0 0.0
    %4957 = vmatprep.mubr.f32.mxu0 0.0
    %v4958 = vand.u32 %v4810, 4294901760
    %4959 = vmatmul.mubr.f32.gmra.mrb[0].mxu0 %v4958
    %v4960 = vpop.f32.mrb[0].mxu0
    %v4961 = vadd.f32 %v4885, %v4960
    %v4962 = vpop.f32.mrb[0].mxu0
    %4963 = vdwg.mxu0
    %4964 = vmatprep.subr.mxu0 0.0
    %v4965 = vand.u32 %v4810, 4294901760
    %v4966 = vsub.f32 %v4810, %v4965
    %4967 = vmatpush1.xpose.msra.mxu0 %v4966
    %4968 = vmatprep.subr.mxu0 0.0
    %4969 = vmatpush1.xpose.msra.mxu0 0.0
    %4970 = vmatprep.subr.mxu0 0.0
    %4971 = vmatpush1.xpose.msra.mxu0 0.0
    %4972 = vmatprep.subr.mxu0 0.0
    %4973 = vmatpush1.xpose.msra.mxu0 0.0
    %4974 = vmatprep.subr.mxu0 0.0
    %4975 = vmatpush1.xpose.msra.mxu0 0.0
    %4976 = vmatprep.subr.mxu0 0.0
    %4977 = vmatpush1.xpose.msra.mxu0 0.0
    %4978 = vmatprep.subr.mxu0 0.0
    %4979 = vmatpush1.xpose.msra.mxu0 0.0
    %4980 = vmatprep.subr.mxu0 0.0
    %4981 = vmatpush1.xpose.msra.mxu0 0.0
    %4982 = vmatprep.subr.mxu0 0.0
    %4983 = vmatpush1.xpose.msra.mxu0 0.0
    %4984 = vmatprep.subr.mxu0 0.0
    %4985 = vmatpush1.xpose.msra.mxu0 0.0
    %4986 = vmatprep.subr.mxu0 0.0
    %4987 = vmatpush1.xpose.msra.mxu0 0.0
    %4988 = vmatprep.subr.mxu0 0.0
    %4989 = vmatpush1.xpose.msra.mxu0 0.0
    %4990 = vmatprep.subr.mxu0 0.0
    %4991 = vmatpush1.xpose.msra.mxu0 0.0
    %4992 = vmatprep.subr.mxu0 0.0
    %4993 = vmatpush1.xpose.msra.mxu0 0.0
    %4994 = vmatprep.subr.mxu0 0.0
    %4995 = vmatpush1.xpose.msra.mxu0 0.0
    %4996 = vmatprep.subr.mxu0 0.0
    %4997 = vmatpush1.xpose.msra.mxu0 0.0
    %4998 = vmatprep.subr.mxu0 0.0
    %4999 = vmatpush1.xpose.msra.mxu0 0.0
    %5000 = vmatprep.subr.mxu0 0.0
    %5001 = vmatpush1.xpose.msra.mxu0 0.0
    %5002 = vmatprep.subr.mxu0 0.0
    %5003 = vmatpush1.xpose.msra.mxu0 0.0
    %5004 = vmatprep.subr.mxu0 0.0
    %5005 = vmatpush1.xpose.msra.mxu0 0.0
    %5006 = vmatprep.subr.mxu0 0.0
    %5007 = vmatpush1.xpose.msra.mxu0 0.0
    %5008 = vmatprep.subr.mxu0 0.0
    %5009 = vmatpush1.xpose.msra.mxu0 0.0
    %5010 = vmatprep.subr.mxu0 0.0
    %5011 = vmatpush1.xpose.msra.mxu0 0.0
    %5012 = vmatprep.subr.mxu0 0.0
    %5013 = vmatpush1.xpose.msra.mxu0 0.0
    %5014 = vmatprep.subr.mxu0 0.0
    %5015 = vmatpush1.xpose.msra.mxu0 0.0
    %5016 = vmatprep.subr.mxu0 0.0
    %5017 = vmatpush1.xpose.msra.mxu0 0.0
    %5018 = vmatprep.subr.mxu0 0.0
    %5019 = vmatpush1.xpose.msra.mxu0 0.0
    %5020 = vmatprep.subr.mxu0 0.0
    %5021 = vmatpush1.xpose.msra.mxu0 0.0
    %5022 = vmatprep.subr.mxu0 0.0
    %5023 = vmatpush1.xpose.msra.mxu0 0.0
    %5024 = vmatprep.subr.mxu0 0.0
    %5025 = vmatpush1.xpose.msra.mxu0 0.0
    %5026 = vmatprep.subr.mxu0 0.0
    %5027 = vmatpush1.xpose.msra.mxu0 0.0
    %5028 = vmatprep.subr.mxu0 0.0
    %5029 = vmatpush1.xpose.msra.mxu0 0.0
    %5030 = vmatprep.mubr.f32.mxu0 0.0
    %v5031 = vand.u32 %v4810, 4294901760
    %v5032 = vsub.f32 %v4810, %v5031
    %5033 = vmatmul.mubr.f32.gmra.mrb[0].mxu0 %v5032
    %v5034 = vpop.f32.mrb[0].mxu0
    %v5035 = vadd.f32 %v4961, %v5034
    %v5036 = vpop.f32.mrb[0].mxu0
    %5037 = vdwg.mxu0
    %5038 = vmatprep.subr.mxu0 0.0
    %v5039 = vand.u32 %v4810, 4294901760
    %5040 = vmatpush1.xpose.msra.mxu0 %v5039
    %5041 = vmatprep.subr.mxu0 0.0
    %5042 = vmatpush1.xpose.msra.mxu0 0.0
    %5043 = vmatprep.subr.mxu0 0.0
    %5044 = vmatpush1.xpose.msra.mxu0 0.0
    %5045 = vmatprep.subr.mxu0 0.0
    %5046 = vmatpush1.xpose.msra.mxu0 0.0
    %5047 = vmatprep.subr.mxu0 0.0
    %5048 = vmatpush1.xpose.msra.mxu0 0.0
    %5049 = vmatprep.subr.mxu0 0.0
    %5050 = vmatpush1.xpose.msra.mxu0 0.0
    %5051 = vmatprep.subr.mxu0 0.0
    %5052 = vmatpush1.xpose.msra.mxu0 0.0
    %5053 = vmatprep.subr.mxu0 0.0
    %5054 = vmatpush1.xpose.msra.mxu0 0.0
    %5055 = vmatprep.subr.mxu0 0.0
    %5056 = vmatpush1.xpose.msra.mxu0 0.0
    %5057 = vmatprep.subr.mxu0 0.0
    %5058 = vmatpush1.xpose.msra.mxu0 0.0
    %5059 = vmatprep.subr.mxu0 0.0
    %5060 = vmatpush1.xpose.msra.mxu0 0.0
    %5061 = vmatprep.subr.mxu0 0.0
    %5062 = vmatpush1.xpose.msra.mxu0 0.0
    %5063 = vmatprep.subr.mxu0 0.0
    %5064 = vmatpush1.xpose.msra.mxu0 0.0
    %5065 = vmatprep.subr.mxu0 0.0
    %5066 = vmatpush1.xpose.msra.mxu0 0.0
    %5067 = vmatprep.subr.mxu0 0.0
    %5068 = vmatpush1.xpose.msra.mxu0 0.0
    %5069 = vmatprep.subr.mxu0 0.0
    %5070 = vmatpush1.xpose.msra.mxu0 0.0
    %5071 = vmatprep.subr.mxu0 0.0
    %5072 = vmatpush1.xpose.msra.mxu0 0.0
    %5073 = vmatprep.subr.mxu0 0.0
    %5074 = vmatpush1.xpose.msra.mxu0 0.0
    %5075 = vmatprep.subr.mxu0 0.0
    %5076 = vmatpush1.xpose.msra.mxu0 0.0
    %5077 = vmatprep.subr.mxu0 0.0
    %5078 = vmatpush1.xpose.msra.mxu0 0.0
    %5079 = vmatprep.subr.mxu0 0.0
    %5080 = vmatpush1.xpose.msra.mxu0 0.0
    %5081 = vmatprep.subr.mxu0 0.0
    %5082 = vmatpush1.xpose.msra.mxu0 0.0
    %5083 = vmatprep.subr.mxu0 0.0
    %5084 = vmatpush1.xpose.msra.mxu0 0.0
    %5085 = vmatprep.subr.mxu0 0.0
    %5086 = vmatpush1.xpose.msra.mxu0 0.0
    %5087 = vmatprep.subr.mxu0 0.0
    %5088 = vmatpush1.xpose.msra.mxu0 0.0
    %5089 = vmatprep.subr.mxu0 0.0
    %5090 = vmatpush1.xpose.msra.mxu0 0.0
    %5091 = vmatprep.subr.mxu0 0.0
    %5092 = vmatpush1.xpose.msra.mxu0 0.0
    %5093 = vmatprep.subr.mxu0 0.0
    %5094 = vmatpush1.xpose.msra.mxu0 0.0
    %5095 = vmatprep.subr.mxu0 0.0
    %5096 = vmatpush1.xpose.msra.mxu0 0.0
    %5097 = vmatprep.subr.mxu0 0.0
    %5098 = vmatpush1.xpose.msra.mxu0 0.0
    %5099 = vmatprep.subr.mxu0 0.0
    %5100 = vmatpush1.xpose.msra.mxu0 0.0
    %5101 = vmatprep.subr.mxu0 0.0
    %5102 = vmatpush1.xpose.msra.mxu0 0.0
    %5103 = vmatprep.mubr.f32.mxu0 0.0
    %v5104 = vand.u32 %v4810, 4294901760
    %v5105 = vsub.f32 %v4810, %v5104
    %v5106 = vand.u32 %v5105, 4294901760
    %5107 = vmatmul.mubr.f32.gmra.mrb[0].mxu0 %v5106
    %v5108 = vpop.f32.mrb[0].mxu0
    %v5109 = vadd.f32 %v5035, %v5108
    %v5110 = vpop.f32.mrb[0].mxu0
    %5111 = vdwg.mxu0
    %5112 = vmatprep.subr.mxu0 0.0
    %v5113 = vand.u32 %v4810, 4294901760
    %v5114 = vsub.f32 %v4810, %v5113
    %v5115 = vand.u32 %v5114, 4294901760
    %5116 = vmatpush1.xpose.msra.mxu0 %v5115
    %5117 = vmatprep.subr.mxu0 0.0
    %5118 = vmatpush1.xpose.msra.mxu0 0.0
    %5119 = vmatprep.subr.mxu0 0.0
    %5120 = vmatpush1.xpose.msra.mxu0 0.0
    %5121 = vmatprep.subr.mxu0 0.0
    %5122 = vmatpush1.xpose.msra.mxu0 0.0
    %5123 = vmatprep.subr.mxu0 0.0
    %5124 = vmatpush1.xpose.msra.mxu0 0.0
    %5125 = vmatprep.subr.mxu0 0.0
    %5126 = vmatpush1.xpose.msra.mxu0 0.0
    %5127 = vmatprep.subr.mxu0 0.0
    %5128 = vmatpush1.xpose.msra.mxu0 0.0
    %5129 = vmatprep.subr.mxu0 0.0
    %5130 = vmatpush1.xpose.msra.mxu0 0.0
    %5131 = vmatprep.subr.mxu0 0.0
    %5132 = vmatpush1.xpose.msra.mxu0 0.0
    %5133 = vmatprep.subr.mxu0 0.0
    %5134 = vmatpush1.xpose.msra.mxu0 0.0
    %5135 = vmatprep.subr.mxu0 0.0
    %5136 = vmatpush1.xpose.msra.mxu0 0.0
    %5137 = vmatprep.subr.mxu0 0.0
    %5138 = vmatpush1.xpose.msra.mxu0 0.0
    %5139 = vmatprep.subr.mxu0 0.0
    %5140 = vmatpush1.xpose.msra.mxu0 0.0
    %5141 = vmatprep.subr.mxu0 0.0
    %5142 = vmatpush1.xpose.msra.mxu0 0.0
    %5143 = vmatprep.subr.mxu0 0.0
    %5144 = vmatpush1.xpose.msra.mxu0 0.0
    %5145 = vmatprep.subr.mxu0 0.0
    %5146 = vmatpush1.xpose.msra.mxu0 0.0
    %5147 = vmatprep.subr.mxu0 0.0
    %5148 = vmatpush1.xpose.msra.mxu0 0.0
    %5149 = vmatprep.subr.mxu0 0.0
    %5150 = vmatpush1.xpose.msra.mxu0 0.0
    %5151 = vmatprep.subr.mxu0 0.0
    %5152 = vmatpush1.xpose.msra.mxu0 0.0
    %5153 = vmatprep.subr.mxu0 0.0
    %5154 = vmatpush1.xpose.msra.mxu0 0.0
    %5155 = vmatprep.subr.mxu0 0.0
    %5156 = vmatpush1.xpose.msra.mxu0 0.0
    %5157 = vmatprep.subr.mxu0 0.0
    %5158 = vmatpush1.xpose.msra.mxu0 0.0
    %5159 = vmatprep.subr.mxu0 0.0
    %5160 = vmatpush1.xpose.msra.mxu0 0.0
    %5161 = vmatprep.subr.mxu0 0.0
    %5162 = vmatpush1.xpose.msra.mxu0 0.0
    %5163 = vmatprep.subr.mxu0 0.0
    %5164 = vmatpush1.xpose.msra.mxu0 0.0
    %5165 = vmatprep.subr.mxu0 0.0
    %5166 = vmatpush1.xpose.msra.mxu0 0.0
    %5167 = vmatprep.subr.mxu0 0.0
    %5168 = vmatpush1.xpose.msra.mxu0 0.0
    %5169 = vmatprep.subr.mxu0 0.0
    %5170 = vmatpush1.xpose.msra.mxu0 0.0
    %5171 = vmatprep.subr.mxu0 0.0
    %5172 = vmatpush1.xpose.msra.mxu0 0.0
    %5173 = vmatprep.subr.mxu0 0.0
    %5174 = vmatpush1.xpose.msra.mxu0 0.0
    %5175 = vmatprep.subr.mxu0 0.0
    %5176 = vmatpush1.xpose.msra.mxu0 0.0
    %5177 = vmatprep.subr.mxu0 0.0
    %5178 = vmatpush1.xpose.msra.mxu0 0.0
    %5179 = vmatprep.mubr.f32.mxu0 0.0
    %v5180 = vand.u32 %v4810, 4294901760
    %5181 = vmatmul.mubr.f32.gmra.mrb[0].mxu0 %v5180
    %v5182 = vpop.f32.mrb[0].mxu0
    %v5183 = vadd.f32 %v5109, %v5182
    %v5184 = vpop.f32.mrb[0].mxu0
    %5185 = vdwg.mxu0
    %5186 = vmatprep.subr.mxu0 0.0
    %v5187 = vand.u32 %v4810, 4294901760
    %5188 = vmatpush1.xpose.msra.mxu0 %v5187
    %5189 = vmatprep.subr.mxu0 0.0
    %5190 = vmatpush1.xpose.msra.mxu0 0.0
    %5191 = vmatprep.subr.mxu0 0.0
    %5192 = vmatpush1.xpose.msra.mxu0 0.0
    %5193 = vmatprep.subr.mxu0 0.0
    %5194 = vmatpush1.xpose.msra.mxu0 0.0
    %5195 = vmatprep.subr.mxu0 0.0
    %5196 = vmatpush1.xpose.msra.mxu0 0.0
    %5197 = vmatprep.subr.mxu0 0.0
    %5198 = vmatpush1.xpose.msra.mxu0 0.0
    %5199 = vmatprep.subr.mxu0 0.0
    %5200 = vmatpush1.xpose.msra.mxu0 0.0
    %5201 = vmatprep.subr.mxu0 0.0
    %5202 = vmatpush1.xpose.msra.mxu0 0.0
    %5203 = vmatprep.subr.mxu0 0.0
    %5204 = vmatpush1.xpose.msra.mxu0 0.0
    %5205 = vmatprep.subr.mxu0 0.0
    %5206 = vmatpush1.xpose.msra.mxu0 0.0
    %5207 = vmatprep.subr.mxu0 0.0
    %5208 = vmatpush1.xpose.msra.mxu0 0.0
    %5209 = vmatprep.subr.mxu0 0.0
    %5210 = vmatpush1.xpose.msra.mxu0 0.0
    %5211 = vmatprep.subr.mxu0 0.0
    %5212 = vmatpush1.xpose.msra.mxu0 0.0
    %5213 = vmatprep.subr.mxu0 0.0
    %5214 = vmatpush1.xpose.msra.mxu0 0.0
    %5215 = vmatprep.subr.mxu0 0.0
    %5216 = vmatpush1.xpose.msra.mxu0 0.0
    %5217 = vmatprep.subr.mxu0 0.0
    %5218 = vmatpush1.xpose.msra.mxu0 0.0
    %5219 = vmatprep.subr.mxu0 0.0
    %5220 = vmatpush1.xpose.msra.mxu0 0.0
    %5221 = vmatprep.subr.mxu0 0.0
    %5222 = vmatpush1.xpose.msra.mxu0 0.0
    %5223 = vmatprep.subr.mxu0 0.0
    %5224 = vmatpush1.xpose.msra.mxu0 0.0
    %5225 = vmatprep.subr.mxu0 0.0
    %5226 = vmatpush1.xpose.msra.mxu0 0.0
    %5227 = vmatprep.subr.mxu0 0.0
    %5228 = vmatpush1.xpose.msra.mxu0 0.0
    %5229 = vmatprep.subr.mxu0 0.0
    %5230 = vmatpush1.xpose.msra.mxu0 0.0
    %5231 = vmatprep.subr.mxu0 0.0
    %5232 = vmatpush1.xpose.msra.mxu0 0.0
    %5233 = vmatprep.subr.mxu0 0.0
    %5234 = vmatpush1.xpose.msra.mxu0 0.0
    %5235 = vmatprep.subr.mxu0 0.0
    %5236 = vmatpush1.xpose.msra.mxu0 0.0
    %5237 = vmatprep.subr.mxu0 0.0
    %5238 = vmatpush1.xpose.msra.mxu0 0.0
    %5239 = vmatprep.subr.mxu0 0.0
    %5240 = vmatpush1.xpose.msra.mxu0 0.0
    %5241 = vmatprep.subr.mxu0 0.0
    %5242 = vmatpush1.xpose.msra.mxu0 0.0
    %5243 = vmatprep.subr.mxu0 0.0
    %5244 = vmatpush1.xpose.msra.mxu0 0.0
    %5245 = vmatprep.subr.mxu0 0.0
    %5246 = vmatpush1.xpose.msra.mxu0 0.0
    %5247 = vmatprep.subr.mxu0 0.0
    %5248 = vmatpush1.xpose.msra.mxu0 0.0
    %5249 = vmatprep.subr.mxu0 0.0
    %5250 = vmatpush1.xpose.msra.mxu0 0.0
    %5251 = vmatprep.mubr.f32.mxu0 0.0
    %v5252 = vand.u32 %v4810, 4294901760
    %5253 = vmatmul.mubr.f32.gmra.mrb[0].mxu0 %v5252
    %v5254 = vpop.f32.mrb[0].mxu0
    %v5255 = vadd.f32 %v5183, %v5254
    %v5256 = vpop.f32.mrb[0].mxu0
    %5257 = vdwg.mxu0
    %5258 = vrot.lane.b32.xlu0 %v61, 112
    %v5259 = vpop.permute.xlu0 %5258
    %v5260 = vsel %vm67, %v5259, 0
    %5262 = vmatprep.subr.mxu0 0.0
    %v5263 = vand.u32 %v5260, 4294901760
    %5264 = vmatpush1.xpose.msra.mxu0 %v5263
    %5265 = vmatprep.subr.mxu0 0.0
    %5266 = vmatpush1.xpose.msra.mxu0 0.0
    %5267 = vmatprep.subr.mxu0 0.0
    %5268 = vmatpush1.xpose.msra.mxu0 0.0
    %5269 = vmatprep.subr.mxu0 0.0
    %5270 = vmatpush1.xpose.msra.mxu0 0.0
    %5271 = vmatprep.subr.mxu0 0.0
    %5272 = vmatpush1.xpose.msra.mxu0 0.0
    %5273 = vmatprep.subr.mxu0 0.0
    %5274 = vmatpush1.xpose.msra.mxu0 0.0
    %5275 = vmatprep.subr.mxu0 0.0
    %5276 = vmatpush1.xpose.msra.mxu0 0.0
    %5277 = vmatprep.subr.mxu0 0.0
    %5278 = vmatpush1.xpose.msra.mxu0 0.0
    %5279 = vmatprep.subr.mxu0 0.0
    %5280 = vmatpush1.xpose.msra.mxu0 0.0
    %5281 = vmatprep.subr.mxu0 0.0
    %5282 = vmatpush1.xpose.msra.mxu0 0.0
    %5283 = vmatprep.subr.mxu0 0.0
    %5284 = vmatpush1.xpose.msra.mxu0 0.0
    %5285 = vmatprep.subr.mxu0 0.0
    %5286 = vmatpush1.xpose.msra.mxu0 0.0
    %5287 = vmatprep.subr.mxu0 0.0
    %5288 = vmatpush1.xpose.msra.mxu0 0.0
    %5289 = vmatprep.subr.mxu0 0.0
    %5290 = vmatpush1.xpose.msra.mxu0 0.0
    %5291 = vmatprep.subr.mxu0 0.0
    %5292 = vmatpush1.xpose.msra.mxu0 0.0
    %5293 = vmatprep.subr.mxu0 0.0
    %5294 = vmatpush1.xpose.msra.mxu0 0.0
    %5295 = vmatprep.subr.mxu0 0.0
    %5296 = vmatpush1.xpose.msra.mxu0 0.0
    %5297 = vmatprep.subr.mxu0 0.0
    %5298 = vmatpush1.xpose.msra.mxu0 0.0
    %5299 = vmatprep.subr.mxu0 0.0
    %5300 = vmatpush1.xpose.msra.mxu0 0.0
    %5301 = vmatprep.subr.mxu0 0.0
    %5302 = vmatpush1.xpose.msra.mxu0 0.0
    %5303 = vmatprep.subr.mxu0 0.0
    %5304 = vmatpush1.xpose.msra.mxu0 0.0
    %5305 = vmatprep.subr.mxu0 0.0
    %5306 = vmatpush1.xpose.msra.mxu0 0.0
    %5307 = vmatprep.subr.mxu0 0.0
    %5308 = vmatpush1.xpose.msra.mxu0 0.0
    %5309 = vmatprep.subr.mxu0 0.0
    %5310 = vmatpush1.xpose.msra.mxu0 0.0
    %5311 = vmatprep.subr.mxu0 0.0
    %5312 = vmatpush1.xpose.msra.mxu0 0.0
    %5313 = vmatprep.subr.mxu0 0.0
    %5314 = vmatpush1.xpose.msra.mxu0 0.0
    %5315 = vmatprep.subr.mxu0 0.0
    %5316 = vmatpush1.xpose.msra.mxu0 0.0
    %5317 = vmatprep.subr.mxu0 0.0
    %5318 = vmatpush1.xpose.msra.mxu0 0.0
    %5319 = vmatprep.subr.mxu0 0.0
    %5320 = vmatpush1.xpose.msra.mxu0 0.0
    %5321 = vmatprep.subr.mxu0 0.0
    %5322 = vmatpush1.xpose.msra.mxu0 0.0
    %5323 = vmatprep.subr.mxu0 0.0
    %5324 = vmatpush1.xpose.msra.mxu0 0.0
    %5325 = vmatprep.subr.mxu0 0.0
    %5326 = vmatpush1.xpose.msra.mxu0 0.0
    %5327 = vmatprep.mubr.f32.mxu0 0.0
    %v5328 = vand.u32 %v5260, 4294901760
    %v5329 = vsub.f32 %v5260, %v5328
    %v5330 = vand.u32 %v5329, 4294901760
    %v5331 = vsub.f32 %v5329, %v5330
    %v5332 = vand.u32 %v5331, 4294901760
    %5333 = vmatmul.mubr.f32.gmra.mrb[0].mxu0 %v5332
    %v5334 = vpop.f32.mrb[0].mxu0
    %v5335 = vadd.f32 0.0, %v5334
    %v5336 = vpop.f32.mrb[0].mxu0
    %5337 = vdwg.mxu0
    %5338 = vmatprep.subr.mxu0 0.0
    %v5339 = vand.u32 %v5260, 4294901760
    %v5340 = vsub.f32 %v5260, %v5339
    %v5341 = vand.u32 %v5340, 4294901760
    %v5342 = vsub.f32 %v5340, %v5341
    %v5343 = vand.u32 %v5342, 4294901760
    %5344 = vmatpush1.xpose.msra.mxu0 %v5343
    %5345 = vmatprep.subr.mxu0 0.0
    %5346 = vmatpush1.xpose.msra.mxu0 0.0
    %5347 = vmatprep.subr.mxu0 0.0
    %5348 = vmatpush1.xpose.msra.mxu0 0.0
    %5349 = vmatprep.subr.mxu0 0.0
    %5350 = vmatpush1.xpose.msra.mxu0 0.0
    %5351 = vmatprep.subr.mxu0 0.0
    %5352 = vmatpush1.xpose.msra.mxu0 0.0
    %5353 = vmatprep.subr.mxu0 0.0
    %5354 = vmatpush1.xpose.msra.mxu0 0.0
    %5355 = vmatprep.subr.mxu0 0.0
    %5356 = vmatpush1.xpose.msra.mxu0 0.0
    %5357 = vmatprep.subr.mxu0 0.0
    %5358 = vmatpush1.xpose.msra.mxu0 0.0
    %5359 = vmatprep.subr.mxu0 0.0
    %5360 = vmatpush1.xpose.msra.mxu0 0.0
    %5361 = vmatprep.subr.mxu0 0.0
    %5362 = vmatpush1.xpose.msra.mxu0 0.0
    %5363 = vmatprep.subr.mxu0 0.0
    %5364 = vmatpush1.xpose.msra.mxu0 0.0
    %5365 = vmatprep.subr.mxu0 0.0
    %5366 = vmatpush1.xpose.msra.mxu0 0.0
    %5367 = vmatprep.subr.mxu0 0.0
    %5368 = vmatpush1.xpose.msra.mxu0 0.0
    %5369 = vmatprep.subr.mxu0 0.0
    %5370 = vmatpush1.xpose.msra.mxu0 0.0
    %5371 = vmatprep.subr.mxu0 0.0
    %5372 = vmatpush1.xpose.msra.mxu0 0.0
    %5373 = vmatprep.subr.mxu0 0.0
    %5374 = vmatpush1.xpose.msra.mxu0 0.0
    %5375 = vmatprep.subr.mxu0 0.0
    %5376 = vmatpush1.xpose.msra.mxu0 0.0
    %5377 = vmatprep.subr.mxu0 0.0
    %5378 = vmatpush1.xpose.msra.mxu0 0.0
    %5379 = vmatprep.subr.mxu0 0.0
    %5380 = vmatpush1.xpose.msra.mxu0 0.0
    %5381 = vmatprep.subr.mxu0 0.0
    %5382 = vmatpush1.xpose.msra.mxu0 0.0
    %5383 = vmatprep.subr.mxu0 0.0
    %5384 = vmatpush1.xpose.msra.mxu0 0.0
    %5385 = vmatprep.subr.mxu0 0.0
    %5386 = vmatpush1.xpose.msra.mxu0 0.0
    %5387 = vmatprep.subr.mxu0 0.0
    %5388 = vmatpush1.xpose.msra.mxu0 0.0
    %5389 = vmatprep.subr.mxu0 0.0
    %5390 = vmatpush1.xpose.msra.mxu0 0.0
    %5391 = vmatprep.subr.mxu0 0.0
    %5392 = vmatpush1.xpose.msra.mxu0 0.0
    %5393 = vmatprep.subr.mxu0 0.0
    %5394 = vmatpush1.xpose.msra.mxu0 0.0
    %5395 = vmatprep.subr.mxu0 0.0
    %5396 = vmatpush1.xpose.msra.mxu0 0.0
    %5397 = vmatprep.subr.mxu0 0.0
    %5398 = vmatpush1.xpose.msra.mxu0 0.0
    %5399 = vmatprep.subr.mxu0 0.0
    %5400 = vmatpush1.xpose.msra.mxu0 0.0
    %5401 = vmatprep.subr.mxu0 0.0
    %5402 = vmatpush1.xpose.msra.mxu0 0.0
    %5403 = vmatprep.subr.mxu0 0.0
    %5404 = vmatpush1.xpose.msra.mxu0 0.0
    %5405 = vmatprep.subr.mxu0 0.0
    %5406 = vmatpush1.xpose.msra.mxu0 0.0
    %5407 = vmatprep.mubr.f32.mxu0 0.0
    %v5408 = vand.u32 %v5260, 4294901760
    %5409 = vmatmul.mubr.f32.gmra.mrb[0].mxu0 %v5408
    %v5410 = vpop.f32.mrb[0].mxu0
    %v5411 = vadd.f32 %v5335, %v5410
    %v5412 = vpop.f32.mrb[0].mxu0
    %5413 = vdwg.mxu0
    %5414 = vmatprep.subr.mxu0 0.0
    %v5415 = vand.u32 %v5260, 4294901760
    %v5416 = vsub.f32 %v5260, %v5415
    %5417 = vmatpush1.xpose.msra.mxu0 %v5416
    %5418 = vmatprep.subr.mxu0 0.0
    %5419 = vmatpush1.xpose.msra.mxu0 0.0
    %5420 = vmatprep.subr.mxu0 0.0
    %5421 = vmatpush1.xpose.msra.mxu0 0.0
    %5422 = vmatprep.subr.mxu0 0.0
    %5423 = vmatpush1.xpose.msra.mxu0 0.0
    %5424 = vmatprep.subr.mxu0 0.0
    %5425 = vmatpush1.xpose.msra.mxu0 0.0
    %5426 = vmatprep.subr.mxu0 0.0
    %5427 = vmatpush1.xpose.msra.mxu0 0.0
    %5428 = vmatprep.subr.mxu0 0.0
    %5429 = vmatpush1.xpose.msra.mxu0 0.0
    %5430 = vmatprep.subr.mxu0 0.0
    %5431 = vmatpush1.xpose.msra.mxu0 0.0
    %5432 = vmatprep.subr.mxu0 0.0
    %5433 = vmatpush1.xpose.msra.mxu0 0.0
    %5434 = vmatprep.subr.mxu0 0.0
    %5435 = vmatpush1.xpose.msra.mxu0 0.0
    %5436 = vmatprep.subr.mxu0 0.0
    %5437 = vmatpush1.xpose.msra.mxu0 0.0
    %5438 = vmatprep.subr.mxu0 0.0
    %5439 = vmatpush1.xpose.msra.mxu0 0.0
    %5440 = vmatprep.subr.mxu0 0.0
    %5441 = vmatpush1.xpose.msra.mxu0 0.0
    %5442 = vmatprep.subr.mxu0 0.0
    %5443 = vmatpush1.xpose.msra.mxu0 0.0
    %5444 = vmatprep.subr.mxu0 0.0
    %5445 = vmatpush1.xpose.msra.mxu0 0.0
    %5446 = vmatprep.subr.mxu0 0.0
    %5447 = vmatpush1.xpose.msra.mxu0 0.0
    %5448 = vmatprep.subr.mxu0 0.0
    %5449 = vmatpush1.xpose.msra.mxu0 0.0
    %5450 = vmatprep.subr.mxu0 0.0
    %5451 = vmatpush1.xpose.msra.mxu0 0.0
    %5452 = vmatprep.subr.mxu0 0.0
    %5453 = vmatpush1.xpose.msra.mxu0 0.0
    %5454 = vmatprep.subr.mxu0 0.0
    %5455 = vmatpush1.xpose.msra.mxu0 0.0
    %5456 = vmatprep.subr.mxu0 0.0
    %5457 = vmatpush1.xpose.msra.mxu0 0.0
    %5458 = vmatprep.subr.mxu0 0.0
    %5459 = vmatpush1.xpose.msra.mxu0 0.0
    %5460 = vmatprep.subr.mxu0 0.0
    %5461 = vmatpush1.xpose.msra.mxu0 0.0
    %5462 = vmatprep.subr.mxu0 0.0
    %5463 = vmatpush1.xpose.msra.mxu0 0.0
    %5464 = vmatprep.subr.mxu0 0.0
    %5465 = vmatpush1.xpose.msra.mxu0 0.0
    %5466 = vmatprep.subr.mxu0 0.0
    %5467 = vmatpush1.xpose.msra.mxu0 0.0
    %5468 = vmatprep.subr.mxu0 0.0
    %5469 = vmatpush1.xpose.msra.mxu0 0.0
    %5470 = vmatprep.subr.mxu0 0.0
    %5471 = vmatpush1.xpose.msra.mxu0 0.0
    %5472 = vmatprep.subr.mxu0 0.0
    %5473 = vmatpush1.xpose.msra.mxu0 0.0
    %5474 = vmatprep.subr.mxu0 0.0
    %5475 = vmatpush1.xpose.msra.mxu0 0.0
    %5476 = vmatprep.subr.mxu0 0.0
    %5477 = vmatpush1.xpose.msra.mxu0 0.0
    %5478 = vmatprep.subr.mxu0 0.0
    %5479 = vmatpush1.xpose.msra.mxu0 0.0
    %5480 = vmatprep.mubr.f32.mxu0 0.0
    %v5481 = vand.u32 %v5260, 4294901760
    %v5482 = vsub.f32 %v5260, %v5481
    %5483 = vmatmul.mubr.f32.gmra.mrb[0].mxu0 %v5482
    %v5484 = vpop.f32.mrb[0].mxu0
    %v5485 = vadd.f32 %v5411, %v5484
    %v5486 = vpop.f32.mrb[0].mxu0
    %5487 = vdwg.mxu0
    %5488 = vmatprep.subr.mxu0 0.0
    %v5489 = vand.u32 %v5260, 4294901760
    %5490 = vmatpush1.xpose.msra.mxu0 %v5489
    %5491 = vmatprep.subr.mxu0 0.0
    %5492 = vmatpush1.xpose.msra.mxu0 0.0
    %5493 = vmatprep.subr.mxu0 0.0
    %5494 = vmatpush1.xpose.msra.mxu0 0.0
    %5495 = vmatprep.subr.mxu0 0.0
    %5496 = vmatpush1.xpose.msra.mxu0 0.0
    %5497 = vmatprep.subr.mxu0 0.0
    %5498 = vmatpush1.xpose.msra.mxu0 0.0
    %5499 = vmatprep.subr.mxu0 0.0
    %5500 = vmatpush1.xpose.msra.mxu0 0.0
    %5501 = vmatprep.subr.mxu0 0.0
    %5502 = vmatpush1.xpose.msra.mxu0 0.0
    %5503 = vmatprep.subr.mxu0 0.0
    %5504 = vmatpush1.xpose.msra.mxu0 0.0
    %5505 = vmatprep.subr.mxu0 0.0
    %5506 = vmatpush1.xpose.msra.mxu0 0.0
    %5507 = vmatprep.subr.mxu0 0.0
    %5508 = vmatpush1.xpose.msra.mxu0 0.0
    %5509 = vmatprep.subr.mxu0 0.0
    %5510 = vmatpush1.xpose.msra.mxu0 0.0
    %5511 = vmatprep.subr.mxu0 0.0
    %5512 = vmatpush1.xpose.msra.mxu0 0.0
    %5513 = vmatprep.subr.mxu0 0.0
    %5514 = vmatpush1.xpose.msra.mxu0 0.0
    %5515 = vmatprep.subr.mxu0 0.0
    %5516 = vmatpush1.xpose.msra.mxu0 0.0
    %5517 = vmatprep.subr.mxu0 0.0
    %5518 = vmatpush1.xpose.msra.mxu0 0.0
    %5519 = vmatprep.subr.mxu0 0.0
    %5520 = vmatpush1.xpose.msra.mxu0 0.0
    %5521 = vmatprep.subr.mxu0 0.0
    %5522 = vmatpush1.xpose.msra.mxu0 0.0
    %5523 = vmatprep.subr.mxu0 0.0
    %5524 = vmatpush1.xpose.msra.mxu0 0.0
    %5525 = vmatprep.subr.mxu0 0.0
    %5526 = vmatpush1.xpose.msra.mxu0 0.0
    %5527 = vmatprep.subr.mxu0 0.0
    %5528 = vmatpush1.xpose.msra.mxu0 0.0
    %5529 = vmatprep.subr.mxu0 0.0
    %5530 = vmatpush1.xpose.msra.mxu0 0.0
    %5531 = vmatprep.subr.mxu0 0.0
    %5532 = vmatpush1.xpose.msra.mxu0 0.0
    %5533 = vmatprep.subr.mxu0 0.0
    %5534 = vmatpush1.xpose.msra.mxu0 0.0
    %5535 = vmatprep.subr.mxu0 0.0
    %5536 = vmatpush1.xpose.msra.mxu0 0.0
    %5537 = vmatprep.subr.mxu0 0.0
    %5538 = vmatpush1.xpose.msra.mxu0 0.0
    %5539 = vmatprep.subr.mxu0 0.0
    %5540 = vmatpush1.xpose.msra.mxu0 0.0
    %5541 = vmatprep.subr.mxu0 0.0
    %5542 = vmatpush1.xpose.msra.mxu0 0.0
    %5543 = vmatprep.subr.mxu0 0.0
    %5544 = vmatpush1.xpose.msra.mxu0 0.0
    %5545 = vmatprep.subr.mxu0 0.0
    %5546 = vmatpush1.xpose.msra.mxu0 0.0
    %5547 = vmatprep.subr.mxu0 0.0
    %5548 = vmatpush1.xpose.msra.mxu0 0.0
    %5549 = vmatprep.subr.mxu0 0.0
    %5550 = vmatpush1.xpose.msra.mxu0 0.0
    %5551 = vmatprep.subr.mxu0 0.0
    %5552 = vmatpush1.xpose.msra.mxu0 0.0
    %5553 = vmatprep.mubr.f32.mxu0 0.0
    %v5554 = vand.u32 %v5260, 4294901760
    %v5555 = vsub.f32 %v5260, %v5554
    %v5556 = vand.u32 %v5555, 4294901760
    %5557 = vmatmul.mubr.f32.gmra.mrb[0].mxu0 %v5556
    %v5558 = vpop.f32.mrb[0].mxu0
    %v5559 = vadd.f32 %v5485, %v5558
    %v5560 = vpop.f32.mrb[0].mxu0
    %5561 = vdwg.mxu0
    %5562 = vmatprep.subr.mxu0 0.0
    %v5563 = vand.u32 %v5260, 4294901760
    %v5564 = vsub.f32 %v5260, %v5563
    %v5565 = vand.u32 %v5564, 4294901760
    %5566 = vmatpush1.xpose.msra.mxu0 %v5565
    %5567 = vmatprep.subr.mxu0 0.0
    %5568 = vmatpush1.xpose.msra.mxu0 0.0
    %5569 = vmatprep.subr.mxu0 0.0
    %5570 = vmatpush1.xpose.msra.mxu0 0.0
    %5571 = vmatprep.subr.mxu0 0.0
    %5572 = vmatpush1.xpose.msra.mxu0 0.0
    %5573 = vmatprep.subr.mxu0 0.0
    %5574 = vmatpush1.xpose.msra.mxu0 0.0
    %5575 = vmatprep.subr.mxu0 0.0
    %5576 = vmatpush1.xpose.msra.mxu0 0.0
    %5577 = vmatprep.subr.mxu0 0.0
    %5578 = vmatpush1.xpose.msra.mxu0 0.0
    %5579 = vmatprep.subr.mxu0 0.0
    %5580 = vmatpush1.xpose.msra.mxu0 0.0
    %5581 = vmatprep.subr.mxu0 0.0
    %5582 = vmatpush1.xpose.msra.mxu0 0.0
    %5583 = vmatprep.subr.mxu0 0.0
    %5584 = vmatpush1.xpose.msra.mxu0 0.0
    %5585 = vmatprep.subr.mxu0 0.0
    %5586 = vmatpush1.xpose.msra.mxu0 0.0
    %5587 = vmatprep.subr.mxu0 0.0
    %5588 = vmatpush1.xpose.msra.mxu0 0.0
    %5589 = vmatprep.subr.mxu0 0.0
    %5590 = vmatpush1.xpose.msra.mxu0 0.0
    %5591 = vmatprep.subr.mxu0 0.0
    %5592 = vmatpush1.xpose.msra.mxu0 0.0
    %5593 = vmatprep.subr.mxu0 0.0
    %5594 = vmatpush1.xpose.msra.mxu0 0.0
    %5595 = vmatprep.subr.mxu0 0.0
    %5596 = vmatpush1.xpose.msra.mxu0 0.0
    %5597 = vmatprep.subr.mxu0 0.0
    %5598 = vmatpush1.xpose.msra.mxu0 0.0
    %5599 = vmatprep.subr.mxu0 0.0
    %5600 = vmatpush1.xpose.msra.mxu0 0.0
    %5601 = vmatprep.subr.mxu0 0.0
    %5602 = vmatpush1.xpose.msra.mxu0 0.0
    %5603 = vmatprep.subr.mxu0 0.0
    %5604 = vmatpush1.xpose.msra.mxu0 0.0
    %5605 = vmatprep.subr.mxu0 0.0
    %5606 = vmatpush1.xpose.msra.mxu0 0.0
    %5607 = vmatprep.subr.mxu0 0.0
    %5608 = vmatpush1.xpose.msra.mxu0 0.0
    %5609 = vmatprep.subr.mxu0 0.0
    %5610 = vmatpush1.xpose.msra.mxu0 0.0
    %5611 = vmatprep.subr.mxu0 0.0
    %5612 = vmatpush1.xpose.msra.mxu0 0.0
    %5613 = vmatprep.subr.mxu0 0.0
    %5614 = vmatpush1.xpose.msra.mxu0 0.0
    %5615 = vmatprep.subr.mxu0 0.0
    %5616 = vmatpush1.xpose.msra.mxu0 0.0
    %5617 = vmatprep.subr.mxu0 0.0
    %5618 = vmatpush1.xpose.msra.mxu0 0.0
    %5619 = vmatprep.subr.mxu0 0.0
    %5620 = vmatpush1.xpose.msra.mxu0 0.0
    %5621 = vmatprep.subr.mxu0 0.0
    %5622 = vmatpush1.xpose.msra.mxu0 0.0
    %5623 = vmatprep.subr.mxu0 0.0
    %5624 = vmatpush1.xpose.msra.mxu0 0.0
    %5625 = vmatprep.subr.mxu0 0.0
    %5626 = vmatpush1.xpose.msra.mxu0 0.0
    %5627 = vmatprep.subr.mxu0 0.0
    %5628 = vmatpush1.xpose.msra.mxu0 0.0
    %5629 = vmatprep.mubr.f32.mxu0 0.0
    %v5630 = vand.u32 %v5260, 4294901760
    %5631 = vmatmul.mubr.f32.gmra.mrb[0].mxu0 %v5630
    %v5632 = vpop.f32.mrb[0].mxu0
    %v5633 = vadd.f32 %v5559, %v5632
    %v5634 = vpop.f32.mrb[0].mxu0
    %5635 = vdwg.mxu0
    %5636 = vmatprep.subr.mxu0 0.0
    %v5637 = vand.u32 %v5260, 4294901760
    %5638 = vmatpush1.xpose.msra.mxu0 %v5637
    %5639 = vmatprep.subr.mxu0 0.0
    %5640 = vmatpush1.xpose.msra.mxu0 0.0
    %5641 = vmatprep.subr.mxu0 0.0
    %5642 = vmatpush1.xpose.msra.mxu0 0.0
    %5643 = vmatprep.subr.mxu0 0.0
    %5644 = vmatpush1.xpose.msra.mxu0 0.0
    %5645 = vmatprep.subr.mxu0 0.0
    %5646 = vmatpush1.xpose.msra.mxu0 0.0
    %5647 = vmatprep.subr.mxu0 0.0
    %5648 = vmatpush1.xpose.msra.mxu0 0.0
    %5649 = vmatprep.subr.mxu0 0.0
    %5650 = vmatpush1.xpose.msra.mxu0 0.0
    %5651 = vmatprep.subr.mxu0 0.0
    %5652 = vmatpush1.xpose.msra.mxu0 0.0
    %5653 = vmatprep.subr.mxu0 0.0
    %5654 = vmatpush1.xpose.msra.mxu0 0.0
    %5655 = vmatprep.subr.mxu0 0.0
    %5656 = vmatpush1.xpose.msra.mxu0 0.0
    %5657 = vmatprep.subr.mxu0 0.0
    %5658 = vmatpush1.xpose.msra.mxu0 0.0
    %5659 = vmatprep.subr.mxu0 0.0
    %5660 = vmatpush1.xpose.msra.mxu0 0.0
    %5661 = vmatprep.subr.mxu0 0.0
    %5662 = vmatpush1.xpose.msra.mxu0 0.0
    %5663 = vmatprep.subr.mxu0 0.0
    %5664 = vmatpush1.xpose.msra.mxu0 0.0
    %5665 = vmatprep.subr.mxu0 0.0
    %5666 = vmatpush1.xpose.msra.mxu0 0.0
    %5667 = vmatprep.subr.mxu0 0.0
    %5668 = vmatpush1.xpose.msra.mxu0 0.0
    %5669 = vmatprep.subr.mxu0 0.0
    %5670 = vmatpush1.xpose.msra.mxu0 0.0
    %5671 = vmatprep.subr.mxu0 0.0
    %5672 = vmatpush1.xpose.msra.mxu0 0.0
    %5673 = vmatprep.subr.mxu0 0.0
    %5674 = vmatpush1.xpose.msra.mxu0 0.0
    %5675 = vmatprep.subr.mxu0 0.0
    %5676 = vmatpush1.xpose.msra.mxu0 0.0
    %5677 = vmatprep.subr.mxu0 0.0
    %5678 = vmatpush1.xpose.msra.mxu0 0.0
    %5679 = vmatprep.subr.mxu0 0.0
    %5680 = vmatpush1.xpose.msra.mxu0 0.0
    %5681 = vmatprep.subr.mxu0 0.0
    %5682 = vmatpush1.xpose.msra.mxu0 0.0
    %5683 = vmatprep.subr.mxu0 0.0
    %5684 = vmatpush1.xpose.msra.mxu0 0.0
    %5685 = vmatprep.subr.mxu0 0.0
    %5686 = vmatpush1.xpose.msra.mxu0 0.0
    %5687 = vmatprep.subr.mxu0 0.0
    %5688 = vmatpush1.xpose.msra.mxu0 0.0
    %5689 = vmatprep.subr.mxu0 0.0
    %5690 = vmatpush1.xpose.msra.mxu0 0.0
    %5691 = vmatprep.subr.mxu0 0.0
    %5692 = vmatpush1.xpose.msra.mxu0 0.0
    %5693 = vmatprep.subr.mxu0 0.0
    %5694 = vmatpush1.xpose.msra.mxu0 0.0
    %5695 = vmatprep.subr.mxu0 0.0
    %5696 = vmatpush1.xpose.msra.mxu0 0.0
    %5697 = vmatprep.subr.mxu0 0.0
    %5698 = vmatpush1.xpose.msra.mxu0 0.0
    %5699 = vmatprep.subr.mxu0 0.0
    %5700 = vmatpush1.xpose.msra.mxu0 0.0
    %5701 = vmatprep.mubr.f32.mxu0 0.0
    %v5702 = vand.u32 %v5260, 4294901760
    %5703 = vmatmul.mubr.f32.gmra.mrb[0].mxu0 %v5702
    %v5704 = vpop.f32.mrb[0].mxu0
    %v5705 = vadd.f32 %v5633, %v5704
    %v5706 = vpop.f32.mrb[0].mxu0
    %5707 = vdwg.mxu0
    %v5708 = vmul.f32 %v5255, 0.17677669
    %v5709 = vmul.f32 %v5705, 0.17677669
    %v5710 = vsel %vm67, %v5708, -inf
    %5711 = vmax.xlane.f32.xlu0 %v5710
    %v5712 = vpop.xlane.xlu0 %5711
    %v5713 = vsel %vm67, %v5709, -inf
    %5714 = vmax.xlane.f32.xlu0 %v5713
    %v5715 = vpop.xlane.xlu0 %5714
    %v5716 = vsub.f32 %v5708, %v5712
    %v5717 = vsub.f32 %v5709, %v5715
    %v5718 = vmul.f32 %v5716, 1.442695
    %v5719 = vpow.pop %v5718
    %v5720 = vmul.f32 %v5717, 1.442695
    %v5721 = vpow.pop %v5720
    %v5722 = vsel %vm67, %v5719, 0.0
    %5723 = vadd.xlane.f32.xlu0 %v5722
    %v5724 = vpop.xlane.xlu0 %5723
    %v5725 = vsel %vm67, %v5721, 0.0
    %5726 = vadd.xlane.f32.xlu0 %v5725
    %v5727 = vpop.xlane.xlu0 %5726
    %v5728 = vrcp.pop %v5724
    %v5729 = vmul.f32 %v5719, %v5728
    %v5730 = vrcp.pop %v5727
    %v5731 = vmul.f32 %v5721, %v5730
    %v5734 = vsel %vm67, %v5729, 0
    %5736 = vmatprep.subr.mxu0 0.0
    %v5737 = vand.u32 %v4809, 4294901760
    %5738 = vmatpush1.msra.mxu0 %v5737
    %5739 = vmatprep.subr.mxu0 0.0
    %5740 = vmatpush1.msra.mxu0 0.0
    %5741 = vmatprep.subr.mxu0 0.0
    %5742 = vmatpush1.msra.mxu0 0.0
    %5743 = vmatprep.subr.mxu0 0.0
    %5744 = vmatpush1.msra.mxu0 0.0
    %5745 = vmatprep.subr.mxu0 0.0
    %5746 = vmatpush1.msra.mxu0 0.0
    %5747 = vmatprep.subr.mxu0 0.0
    %5748 = vmatpush1.msra.mxu0 0.0
    %5749 = vmatprep.subr.mxu0 0.0
    %5750 = vmatpush1.msra.mxu0 0.0
    %5751 = vmatprep.subr.mxu0 0.0
    %5752 = vmatpush1.msra.mxu0 0.0
    %5753 = vmatprep.subr.mxu0 0.0
    %5754 = vmatpush1.msra.mxu0 0.0
    %5755 = vmatprep.subr.mxu0 0.0
    %5756 = vmatpush1.msra.mxu0 0.0
    %5757 = vmatprep.subr.mxu0 0.0
    %5758 = vmatpush1.msra.mxu0 0.0
    %5759 = vmatprep.subr.mxu0 0.0
    %5760 = vmatpush1.msra.mxu0 0.0
    %5761 = vmatprep.subr.mxu0 0.0
    %5762 = vmatpush1.msra.mxu0 0.0
    %5763 = vmatprep.subr.mxu0 0.0
    %5764 = vmatpush1.msra.mxu0 0.0
    %5765 = vmatprep.subr.mxu0 0.0
    %5766 = vmatpush1.msra.mxu0 0.0
    %5767 = vmatprep.subr.mxu0 0.0
    %5768 = vmatpush1.msra.mxu0 0.0
    %5769 = vmatprep.subr.mxu0 0.0
    %5770 = vmatpush1.msra.mxu0 0.0
    %5771 = vmatprep.subr.mxu0 0.0
    %5772 = vmatpush1.msra.mxu0 0.0
    %5773 = vmatprep.subr.mxu0 0.0
    %5774 = vmatpush1.msra.mxu0 0.0
    %5775 = vmatprep.subr.mxu0 0.0
    %5776 = vmatpush1.msra.mxu0 0.0
    %5777 = vmatprep.subr.mxu0 0.0
    %5778 = vmatpush1.msra.mxu0 0.0
    %5779 = vmatprep.subr.mxu0 0.0
    %5780 = vmatpush1.msra.mxu0 0.0
    %5781 = vmatprep.subr.mxu0 0.0
    %5782 = vmatpush1.msra.mxu0 0.0
    %5783 = vmatprep.subr.mxu0 0.0
    %5784 = vmatpush1.msra.mxu0 0.0
    %5785 = vmatprep.subr.mxu0 0.0
    %5786 = vmatpush1.msra.mxu0 0.0
    %5787 = vmatprep.subr.mxu0 0.0
    %5788 = vmatpush1.msra.mxu0 0.0
    %5789 = vmatprep.subr.mxu0 0.0
    %5790 = vmatpush1.msra.mxu0 0.0
    %5791 = vmatprep.subr.mxu0 0.0
    %5792 = vmatpush1.msra.mxu0 0.0
    %5793 = vmatprep.subr.mxu0 0.0
    %5794 = vmatpush1.msra.mxu0 0.0
    %5795 = vmatprep.subr.mxu0 0.0
    %5796 = vmatpush1.msra.mxu0 0.0
    %5797 = vmatprep.subr.mxu0 0.0
    %5798 = vmatpush1.msra.mxu0 0.0
    %5799 = vmatprep.subr.mxu0 0.0
    %5800 = vmatpush1.msra.mxu0 0.0
    %5801 = vmatprep.mubr.f32.mxu0 0.0
    %v5802 = vand.u32 %v5734, 4294901760
    %v5803 = vsub.f32 %v5734, %v5802
    %v5804 = vand.u32 %v5803, 4294901760
    %v5805 = vsub.f32 %v5803, %v5804
    %v5806 = vand.u32 %v5805, 4294901760
    %5807 = vmatmul.mubr.f32.gmra.mrb[0].mxu0 %v5806
    %v5808 = vpop.f32.mrb[0].mxu0
    %v5809 = vadd.f32 0.0, %v5808
    %v5810 = vpop.f32.mrb[0].mxu0
    %5811 = vdwg.mxu0
    %5812 = vmatprep.subr.mxu0 0.0
    %v5813 = vand.u32 %v4809, 4294901760
    %v5814 = vsub.f32 %v4809, %v5813
    %v5815 = vand.u32 %v5814, 4294901760
    %v5816 = vsub.f32 %v5814, %v5815
    %v5817 = vand.u32 %v5816, 4294901760
    %5818 = vmatpush1.msra.mxu0 %v5817
    %5819 = vmatprep.subr.mxu0 0.0
    %5820 = vmatpush1.msra.mxu0 0.0
    %5821 = vmatprep.subr.mxu0 0.0
    %5822 = vmatpush1.msra.mxu0 0.0
    %5823 = vmatprep.subr.mxu0 0.0
    %5824 = vmatpush1.msra.mxu0 0.0
    %5825 = vmatprep.subr.mxu0 0.0
    %5826 = vmatpush1.msra.mxu0 0.0
    %5827 = vmatprep.subr.mxu0 0.0
    %5828 = vmatpush1.msra.mxu0 0.0
    %5829 = vmatprep.subr.mxu0 0.0
    %5830 = vmatpush1.msra.mxu0 0.0
    %5831 = vmatprep.subr.mxu0 0.0
    %5832 = vmatpush1.msra.mxu0 0.0
    %5833 = vmatprep.subr.mxu0 0.0
    %5834 = vmatpush1.msra.mxu0 0.0
    %5835 = vmatprep.subr.mxu0 0.0
    %5836 = vmatpush1.msra.mxu0 0.0
    %5837 = vmatprep.subr.mxu0 0.0
    %5838 = vmatpush1.msra.mxu0 0.0
    %5839 = vmatprep.subr.mxu0 0.0
    %5840 = vmatpush1.msra.mxu0 0.0
    %5841 = vmatprep.subr.mxu0 0.0
    %5842 = vmatpush1.msra.mxu0 0.0
    %5843 = vmatprep.subr.mxu0 0.0
    %5844 = vmatpush1.msra.mxu0 0.0
    %5845 = vmatprep.subr.mxu0 0.0
    %5846 = vmatpush1.msra.mxu0 0.0
    %5847 = vmatprep.subr.mxu0 0.0
    %5848 = vmatpush1.msra.mxu0 0.0
    %5849 = vmatprep.subr.mxu0 0.0
    %5850 = vmatpush1.msra.mxu0 0.0
    %5851 = vmatprep.subr.mxu0 0.0
    %5852 = vmatpush1.msra.mxu0 0.0
    %5853 = vmatprep.subr.mxu0 0.0
    %5854 = vmatpush1.msra.mxu0 0.0
    %5855 = vmatprep.subr.mxu0 0.0
    %5856 = vmatpush1.msra.mxu0 0.0
    %5857 = vmatprep.subr.mxu0 0.0
    %5858 = vmatpush1.msra.mxu0 0.0
    %5859 = vmatprep.subr.mxu0 0.0
    %5860 = vmatpush1.msra.mxu0 0.0
    %5861 = vmatprep.subr.mxu0 0.0
    %5862 = vmatpush1.msra.mxu0 0.0
    %5863 = vmatprep.subr.mxu0 0.0
    %5864 = vmatpush1.msra.mxu0 0.0
    %5865 = vmatprep.subr.mxu0 0.0
    %5866 = vmatpush1.msra.mxu0 0.0
    %5867 = vmatprep.subr.mxu0 0.0
    %5868 = vmatpush1.msra.mxu0 0.0
    %5869 = vmatprep.subr.mxu0 0.0
    %5870 = vmatpush1.msra.mxu0 0.0
    %5871 = vmatprep.subr.mxu0 0.0
    %5872 = vmatpush1.msra.mxu0 0.0
    %5873 = vmatprep.subr.mxu0 0.0
    %5874 = vmatpush1.msra.mxu0 0.0
    %5875 = vmatprep.subr.mxu0 0.0
    %5876 = vmatpush1.msra.mxu0 0.0
    %5877 = vmatprep.subr.mxu0 0.0
    %5878 = vmatpush1.msra.mxu0 0.0
    %5879 = vmatprep.subr.mxu0 0.0
    %5880 = vmatpush1.msra.mxu0 0.0
    %5881 = vmatprep.mubr.f32.mxu0 0.0
    %v5882 = vand.u32 %v5734, 4294901760
    %5883 = vmatmul.mubr.f32.gmra.mrb[0].mxu0 %v5882
    %v5884 = vpop.f32.mrb[0].mxu0
    %v5885 = vadd.f32 %v5809, %v5884
    %v5886 = vpop.f32.mrb[0].mxu0
    %5887 = vdwg.mxu0
    %5888 = vmatprep.subr.mxu0 0.0
    %v5889 = vand.u32 %v4809, 4294901760
    %v5890 = vsub.f32 %v4809, %v5889
    %5891 = vmatpush1.msra.mxu0 %v5890
    %5892 = vmatprep.subr.mxu0 0.0
    %5893 = vmatpush1.msra.mxu0 0.0
    %5894 = vmatprep.subr.mxu0 0.0
    %5895 = vmatpush1.msra.mxu0 0.0
    %5896 = vmatprep.subr.mxu0 0.0
    %5897 = vmatpush1.msra.mxu0 0.0
    %5898 = vmatprep.subr.mxu0 0.0
    %5899 = vmatpush1.msra.mxu0 0.0
    %5900 = vmatprep.subr.mxu0 0.0
    %5901 = vmatpush1.msra.mxu0 0.0
    %5902 = vmatprep.subr.mxu0 0.0
    %5903 = vmatpush1.msra.mxu0 0.0
    %5904 = vmatprep.subr.mxu0 0.0
    %5905 = vmatpush1.msra.mxu0 0.0
    %5906 = vmatprep.subr.mxu0 0.0
    %5907 = vmatpush1.msra.mxu0 0.0
    %5908 = vmatprep.subr.mxu0 0.0
    %5909 = vmatpush1.msra.mxu0 0.0
    %5910 = vmatprep.subr.mxu0 0.0
    %5911 = vmatpush1.msra.mxu0 0.0
    %5912 = vmatprep.subr.mxu0 0.0
    %5913 = vmatpush1.msra.mxu0 0.0
    %5914 = vmatprep.subr.mxu0 0.0
    %5915 = vmatpush1.msra.mxu0 0.0
    %5916 = vmatprep.subr.mxu0 0.0
    %5917 = vmatpush1.msra.mxu0 0.0
    %5918 = vmatprep.subr.mxu0 0.0
    %5919 = vmatpush1.msra.mxu0 0.0
    %5920 = vmatprep.subr.mxu0 0.0
    %5921 = vmatpush1.msra.mxu0 0.0
    %5922 = vmatprep.subr.mxu0 0.0
    %5923 = vmatpush1.msra.mxu0 0.0
    %5924 = vmatprep.subr.mxu0 0.0
    %5925 = vmatpush1.msra.mxu0 0.0
    %5926 = vmatprep.subr.mxu0 0.0
    %5927 = vmatpush1.msra.mxu0 0.0
    %5928 = vmatprep.subr.mxu0 0.0
    %5929 = vmatpush1.msra.mxu0 0.0
    %5930 = vmatprep.subr.mxu0 0.0
    %5931 = vmatpush1.msra.mxu0 0.0
    %5932 = vmatprep.subr.mxu0 0.0
    %5933 = vmatpush1.msra.mxu0 0.0
    %5934 = vmatprep.subr.mxu0 0.0
    %5935 = vmatpush1.msra.mxu0 0.0
    %5936 = vmatprep.subr.mxu0 0.0
    %5937 = vmatpush1.msra.mxu0 0.0
    %5938 = vmatprep.subr.mxu0 0.0
    %5939 = vmatpush1.msra.mxu0 0.0
    %5940 = vmatprep.subr.mxu0 0.0
    %5941 = vmatpush1.msra.mxu0 0.0
    %5942 = vmatprep.subr.mxu0 0.0
    %5943 = vmatpush1.msra.mxu0 0.0
    %5944 = vmatprep.subr.mxu0 0.0
    %5945 = vmatpush1.msra.mxu0 0.0
    %5946 = vmatprep.subr.mxu0 0.0
    %5947 = vmatpush1.msra.mxu0 0.0
    %5948 = vmatprep.subr.mxu0 0.0
    %5949 = vmatpush1.msra.mxu0 0.0
    %5950 = vmatprep.subr.mxu0 0.0
    %5951 = vmatpush1.msra.mxu0 0.0
    %5952 = vmatprep.subr.mxu0 0.0
    %5953 = vmatpush1.msra.mxu0 0.0
    %5954 = vmatprep.mubr.f32.mxu0 0.0
    %v5955 = vand.u32 %v5734, 4294901760
    %v5956 = vsub.f32 %v5734, %v5955
    %5957 = vmatmul.mubr.f32.gmra.mrb[0].mxu0 %v5956
    %v5958 = vpop.f32.mrb[0].mxu0
    %v5959 = vadd.f32 %v5885, %v5958
    %v5960 = vpop.f32.mrb[0].mxu0
    %5961 = vdwg.mxu0
    %5962 = vmatprep.subr.mxu0 0.0
    %v5963 = vand.u32 %v4809, 4294901760
    %5964 = vmatpush1.msra.mxu0 %v5963
    %5965 = vmatprep.subr.mxu0 0.0
    %5966 = vmatpush1.msra.mxu0 0.0
    %5967 = vmatprep.subr.mxu0 0.0
    %5968 = vmatpush1.msra.mxu0 0.0
    %5969 = vmatprep.subr.mxu0 0.0
    %5970 = vmatpush1.msra.mxu0 0.0
    %5971 = vmatprep.subr.mxu0 0.0
    %5972 = vmatpush1.msra.mxu0 0.0
    %5973 = vmatprep.subr.mxu0 0.0
    %5974 = vmatpush1.msra.mxu0 0.0
    %5975 = vmatprep.subr.mxu0 0.0
    %5976 = vmatpush1.msra.mxu0 0.0
    %5977 = vmatprep.subr.mxu0 0.0
    %5978 = vmatpush1.msra.mxu0 0.0
    %5979 = vmatprep.subr.mxu0 0.0
    %5980 = vmatpush1.msra.mxu0 0.0
    %5981 = vmatprep.subr.mxu0 0.0
    %5982 = vmatpush1.msra.mxu0 0.0
    %5983 = vmatprep.subr.mxu0 0.0
    %5984 = vmatpush1.msra.mxu0 0.0
    %5985 = vmatprep.subr.mxu0 0.0
    %5986 = vmatpush1.msra.mxu0 0.0
    %5987 = vmatprep.subr.mxu0 0.0
    %5988 = vmatpush1.msra.mxu0 0.0
    %5989 = vmatprep.subr.mxu0 0.0
    %5990 = vmatpush1.msra.mxu0 0.0
    %5991 = vmatprep.subr.mxu0 0.0
    %5992 = vmatpush1.msra.mxu0 0.0
    %5993 = vmatprep.subr.mxu0 0.0
    %5994 = vmatpush1.msra.mxu0 0.0
    %5995 = vmatprep.subr.mxu0 0.0
    %5996 = vmatpush1.msra.mxu0 0.0
    %5997 = vmatprep.subr.mxu0 0.0
    %5998 = vmatpush1.msra.mxu0 0.0
    %5999 = vmatprep.subr.mxu0 0.0
    %6000 = vmatpush1.msra.mxu0 0.0
    %6001 = vmatprep.subr.mxu0 0.0
    %6002 = vmatpush1.msra.mxu0 0.0
    %6003 = vmatprep.subr.mxu0 0.0
    %6004 = vmatpush1.msra.mxu0 0.0
    %6005 = vmatprep.subr.mxu0 0.0
    %6006 = vmatpush1.msra.mxu0 0.0
    %6007 = vmatprep.subr.mxu0 0.0
    %6008 = vmatpush1.msra.mxu0 0.0
    %6009 = vmatprep.subr.mxu0 0.0
    %6010 = vmatpush1.msra.mxu0 0.0
    %6011 = vmatprep.subr.mxu0 0.0
    %6012 = vmatpush1.msra.mxu0 0.0
    %6013 = vmatprep.subr.mxu0 0.0
    %6014 = vmatpush1.msra.mxu0 0.0
    %6015 = vmatprep.subr.mxu0 0.0
    %6016 = vmatpush1.msra.mxu0 0.0
    %6017 = vmatprep.subr.mxu0 0.0
    %6018 = vmatpush1.msra.mxu0 0.0
    %6019 = vmatprep.subr.mxu0 0.0
    %6020 = vmatpush1.msra.mxu0 0.0
    %6021 = vmatprep.subr.mxu0 0.0
    %6022 = vmatpush1.msra.mxu0 0.0
    %6023 = vmatprep.subr.mxu0 0.0
    %6024 = vmatpush1.msra.mxu0 0.0
    %6025 = vmatprep.subr.mxu0 0.0
    %6026 = vmatpush1.msra.mxu0 0.0
    %6027 = vmatprep.mubr.f32.mxu0 0.0
    %v6028 = vand.u32 %v5734, 4294901760
    %v6029 = vsub.f32 %v5734, %v6028
    %v6030 = vand.u32 %v6029, 4294901760
    %6031 = vmatmul.mubr.f32.gmra.mrb[0].mxu0 %v6030
    %v6032 = vpop.f32.mrb[0].mxu0
    %v6033 = vadd.f32 %v5959, %v6032
    %v6034 = vpop.f32.mrb[0].mxu0
    %6035 = vdwg.mxu0
    %6036 = vmatprep.subr.mxu0 0.0
    %v6037 = vand.u32 %v4809, 4294901760
    %v6038 = vsub.f32 %v4809, %v6037
    %v6039 = vand.u32 %v6038, 4294901760
    %6040 = vmatpush1.msra.mxu0 %v6039
    %6041 = vmatprep.subr.mxu0 0.0
    %6042 = vmatpush1.msra.mxu0 0.0
    %6043 = vmatprep.subr.mxu0 0.0
    %6044 = vmatpush1.msra.mxu0 0.0
    %6045 = vmatprep.subr.mxu0 0.0
    %6046 = vmatpush1.msra.mxu0 0.0
    %6047 = vmatprep.subr.mxu0 0.0
    %6048 = vmatpush1.msra.mxu0 0.0
    %6049 = vmatprep.subr.mxu0 0.0
    %6050 = vmatpush1.msra.mxu0 0.0
    %6051 = vmatprep.subr.mxu0 0.0
    %6052 = vmatpush1.msra.mxu0 0.0
    %6053 = vmatprep.subr.mxu0 0.0
    %6054 = vmatpush1.msra.mxu0 0.0
    %6055 = vmatprep.subr.mxu0 0.0
    %6056 = vmatpush1.msra.mxu0 0.0
    %6057 = vmatprep.subr.mxu0 0.0
    %6058 = vmatpush1.msra.mxu0 0.0
    %6059 = vmatprep.subr.mxu0 0.0
    %6060 = vmatpush1.msra.mxu0 0.0
    %6061 = vmatprep.subr.mxu0 0.0
    %6062 = vmatpush1.msra.mxu0 0.0
    %6063 = vmatprep.subr.mxu0 0.0
    %6064 = vmatpush1.msra.mxu0 0.0
    %6065 = vmatprep.subr.mxu0 0.0
    %6066 = vmatpush1.msra.mxu0 0.0
    %6067 = vmatprep.subr.mxu0 0.0
    %6068 = vmatpush1.msra.mxu0 0.0
    %6069 = vmatprep.subr.mxu0 0.0
    %6070 = vmatpush1.msra.mxu0 0.0
    %6071 = vmatprep.subr.mxu0 0.0
    %6072 = vmatpush1.msra.mxu0 0.0
    %6073 = vmatprep.subr.mxu0 0.0
    %6074 = vmatpush1.msra.mxu0 0.0
    %6075 = vmatprep.subr.mxu0 0.0
    %6076 = vmatpush1.msra.mxu0 0.0
    %6077 = vmatprep.subr.mxu0 0.0
    %6078 = vmatpush1.msra.mxu0 0.0
    %6079 = vmatprep.subr.mxu0 0.0
    %6080 = vmatpush1.msra.mxu0 0.0
    %6081 = vmatprep.subr.mxu0 0.0
    %6082 = vmatpush1.msra.mxu0 0.0
    %6083 = vmatprep.subr.mxu0 0.0
    %6084 = vmatpush1.msra.mxu0 0.0
    %6085 = vmatprep.subr.mxu0 0.0
    %6086 = vmatpush1.msra.mxu0 0.0
    %6087 = vmatprep.subr.mxu0 0.0
    %6088 = vmatpush1.msra.mxu0 0.0
    %6089 = vmatprep.subr.mxu0 0.0
    %6090 = vmatpush1.msra.mxu0 0.0
    %6091 = vmatprep.subr.mxu0 0.0
    %6092 = vmatpush1.msra.mxu0 0.0
    %6093 = vmatprep.subr.mxu0 0.0
    %6094 = vmatpush1.msra.mxu0 0.0
    %6095 = vmatprep.subr.mxu0 0.0
    %6096 = vmatpush1.msra.mxu0 0.0
    %6097 = vmatprep.subr.mxu0 0.0
    %6098 = vmatpush1.msra.mxu0 0.0
    %6099 = vmatprep.subr.mxu0 0.0
    %6100 = vmatpush1.msra.mxu0 0.0
    %6101 = vmatprep.subr.mxu0 0.0
    %6102 = vmatpush1.msra.mxu0 0.0
    %6103 = vmatprep.mubr.f32.mxu0 0.0
    %v6104 = vand.u32 %v5734, 4294901760
    %6105 = vmatmul.mubr.f32.gmra.mrb[0].mxu0 %v6104
    %v6106 = vpop.f32.mrb[0].mxu0
    %v6107 = vadd.f32 %v6033, %v6106
    %v6108 = vpop.f32.mrb[0].mxu0
    %6109 = vdwg.mxu0
    %6110 = vmatprep.subr.mxu0 0.0
    %v6111 = vand.u32 %v4809, 4294901760
    %6112 = vmatpush1.msra.mxu0 %v6111
    %6113 = vmatprep.subr.mxu0 0.0
    %6114 = vmatpush1.msra.mxu0 0.0
    %6115 = vmatprep.subr.mxu0 0.0
    %6116 = vmatpush1.msra.mxu0 0.0
    %6117 = vmatprep.subr.mxu0 0.0
    %6118 = vmatpush1.msra.mxu0 0.0
    %6119 = vmatprep.subr.mxu0 0.0
    %6120 = vmatpush1.msra.mxu0 0.0
    %6121 = vmatprep.subr.mxu0 0.0
    %6122 = vmatpush1.msra.mxu0 0.0
    %6123 = vmatprep.subr.mxu0 0.0
    %6124 = vmatpush1.msra.mxu0 0.0
    %6125 = vmatprep.subr.mxu0 0.0
    %6126 = vmatpush1.msra.mxu0 0.0
    %6127 = vmatprep.subr.mxu0 0.0
    %6128 = vmatpush1.msra.mxu0 0.0
    %6129 = vmatprep.subr.mxu0 0.0
    %6130 = vmatpush1.msra.mxu0 0.0
    %6131 = vmatprep.subr.mxu0 0.0
    %6132 = vmatpush1.msra.mxu0 0.0
    %6133 = vmatprep.subr.mxu0 0.0
    %6134 = vmatpush1.msra.mxu0 0.0
    %6135 = vmatprep.subr.mxu0 0.0
    %6136 = vmatpush1.msra.mxu0 0.0
    %6137 = vmatprep.subr.mxu0 0.0
    %6138 = vmatpush1.msra.mxu0 0.0
    %6139 = vmatprep.subr.mxu0 0.0
    %6140 = vmatpush1.msra.mxu0 0.0
    %6141 = vmatprep.subr.mxu0 0.0
    %6142 = vmatpush1.msra.mxu0 0.0
    %6143 = vmatprep.subr.mxu0 0.0
    %6144 = vmatpush1.msra.mxu0 0.0
    %6145 = vmatprep.subr.mxu0 0.0
    %6146 = vmatpush1.msra.mxu0 0.0
    %6147 = vmatprep.subr.mxu0 0.0
    %6148 = vmatpush1.msra.mxu0 0.0
    %6149 = vmatprep.subr.mxu0 0.0
    %6150 = vmatpush1.msra.mxu0 0.0
    %6151 = vmatprep.subr.mxu0 0.0
    %6152 = vmatpush1.msra.mxu0 0.0
    %6153 = vmatprep.subr.mxu0 0.0
    %6154 = vmatpush1.msra.mxu0 0.0
    %6155 = vmatprep.subr.mxu0 0.0
    %6156 = vmatpush1.msra.mxu0 0.0
    %6157 = vmatprep.subr.mxu0 0.0
    %6158 = vmatpush1.msra.mxu0 0.0
    %6159 = vmatprep.subr.mxu0 0.0
    %6160 = vmatpush1.msra.mxu0 0.0
    %6161 = vmatprep.subr.mxu0 0.0
    %6162 = vmatpush1.msra.mxu0 0.0
    %6163 = vmatprep.subr.mxu0 0.0
    %6164 = vmatpush1.msra.mxu0 0.0
    %6165 = vmatprep.subr.mxu0 0.0
    %6166 = vmatpush1.msra.mxu0 0.0
    %6167 = vmatprep.subr.mxu0 0.0
    %6168 = vmatpush1.msra.mxu0 0.0
    %6169 = vmatprep.subr.mxu0 0.0
    %6170 = vmatpush1.msra.mxu0 0.0
    %6171 = vmatprep.subr.mxu0 0.0
    %6172 = vmatpush1.msra.mxu0 0.0
    %6173 = vmatprep.subr.mxu0 0.0
    %6174 = vmatpush1.msra.mxu0 0.0
    %6175 = vmatprep.mubr.f32.mxu0 0.0
    %v6176 = vand.u32 %v5734, 4294901760
    %6177 = vmatmul.mubr.f32.gmra.mrb[0].mxu0 %v6176
    %v6178 = vpop.f32.mrb[0].mxu0
    %v6179 = vadd.f32 %v6107, %v6178
    %v6180 = vpop.f32.mrb[0].mxu0
    %6181 = vdwg.mxu0
    %v6184 = vsel %vm67, %v5731, 0
    %6186 = vmatprep.subr.mxu0 0.0
    %v6187 = vand.u32 %v5259, 4294901760
    %6188 = vmatpush1.msra.mxu0 %v6187
    %6189 = vmatprep.subr.mxu0 0.0
    %6190 = vmatpush1.msra.mxu0 0.0
    %6191 = vmatprep.subr.mxu0 0.0
    %6192 = vmatpush1.msra.mxu0 0.0
    %6193 = vmatprep.subr.mxu0 0.0
    %6194 = vmatpush1.msra.mxu0 0.0
    %6195 = vmatprep.subr.mxu0 0.0
    %6196 = vmatpush1.msra.mxu0 0.0
    %6197 = vmatprep.subr.mxu0 0.0
    %6198 = vmatpush1.msra.mxu0 0.0
    %6199 = vmatprep.subr.mxu0 0.0
    %6200 = vmatpush1.msra.mxu0 0.0
    %6201 = vmatprep.subr.mxu0 0.0
    %6202 = vmatpush1.msra.mxu0 0.0
    %6203 = vmatprep.subr.mxu0 0.0
    %6204 = vmatpush1.msra.mxu0 0.0
    %6205 = vmatprep.subr.mxu0 0.0
    %6206 = vmatpush1.msra.mxu0 0.0
    %6207 = vmatprep.subr.mxu0 0.0
    %6208 = vmatpush1.msra.mxu0 0.0
    %6209 = vmatprep.subr.mxu0 0.0
    %6210 = vmatpush1.msra.mxu0 0.0
    %6211 = vmatprep.subr.mxu0 0.0
    %6212 = vmatpush1.msra.mxu0 0.0
    %6213 = vmatprep.subr.mxu0 0.0
    %6214 = vmatpush1.msra.mxu0 0.0
    %6215 = vmatprep.subr.mxu0 0.0
    %6216 = vmatpush1.msra.mxu0 0.0
    %6217 = vmatprep.subr.mxu0 0.0
    %6218 = vmatpush1.msra.mxu0 0.0
    %6219 = vmatprep.subr.mxu0 0.0
    %6220 = vmatpush1.msra.mxu0 0.0
    %6221 = vmatprep.subr.mxu0 0.0
    %6222 = vmatpush1.msra.mxu0 0.0
    %6223 = vmatprep.subr.mxu0 0.0
    %6224 = vmatpush1.msra.mxu0 0.0
    %6225 = vmatprep.subr.mxu0 0.0
    %6226 = vmatpush1.msra.mxu0 0.0
    %6227 = vmatprep.subr.mxu0 0.0
    %6228 = vmatpush1.msra.mxu0 0.0
    %6229 = vmatprep.subr.mxu0 0.0
    %6230 = vmatpush1.msra.mxu0 0.0
    %6231 = vmatprep.subr.mxu0 0.0
    %6232 = vmatpush1.msra.mxu0 0.0
    %6233 = vmatprep.subr.mxu0 0.0
    %6234 = vmatpush1.msra.mxu0 0.0
    %6235 = vmatprep.subr.mxu0 0.0
    %6236 = vmatpush1.msra.mxu0 0.0
    %6237 = vmatprep.subr.mxu0 0.0
    %6238 = vmatpush1.msra.mxu0 0.0
    %6239 = vmatprep.subr.mxu0 0.0
    %6240 = vmatpush1.msra.mxu0 0.0
    %6241 = vmatprep.subr.mxu0 0.0
    %6242 = vmatpush1.msra.mxu0 0.0
    %6243 = vmatprep.subr.mxu0 0.0
    %6244 = vmatpush1.msra.mxu0 0.0
    %6245 = vmatprep.subr.mxu0 0.0
    %6246 = vmatpush1.msra.mxu0 0.0
    %6247 = vmatprep.subr.mxu0 0.0
    %6248 = vmatpush1.msra.mxu0 0.0
    %6249 = vmatprep.subr.mxu0 0.0
    %6250 = vmatpush1.msra.mxu0 0.0
    %6251 = vmatprep.mubr.f32.mxu0 0.0
    %v6252 = vand.u32 %v6184, 4294901760
    %v6253 = vsub.f32 %v6184, %v6252
    %v6254 = vand.u32 %v6253, 4294901760
    %v6255 = vsub.f32 %v6253, %v6254
    %v6256 = vand.u32 %v6255, 4294901760
    %6257 = vmatmul.mubr.f32.gmra.mrb[0].mxu0 %v6256
    %v6258 = vpop.f32.mrb[0].mxu0
    %v6259 = vadd.f32 0.0, %v6258
    %v6260 = vpop.f32.mrb[0].mxu0
    %6261 = vdwg.mxu0
    %6262 = vmatprep.subr.mxu0 0.0
    %v6263 = vand.u32 %v5259, 4294901760
    %v6264 = vsub.f32 %v5259, %v6263
    %v6265 = vand.u32 %v6264, 4294901760
    %v6266 = vsub.f32 %v6264, %v6265
    %v6267 = vand.u32 %v6266, 4294901760
    %6268 = vmatpush1.msra.mxu0 %v6267
    %6269 = vmatprep.subr.mxu0 0.0
    %6270 = vmatpush1.msra.mxu0 0.0
    %6271 = vmatprep.subr.mxu0 0.0
    %6272 = vmatpush1.msra.mxu0 0.0
    %6273 = vmatprep.subr.mxu0 0.0
    %6274 = vmatpush1.msra.mxu0 0.0
    %6275 = vmatprep.subr.mxu0 0.0
    %6276 = vmatpush1.msra.mxu0 0.0
    %6277 = vmatprep.subr.mxu0 0.0
    %6278 = vmatpush1.msra.mxu0 0.0
    %6279 = vmatprep.subr.mxu0 0.0
    %6280 = vmatpush1.msra.mxu0 0.0
    %6281 = vmatprep.subr.mxu0 0.0
    %6282 = vmatpush1.msra.mxu0 0.0
    %6283 = vmatprep.subr.mxu0 0.0
    %6284 = vmatpush1.msra.mxu0 0.0
    %6285 = vmatprep.subr.mxu0 0.0
    %6286 = vmatpush1.msra.mxu0 0.0
    %6287 = vmatprep.subr.mxu0 0.0
    %6288 = vmatpush1.msra.mxu0 0.0
    %6289 = vmatprep.subr.mxu0 0.0
    %6290 = vmatpush1.msra.mxu0 0.0
    %6291 = vmatprep.subr.mxu0 0.0
    %6292 = vmatpush1.msra.mxu0 0.0
    %6293 = vmatprep.subr.mxu0 0.0
    %6294 = vmatpush1.msra.mxu0 0.0
    %6295 = vmatprep.subr.mxu0 0.0
    %6296 = vmatpush1.msra.mxu0 0.0
    %6297 = vmatprep.subr.mxu0 0.0
    %6298 = vmatpush1.msra.mxu0 0.0
    %6299 = vmatprep.subr.mxu0 0.0
    %6300 = vmatpush1.msra.mxu0 0.0
    %6301 = vmatprep.subr.mxu0 0.0
    %6302 = vmatpush1.msra.mxu0 0.0
    %6303 = vmatprep.subr.mxu0 0.0
    %6304 = vmatpush1.msra.mxu0 0.0
    %6305 = vmatprep.subr.mxu0 0.0
    %6306 = vmatpush1.msra.mxu0 0.0
    %6307 = vmatprep.subr.mxu0 0.0
    %6308 = vmatpush1.msra.mxu0 0.0
    %6309 = vmatprep.subr.mxu0 0.0
    %6310 = vmatpush1.msra.mxu0 0.0
    %6311 = vmatprep.subr.mxu0 0.0
    %6312 = vmatpush1.msra.mxu0 0.0
    %6313 = vmatprep.subr.mxu0 0.0
    %6314 = vmatpush1.msra.mxu0 0.0
    %6315 = vmatprep.subr.mxu0 0.0
    %6316 = vmatpush1.msra.mxu0 0.0
    %6317 = vmatprep.subr.mxu0 0.0
    %6318 = vmatpush1.msra.mxu0 0.0
    %6319 = vmatprep.subr.mxu0 0.0
    %6320 = vmatpush1.msra.mxu0 0.0
    %6321 = vmatprep.subr.mxu0 0.0
    %6322 = vmatpush1.msra.mxu0 0.0
    %6323 = vmatprep.subr.mxu0 0.0
    %6324 = vmatpush1.msra.mxu0 0.0
    %6325 = vmatprep.subr.mxu0 0.0
    %6326 = vmatpush1.msra.mxu0 0.0
    %6327 = vmatprep.subr.mxu0 0.0
    %6328 = vmatpush1.msra.mxu0 0.0
    %6329 = vmatprep.subr.mxu0 0.0
    %6330 = vmatpush1.msra.mxu0 0.0
    %6331 = vmatprep.mubr.f32.mxu0 0.0
    %v6332 = vand.u32 %v6184, 4294901760
    %6333 = vmatmul.mubr.f32.gmra.mrb[0].mxu0 %v6332
    %v6334 = vpop.f32.mrb[0].mxu0
    %v6335 = vadd.f32 %v6259, %v6334
    %v6336 = vpop.f32.mrb[0].mxu0
    %6337 = vdwg.mxu0
    %6338 = vmatprep.subr.mxu0 0.0
    %v6339 = vand.u32 %v5259, 4294901760
    %v6340 = vsub.f32 %v5259, %v6339
    %6341 = vmatpush1.msra.mxu0 %v6340
    %6342 = vmatprep.subr.mxu0 0.0
    %6343 = vmatpush1.msra.mxu0 0.0
    %6344 = vmatprep.subr.mxu0 0.0
    %6345 = vmatpush1.msra.mxu0 0.0
    %6346 = vmatprep.subr.mxu0 0.0
    %6347 = vmatpush1.msra.mxu0 0.0
    %6348 = vmatprep.subr.mxu0 0.0
    %6349 = vmatpush1.msra.mxu0 0.0
    %6350 = vmatprep.subr.mxu0 0.0
    %6351 = vmatpush1.msra.mxu0 0.0
    %6352 = vmatprep.subr.mxu0 0.0
    %6353 = vmatpush1.msra.mxu0 0.0
    %6354 = vmatprep.subr.mxu0 0.0
    %6355 = vmatpush1.msra.mxu0 0.0
    %6356 = vmatprep.subr.mxu0 0.0
    %6357 = vmatpush1.msra.mxu0 0.0
    %6358 = vmatprep.subr.mxu0 0.0
    %6359 = vmatpush1.msra.mxu0 0.0
    %6360 = vmatprep.subr.mxu0 0.0
    %6361 = vmatpush1.msra.mxu0 0.0
    %6362 = vmatprep.subr.mxu0 0.0
    %6363 = vmatpush1.msra.mxu0 0.0
    %6364 = vmatprep.subr.mxu0 0.0
    %6365 = vmatpush1.msra.mxu0 0.0
    %6366 = vmatprep.subr.mxu0 0.0
    %6367 = vmatpush1.msra.mxu0 0.0
    %6368 = vmatprep.subr.mxu0 0.0
    %6369 = vmatpush1.msra.mxu0 0.0
    %6370 = vmatprep.subr.mxu0 0.0
    %6371 = vmatpush1.msra.mxu0 0.0
    %6372 = vmatprep.subr.mxu0 0.0
    %6373 = vmatpush1.msra.mxu0 0.0
    %6374 = vmatprep.subr.mxu0 0.0
    %6375 = vmatpush1.msra.mxu0 0.0
    %6376 = vmatprep.subr.mxu0 0.0
    %6377 = vmatpush1.msra.mxu0 0.0
    %6378 = vmatprep.subr.mxu0 0.0
    %6379 = vmatpush1.msra.mxu0 0.0
    %6380 = vmatprep.subr.mxu0 0.0
    %6381 = vmatpush1.msra.mxu0 0.0
    %6382 = vmatprep.subr.mxu0 0.0
    %6383 = vmatpush1.msra.mxu0 0.0
    %6384 = vmatprep.subr.mxu0 0.0
    %6385 = vmatpush1.msra.mxu0 0.0
    %6386 = vmatprep.subr.mxu0 0.0
    %6387 = vmatpush1.msra.mxu0 0.0
    %6388 = vmatprep.subr.mxu0 0.0
    %6389 = vmatpush1.msra.mxu0 0.0
    %6390 = vmatprep.subr.mxu0 0.0
    %6391 = vmatpush1.msra.mxu0 0.0
    %6392 = vmatprep.subr.mxu0 0.0
    %6393 = vmatpush1.msra.mxu0 0.0
    %6394 = vmatprep.subr.mxu0 0.0
    %6395 = vmatpush1.msra.mxu0 0.0
    %6396 = vmatprep.subr.mxu0 0.0
    %6397 = vmatpush1.msra.mxu0 0.0
    %6398 = vmatprep.subr.mxu0 0.0
    %6399 = vmatpush1.msra.mxu0 0.0
    %6400 = vmatprep.subr.mxu0 0.0
    %6401 = vmatpush1.msra.mxu0 0.0
    %6402 = vmatprep.subr.mxu0 0.0
    %6403 = vmatpush1.msra.mxu0 0.0
    %6404 = vmatprep.mubr.f32.mxu0 0.0
    %v6405 = vand.u32 %v6184, 4294901760
    %v6406 = vsub.f32 %v6184, %v6405
    %6407 = vmatmul.mubr.f32.gmra.mrb[0].mxu0 %v6406
    %v6408 = vpop.f32.mrb[0].mxu0
    %v6409 = vadd.f32 %v6335, %v6408
    %v6410 = vpop.f32.mrb[0].mxu0
    %6411 = vdwg.mxu0
    %6412 = vmatprep.subr.mxu0 0.0
    %v6413 = vand.u32 %v5259, 4294901760
    %6414 = vmatpush1.msra.mxu0 %v6413
    %6415 = vmatprep.subr.mxu0 0.0
    %6416 = vmatpush1.msra.mxu0 0.0
    %6417 = vmatprep.subr.mxu0 0.0
    %6418 = vmatpush1.msra.mxu0 0.0
    %6419 = vmatprep.subr.mxu0 0.0
    %6420 = vmatpush1.msra.mxu0 0.0
    %6421 = vmatprep.subr.mxu0 0.0
    %6422 = vmatpush1.msra.mxu0 0.0
    %6423 = vmatprep.subr.mxu0 0.0
    %6424 = vmatpush1.msra.mxu0 0.0
    %6425 = vmatprep.subr.mxu0 0.0
    %6426 = vmatpush1.msra.mxu0 0.0
    %6427 = vmatprep.subr.mxu0 0.0
    %6428 = vmatpush1.msra.mxu0 0.0
    %6429 = vmatprep.subr.mxu0 0.0
    %6430 = vmatpush1.msra.mxu0 0.0
    %6431 = vmatprep.subr.mxu0 0.0
    %6432 = vmatpush1.msra.mxu0 0.0
    %6433 = vmatprep.subr.mxu0 0.0
    %6434 = vmatpush1.msra.mxu0 0.0
    %6435 = vmatprep.subr.mxu0 0.0
    %6436 = vmatpush1.msra.mxu0 0.0
    %6437 = vmatprep.subr.mxu0 0.0
    %6438 = vmatpush1.msra.mxu0 0.0
    %6439 = vmatprep.subr.mxu0 0.0
    %6440 = vmatpush1.msra.mxu0 0.0
    %6441 = vmatprep.subr.mxu0 0.0
    %6442 = vmatpush1.msra.mxu0 0.0
    %6443 = vmatprep.subr.mxu0 0.0
    %6444 = vmatpush1.msra.mxu0 0.0
    %6445 = vmatprep.subr.mxu0 0.0
    %6446 = vmatpush1.msra.mxu0 0.0
    %6447 = vmatprep.subr.mxu0 0.0
    %6448 = vmatpush1.msra.mxu0 0.0
    %6449 = vmatprep.subr.mxu0 0.0
    %6450 = vmatpush1.msra.mxu0 0.0
    %6451 = vmatprep.subr.mxu0 0.0
    %6452 = vmatpush1.msra.mxu0 0.0
    %6453 = vmatprep.subr.mxu0 0.0
    %6454 = vmatpush1.msra.mxu0 0.0
    %6455 = vmatprep.subr.mxu0 0.0
    %6456 = vmatpush1.msra.mxu0 0.0
    %6457 = vmatprep.subr.mxu0 0.0
    %6458 = vmatpush1.msra.mxu0 0.0
    %6459 = vmatprep.subr.mxu0 0.0
    %6460 = vmatpush1.msra.mxu0 0.0
    %6461 = vmatprep.subr.mxu0 0.0
    %6462 = vmatpush1.msra.mxu0 0.0
    %6463 = vmatprep.subr.mxu0 0.0
    %6464 = vmatpush1.msra.mxu0 0.0
    %6465 = vmatprep.subr.mxu0 0.0
    %6466 = vmatpush1.msra.mxu0 0.0
    %6467 = vmatprep.subr.mxu0 0.0
    %6468 = vmatpush1.msra.mxu0 0.0
    %6469 = vmatprep.subr.mxu0 0.0
    %6470 = vmatpush1.msra.mxu0 0.0
    %6471 = vmatprep.subr.mxu0 0.0
    %6472 = vmatpush1.msra.mxu0 0.0
    %6473 = vmatprep.subr.mxu0 0.0
    %6474 = vmatpush1.msra.mxu0 0.0
    %6475 = vmatprep.subr.mxu0 0.0
    %6476 = vmatpush1.msra.mxu0 0.0
    %6477 = vmatprep.mubr.f32.mxu0 0.0
    %v6478 = vand.u32 %v6184, 4294901760
    %v6479 = vsub.f32 %v6184, %v6478
    %v6480 = vand.u32 %v6479, 4294901760
    %6481 = vmatmul.mubr.f32.gmra.mrb[0].mxu0 %v6480
    %v6482 = vpop.f32.mrb[0].mxu0
    %v6483 = vadd.f32 %v6409, %v6482
    %v6484 = vpop.f32.mrb[0].mxu0
    %6485 = vdwg.mxu0
    %6486 = vmatprep.subr.mxu0 0.0
    %v6487 = vand.u32 %v5259, 4294901760
    %v6488 = vsub.f32 %v5259, %v6487
    %v6489 = vand.u32 %v6488, 4294901760
    %6490 = vmatpush1.msra.mxu0 %v6489
    %6491 = vmatprep.subr.mxu0 0.0
    %6492 = vmatpush1.msra.mxu0 0.0
    %6493 = vmatprep.subr.mxu0 0.0
    %6494 = vmatpush1.msra.mxu0 0.0
    %6495 = vmatprep.subr.mxu0 0.0
    %6496 = vmatpush1.msra.mxu0 0.0
    %6497 = vmatprep.subr.mxu0 0.0
    %6498 = vmatpush1.msra.mxu0 0.0
    %6499 = vmatprep.subr.mxu0 0.0
    %6500 = vmatpush1.msra.mxu0 0.0
    %6501 = vmatprep.subr.mxu0 0.0
    %6502 = vmatpush1.msra.mxu0 0.0
    %6503 = vmatprep.subr.mxu0 0.0
    %6504 = vmatpush1.msra.mxu0 0.0
    %6505 = vmatprep.subr.mxu0 0.0
    %6506 = vmatpush1.msra.mxu0 0.0
    %6507 = vmatprep.subr.mxu0 0.0
    %6508 = vmatpush1.msra.mxu0 0.0
    %6509 = vmatprep.subr.mxu0 0.0
    %6510 = vmatpush1.msra.mxu0 0.0
    %6511 = vmatprep.subr.mxu0 0.0
    %6512 = vmatpush1.msra.mxu0 0.0
    %6513 = vmatprep.subr.mxu0 0.0
    %6514 = vmatpush1.msra.mxu0 0.0
    %6515 = vmatprep.subr.mxu0 0.0
    %6516 = vmatpush1.msra.mxu0 0.0
    %6517 = vmatprep.subr.mxu0 0.0
    %6518 = vmatpush1.msra.mxu0 0.0
    %6519 = vmatprep.subr.mxu0 0.0
    %6520 = vmatpush1.msra.mxu0 0.0
    %6521 = vmatprep.subr.mxu0 0.0
    %6522 = vmatpush1.msra.mxu0 0.0
    %6523 = vmatprep.subr.mxu0 0.0
    %6524 = vmatpush1.msra.mxu0 0.0
    %6525 = vmatprep.subr.mxu0 0.0
    %6526 = vmatpush1.msra.mxu0 0.0
    %6527 = vmatprep.subr.mxu0 0.0
    %6528 = vmatpush1.msra.mxu0 0.0
    %6529 = vmatprep.subr.mxu0 0.0
    %6530 = vmatpush1.msra.mxu0 0.0
    %6531 = vmatprep.subr.mxu0 0.0
    %6532 = vmatpush1.msra.mxu0 0.0
    %6533 = vmatprep.subr.mxu0 0.0
    %6534 = vmatpush1.msra.mxu0 0.0
    %6535 = vmatprep.subr.mxu0 0.0
    %6536 = vmatpush1.msra.mxu0 0.0
    %6537 = vmatprep.subr.mxu0 0.0
    %6538 = vmatpush1.msra.mxu0 0.0
    %6539 = vmatprep.subr.mxu0 0.0
    %6540 = vmatpush1.msra.mxu0 0.0
    %6541 = vmatprep.subr.mxu0 0.0
    %6542 = vmatpush1.msra.mxu0 0.0
    %6543 = vmatprep.subr.mxu0 0.0
    %6544 = vmatpush1.msra.mxu0 0.0
    %6545 = vmatprep.subr.mxu0 0.0
    %6546 = vmatpush1.msra.mxu0 0.0
    %6547 = vmatprep.subr.mxu0 0.0
    %6548 = vmatpush1.msra.mxu0 0.0
    %6549 = vmatprep.subr.mxu0 0.0
    %6550 = vmatpush1.msra.mxu0 0.0
    %6551 = vmatprep.subr.mxu0 0.0
    %6552 = vmatpush1.msra.mxu0 0.0
    %6553 = vmatprep.mubr.f32.mxu0 0.0
    %v6554 = vand.u32 %v6184, 4294901760
    %6555 = vmatmul.mubr.f32.gmra.mrb[0].mxu0 %v6554
    %v6556 = vpop.f32.mrb[0].mxu0
    %v6557 = vadd.f32 %v6483, %v6556
    %v6558 = vpop.f32.mrb[0].mxu0
    %6559 = vdwg.mxu0
    %6560 = vmatprep.subr.mxu0 0.0
    %v6561 = vand.u32 %v5259, 4294901760
    %6562 = vmatpush1.msra.mxu0 %v6561
    %6563 = vmatprep.subr.mxu0 0.0
    %6564 = vmatpush1.msra.mxu0 0.0
    %6565 = vmatprep.subr.mxu0 0.0
    %6566 = vmatpush1.msra.mxu0 0.0
    %6567 = vmatprep.subr.mxu0 0.0
    %6568 = vmatpush1.msra.mxu0 0.0
    %6569 = vmatprep.subr.mxu0 0.0
    %6570 = vmatpush1.msra.mxu0 0.0
    %6571 = vmatprep.subr.mxu0 0.0
    %6572 = vmatpush1.msra.mxu0 0.0
    %6573 = vmatprep.subr.mxu0 0.0
    %6574 = vmatpush1.msra.mxu0 0.0
    %6575 = vmatprep.subr.mxu0 0.0
    %6576 = vmatpush1.msra.mxu0 0.0
    %6577 = vmatprep.subr.mxu0 0.0
    %6578 = vmatpush1.msra.mxu0 0.0
    %6579 = vmatprep.subr.mxu0 0.0
    %6580 = vmatpush1.msra.mxu0 0.0
    %6581 = vmatprep.subr.mxu0 0.0
    %6582 = vmatpush1.msra.mxu0 0.0
    %6583 = vmatprep.subr.mxu0 0.0
    %6584 = vmatpush1.msra.mxu0 0.0
    %6585 = vmatprep.subr.mxu0 0.0
    %6586 = vmatpush1.msra.mxu0 0.0
    %6587 = vmatprep.subr.mxu0 0.0
    %6588 = vmatpush1.msra.mxu0 0.0
    %6589 = vmatprep.subr.mxu0 0.0
    %6590 = vmatpush1.msra.mxu0 0.0
    %6591 = vmatprep.subr.mxu0 0.0
    %6592 = vmatpush1.msra.mxu0 0.0
    %6593 = vmatprep.subr.mxu0 0.0
    %6594 = vmatpush1.msra.mxu0 0.0
    %6595 = vmatprep.subr.mxu0 0.0
    %6596 = vmatpush1.msra.mxu0 0.0
    %6597 = vmatprep.subr.mxu0 0.0
    %6598 = vmatpush1.msra.mxu0 0.0
    %6599 = vmatprep.subr.mxu0 0.0
    %6600 = vmatpush1.msra.mxu0 0.0
    %6601 = vmatprep.subr.mxu0 0.0
    %6602 = vmatpush1.msra.mxu0 0.0
    %6603 = vmatprep.subr.mxu0 0.0
    %6604 = vmatpush1.msra.mxu0 0.0
    %6605 = vmatprep.subr.mxu0 0.0
    %6606 = vmatpush1.msra.mxu0 0.0
    %6607 = vmatprep.subr.mxu0 0.0
    %6608 = vmatpush1.msra.mxu0 0.0
    %6609 = vmatprep.subr.mxu0 0.0
    %6610 = vmatpush1.msra.mxu0 0.0
    %6611 = vmatprep.subr.mxu0 0.0
    %6612 = vmatpush1.msra.mxu0 0.0
    %6613 = vmatprep.subr.mxu0 0.0
    %6614 = vmatpush1.msra.mxu0 0.0
    %6615 = vmatprep.subr.mxu0 0.0
    %6616 = vmatpush1.msra.mxu0 0.0
    %6617 = vmatprep.subr.mxu0 0.0
    %6618 = vmatpush1.msra.mxu0 0.0
    %6619 = vmatprep.subr.mxu0 0.0
    %6620 = vmatpush1.msra.mxu0 0.0
    %6621 = vmatprep.subr.mxu0 0.0
    %6622 = vmatpush1.msra.mxu0 0.0
    %6623 = vmatprep.subr.mxu0 0.0
    %6624 = vmatpush1.msra.mxu0 0.0
    %6625 = vmatprep.mubr.f32.mxu0 0.0
    %v6626 = vand.u32 %v6184, 4294901760
    %6627 = vmatmul.mubr.f32.gmra.mrb[0].mxu0 %v6626
    %v6628 = vpop.f32.mrb[0].mxu0
    %v6629 = vadd.f32 %v6557, %v6628
    %v6630 = vpop.f32.mrb[0].mxu0
    %6631 = vdwg.mxu0
    %6632 = vrot.lane.b32.xlu0 %v62, 112
    %v6633 = vpop.permute.xlu0 %6632
    %6634 = vrot.lane.b32.xlu0 %v63, 112
    %v6635 = vpop.permute.xlu0 %6634
    %6636 = vrot.lane.b32.xlu0 %v64, 112
    %v6637 = vpop.permute.xlu0 %6636
    %6638 = vrot.lane.b32.xlu0 %v65, 112
    %v6639 = vpop.permute.xlu0 %6638
    %v6641 = vsel %vm67, %v6179, 0
    %v6644 = vsel %vm67, %v6629, 0
    %v6646 = vsel %vm67, %v6633, 0
    %v6648 = vsel %vm67, %v6635, 0
    %v6650 = vsel %vm67, %v6637, 0
    %v6652 = vsel %vm67, %v6639, 0
    %6654 = vmatprep.subr.mxu0 0.0
    %v6655 = vand.u32 %v6646, 4294901760
    %6656 = vmatpush1.xpose.msra.mxu0 %v6655
    %6657 = vmatprep.subr.mxu0 0.0
    %v6658 = vand.u32 %v6648, 4294901760
    %6659 = vmatpush1.xpose.msra.mxu0 %v6658
    %6660 = vmatprep.subr.mxu0 0.0
    %v6661 = vand.u32 %v6650, 4294901760
    %6662 = vmatpush1.xpose.msra.mxu0 %v6661
    %6663 = vmatprep.subr.mxu0 0.0
    %v6664 = vand.u32 %v6652, 4294901760
    %6665 = vmatpush1.xpose.msra.mxu0 %v6664
    %6666 = vmatprep.subr.mxu0 0.0
    %6667 = vmatpush1.xpose.msra.mxu0 0.0
    %6668 = vmatprep.subr.mxu0 0.0
    %6669 = vmatpush1.xpose.msra.mxu0 0.0
    %6670 = vmatprep.subr.mxu0 0.0
    %6671 = vmatpush1.xpose.msra.mxu0 0.0
    %6672 = vmatprep.subr.mxu0 0.0
    %6673 = vmatpush1.xpose.msra.mxu0 0.0
    %6674 = vmatprep.subr.mxu0 0.0
    %6675 = vmatpush1.xpose.msra.mxu0 0.0
    %6676 = vmatprep.subr.mxu0 0.0
    %6677 = vmatpush1.xpose.msra.mxu0 0.0
    %6678 = vmatprep.subr.mxu0 0.0
    %6679 = vmatpush1.xpose.msra.mxu0 0.0
    %6680 = vmatprep.subr.mxu0 0.0
    %6681 = vmatpush1.xpose.msra.mxu0 0.0
    %6682 = vmatprep.subr.mxu0 0.0
    %6683 = vmatpush1.xpose.msra.mxu0 0.0
    %6684 = vmatprep.subr.mxu0 0.0
    %6685 = vmatpush1.xpose.msra.mxu0 0.0
    %6686 = vmatprep.subr.mxu0 0.0
    %6687 = vmatpush1.xpose.msra.mxu0 0.0
    %6688 = vmatprep.subr.mxu0 0.0
    %6689 = vmatpush1.xpose.msra.mxu0 0.0
    %6690 = vmatprep.subr.mxu0 0.0
    %6691 = vmatpush1.xpose.msra.mxu0 0.0
    %6692 = vmatprep.subr.mxu0 0.0
    %6693 = vmatpush1.xpose.msra.mxu0 0.0
    %6694 = vmatprep.subr.mxu0 0.0
    %6695 = vmatpush1.xpose.msra.mxu0 0.0
    %6696 = vmatprep.subr.mxu0 0.0
    %6697 = vmatpush1.xpose.msra.mxu0 0.0
    %6698 = vmatprep.subr.mxu0 0.0
    %6699 = vmatpush1.xpose.msra.mxu0 0.0
    %6700 = vmatprep.subr.mxu0 0.0
    %6701 = vmatpush1.xpose.msra.mxu0 0.0
    %6702 = vmatprep.subr.mxu0 0.0
    %6703 = vmatpush1.xpose.msra.mxu0 0.0
    %6704 = vmatprep.subr.mxu0 0.0
    %6705 = vmatpush1.xpose.msra.mxu0 0.0
    %6706 = vmatprep.subr.mxu0 0.0
    %6707 = vmatpush1.xpose.msra.mxu0 0.0
    %6708 = vmatprep.subr.mxu0 0.0
    %6709 = vmatpush1.xpose.msra.mxu0 0.0
    %6710 = vmatprep.subr.mxu0 0.0
    %6711 = vmatpush1.xpose.msra.mxu0 0.0
    %6712 = vmatprep.subr.mxu0 0.0
    %6713 = vmatpush1.xpose.msra.mxu0 0.0
    %6714 = vmatprep.subr.mxu0 0.0
    %6715 = vmatpush1.xpose.msra.mxu0 0.0
    %6716 = vmatprep.subr.mxu0 0.0
    %6717 = vmatpush1.xpose.msra.mxu0 0.0
    %6718 = vmatprep.subr.mxu0 0.0
    %6719 = vmatpush1.xpose.msra.mxu0 0.0
    %6720 = vmatprep.subr.mxu0 0.0
    %6721 = vmatpush1.xpose.msra.mxu0 0.0
    %6722 = vmatprep.mubr.f32.mxu0 0.0
    %v6723 = vand.u32 %v6641, 4294901760
    %v6724 = vsub.f32 %v6641, %v6723
    %v6725 = vand.u32 %v6724, 4294901760
    %v6726 = vsub.f32 %v6724, %v6725
    %v6727 = vand.u32 %v6726, 4294901760
    %6728 = vmatmul.mubr.f32.gmra.mrb[0].mxu0 %v6727
    %v6729 = vpop.f32.mrb[0].mxu0
    %v6730 = vadd.f32 0.0, %v6729
    %v6731 = vpop.f32.mrb[0].mxu0
    %6732 = vmatprep.mubr.f32.mxu0 0.0
    %v6733 = vand.u32 %v6644, 4294901760
    %v6734 = vsub.f32 %v6644, %v6733
    %v6735 = vand.u32 %v6734, 4294901760
    %v6736 = vsub.f32 %v6734, %v6735
    %v6737 = vand.u32 %v6736, 4294901760
    %6738 = vmatmul.mubr.f32.gmra.mrb[0].mxu0 %v6737
    %v6739 = vpop.f32.mrb[0].mxu0
    %v6740 = vadd.f32 0.0, %v6739
    %v6741 = vpop.f32.mrb[0].mxu0
    %6742 = vdwg.mxu0
    %6743 = vmatprep.subr.mxu0 0.0
    %v6744 = vand.u32 %v6646, 4294901760
    %v6745 = vsub.f32 %v6646, %v6744
    %v6746 = vand.u32 %v6745, 4294901760
    %v6747 = vsub.f32 %v6745, %v6746
    %v6748 = vand.u32 %v6747, 4294901760
    %6749 = vmatpush1.xpose.msra.mxu0 %v6748
    %6750 = vmatprep.subr.mxu0 0.0
    %v6751 = vand.u32 %v6648, 4294901760
    %v6752 = vsub.f32 %v6648, %v6751
    %v6753 = vand.u32 %v6752, 4294901760
    %v6754 = vsub.f32 %v6752, %v6753
    %v6755 = vand.u32 %v6754, 4294901760
    %6756 = vmatpush1.xpose.msra.mxu0 %v6755
    %6757 = vmatprep.subr.mxu0 0.0
    %v6758 = vand.u32 %v6650, 4294901760
    %v6759 = vsub.f32 %v6650, %v6758
    %v6760 = vand.u32 %v6759, 4294901760
    %v6761 = vsub.f32 %v6759, %v6760
    %v6762 = vand.u32 %v6761, 4294901760
    %6763 = vmatpush1.xpose.msra.mxu0 %v6762
    %6764 = vmatprep.subr.mxu0 0.0
    %v6765 = vand.u32 %v6652, 4294901760
    %v6766 = vsub.f32 %v6652, %v6765
    %v6767 = vand.u32 %v6766, 4294901760
    %v6768 = vsub.f32 %v6766, %v6767
    %v6769 = vand.u32 %v6768, 4294901760
    %6770 = vmatpush1.xpose.msra.mxu0 %v6769
    %6771 = vmatprep.subr.mxu0 0.0
    %6772 = vmatpush1.xpose.msra.mxu0 0.0
    %6773 = vmatprep.subr.mxu0 0.0
    %6774 = vmatpush1.xpose.msra.mxu0 0.0
    %6775 = vmatprep.subr.mxu0 0.0
    %6776 = vmatpush1.xpose.msra.mxu0 0.0
    %6777 = vmatprep.subr.mxu0 0.0
    %6778 = vmatpush1.xpose.msra.mxu0 0.0
    %6779 = vmatprep.subr.mxu0 0.0
    %6780 = vmatpush1.xpose.msra.mxu0 0.0
    %6781 = vmatprep.subr.mxu0 0.0
    %6782 = vmatpush1.xpose.msra.mxu0 0.0
    %6783 = vmatprep.subr.mxu0 0.0
    %6784 = vmatpush1.xpose.msra.mxu0 0.0
    %6785 = vmatprep.subr.mxu0 0.0
    %6786 = vmatpush1.xpose.msra.mxu0 0.0
    %6787 = vmatprep.subr.mxu0 0.0
    %6788 = vmatpush1.xpose.msra.mxu0 0.0
    %6789 = vmatprep.subr.mxu0 0.0
    %6790 = vmatpush1.xpose.msra.mxu0 0.0
    %6791 = vmatprep.subr.mxu0 0.0
    %6792 = vmatpush1.xpose.msra.mxu0 0.0
    %6793 = vmatprep.subr.mxu0 0.0
    %6794 = vmatpush1.xpose.msra.mxu0 0.0
    %6795 = vmatprep.subr.mxu0 0.0
    %6796 = vmatpush1.xpose.msra.mxu0 0.0
    %6797 = vmatprep.subr.mxu0 0.0
    %6798 = vmatpush1.xpose.msra.mxu0 0.0
    %6799 = vmatprep.subr.mxu0 0.0
    %6800 = vmatpush1.xpose.msra.mxu0 0.0
    %6801 = vmatprep.subr.mxu0 0.0
    %6802 = vmatpush1.xpose.msra.mxu0 0.0
    %6803 = vmatprep.subr.mxu0 0.0
    %6804 = vmatpush1.xpose.msra.mxu0 0.0
    %6805 = vmatprep.subr.mxu0 0.0
    %6806 = vmatpush1.xpose.msra.mxu0 0.0
    %6807 = vmatprep.subr.mxu0 0.0
    %6808 = vmatpush1.xpose.msra.mxu0 0.0
    %6809 = vmatprep.subr.mxu0 0.0
    %6810 = vmatpush1.xpose.msra.mxu0 0.0
    %6811 = vmatprep.subr.mxu0 0.0
    %6812 = vmatpush1.xpose.msra.mxu0 0.0
    %6813 = vmatprep.subr.mxu0 0.0
    %6814 = vmatpush1.xpose.msra.mxu0 0.0
    %6815 = vmatprep.subr.mxu0 0.0
    %6816 = vmatpush1.xpose.msra.mxu0 0.0
    %6817 = vmatprep.subr.mxu0 0.0
    %6818 = vmatpush1.xpose.msra.mxu0 0.0
    %6819 = vmatprep.subr.mxu0 0.0
    %6820 = vmatpush1.xpose.msra.mxu0 0.0
    %6821 = vmatprep.subr.mxu0 0.0
    %6822 = vmatpush1.xpose.msra.mxu0 0.0
    %6823 = vmatprep.subr.mxu0 0.0
    %6824 = vmatpush1.xpose.msra.mxu0 0.0
    %6825 = vmatprep.subr.mxu0 0.0
    %6826 = vmatpush1.xpose.msra.mxu0 0.0
    %6827 = vmatprep.mubr.f32.mxu0 0.0
    %v6828 = vand.u32 %v6641, 4294901760
    %6829 = vmatmul.mubr.f32.gmra.mrb[0].mxu0 %v6828
    %v6830 = vpop.f32.mrb[0].mxu0
    %v6831 = vadd.f32 %v6730, %v6830
    %v6832 = vpop.f32.mrb[0].mxu0
    %6833 = vmatprep.mubr.f32.mxu0 0.0
    %v6834 = vand.u32 %v6644, 4294901760
    %6835 = vmatmul.mubr.f32.gmra.mrb[0].mxu0 %v6834
    %v6836 = vpop.f32.mrb[0].mxu0
    %v6837 = vadd.f32 %v6740, %v6836
    %v6838 = vpop.f32.mrb[0].mxu0
    %6839 = vdwg.mxu0
    %6840 = vmatprep.subr.mxu0 0.0
    %v6841 = vand.u32 %v6646, 4294901760
    %v6842 = vsub.f32 %v6646, %v6841
    %6843 = vmatpush1.xpose.msra.mxu0 %v6842
    %6844 = vmatprep.subr.mxu0 0.0
    %v6845 = vand.u32 %v6648, 4294901760
    %v6846 = vsub.f32 %v6648, %v6845
    %6847 = vmatpush1.xpose.msra.mxu0 %v6846
    %6848 = vmatprep.subr.mxu0 0.0
    %v6849 = vand.u32 %v6650, 4294901760
    %v6850 = vsub.f32 %v6650, %v6849
    %6851 = vmatpush1.xpose.msra.mxu0 %v6850
    %6852 = vmatprep.subr.mxu0 0.0
    %v6853 = vand.u32 %v6652, 4294901760
    %v6854 = vsub.f32 %v6652, %v6853
    %6855 = vmatpush1.xpose.msra.mxu0 %v6854
    %6856 = vmatprep.subr.mxu0 0.0
    %6857 = vmatpush1.xpose.msra.mxu0 0.0
    %6858 = vmatprep.subr.mxu0 0.0
    %6859 = vmatpush1.xpose.msra.mxu0 0.0
    %6860 = vmatprep.subr.mxu0 0.0
    %6861 = vmatpush1.xpose.msra.mxu0 0.0
    %6862 = vmatprep.subr.mxu0 0.0
    %6863 = vmatpush1.xpose.msra.mxu0 0.0
    %6864 = vmatprep.subr.mxu0 0.0
    %6865 = vmatpush1.xpose.msra.mxu0 0.0
    %6866 = vmatprep.subr.mxu0 0.0
    %6867 = vmatpush1.xpose.msra.mxu0 0.0
    %6868 = vmatprep.subr.mxu0 0.0
    %6869 = vmatpush1.xpose.msra.mxu0 0.0
    %6870 = vmatprep.subr.mxu0 0.0
    %6871 = vmatpush1.xpose.msra.mxu0 0.0
    %6872 = vmatprep.subr.mxu0 0.0
    %6873 = vmatpush1.xpose.msra.mxu0 0.0
    %6874 = vmatprep.subr.mxu0 0.0
    %6875 = vmatpush1.xpose.msra.mxu0 0.0
    %6876 = vmatprep.subr.mxu0 0.0
    %6877 = vmatpush1.xpose.msra.mxu0 0.0
    %6878 = vmatprep.subr.mxu0 0.0
    %6879 = vmatpush1.xpose.msra.mxu0 0.0
    %6880 = vmatprep.subr.mxu0 0.0
    %6881 = vmatpush1.xpose.msra.mxu0 0.0
    %6882 = vmatprep.subr.mxu0 0.0
    %6883 = vmatpush1.xpose.msra.mxu0 0.0
    %6884 = vmatprep.subr.mxu0 0.0
    %6885 = vmatpush1.xpose.msra.mxu0 0.0
    %6886 = vmatprep.subr.mxu0 0.0
    %6887 = vmatpush1.xpose.msra.mxu0 0.0
    %6888 = vmatprep.subr.mxu0 0.0
    %6889 = vmatpush1.xpose.msra.mxu0 0.0
    %6890 = vmatprep.subr.mxu0 0.0
    %6891 = vmatpush1.xpose.msra.mxu0 0.0
    %6892 = vmatprep.subr.mxu0 0.0
    %6893 = vmatpush1.xpose.msra.mxu0 0.0
    %6894 = vmatprep.subr.mxu0 0.0
    %6895 = vmatpush1.xpose.msra.mxu0 0.0
    %6896 = vmatprep.subr.mxu0 0.0
    %6897 = vmatpush1.xpose.msra.mxu0 0.0
    %6898 = vmatprep.subr.mxu0 0.0
    %6899 = vmatpush1.xpose.msra.mxu0 0.0
    %6900 = vmatprep.subr.mxu0 0.0
    %6901 = vmatpush1.xpose.msra.mxu0 0.0
    %6902 = vmatprep.subr.mxu0 0.0
    %6903 = vmatpush1.xpose.msra.mxu0 0.0
    %6904 = vmatprep.subr.mxu0 0.0
    %6905 = vmatpush1.xpose.msra.mxu0 0.0
    %6906 = vmatprep.subr.mxu0 0.0
    %6907 = vmatpush1.xpose.msra.mxu0 0.0
    %6908 = vmatprep.subr.mxu0 0.0
    %6909 = vmatpush1.xpose.msra.mxu0 0.0
    %6910 = vmatprep.subr.mxu0 0.0
    %6911 = vmatpush1.xpose.msra.mxu0 0.0
    %6912 = vmatprep.mubr.f32.mxu0 0.0
    %v6913 = vand.u32 %v6641, 4294901760
    %v6914 = vsub.f32 %v6641, %v6913
    %6915 = vmatmul.mubr.f32.gmra.mrb[0].mxu0 %v6914
    %v6916 = vpop.f32.mrb[0].mxu0
    %v6917 = vadd.f32 %v6831, %v6916
    %v6918 = vpop.f32.mrb[0].mxu0
    %6919 = vmatprep.mubr.f32.mxu0 0.0
    %v6920 = vand.u32 %v6644, 4294901760
    %v6921 = vsub.f32 %v6644, %v6920
    %6922 = vmatmul.mubr.f32.gmra.mrb[0].mxu0 %v6921
    %v6923 = vpop.f32.mrb[0].mxu0
    %v6924 = vadd.f32 %v6837, %v6923
    %v6925 = vpop.f32.mrb[0].mxu0
    %6926 = vdwg.mxu0
    %6927 = vmatprep.subr.mxu0 0.0
    %v6928 = vand.u32 %v6646, 4294901760
    %6929 = vmatpush1.xpose.msra.mxu0 %v6928
    %6930 = vmatprep.subr.mxu0 0.0
    %v6931 = vand.u32 %v6648, 4294901760
    %6932 = vmatpush1.xpose.msra.mxu0 %v6931
    %6933 = vmatprep.subr.mxu0 0.0
    %v6934 = vand.u32 %v6650, 4294901760
    %6935 = vmatpush1.xpose.msra.mxu0 %v6934
    %6936 = vmatprep.subr.mxu0 0.0
    %v6937 = vand.u32 %v6652, 4294901760
    %6938 = vmatpush1.xpose.msra.mxu0 %v6937
    %6939 = vmatprep.subr.mxu0 0.0
    %6940 = vmatpush1.xpose.msra.mxu0 0.0
    %6941 = vmatprep.subr.mxu0 0.0
    %6942 = vmatpush1.xpose.msra.mxu0 0.0
    %6943 = vmatprep.subr.mxu0 0.0
    %6944 = vmatpush1.xpose.msra.mxu0 0.0
    %6945 = vmatprep.subr.mxu0 0.0
    %6946 = vmatpush1.xpose.msra.mxu0 0.0
    %6947 = vmatprep.subr.mxu0 0.0
    %6948 = vmatpush1.xpose.msra.mxu0 0.0
    %6949 = vmatprep.subr.mxu0 0.0
    %6950 = vmatpush1.xpose.msra.mxu0 0.0
    %6951 = vmatprep.subr.mxu0 0.0
    %6952 = vmatpush1.xpose.msra.mxu0 0.0
    %6953 = vmatprep.subr.mxu0 0.0
    %6954 = vmatpush1.xpose.msra.mxu0 0.0
    %6955 = vmatprep.subr.mxu0 0.0
    %6956 = vmatpush1.xpose.msra.mxu0 0.0
    %6957 = vmatprep.subr.mxu0 0.0
    %6958 = vmatpush1.xpose.msra.mxu0 0.0
    %6959 = vmatprep.subr.mxu0 0.0
    %6960 = vmatpush1.xpose.msra.mxu0 0.0
    %6961 = vmatprep.subr.mxu0 0.0
    %6962 = vmatpush1.xpose.msra.mxu0 0.0
    %6963 = vmatprep.subr.mxu0 0.0
    %6964 = vmatpush1.xpose.msra.mxu0 0.0
    %6965 = vmatprep.subr.mxu0 0.0
    %6966 = vmatpush1.xpose.msra.mxu0 0.0
    %6967 = vmatprep.subr.mxu0 0.0
    %6968 = vmatpush1.xpose.msra.mxu0 0.0
    %6969 = vmatprep.subr.mxu0 0.0
    %6970 = vmatpush1.xpose.msra.mxu0 0.0
    %6971 = vmatprep.subr.mxu0 0.0
    %6972 = vmatpush1.xpose.msra.mxu0 0.0
    %6973 = vmatprep.subr.mxu0 0.0
    %6974 = vmatpush1.xpose.msra.mxu0 0.0
    %6975 = vmatprep.subr.mxu0 0.0
    %6976 = vmatpush1.xpose.msra.mxu0 0.0
    %6977 = vmatprep.subr.mxu0 0.0
    %6978 = vmatpush1.xpose.msra.mxu0 0.0
    %6979 = vmatprep.subr.mxu0 0.0
    %6980 = vmatpush1.xpose.msra.mxu0 0.0
    %6981 = vmatprep.subr.mxu0 0.0
    %6982 = vmatpush1.xpose.msra.mxu0 0.0
    %6983 = vmatprep.subr.mxu0 0.0
    %6984 = vmatpush1.xpose.msra.mxu0 0.0
    %6985 = vmatprep.subr.mxu0 0.0
    %6986 = vmatpush1.xpose.msra.mxu0 0.0
    %6987 = vmatprep.subr.mxu0 0.0
    %6988 = vmatpush1.xpose.msra.mxu0 0.0
    %6989 = vmatprep.subr.mxu0 0.0
    %6990 = vmatpush1.xpose.msra.mxu0 0.0
    %6991 = vmatprep.subr.mxu0 0.0
    %6992 = vmatpush1.xpose.msra.mxu0 0.0
    %6993 = vmatprep.subr.mxu0 0.0
    %6994 = vmatpush1.xpose.msra.mxu0 0.0
    %6995 = vmatprep.mubr.f32.mxu0 0.0
    %v6996 = vand.u32 %v6641, 4294901760
    %v6997 = vsub.f32 %v6641, %v6996
    %v6998 = vand.u32 %v6997, 4294901760
    %6999 = vmatmul.mubr.f32.gmra.mrb[0].mxu0 %v6998
    %v7000 = vpop.f32.mrb[0].mxu0
    %v7001 = vadd.f32 %v6917, %v7000
    %v7002 = vpop.f32.mrb[0].mxu0
    %7003 = vmatprep.mubr.f32.mxu0 0.0
    %v7004 = vand.u32 %v6644, 4294901760
    %v7005 = vsub.f32 %v6644, %v7004
    %v7006 = vand.u32 %v7005, 4294901760
    %7007 = vmatmul.mubr.f32.gmra.mrb[0].mxu0 %v7006
    %v7008 = vpop.f32.mrb[0].mxu0
    %v7009 = vadd.f32 %v6924, %v7008
    %v7010 = vpop.f32.mrb[0].mxu0
    %7011 = vdwg.mxu0
    %7012 = vmatprep.subr.mxu0 0.0
    %v7013 = vand.u32 %v6646, 4294901760
    %v7014 = vsub.f32 %v6646, %v7013
    %v7015 = vand.u32 %v7014, 4294901760
    %7016 = vmatpush1.xpose.msra.mxu0 %v7015
    %7017 = vmatprep.subr.mxu0 0.0
    %v7018 = vand.u32 %v6648, 4294901760
    %v7019 = vsub.f32 %v6648, %v7018
    %v7020 = vand.u32 %v7019, 4294901760
    %7021 = vmatpush1.xpose.msra.mxu0 %v7020
    %7022 = vmatprep.subr.mxu0 0.0
    %v7023 = vand.u32 %v6650, 4294901760
    %v7024 = vsub.f32 %v6650, %v7023
    %v7025 = vand.u32 %v7024, 4294901760
    %7026 = vmatpush1.xpose.msra.mxu0 %v7025
    %7027 = vmatprep.subr.mxu0 0.0
    %v7028 = vand.u32 %v6652, 4294901760
    %v7029 = vsub.f32 %v6652, %v7028
    %v7030 = vand.u32 %v7029, 4294901760
    %7031 = vmatpush1.xpose.msra.mxu0 %v7030
    %7032 = vmatprep.subr.mxu0 0.0
    %7033 = vmatpush1.xpose.msra.mxu0 0.0
    %7034 = vmatprep.subr.mxu0 0.0
    %7035 = vmatpush1.xpose.msra.mxu0 0.0
    %7036 = vmatprep.subr.mxu0 0.0
    %7037 = vmatpush1.xpose.msra.mxu0 0.0
    %7038 = vmatprep.subr.mxu0 0.0
    %7039 = vmatpush1.xpose.msra.mxu0 0.0
    %7040 = vmatprep.subr.mxu0 0.0
    %7041 = vmatpush1.xpose.msra.mxu0 0.0
    %7042 = vmatprep.subr.mxu0 0.0
    %7043 = vmatpush1.xpose.msra.mxu0 0.0
    %7044 = vmatprep.subr.mxu0 0.0
    %7045 = vmatpush1.xpose.msra.mxu0 0.0
    %7046 = vmatprep.subr.mxu0 0.0
    %7047 = vmatpush1.xpose.msra.mxu0 0.0
    %7048 = vmatprep.subr.mxu0 0.0
    %7049 = vmatpush1.xpose.msra.mxu0 0.0
    %7050 = vmatprep.subr.mxu0 0.0
    %7051 = vmatpush1.xpose.msra.mxu0 0.0
    %7052 = vmatprep.subr.mxu0 0.0
    %7053 = vmatpush1.xpose.msra.mxu0 0.0
    %7054 = vmatprep.subr.mxu0 0.0
    %7055 = vmatpush1.xpose.msra.mxu0 0.0
    %7056 = vmatprep.subr.mxu0 0.0
    %7057 = vmatpush1.xpose.msra.mxu0 0.0
    %7058 = vmatprep.subr.mxu0 0.0
    %7059 = vmatpush1.xpose.msra.mxu0 0.0
    %7060 = vmatprep.subr.mxu0 0.0
    %7061 = vmatpush1.xpose.msra.mxu0 0.0
    %7062 = vmatprep.subr.mxu0 0.0
    %7063 = vmatpush1.xpose.msra.mxu0 0.0
    %7064 = vmatprep.subr.mxu0 0.0
    %7065 = vmatpush1.xpose.msra.mxu0 0.0
    %7066 = vmatprep.subr.mxu0 0.0
    %7067 = vmatpush1.xpose.msra.mxu0 0.0
    %7068 = vmatprep.subr.mxu0 0.0
    %7069 = vmatpush1.xpose.msra.mxu0 0.0
    %7070 = vmatprep.subr.mxu0 0.0
    %7071 = vmatpush1.xpose.msra.mxu0 0.0
    %7072 = vmatprep.subr.mxu0 0.0
    %7073 = vmatpush1.xpose.msra.mxu0 0.0
    %7074 = vmatprep.subr.mxu0 0.0
    %7075 = vmatpush1.xpose.msra.mxu0 0.0
    %7076 = vmatprep.subr.mxu0 0.0
    %7077 = vmatpush1.xpose.msra.mxu0 0.0
    %7078 = vmatprep.subr.mxu0 0.0
    %7079 = vmatpush1.xpose.msra.mxu0 0.0
    %7080 = vmatprep.subr.mxu0 0.0
    %7081 = vmatpush1.xpose.msra.mxu0 0.0
    %7082 = vmatprep.subr.mxu0 0.0
    %7083 = vmatpush1.xpose.msra.mxu0 0.0
    %7084 = vmatprep.subr.mxu0 0.0
    %7085 = vmatpush1.xpose.msra.mxu0 0.0
    %7086 = vmatprep.subr.mxu0 0.0
    %7087 = vmatpush1.xpose.msra.mxu0 0.0
    %7088 = vmatprep.mubr.f32.mxu0 0.0
    %v7089 = vand.u32 %v6641, 4294901760
    %7090 = vmatmul.mubr.f32.gmra.mrb[0].mxu0 %v7089
    %v7091 = vpop.f32.mrb[0].mxu0
    %v7092 = vadd.f32 %v7001, %v7091
    %v7093 = vpop.f32.mrb[0].mxu0
    %7094 = vmatprep.mubr.f32.mxu0 0.0
    %v7095 = vand.u32 %v6644, 4294901760
    %7096 = vmatmul.mubr.f32.gmra.mrb[0].mxu0 %v7095
    %v7097 = vpop.f32.mrb[0].mxu0
    %v7098 = vadd.f32 %v7009, %v7097
    %v7099 = vpop.f32.mrb[0].mxu0
    %7100 = vdwg.mxu0
    %7101 = vmatprep.subr.mxu0 0.0
    %v7102 = vand.u32 %v6646, 4294901760
    %7103 = vmatpush1.xpose.msra.mxu0 %v7102
    %7104 = vmatprep.subr.mxu0 0.0
    %v7105 = vand.u32 %v6648, 4294901760
    %7106 = vmatpush1.xpose.msra.mxu0 %v7105
    %7107 = vmatprep.subr.mxu0 0.0
    %v7108 = vand.u32 %v6650, 4294901760
    %7109 = vmatpush1.xpose.msra.mxu0 %v7108
    %7110 = vmatprep.subr.mxu0 0.0
    %v7111 = vand.u32 %v6652, 4294901760
    %7112 = vmatpush1.xpose.msra.mxu0 %v7111
    %7113 = vmatprep.subr.mxu0 0.0
    %7114 = vmatpush1.xpose.msra.mxu0 0.0
    %7115 = vmatprep.subr.mxu0 0.0
    %7116 = vmatpush1.xpose.msra.mxu0 0.0
    %7117 = vmatprep.subr.mxu0 0.0
    %7118 = vmatpush1.xpose.msra.mxu0 0.0
    %7119 = vmatprep.subr.mxu0 0.0
    %7120 = vmatpush1.xpose.msra.mxu0 0.0
    %7121 = vmatprep.subr.mxu0 0.0
    %7122 = vmatpush1.xpose.msra.mxu0 0.0
    %7123 = vmatprep.subr.mxu0 0.0
    %7124 = vmatpush1.xpose.msra.mxu0 0.0
    %7125 = vmatprep.subr.mxu0 0.0
    %7126 = vmatpush1.xpose.msra.mxu0 0.0
    %7127 = vmatprep.subr.mxu0 0.0
    %7128 = vmatpush1.xpose.msra.mxu0 0.0
    %7129 = vmatprep.subr.mxu0 0.0
    %7130 = vmatpush1.xpose.msra.mxu0 0.0
    %7131 = vmatprep.subr.mxu0 0.0
    %7132 = vmatpush1.xpose.msra.mxu0 0.0
    %7133 = vmatprep.subr.mxu0 0.0
    %7134 = vmatpush1.xpose.msra.mxu0 0.0
    %7135 = vmatprep.subr.mxu0 0.0
    %7136 = vmatpush1.xpose.msra.mxu0 0.0
    %7137 = vmatprep.subr.mxu0 0.0
    %7138 = vmatpush1.xpose.msra.mxu0 0.0
    %7139 = vmatprep.subr.mxu0 0.0
    %7140 = vmatpush1.xpose.msra.mxu0 0.0
    %7141 = vmatprep.subr.mxu0 0.0
    %7142 = vmatpush1.xpose.msra.mxu0 0.0
    %7143 = vmatprep.subr.mxu0 0.0
    %7144 = vmatpush1.xpose.msra.mxu0 0.0
    %7145 = vmatprep.subr.mxu0 0.0
    %7146 = vmatpush1.xpose.msra.mxu0 0.0
    %7147 = vmatprep.subr.mxu0 0.0
    %7148 = vmatpush1.xpose.msra.mxu0 0.0
    %7149 = vmatprep.subr.mxu0 0.0
    %7150 = vmatpush1.xpose.msra.mxu0 0.0
    %7151 = vmatprep.subr.mxu0 0.0
    %7152 = vmatpush1.xpose.msra.mxu0 0.0
    %7153 = vmatprep.subr.mxu0 0.0
    %7154 = vmatpush1.xpose.msra.mxu0 0.0
    %7155 = vmatprep.subr.mxu0 0.0
    %7156 = vmatpush1.xpose.msra.mxu0 0.0
    %7157 = vmatprep.subr.mxu0 0.0
    %7158 = vmatpush1.xpose.msra.mxu0 0.0
    %7159 = vmatprep.subr.mxu0 0.0
    %7160 = vmatpush1.xpose.msra.mxu0 0.0
    %7161 = vmatprep.subr.mxu0 0.0
    %7162 = vmatpush1.xpose.msra.mxu0 0.0
    %7163 = vmatprep.subr.mxu0 0.0
    %7164 = vmatpush1.xpose.msra.mxu0 0.0
    %7165 = vmatprep.subr.mxu0 0.0
    %7166 = vmatpush1.xpose.msra.mxu0 0.0
    %7167 = vmatprep.subr.mxu0 0.0
    %7168 = vmatpush1.xpose.msra.mxu0 0.0
    %7169 = vmatprep.mubr.f32.mxu0 0.0
    %v7170 = vand.u32 %v6641, 4294901760
    %7171 = vmatmul.mubr.f32.gmra.mrb[0].mxu0 %v7170
    %v7172 = vpop.f32.mrb[0].mxu0
    %v7173 = vadd.f32 %v7092, %v7172
    %v7174 = vpop.f32.mrb[0].mxu0
    %7175 = vmatprep.mubr.f32.mxu0 0.0
    %v7176 = vand.u32 %v6644, 4294901760
    %7177 = vmatmul.mubr.f32.gmra.mrb[0].mxu0 %v7176
    %v7178 = vpop.f32.mrb[0].mxu0
    %v7179 = vadd.f32 %v7098, %v7178
    %v7180 = vpop.f32.mrb[0].mxu0
    %7181 = vdwg.mxu0
    %v7182 = vadd.f32 %v4799, %v7173
    %v7183 = vadd.f32 %v4805, %v7179
    %7184 = vrot.lane.b32.xlu0 %v60, 104
    %v7185 = vpop.permute.xlu0 %7184
    %v7186 = vsel %vm67, %v7185, 0
    %7188 = vmatprep.subr.mxu0 0.0
    %v7189 = vand.u32 %v7186, 4294901760
    %7190 = vmatpush1.xpose.msra.mxu0 %v7189
    %7191 = vmatprep.subr.mxu0 0.0
    %7192 = vmatpush1.xpose.msra.mxu0 0.0
    %7193 = vmatprep.subr.mxu0 0.0
    %7194 = vmatpush1.xpose.msra.mxu0 0.0
    %7195 = vmatprep.subr.mxu0 0.0
    %7196 = vmatpush1.xpose.msra.mxu0 0.0
    %7197 = vmatprep.subr.mxu0 0.0
    %7198 = vmatpush1.xpose.msra.mxu0 0.0
    %7199 = vmatprep.subr.mxu0 0.0
    %7200 = vmatpush1.xpose.msra.mxu0 0.0
    %7201 = vmatprep.subr.mxu0 0.0
    %7202 = vmatpush1.xpose.msra.mxu0 0.0
    %7203 = vmatprep.subr.mxu0 0.0
    %7204 = vmatpush1.xpose.msra.mxu0 0.0
    %7205 = vmatprep.subr.mxu0 0.0
    %7206 = vmatpush1.xpose.msra.mxu0 0.0
    %7207 = vmatprep.subr.mxu0 0.0
    %7208 = vmatpush1.xpose.msra.mxu0 0.0
    %7209 = vmatprep.subr.mxu0 0.0
    %7210 = vmatpush1.xpose.msra.mxu0 0.0
    %7211 = vmatprep.subr.mxu0 0.0
    %7212 = vmatpush1.xpose.msra.mxu0 0.0
    %7213 = vmatprep.subr.mxu0 0.0
    %7214 = vmatpush1.xpose.msra.mxu0 0.0
    %7215 = vmatprep.subr.mxu0 0.0
    %7216 = vmatpush1.xpose.msra.mxu0 0.0
    %7217 = vmatprep.subr.mxu0 0.0
    %7218 = vmatpush1.xpose.msra.mxu0 0.0
    %7219 = vmatprep.subr.mxu0 0.0
    %7220 = vmatpush1.xpose.msra.mxu0 0.0
    %7221 = vmatprep.subr.mxu0 0.0
    %7222 = vmatpush1.xpose.msra.mxu0 0.0
    %7223 = vmatprep.subr.mxu0 0.0
    %7224 = vmatpush1.xpose.msra.mxu0 0.0
    %7225 = vmatprep.subr.mxu0 0.0
    %7226 = vmatpush1.xpose.msra.mxu0 0.0
    %7227 = vmatprep.subr.mxu0 0.0
    %7228 = vmatpush1.xpose.msra.mxu0 0.0
    %7229 = vmatprep.subr.mxu0 0.0
    %7230 = vmatpush1.xpose.msra.mxu0 0.0
    %7231 = vmatprep.subr.mxu0 0.0
    %7232 = vmatpush1.xpose.msra.mxu0 0.0
    %7233 = vmatprep.subr.mxu0 0.0
    %7234 = vmatpush1.xpose.msra.mxu0 0.0
    %7235 = vmatprep.subr.mxu0 0.0
    %7236 = vmatpush1.xpose.msra.mxu0 0.0
    %7237 = vmatprep.subr.mxu0 0.0
    %7238 = vmatpush1.xpose.msra.mxu0 0.0
    %7239 = vmatprep.subr.mxu0 0.0
    %7240 = vmatpush1.xpose.msra.mxu0 0.0
    %7241 = vmatprep.subr.mxu0 0.0
    %7242 = vmatpush1.xpose.msra.mxu0 0.0
    %7243 = vmatprep.subr.mxu0 0.0
    %7244 = vmatpush1.xpose.msra.mxu0 0.0
    %7245 = vmatprep.subr.mxu0 0.0
    %7246 = vmatpush1.xpose.msra.mxu0 0.0
    %7247 = vmatprep.subr.mxu0 0.0
    %7248 = vmatpush1.xpose.msra.mxu0 0.0
    %7249 = vmatprep.subr.mxu0 0.0
    %7250 = vmatpush1.xpose.msra.mxu0 0.0
    %7251 = vmatprep.subr.mxu0 0.0
    %7252 = vmatpush1.xpose.msra.mxu0 0.0
    %7253 = vmatprep.mubr.f32.mxu0 0.0
    %v7254 = vand.u32 %v7186, 4294901760
    %v7255 = vsub.f32 %v7186, %v7254
    %v7256 = vand.u32 %v7255, 4294901760
    %v7257 = vsub.f32 %v7255, %v7256
    %v7258 = vand.u32 %v7257, 4294901760
    %7259 = vmatmul.mubr.f32.gmra.mrb[0].mxu0 %v7258
    %v7260 = vpop.f32.mrb[0].mxu0
    %v7261 = vadd.f32 0.0, %v7260
    %v7262 = vpop.f32.mrb[0].mxu0
    %7263 = vdwg.mxu0
    %7264 = vmatprep.subr.mxu0 0.0
    %v7265 = vand.u32 %v7186, 4294901760
    %v7266 = vsub.f32 %v7186, %v7265
    %v7267 = vand.u32 %v7266, 4294901760
    %v7268 = vsub.f32 %v7266, %v7267
    %v7269 = vand.u32 %v7268, 4294901760
    %7270 = vmatpush1.xpose.msra.mxu0 %v7269
    %7271 = vmatprep.subr.mxu0 0.0
    %7272 = vmatpush1.xpose.msra.mxu0 0.0
    %7273 = vmatprep.subr.mxu0 0.0
    %7274 = vmatpush1.xpose.msra.mxu0 0.0
    %7275 = vmatprep.subr.mxu0 0.0
    %7276 = vmatpush1.xpose.msra.mxu0 0.0
    %7277 = vmatprep.subr.mxu0 0.0
    %7278 = vmatpush1.xpose.msra.mxu0 0.0
    %7279 = vmatprep.subr.mxu0 0.0
    %7280 = vmatpush1.xpose.msra.mxu0 0.0
    %7281 = vmatprep.subr.mxu0 0.0
    %7282 = vmatpush1.xpose.msra.mxu0 0.0
    %7283 = vmatprep.subr.mxu0 0.0
    %7284 = vmatpush1.xpose.msra.mxu0 0.0
    %7285 = vmatprep.subr.mxu0 0.0
    %7286 = vmatpush1.xpose.msra.mxu0 0.0
    %7287 = vmatprep.subr.mxu0 0.0
    %7288 = vmatpush1.xpose.msra.mxu0 0.0
    %7289 = vmatprep.subr.mxu0 0.0
    %7290 = vmatpush1.xpose.msra.mxu0 0.0
    %7291 = vmatprep.subr.mxu0 0.0
    %7292 = vmatpush1.xpose.msra.mxu0 0.0
    %7293 = vmatprep.subr.mxu0 0.0
    %7294 = vmatpush1.xpose.msra.mxu0 0.0
    %7295 = vmatprep.subr.mxu0 0.0
    %7296 = vmatpush1.xpose.msra.mxu0 0.0
    %7297 = vmatprep.subr.mxu0 0.0
    %7298 = vmatpush1.xpose.msra.mxu0 0.0
    %7299 = vmatprep.subr.mxu0 0.0
    %7300 = vmatpush1.xpose.msra.mxu0 0.0
    %7301 = vmatprep.subr.mxu0 0.0
    %7302 = vmatpush1.xpose.msra.mxu0 0.0
    %7303 = vmatprep.subr.mxu0 0.0
    %7304 = vmatpush1.xpose.msra.mxu0 0.0
    %7305 = vmatprep.subr.mxu0 0.0
    %7306 = vmatpush1.xpose.msra.mxu0 0.0
    %7307 = vmatprep.subr.mxu0 0.0
    %7308 = vmatpush1.xpose.msra.mxu0 0.0
    %7309 = vmatprep.subr.mxu0 0.0
    %7310 = vmatpush1.xpose.msra.mxu0 0.0
    %7311 = vmatprep.subr.mxu0 0.0
    %7312 = vmatpush1.xpose.msra.mxu0 0.0
    %7313 = vmatprep.subr.mxu0 0.0
    %7314 = vmatpush1.xpose.msra.mxu0 0.0
    %7315 = vmatprep.subr.mxu0 0.0
    %7316 = vmatpush1.xpose.msra.mxu0 0.0
    %7317 = vmatprep.subr.mxu0 0.0
    %7318 = vmatpush1.xpose.msra.mxu0 0.0
    %7319 = vmatprep.subr.mxu0 0.0
    %7320 = vmatpush1.xpose.msra.mxu0 0.0
    %7321 = vmatprep.subr.mxu0 0.0
    %7322 = vmatpush1.xpose.msra.mxu0 0.0
    %7323 = vmatprep.subr.mxu0 0.0
    %7324 = vmatpush1.xpose.msra.mxu0 0.0
    %7325 = vmatprep.subr.mxu0 0.0
    %7326 = vmatpush1.xpose.msra.mxu0 0.0
    %7327 = vmatprep.subr.mxu0 0.0
    %7328 = vmatpush1.xpose.msra.mxu0 0.0
    %7329 = vmatprep.subr.mxu0 0.0
    %7330 = vmatpush1.xpose.msra.mxu0 0.0
    %7331 = vmatprep.subr.mxu0 0.0
    %7332 = vmatpush1.xpose.msra.mxu0 0.0
    %7333 = vmatprep.mubr.f32.mxu0 0.0
    %v7334 = vand.u32 %v7186, 4294901760
    %7335 = vmatmul.mubr.f32.gmra.mrb[0].mxu0 %v7334
    %v7336 = vpop.f32.mrb[0].mxu0
    %v7337 = vadd.f32 %v7261, %v7336
    %v7338 = vpop.f32.mrb[0].mxu0
    %7339 = vdwg.mxu0
    %7340 = vmatprep.subr.mxu0 0.0
    %v7341 = vand.u32 %v7186, 4294901760
    %v7342 = vsub.f32 %v7186, %v7341
    %7343 = vmatpush1.xpose.msra.mxu0 %v7342
    %7344 = vmatprep.subr.mxu0 0.0
    %7345 = vmatpush1.xpose.msra.mxu0 0.0
    %7346 = vmatprep.subr.mxu0 0.0
    %7347 = vmatpush1.xpose.msra.mxu0 0.0
    %7348 = vmatprep.subr.mxu0 0.0
    %7349 = vmatpush1.xpose.msra.mxu0 0.0
    %7350 = vmatprep.subr.mxu0 0.0
    %7351 = vmatpush1.xpose.msra.mxu0 0.0
    %7352 = vmatprep.subr.mxu0 0.0
    %7353 = vmatpush1.xpose.msra.mxu0 0.0
    %7354 = vmatprep.subr.mxu0 0.0
    %7355 = vmatpush1.xpose.msra.mxu0 0.0
    %7356 = vmatprep.subr.mxu0 0.0
    %7357 = vmatpush1.xpose.msra.mxu0 0.0
    %7358 = vmatprep.subr.mxu0 0.0
    %7359 = vmatpush1.xpose.msra.mxu0 0.0
    %7360 = vmatprep.subr.mxu0 0.0
    %7361 = vmatpush1.xpose.msra.mxu0 0.0
    %7362 = vmatprep.subr.mxu0 0.0
    %7363 = vmatpush1.xpose.msra.mxu0 0.0
    %7364 = vmatprep.subr.mxu0 0.0
    %7365 = vmatpush1.xpose.msra.mxu0 0.0
    %7366 = vmatprep.subr.mxu0 0.0
    %7367 = vmatpush1.xpose.msra.mxu0 0.0
    %7368 = vmatprep.subr.mxu0 0.0
    %7369 = vmatpush1.xpose.msra.mxu0 0.0
    %7370 = vmatprep.subr.mxu0 0.0
    %7371 = vmatpush1.xpose.msra.mxu0 0.0
    %7372 = vmatprep.subr.mxu0 0.0
    %7373 = vmatpush1.xpose.msra.mxu0 0.0
    %7374 = vmatprep.subr.mxu0 0.0
    %7375 = vmatpush1.xpose.msra.mxu0 0.0
    %7376 = vmatprep.subr.mxu0 0.0
    %7377 = vmatpush1.xpose.msra.mxu0 0.0
    %7378 = vmatprep.subr.mxu0 0.0
    %7379 = vmatpush1.xpose.msra.mxu0 0.0
    %7380 = vmatprep.subr.mxu0 0.0
    %7381 = vmatpush1.xpose.msra.mxu0 0.0
    %7382 = vmatprep.subr.mxu0 0.0
    %7383 = vmatpush1.xpose.msra.mxu0 0.0
    %7384 = vmatprep.subr.mxu0 0.0
    %7385 = vmatpush1.xpose.msra.mxu0 0.0
    %7386 = vmatprep.subr.mxu0 0.0
    %7387 = vmatpush1.xpose.msra.mxu0 0.0
    %7388 = vmatprep.subr.mxu0 0.0
    %7389 = vmatpush1.xpose.msra.mxu0 0.0
    %7390 = vmatprep.subr.mxu0 0.0
    %7391 = vmatpush1.xpose.msra.mxu0 0.0
    %7392 = vmatprep.subr.mxu0 0.0
    %7393 = vmatpush1.xpose.msra.mxu0 0.0
    %7394 = vmatprep.subr.mxu0 0.0
    %7395 = vmatpush1.xpose.msra.mxu0 0.0
    %7396 = vmatprep.subr.mxu0 0.0
    %7397 = vmatpush1.xpose.msra.mxu0 0.0
    %7398 = vmatprep.subr.mxu0 0.0
    %7399 = vmatpush1.xpose.msra.mxu0 0.0
    %7400 = vmatprep.subr.mxu0 0.0
    %7401 = vmatpush1.xpose.msra.mxu0 0.0
    %7402 = vmatprep.subr.mxu0 0.0
    %7403 = vmatpush1.xpose.msra.mxu0 0.0
    %7404 = vmatprep.subr.mxu0 0.0
    %7405 = vmatpush1.xpose.msra.mxu0 0.0
    %7406 = vmatprep.mubr.f32.mxu0 0.0
    %v7407 = vand.u32 %v7186, 4294901760
    %v7408 = vsub.f32 %v7186, %v7407
    %7409 = vmatmul.mubr.f32.gmra.mrb[0].mxu0 %v7408
    %v7410 = vpop.f32.mrb[0].mxu0
    %v7411 = vadd.f32 %v7337, %v7410
    %v7412 = vpop.f32.mrb[0].mxu0
    %7413 = vdwg.mxu0
    %7414 = vmatprep.subr.mxu0 0.0
    %v7415 = vand.u32 %v7186, 4294901760
    %7416 = vmatpush1.xpose.msra.mxu0 %v7415
    %7417 = vmatprep.subr.mxu0 0.0
    %7418 = vmatpush1.xpose.msra.mxu0 0.0
    %7419 = vmatprep.subr.mxu0 0.0
    %7420 = vmatpush1.xpose.msra.mxu0 0.0
    %7421 = vmatprep.subr.mxu0 0.0
    %7422 = vmatpush1.xpose.msra.mxu0 0.0
    %7423 = vmatprep.subr.mxu0 0.0
    %7424 = vmatpush1.xpose.msra.mxu0 0.0
    %7425 = vmatprep.subr.mxu0 0.0
    %7426 = vmatpush1.xpose.msra.mxu0 0.0
    %7427 = vmatprep.subr.mxu0 0.0
    %7428 = vmatpush1.xpose.msra.mxu0 0.0
    %7429 = vmatprep.subr.mxu0 0.0
    %7430 = vmatpush1.xpose.msra.mxu0 0.0
    %7431 = vmatprep.subr.mxu0 0.0
    %7432 = vmatpush1.xpose.msra.mxu0 0.0
    %7433 = vmatprep.subr.mxu0 0.0
    %7434 = vmatpush1.xpose.msra.mxu0 0.0
    %7435 = vmatprep.subr.mxu0 0.0
    %7436 = vmatpush1.xpose.msra.mxu0 0.0
    %7437 = vmatprep.subr.mxu0 0.0
    %7438 = vmatpush1.xpose.msra.mxu0 0.0
    %7439 = vmatprep.subr.mxu0 0.0
    %7440 = vmatpush1.xpose.msra.mxu0 0.0
    %7441 = vmatprep.subr.mxu0 0.0
    %7442 = vmatpush1.xpose.msra.mxu0 0.0
    %7443 = vmatprep.subr.mxu0 0.0
    %7444 = vmatpush1.xpose.msra.mxu0 0.0
    %7445 = vmatprep.subr.mxu0 0.0
    %7446 = vmatpush1.xpose.msra.mxu0 0.0
    %7447 = vmatprep.subr.mxu0 0.0
    %7448 = vmatpush1.xpose.msra.mxu0 0.0
    %7449 = vmatprep.subr.mxu0 0.0
    %7450 = vmatpush1.xpose.msra.mxu0 0.0
    %7451 = vmatprep.subr.mxu0 0.0
    %7452 = vmatpush1.xpose.msra.mxu0 0.0
    %7453 = vmatprep.subr.mxu0 0.0
    %7454 = vmatpush1.xpose.msra.mxu0 0.0
    %7455 = vmatprep.subr.mxu0 0.0
    %7456 = vmatpush1.xpose.msra.mxu0 0.0
    %7457 = vmatprep.subr.mxu0 0.0
    %7458 = vmatpush1.xpose.msra.mxu0 0.0
    %7459 = vmatprep.subr.mxu0 0.0
    %7460 = vmatpush1.xpose.msra.mxu0 0.0
    %7461 = vmatprep.subr.mxu0 0.0
    %7462 = vmatpush1.xpose.msra.mxu0 0.0
    %7463 = vmatprep.subr.mxu0 0.0
    %7464 = vmatpush1.xpose.msra.mxu0 0.0
    %7465 = vmatprep.subr.mxu0 0.0
    %7466 = vmatpush1.xpose.msra.mxu0 0.0
    %7467 = vmatprep.subr.mxu0 0.0
    %7468 = vmatpush1.xpose.msra.mxu0 0.0
    %7469 = vmatprep.subr.mxu0 0.0
    %7470 = vmatpush1.xpose.msra.mxu0 0.0
    %7471 = vmatprep.subr.mxu0 0.0
    %7472 = vmatpush1.xpose.msra.mxu0 0.0
    %7473 = vmatprep.subr.mxu0 0.0
    %7474 = vmatpush1.xpose.msra.mxu0 0.0
    %7475 = vmatprep.subr.mxu0 0.0
    %7476 = vmatpush1.xpose.msra.mxu0 0.0
    %7477 = vmatprep.subr.mxu0 0.0
    %7478 = vmatpush1.xpose.msra.mxu0 0.0
    %7479 = vmatprep.mubr.f32.mxu0 0.0
    %v7480 = vand.u32 %v7186, 4294901760
    %v7481 = vsub.f32 %v7186, %v7480
    %v7482 = vand.u32 %v7481, 4294901760
    %7483 = vmatmul.mubr.f32.gmra.mrb[0].mxu0 %v7482
    %v7484 = vpop.f32.mrb[0].mxu0
    %v7485 = vadd.f32 %v7411, %v7484
    %v7486 = vpop.f32.mrb[0].mxu0
    %7487 = vdwg.mxu0
    %7488 = vmatprep.subr.mxu0 0.0
    %v7489 = vand.u32 %v7186, 4294901760
    %v7490 = vsub.f32 %v7186, %v7489
    %v7491 = vand.u32 %v7490, 4294901760
    %7492 = vmatpush1.xpose.msra.mxu0 %v7491
    %7493 = vmatprep.subr.mxu0 0.0
    %7494 = vmatpush1.xpose.msra.mxu0 0.0
    %7495 = vmatprep.subr.mxu0 0.0
    %7496 = vmatpush1.xpose.msra.mxu0 0.0
    %7497 = vmatprep.subr.mxu0 0.0
    %7498 = vmatpush1.xpose.msra.mxu0 0.0
    %7499 = vmatprep.subr.mxu0 0.0
    %7500 = vmatpush1.xpose.msra.mxu0 0.0
    %7501 = vmatprep.subr.mxu0 0.0
    %7502 = vmatpush1.xpose.msra.mxu0 0.0
    %7503 = vmatprep.subr.mxu0 0.0
    %7504 = vmatpush1.xpose.msra.mxu0 0.0
    %7505 = vmatprep.subr.mxu0 0.0
    %7506 = vmatpush1.xpose.msra.mxu0 0.0
    %7507 = vmatprep.subr.mxu0 0.0
    %7508 = vmatpush1.xpose.msra.mxu0 0.0
    %7509 = vmatprep.subr.mxu0 0.0
    %7510 = vmatpush1.xpose.msra.mxu0 0.0
    %7511 = vmatprep.subr.mxu0 0.0
    %7512 = vmatpush1.xpose.msra.mxu0 0.0
    %7513 = vmatprep.subr.mxu0 0.0
    %7514 = vmatpush1.xpose.msra.mxu0 0.0
    %7515 = vmatprep.subr.mxu0 0.0
    %7516 = vmatpush1.xpose.msra.mxu0 0.0
    %7517 = vmatprep.subr.mxu0 0.0
    %7518 = vmatpush1.xpose.msra.mxu0 0.0
    %7519 = vmatprep.subr.mxu0 0.0
    %7520 = vmatpush1.xpose.msra.mxu0 0.0
    %7521 = vmatprep.subr.mxu0 0.0
    %7522 = vmatpush1.xpose.msra.mxu0 0.0
    %7523 = vmatprep.subr.mxu0 0.0
    %7524 = vmatpush1.xpose.msra.mxu0 0.0
    %7525 = vmatprep.subr.mxu0 0.0
    %7526 = vmatpush1.xpose.msra.mxu0 0.0
    %7527 = vmatprep.subr.mxu0 0.0
    %7528 = vmatpush1.xpose.msra.mxu0 0.0
    %7529 = vmatprep.subr.mxu0 0.0
    %7530 = vmatpush1.xpose.msra.mxu0 0.0
    %7531 = vmatprep.subr.mxu0 0.0
    %7532 = vmatpush1.xpose.msra.mxu0 0.0
    %7533 = vmatprep.subr.mxu0 0.0
    %7534 = vmatpush1.xpose.msra.mxu0 0.0
    %7535 = vmatprep.subr.mxu0 0.0
    %7536 = vmatpush1.xpose.msra.mxu0 0.0
    %7537 = vmatprep.subr.mxu0 0.0
    %7538 = vmatpush1.xpose.msra.mxu0 0.0
    %7539 = vmatprep.subr.mxu0 0.0
    %7540 = vmatpush1.xpose.msra.mxu0 0.0
    %7541 = vmatprep.subr.mxu0 0.0
    %7542 = vmatpush1.xpose.msra.mxu0 0.0
    %7543 = vmatprep.subr.mxu0 0.0
    %7544 = vmatpush1.xpose.msra.mxu0 0.0
    %7545 = vmatprep.subr.mxu0 0.0
    %7546 = vmatpush1.xpose.msra.mxu0 0.0
    %7547 = vmatprep.subr.mxu0 0.0
    %7548 = vmatpush1.xpose.msra.mxu0 0.0
    %7549 = vmatprep.subr.mxu0 0.0
    %7550 = vmatpush1.xpose.msra.mxu0 0.0
    %7551 = vmatprep.subr.mxu0 0.0
    %7552 = vmatpush1.xpose.msra.mxu0 0.0
    %7553 = vmatprep.subr.mxu0 0.0
    %7554 = vmatpush1.xpose.msra.mxu0 0.0
    %7555 = vmatprep.mubr.f32.mxu0 0.0
    %v7556 = vand.u32 %v7186, 4294901760
    %7557 = vmatmul.mubr.f32.gmra.mrb[0].mxu0 %v7556
    %v7558 = vpop.f32.mrb[0].mxu0
    %v7559 = vadd.f32 %v7485, %v7558
    %v7560 = vpop.f32.mrb[0].mxu0
    %7561 = vdwg.mxu0
    %7562 = vmatprep.subr.mxu0 0.0
    %v7563 = vand.u32 %v7186, 4294901760
    %7564 = vmatpush1.xpose.msra.mxu0 %v7563
    %7565 = vmatprep.subr.mxu0 0.0
    %7566 = vmatpush1.xpose.msra.mxu0 0.0
    %7567 = vmatprep.subr.mxu0 0.0
    %7568 = vmatpush1.xpose.msra.mxu0 0.0
    %7569 = vmatprep.subr.mxu0 0.0
    %7570 = vmatpush1.xpose.msra.mxu0 0.0
    %7571 = vmatprep.subr.mxu0 0.0
    %7572 = vmatpush1.xpose.msra.mxu0 0.0
    %7573 = vmatprep.subr.mxu0 0.0
    %7574 = vmatpush1.xpose.msra.mxu0 0.0
    %7575 = vmatprep.subr.mxu0 0.0
    %7576 = vmatpush1.xpose.msra.mxu0 0.0
    %7577 = vmatprep.subr.mxu0 0.0
    %7578 = vmatpush1.xpose.msra.mxu0 0.0
    %7579 = vmatprep.subr.mxu0 0.0
    %7580 = vmatpush1.xpose.msra.mxu0 0.0
    %7581 = vmatprep.subr.mxu0 0.0
    %7582 = vmatpush1.xpose.msra.mxu0 0.0
    %7583 = vmatprep.subr.mxu0 0.0
    %7584 = vmatpush1.xpose.msra.mxu0 0.0
    %7585 = vmatprep.subr.mxu0 0.0
    %7586 = vmatpush1.xpose.msra.mxu0 0.0
    %7587 = vmatprep.subr.mxu0 0.0
    %7588 = vmatpush1.xpose.msra.mxu0 0.0
    %7589 = vmatprep.subr.mxu0 0.0
    %7590 = vmatpush1.xpose.msra.mxu0 0.0
    %7591 = vmatprep.subr.mxu0 0.0
    %7592 = vmatpush1.xpose.msra.mxu0 0.0
    %7593 = vmatprep.subr.mxu0 0.0
    %7594 = vmatpush1.xpose.msra.mxu0 0.0
    %7595 = vmatprep.subr.mxu0 0.0
    %7596 = vmatpush1.xpose.msra.mxu0 0.0
    %7597 = vmatprep.subr.mxu0 0.0
    %7598 = vmatpush1.xpose.msra.mxu0 0.0
    %7599 = vmatprep.subr.mxu0 0.0
    %7600 = vmatpush1.xpose.msra.mxu0 0.0
    %7601 = vmatprep.subr.mxu0 0.0
    %7602 = vmatpush1.xpose.msra.mxu0 0.0
    %7603 = vmatprep.subr.mxu0 0.0
    %7604 = vmatpush1.xpose.msra.mxu0 0.0
    %7605 = vmatprep.subr.mxu0 0.0
    %7606 = vmatpush1.xpose.msra.mxu0 0.0
    %7607 = vmatprep.subr.mxu0 0.0
    %7608 = vmatpush1.xpose.msra.mxu0 0.0
    %7609 = vmatprep.subr.mxu0 0.0
    %7610 = vmatpush1.xpose.msra.mxu0 0.0
    %7611 = vmatprep.subr.mxu0 0.0
    %7612 = vmatpush1.xpose.msra.mxu0 0.0
    %7613 = vmatprep.subr.mxu0 0.0
    %7614 = vmatpush1.xpose.msra.mxu0 0.0
    %7615 = vmatprep.subr.mxu0 0.0
    %7616 = vmatpush1.xpose.msra.mxu0 0.0
    %7617 = vmatprep.subr.mxu0 0.0
    %7618 = vmatpush1.xpose.msra.mxu0 0.0
    %7619 = vmatprep.subr.mxu0 0.0
    %7620 = vmatpush1.xpose.msra.mxu0 0.0
    %7621 = vmatprep.subr.mxu0 0.0
    %7622 = vmatpush1.xpose.msra.mxu0 0.0
    %7623 = vmatprep.subr.mxu0 0.0
    %7624 = vmatpush1.xpose.msra.mxu0 0.0
    %7625 = vmatprep.subr.mxu0 0.0
    %7626 = vmatpush1.xpose.msra.mxu0 0.0
    %7627 = vmatprep.mubr.f32.mxu0 0.0
    %v7628 = vand.u32 %v7186, 4294901760
    %7629 = vmatmul.mubr.f32.gmra.mrb[0].mxu0 %v7628
    %v7630 = vpop.f32.mrb[0].mxu0
    %v7631 = vadd.f32 %v7559, %v7630
    %v7632 = vpop.f32.mrb[0].mxu0
    %7633 = vdwg.mxu0
    %7634 = vrot.lane.b32.xlu0 %v61, 104
    %v7635 = vpop.permute.xlu0 %7634
    %v7636 = vsel %vm67, %v7635, 0
    %7638 = vmatprep.subr.mxu0 0.0
    %v7639 = vand.u32 %v7636, 4294901760
    %7640 = vmatpush1.xpose.msra.mxu0 %v7639
    %7641 = vmatprep.subr.mxu0 0.0
    %7642 = vmatpush1.xpose.msra.mxu0 0.0
    %7643 = vmatprep.subr.mxu0 0.0
    %7644 = vmatpush1.xpose.msra.mxu0 0.0
    %7645 = vmatprep.subr.mxu0 0.0
    %7646 = vmatpush1.xpose.msra.mxu0 0.0
    %7647 = vmatprep.subr.mxu0 0.0
    %7648 = vmatpush1.xpose.msra.mxu0 0.0
    %7649 = vmatprep.subr.mxu0 0.0
    %7650 = vmatpush1.xpose.msra.mxu0 0.0
    %7651 = vmatprep.subr.mxu0 0.0
    %7652 = vmatpush1.xpose.msra.mxu0 0.0
    %7653 = vmatprep.subr.mxu0 0.0
    %7654 = vmatpush1.xpose.msra.mxu0 0.0
    %7655 = vmatprep.subr.mxu0 0.0
    %7656 = vmatpush1.xpose.msra.mxu0 0.0
    %7657 = vmatprep.subr.mxu0 0.0
    %7658 = vmatpush1.xpose.msra.mxu0 0.0
    %7659 = vmatprep.subr.mxu0 0.0
    %7660 = vmatpush1.xpose.msra.mxu0 0.0
    %7661 = vmatprep.subr.mxu0 0.0
    %7662 = vmatpush1.xpose.msra.mxu0 0.0
    %7663 = vmatprep.subr.mxu0 0.0
    %7664 = vmatpush1.xpose.msra.mxu0 0.0
    %7665 = vmatprep.subr.mxu0 0.0
    %7666 = vmatpush1.xpose.msra.mxu0 0.0
    %7667 = vmatprep.subr.mxu0 0.0
    %7668 = vmatpush1.xpose.msra.mxu0 0.0
    %7669 = vmatprep.subr.mxu0 0.0
    %7670 = vmatpush1.xpose.msra.mxu0 0.0
    %7671 = vmatprep.subr.mxu0 0.0
    %7672 = vmatpush1.xpose.msra.mxu0 0.0
    %7673 = vmatprep.subr.mxu0 0.0
    %7674 = vmatpush1.xpose.msra.mxu0 0.0
    %7675 = vmatprep.subr.mxu0 0.0
    %7676 = vmatpush1.xpose.msra.mxu0 0.0
    %7677 = vmatprep.subr.mxu0 0.0
    %7678 = vmatpush1.xpose.msra.mxu0 0.0
    %7679 = vmatprep.subr.mxu0 0.0
    %7680 = vmatpush1.xpose.msra.mxu0 0.0
    %7681 = vmatprep.subr.mxu0 0.0
    %7682 = vmatpush1.xpose.msra.mxu0 0.0
    %7683 = vmatprep.subr.mxu0 0.0
    %7684 = vmatpush1.xpose.msra.mxu0 0.0
    %7685 = vmatprep.subr.mxu0 0.0
    %7686 = vmatpush1.xpose.msra.mxu0 0.0
    %7687 = vmatprep.subr.mxu0 0.0
    %7688 = vmatpush1.xpose.msra.mxu0 0.0
    %7689 = vmatprep.subr.mxu0 0.0
    %7690 = vmatpush1.xpose.msra.mxu0 0.0
    %7691 = vmatprep.subr.mxu0 0.0
    %7692 = vmatpush1.xpose.msra.mxu0 0.0
    %7693 = vmatprep.subr.mxu0 0.0
    %7694 = vmatpush1.xpose.msra.mxu0 0.0
    %7695 = vmatprep.subr.mxu0 0.0
    %7696 = vmatpush1.xpose.msra.mxu0 0.0
    %7697 = vmatprep.subr.mxu0 0.0
    %7698 = vmatpush1.xpose.msra.mxu0 0.0
    %7699 = vmatprep.subr.mxu0 0.0
    %7700 = vmatpush1.xpose.msra.mxu0 0.0
    %7701 = vmatprep.subr.mxu0 0.0
    %7702 = vmatpush1.xpose.msra.mxu0 0.0
    %7703 = vmatprep.mubr.f32.mxu0 0.0
    %v7704 = vand.u32 %v7636, 4294901760
    %v7705 = vsub.f32 %v7636, %v7704
    %v7706 = vand.u32 %v7705, 4294901760
    %v7707 = vsub.f32 %v7705, %v7706
    %v7708 = vand.u32 %v7707, 4294901760
    %7709 = vmatmul.mubr.f32.gmra.mrb[0].mxu0 %v7708
    %v7710 = vpop.f32.mrb[0].mxu0
    %v7711 = vadd.f32 0.0, %v7710
    %v7712 = vpop.f32.mrb[0].mxu0
    %7713 = vdwg.mxu0
    %7714 = vmatprep.subr.mxu0 0.0
    %v7715 = vand.u32 %v7636, 4294901760
    %v7716 = vsub.f32 %v7636, %v7715
    %v7717 = vand.u32 %v7716, 4294901760
    %v7718 = vsub.f32 %v7716, %v7717
    %v7719 = vand.u32 %v7718, 4294901760
    %7720 = vmatpush1.xpose.msra.mxu0 %v7719
    %7721 = vmatprep.subr.mxu0 0.0
    %7722 = vmatpush1.xpose.msra.mxu0 0.0
    %7723 = vmatprep.subr.mxu0 0.0
    %7724 = vmatpush1.xpose.msra.mxu0 0.0
    %7725 = vmatprep.subr.mxu0 0.0
    %7726 = vmatpush1.xpose.msra.mxu0 0.0
    %7727 = vmatprep.subr.mxu0 0.0
    %7728 = vmatpush1.xpose.msra.mxu0 0.0
    %7729 = vmatprep.subr.mxu0 0.0
    %7730 = vmatpush1.xpose.msra.mxu0 0.0
    %7731 = vmatprep.subr.mxu0 0.0
    %7732 = vmatpush1.xpose.msra.mxu0 0.0
    %7733 = vmatprep.subr.mxu0 0.0
    %7734 = vmatpush1.xpose.msra.mxu0 0.0
    %7735 = vmatprep.subr.mxu0 0.0
    %7736 = vmatpush1.xpose.msra.mxu0 0.0
    %7737 = vmatprep.subr.mxu0 0.0
    %7738 = vmatpush1.xpose.msra.mxu0 0.0
    %7739 = vmatprep.subr.mxu0 0.0
    %7740 = vmatpush1.xpose.msra.mxu0 0.0
    %7741 = vmatprep.subr.mxu0 0.0
    %7742 = vmatpush1.xpose.msra.mxu0 0.0
    %7743 = vmatprep.subr.mxu0 0.0
    %7744 = vmatpush1.xpose.msra.mxu0 0.0
    %7745 = vmatprep.subr.mxu0 0.0
    %7746 = vmatpush1.xpose.msra.mxu0 0.0
    %7747 = vmatprep.subr.mxu0 0.0
    %7748 = vmatpush1.xpose.msra.mxu0 0.0
    %7749 = vmatprep.subr.mxu0 0.0
    %7750 = vmatpush1.xpose.msra.mxu0 0.0
    %7751 = vmatprep.subr.mxu0 0.0
    %7752 = vmatpush1.xpose.msra.mxu0 0.0
    %7753 = vmatprep.subr.mxu0 0.0
    %7754 = vmatpush1.xpose.msra.mxu0 0.0
    %7755 = vmatprep.subr.mxu0 0.0
    %7756 = vmatpush1.xpose.msra.mxu0 0.0
    %7757 = vmatprep.subr.mxu0 0.0
    %7758 = vmatpush1.xpose.msra.mxu0 0.0
    %7759 = vmatprep.subr.mxu0 0.0
    %7760 = vmatpush1.xpose.msra.mxu0 0.0
    %7761 = vmatprep.subr.mxu0 0.0
    %7762 = vmatpush1.xpose.msra.mxu0 0.0
    %7763 = vmatprep.subr.mxu0 0.0
    %7764 = vmatpush1.xpose.msra.mxu0 0.0
    %7765 = vmatprep.subr.mxu0 0.0
    %7766 = vmatpush1.xpose.msra.mxu0 0.0
    %7767 = vmatprep.subr.mxu0 0.0
    %7768 = vmatpush1.xpose.msra.mxu0 0.0
    %7769 = vmatprep.subr.mxu0 0.0
    %7770 = vmatpush1.xpose.msra.mxu0 0.0
    %7771 = vmatprep.subr.mxu0 0.0
    %7772 = vmatpush1.xpose.msra.mxu0 0.0
    %7773 = vmatprep.subr.mxu0 0.0
    %7774 = vmatpush1.xpose.msra.mxu0 0.0
    %7775 = vmatprep.subr.mxu0 0.0
    %7776 = vmatpush1.xpose.msra.mxu0 0.0
    %7777 = vmatprep.subr.mxu0 0.0
    %7778 = vmatpush1.xpose.msra.mxu0 0.0
    %7779 = vmatprep.subr.mxu0 0.0
    %7780 = vmatpush1.xpose.msra.mxu0 0.0
    %7781 = vmatprep.subr.mxu0 0.0
    %7782 = vmatpush1.xpose.msra.mxu0 0.0
    %7783 = vmatprep.mubr.f32.mxu0 0.0
    %v7784 = vand.u32 %v7636, 4294901760
    %7785 = vmatmul.mubr.f32.gmra.mrb[0].mxu0 %v7784
    %v7786 = vpop.f32.mrb[0].mxu0
    %v7787 = vadd.f32 %v7711, %v7786
    %v7788 = vpop.f32.mrb[0].mxu0
    %7789 = vdwg.mxu0
    %7790 = vmatprep.subr.mxu0 0.0
    %v7791 = vand.u32 %v7636, 4294901760
    %v7792 = vsub.f32 %v7636, %v7791
    %7793 = vmatpush1.xpose.msra.mxu0 %v7792
    %7794 = vmatprep.subr.mxu0 0.0
    %7795 = vmatpush1.xpose.msra.mxu0 0.0
    %7796 = vmatprep.subr.mxu0 0.0
    %7797 = vmatpush1.xpose.msra.mxu0 0.0
    %7798 = vmatprep.subr.mxu0 0.0
    %7799 = vmatpush1.xpose.msra.mxu0 0.0
    %7800 = vmatprep.subr.mxu0 0.0
    %7801 = vmatpush1.xpose.msra.mxu0 0.0
    %7802 = vmatprep.subr.mxu0 0.0
    %7803 = vmatpush1.xpose.msra.mxu0 0.0
    %7804 = vmatprep.subr.mxu0 0.0
    %7805 = vmatpush1.xpose.msra.mxu0 0.0
    %7806 = vmatprep.subr.mxu0 0.0
    %7807 = vmatpush1.xpose.msra.mxu0 0.0
    %7808 = vmatprep.subr.mxu0 0.0
    %7809 = vmatpush1.xpose.msra.mxu0 0.0
    %7810 = vmatprep.subr.mxu0 0.0
    %7811 = vmatpush1.xpose.msra.mxu0 0.0
    %7812 = vmatprep.subr.mxu0 0.0
    %7813 = vmatpush1.xpose.msra.mxu0 0.0
    %7814 = vmatprep.subr.mxu0 0.0
    %7815 = vmatpush1.xpose.msra.mxu0 0.0
    %7816 = vmatprep.subr.mxu0 0.0
    %7817 = vmatpush1.xpose.msra.mxu0 0.0
    %7818 = vmatprep.subr.mxu0 0.0
    %7819 = vmatpush1.xpose.msra.mxu0 0.0
    %7820 = vmatprep.subr.mxu0 0.0
    %7821 = vmatpush1.xpose.msra.mxu0 0.0
    %7822 = vmatprep.subr.mxu0 0.0
    %7823 = vmatpush1.xpose.msra.mxu0 0.0
    %7824 = vmatprep.subr.mxu0 0.0
    %7825 = vmatpush1.xpose.msra.mxu0 0.0
    %7826 = vmatprep.subr.mxu0 0.0
    %7827 = vmatpush1.xpose.msra.mxu0 0.0
    %7828 = vmatprep.subr.mxu0 0.0
    %7829 = vmatpush1.xpose.msra.mxu0 0.0
    %7830 = vmatprep.subr.mxu0 0.0
    %7831 = vmatpush1.xpose.msra.mxu0 0.0
    %7832 = vmatprep.subr.mxu0 0.0
    %7833 = vmatpush1.xpose.msra.mxu0 0.0
    %7834 = vmatprep.subr.mxu0 0.0
    %7835 = vmatpush1.xpose.msra.mxu0 0.0
    %7836 = vmatprep.subr.mxu0 0.0
    %7837 = vmatpush1.xpose.msra.mxu0 0.0
    %7838 = vmatprep.subr.mxu0 0.0
    %7839 = vmatpush1.xpose.msra.mxu0 0.0
    %7840 = vmatprep.subr.mxu0 0.0
    %7841 = vmatpush1.xpose.msra.mxu0 0.0
    %7842 = vmatprep.subr.mxu0 0.0
    %7843 = vmatpush1.xpose.msra.mxu0 0.0
    %7844 = vmatprep.subr.mxu0 0.0
    %7845 = vmatpush1.xpose.msra.mxu0 0.0
    %7846 = vmatprep.subr.mxu0 0.0
    %7847 = vmatpush1.xpose.msra.mxu0 0.0
    %7848 = vmatprep.subr.mxu0 0.0
    %7849 = vmatpush1.xpose.msra.mxu0 0.0
    %7850 = vmatprep.subr.mxu0 0.0
    %7851 = vmatpush1.xpose.msra.mxu0 0.0
    %7852 = vmatprep.subr.mxu0 0.0
    %7853 = vmatpush1.xpose.msra.mxu0 0.0
    %7854 = vmatprep.subr.mxu0 0.0
    %7855 = vmatpush1.xpose.msra.mxu0 0.0
    %7856 = vmatprep.mubr.f32.mxu0 0.0
    %v7857 = vand.u32 %v7636, 4294901760
    %v7858 = vsub.f32 %v7636, %v7857
    %7859 = vmatmul.mubr.f32.gmra.mrb[0].mxu0 %v7858
    %v7860 = vpop.f32.mrb[0].mxu0
    %v7861 = vadd.f32 %v7787, %v7860
    %v7862 = vpop.f32.mrb[0].mxu0
    %7863 = vdwg.mxu0
    %7864 = vmatprep.subr.mxu0 0.0
    %v7865 = vand.u32 %v7636, 4294901760
    %7866 = vmatpush1.xpose.msra.mxu0 %v7865
    %7867 = vmatprep.subr.mxu0 0.0
    %7868 = vmatpush1.xpose.msra.mxu0 0.0
    %7869 = vmatprep.subr.mxu0 0.0
    %7870 = vmatpush1.xpose.msra.mxu0 0.0
    %7871 = vmatprep.subr.mxu0 0.0
    %7872 = vmatpush1.xpose.msra.mxu0 0.0
    %7873 = vmatprep.subr.mxu0 0.0
    %7874 = vmatpush1.xpose.msra.mxu0 0.0
    %7875 = vmatprep.subr.mxu0 0.0
    %7876 = vmatpush1.xpose.msra.mxu0 0.0
    %7877 = vmatprep.subr.mxu0 0.0
    %7878 = vmatpush1.xpose.msra.mxu0 0.0
    %7879 = vmatprep.subr.mxu0 0.0
    %7880 = vmatpush1.xpose.msra.mxu0 0.0
    %7881 = vmatprep.subr.mxu0 0.0
    %7882 = vmatpush1.xpose.msra.mxu0 0.0
    %7883 = vmatprep.subr.mxu0 0.0
    %7884 = vmatpush1.xpose.msra.mxu0 0.0
    %7885 = vmatprep.subr.mxu0 0.0
    %7886 = vmatpush1.xpose.msra.mxu0 0.0
    %7887 = vmatprep.subr.mxu0 0.0
    %7888 = vmatpush1.xpose.msra.mxu0 0.0
    %7889 = vmatprep.subr.mxu0 0.0
    %7890 = vmatpush1.xpose.msra.mxu0 0.0
    %7891 = vmatprep.subr.mxu0 0.0
    %7892 = vmatpush1.xpose.msra.mxu0 0.0
    %7893 = vmatprep.subr.mxu0 0.0
    %7894 = vmatpush1.xpose.msra.mxu0 0.0
    %7895 = vmatprep.subr.mxu0 0.0
    %7896 = vmatpush1.xpose.msra.mxu0 0.0
    %7897 = vmatprep.subr.mxu0 0.0
    %7898 = vmatpush1.xpose.msra.mxu0 0.0
    %7899 = vmatprep.subr.mxu0 0.0
    %7900 = vmatpush1.xpose.msra.mxu0 0.0
    %7901 = vmatprep.subr.mxu0 0.0
    %7902 = vmatpush1.xpose.msra.mxu0 0.0
    %7903 = vmatprep.subr.mxu0 0.0
    %7904 = vmatpush1.xpose.msra.mxu0 0.0
    %7905 = vmatprep.subr.mxu0 0.0
    %7906 = vmatpush1.xpose.msra.mxu0 0.0
    %7907 = vmatprep.subr.mxu0 0.0
    %7908 = vmatpush1.xpose.msra.mxu0 0.0
    %7909 = vmatprep.subr.mxu0 0.0
    %7910 = vmatpush1.xpose.msra.mxu0 0.0
    %7911 = vmatprep.subr.mxu0 0.0
    %7912 = vmatpush1.xpose.msra.mxu0 0.0
    %7913 = vmatprep.subr.mxu0 0.0
    %7914 = vmatpush1.xpose.msra.mxu0 0.0
    %7915 = vmatprep.subr.mxu0 0.0
    %7916 = vmatpush1.xpose.msra.mxu0 0.0
    %7917 = vmatprep.subr.mxu0 0.0
    %7918 = vmatpush1.xpose.msra.mxu0 0.0
    %7919 = vmatprep.subr.mxu0 0.0
    %7920 = vmatpush1.xpose.msra.mxu0 0.0
    %7921 = vmatprep.subr.mxu0 0.0
    %7922 = vmatpush1.xpose.msra.mxu0 0.0
    %7923 = vmatprep.subr.mxu0 0.0
    %7924 = vmatpush1.xpose.msra.mxu0 0.0
    %7925 = vmatprep.subr.mxu0 0.0
    %7926 = vmatpush1.xpose.msra.mxu0 0.0
    %7927 = vmatprep.subr.mxu0 0.0
    %7928 = vmatpush1.xpose.msra.mxu0 0.0
    %7929 = vmatprep.mubr.f32.mxu0 0.0
    %v7930 = vand.u32 %v7636, 4294901760
    %v7931 = vsub.f32 %v7636, %v7930
    %v7932 = vand.u32 %v7931, 4294901760
    %7933 = vmatmul.mubr.f32.gmra.mrb[0].mxu0 %v7932
    %v7934 = vpop.f32.mrb[0].mxu0
    %v7935 = vadd.f32 %v7861, %v7934
    %v7936 = vpop.f32.mrb[0].mxu0
    %7937 = vdwg.mxu0
    %7938 = vmatprep.subr.mxu0 0.0
    %v7939 = vand.u32 %v7636, 4294901760
    %v7940 = vsub.f32 %v7636, %v7939
    %v7941 = vand.u32 %v7940, 4294901760
    %7942 = vmatpush1.xpose.msra.mxu0 %v7941
    %7943 = vmatprep.subr.mxu0 0.0
    %7944 = vmatpush1.xpose.msra.mxu0 0.0
    %7945 = vmatprep.subr.mxu0 0.0
    %7946 = vmatpush1.xpose.msra.mxu0 0.0
    %7947 = vmatprep.subr.mxu0 0.0
    %7948 = vmatpush1.xpose.msra.mxu0 0.0
    %7949 = vmatprep.subr.mxu0 0.0
    %7950 = vmatpush1.xpose.msra.mxu0 0.0
    %7951 = vmatprep.subr.mxu0 0.0
    %7952 = vmatpush1.xpose.msra.mxu0 0.0
    %7953 = vmatprep.subr.mxu0 0.0
    %7954 = vmatpush1.xpose.msra.mxu0 0.0
    %7955 = vmatprep.subr.mxu0 0.0
    %7956 = vmatpush1.xpose.msra.mxu0 0.0
    %7957 = vmatprep.subr.mxu0 0.0
    %7958 = vmatpush1.xpose.msra.mxu0 0.0
    %7959 = vmatprep.subr.mxu0 0.0
    %7960 = vmatpush1.xpose.msra.mxu0 0.0
    %7961 = vmatprep.subr.mxu0 0.0
    %7962 = vmatpush1.xpose.msra.mxu0 0.0
    %7963 = vmatprep.subr.mxu0 0.0
    %7964 = vmatpush1.xpose.msra.mxu0 0.0
    %7965 = vmatprep.subr.mxu0 0.0
    %7966 = vmatpush1.xpose.msra.mxu0 0.0
    %7967 = vmatprep.subr.mxu0 0.0
    %7968 = vmatpush1.xpose.msra.mxu0 0.0
    %7969 = vmatprep.subr.mxu0 0.0
    %7970 = vmatpush1.xpose.msra.mxu0 0.0
    %7971 = vmatprep.subr.mxu0 0.0
    %7972 = vmatpush1.xpose.msra.mxu0 0.0
    %7973 = vmatprep.subr.mxu0 0.0
    %7974 = vmatpush1.xpose.msra.mxu0 0.0
    %7975 = vmatprep.subr.mxu0 0.0
    %7976 = vmatpush1.xpose.msra.mxu0 0.0
    %7977 = vmatprep.subr.mxu0 0.0
    %7978 = vmatpush1.xpose.msra.mxu0 0.0
    %7979 = vmatprep.subr.mxu0 0.0
    %7980 = vmatpush1.xpose.msra.mxu0 0.0
    %7981 = vmatprep.subr.mxu0 0.0
    %7982 = vmatpush1.xpose.msra.mxu0 0.0
    %7983 = vmatprep.subr.mxu0 0.0
    %7984 = vmatpush1.xpose.msra.mxu0 0.0
    %7985 = vmatprep.subr.mxu0 0.0
    %7986 = vmatpush1.xpose.msra.mxu0 0.0
    %7987 = vmatprep.subr.mxu0 0.0
    %7988 = vmatpush1.xpose.msra.mxu0 0.0
    %7989 = vmatprep.subr.mxu0 0.0
    %7990 = vmatpush1.xpose.msra.mxu0 0.0
    %7991 = vmatprep.subr.mxu0 0.0
    %7992 = vmatpush1.xpose.msra.mxu0 0.0
    %7993 = vmatprep.subr.mxu0 0.0
    %7994 = vmatpush1.xpose.msra.mxu0 0.0
    %7995 = vmatprep.subr.mxu0 0.0
    %7996 = vmatpush1.xpose.msra.mxu0 0.0
    %7997 = vmatprep.subr.mxu0 0.0
    %7998 = vmatpush1.xpose.msra.mxu0 0.0
    %7999 = vmatprep.subr.mxu0 0.0
    %8000 = vmatpush1.xpose.msra.mxu0 0.0
    %8001 = vmatprep.subr.mxu0 0.0
    %8002 = vmatpush1.xpose.msra.mxu0 0.0
    %8003 = vmatprep.subr.mxu0 0.0
    %8004 = vmatpush1.xpose.msra.mxu0 0.0
    %8005 = vmatprep.mubr.f32.mxu0 0.0
    %v8006 = vand.u32 %v7636, 4294901760
    %8007 = vmatmul.mubr.f32.gmra.mrb[0].mxu0 %v8006
    %v8008 = vpop.f32.mrb[0].mxu0
    %v8009 = vadd.f32 %v7935, %v8008
    %v8010 = vpop.f32.mrb[0].mxu0
    %8011 = vdwg.mxu0
    %8012 = vmatprep.subr.mxu0 0.0
    %v8013 = vand.u32 %v7636, 4294901760
    %8014 = vmatpush1.xpose.msra.mxu0 %v8013
    %8015 = vmatprep.subr.mxu0 0.0
    %8016 = vmatpush1.xpose.msra.mxu0 0.0
    %8017 = vmatprep.subr.mxu0 0.0
    %8018 = vmatpush1.xpose.msra.mxu0 0.0
    %8019 = vmatprep.subr.mxu0 0.0
    %8020 = vmatpush1.xpose.msra.mxu0 0.0
    %8021 = vmatprep.subr.mxu0 0.0
    %8022 = vmatpush1.xpose.msra.mxu0 0.0
    %8023 = vmatprep.subr.mxu0 0.0
    %8024 = vmatpush1.xpose.msra.mxu0 0.0
    %8025 = vmatprep.subr.mxu0 0.0
    %8026 = vmatpush1.xpose.msra.mxu0 0.0
    %8027 = vmatprep.subr.mxu0 0.0
    %8028 = vmatpush1.xpose.msra.mxu0 0.0
    %8029 = vmatprep.subr.mxu0 0.0
    %8030 = vmatpush1.xpose.msra.mxu0 0.0
    %8031 = vmatprep.subr.mxu0 0.0
    %8032 = vmatpush1.xpose.msra.mxu0 0.0
    %8033 = vmatprep.subr.mxu0 0.0
    %8034 = vmatpush1.xpose.msra.mxu0 0.0
    %8035 = vmatprep.subr.mxu0 0.0
    %8036 = vmatpush1.xpose.msra.mxu0 0.0
    %8037 = vmatprep.subr.mxu0 0.0
    %8038 = vmatpush1.xpose.msra.mxu0 0.0
    %8039 = vmatprep.subr.mxu0 0.0
    %8040 = vmatpush1.xpose.msra.mxu0 0.0
    %8041 = vmatprep.subr.mxu0 0.0
    %8042 = vmatpush1.xpose.msra.mxu0 0.0
    %8043 = vmatprep.subr.mxu0 0.0
    %8044 = vmatpush1.xpose.msra.mxu0 0.0
    %8045 = vmatprep.subr.mxu0 0.0
    %8046 = vmatpush1.xpose.msra.mxu0 0.0
    %8047 = vmatprep.subr.mxu0 0.0
    %8048 = vmatpush1.xpose.msra.mxu0 0.0
    %8049 = vmatprep.subr.mxu0 0.0
    %8050 = vmatpush1.xpose.msra.mxu0 0.0
    %8051 = vmatprep.subr.mxu0 0.0
    %8052 = vmatpush1.xpose.msra.mxu0 0.0
    %8053 = vmatprep.subr.mxu0 0.0
    %8054 = vmatpush1.xpose.msra.mxu0 0.0
    %8055 = vmatprep.subr.mxu0 0.0
    %8056 = vmatpush1.xpose.msra.mxu0 0.0
    %8057 = vmatprep.subr.mxu0 0.0
    %8058 = vmatpush1.xpose.msra.mxu0 0.0
    %8059 = vmatprep.subr.mxu0 0.0
    %8060 = vmatpush1.xpose.msra.mxu0 0.0
    %8061 = vmatprep.subr.mxu0 0.0
    %8062 = vmatpush1.xpose.msra.mxu0 0.0
    %8063 = vmatprep.subr.mxu0 0.0
    %8064 = vmatpush1.xpose.msra.mxu0 0.0
    %8065 = vmatprep.subr.mxu0 0.0
    %8066 = vmatpush1.xpose.msra.mxu0 0.0
    %8067 = vmatprep.subr.mxu0 0.0
    %8068 = vmatpush1.xpose.msra.mxu0 0.0
    %8069 = vmatprep.subr.mxu0 0.0
    %8070 = vmatpush1.xpose.msra.mxu0 0.0
    %8071 = vmatprep.subr.mxu0 0.0
    %8072 = vmatpush1.xpose.msra.mxu0 0.0
    %8073 = vmatprep.subr.mxu0 0.0
    %8074 = vmatpush1.xpose.msra.mxu0 0.0
    %8075 = vmatprep.subr.mxu0 0.0
    %8076 = vmatpush1.xpose.msra.mxu0 0.0
    %8077 = vmatprep.mubr.f32.mxu0 0.0
    %v8078 = vand.u32 %v7636, 4294901760
    %8079 = vmatmul.mubr.f32.gmra.mrb[0].mxu0 %v8078
    %v8080 = vpop.f32.mrb[0].mxu0
    %v8081 = vadd.f32 %v8009, %v8080
    %v8082 = vpop.f32.mrb[0].mxu0
    %8083 = vdwg.mxu0
    %v8084 = vmul.f32 %v7631, 0.17677669
    %v8085 = vmul.f32 %v8081, 0.17677669
    %v8086 = vsel %vm67, %v8084, -inf
    %8087 = vmax.xlane.f32.xlu0 %v8086
    %v8088 = vpop.xlane.xlu0 %8087
    %v8089 = vsel %vm67, %v8085, -inf
    %8090 = vmax.xlane.f32.xlu0 %v8089
    %v8091 = vpop.xlane.xlu0 %8090
    %v8092 = vsub.f32 %v8084, %v8088
    %v8093 = vsub.f32 %v8085, %v8091
    %v8094 = vmul.f32 %v8092, 1.442695
    %v8095 = vpow.pop %v8094
    %v8096 = vmul.f32 %v8093, 1.442695
    %v8097 = vpow.pop %v8096
    %v8098 = vsel %vm67, %v8095, 0.0
    %8099 = vadd.xlane.f32.xlu0 %v8098
    %v8100 = vpop.xlane.xlu0 %8099
    %v8101 = vsel %vm67, %v8097, 0.0
    %8102 = vadd.xlane.f32.xlu0 %v8101
    %v8103 = vpop.xlane.xlu0 %8102
    %v8104 = vrcp.pop %v8100
    %v8105 = vmul.f32 %v8095, %v8104
    %v8106 = vrcp.pop %v8103
    %v8107 = vmul.f32 %v8097, %v8106
    %v8110 = vsel %vm67, %v8105, 0
    %8112 = vmatprep.subr.mxu0 0.0
    %v8113 = vand.u32 %v7185, 4294901760
    %8114 = vmatpush1.msra.mxu0 %v8113
    %8115 = vmatprep.subr.mxu0 0.0
    %8116 = vmatpush1.msra.mxu0 0.0
    %8117 = vmatprep.subr.mxu0 0.0
    %8118 = vmatpush1.msra.mxu0 0.0
    %8119 = vmatprep.subr.mxu0 0.0
    %8120 = vmatpush1.msra.mxu0 0.0
    %8121 = vmatprep.subr.mxu0 0.0
    %8122 = vmatpush1.msra.mxu0 0.0
    %8123 = vmatprep.subr.mxu0 0.0
    %8124 = vmatpush1.msra.mxu0 0.0
    %8125 = vmatprep.subr.mxu0 0.0
    %8126 = vmatpush1.msra.mxu0 0.0
    %8127 = vmatprep.subr.mxu0 0.0
    %8128 = vmatpush1.msra.mxu0 0.0
    %8129 = vmatprep.subr.mxu0 0.0
    %8130 = vmatpush1.msra.mxu0 0.0
    %8131 = vmatprep.subr.mxu0 0.0
    %8132 = vmatpush1.msra.mxu0 0.0
    %8133 = vmatprep.subr.mxu0 0.0
    %8134 = vmatpush1.msra.mxu0 0.0
    %8135 = vmatprep.subr.mxu0 0.0
    %8136 = vmatpush1.msra.mxu0 0.0
    %8137 = vmatprep.subr.mxu0 0.0
    %8138 = vmatpush1.msra.mxu0 0.0
    %8139 = vmatprep.subr.mxu0 0.0
    %8140 = vmatpush1.msra.mxu0 0.0
    %8141 = vmatprep.subr.mxu0 0.0
    %8142 = vmatpush1.msra.mxu0 0.0
    %8143 = vmatprep.subr.mxu0 0.0
    %8144 = vmatpush1.msra.mxu0 0.0
    %8145 = vmatprep.subr.mxu0 0.0
    %8146 = vmatpush1.msra.mxu0 0.0
    %8147 = vmatprep.subr.mxu0 0.0
    %8148 = vmatpush1.msra.mxu0 0.0
    %8149 = vmatprep.subr.mxu0 0.0
    %8150 = vmatpush1.msra.mxu0 0.0
    %8151 = vmatprep.subr.mxu0 0.0
    %8152 = vmatpush1.msra.mxu0 0.0
    %8153 = vmatprep.subr.mxu0 0.0
    %8154 = vmatpush1.msra.mxu0 0.0
    %8155 = vmatprep.subr.mxu0 0.0
    %8156 = vmatpush1.msra.mxu0 0.0
    %8157 = vmatprep.subr.mxu0 0.0
    %8158 = vmatpush1.msra.mxu0 0.0
    %8159 = vmatprep.subr.mxu0 0.0
    %8160 = vmatpush1.msra.mxu0 0.0
    %8161 = vmatprep.subr.mxu0 0.0
    %8162 = vmatpush1.msra.mxu0 0.0
    %8163 = vmatprep.subr.mxu0 0.0
    %8164 = vmatpush1.msra.mxu0 0.0
    %8165 = vmatprep.subr.mxu0 0.0
    %8166 = vmatpush1.msra.mxu0 0.0
    %8167 = vmatprep.subr.mxu0 0.0
    %8168 = vmatpush1.msra.mxu0 0.0
    %8169 = vmatprep.subr.mxu0 0.0
    %8170 = vmatpush1.msra.mxu0 0.0
    %8171 = vmatprep.subr.mxu0 0.0
    %8172 = vmatpush1.msra.mxu0 0.0
    %8173 = vmatprep.subr.mxu0 0.0
    %8174 = vmatpush1.msra.mxu0 0.0
    %8175 = vmatprep.subr.mxu0 0.0
    %8176 = vmatpush1.msra.mxu0 0.0
    %8177 = vmatprep.mubr.f32.mxu0 0.0
    %v8178 = vand.u32 %v8110, 4294901760
    %v8179 = vsub.f32 %v8110, %v8178
    %v8180 = vand.u32 %v8179, 4294901760
    %v8181 = vsub.f32 %v8179, %v8180
    %v8182 = vand.u32 %v8181, 4294901760
    %8183 = vmatmul.mubr.f32.gmra.mrb[0].mxu0 %v8182
    %v8184 = vpop.f32.mrb[0].mxu0
    %v8185 = vadd.f32 0.0, %v8184
    %v8186 = vpop.f32.mrb[0].mxu0
    %8187 = vdwg.mxu0
    %8188 = vmatprep.subr.mxu0 0.0
    %v8189 = vand.u32 %v7185, 4294901760
    %v8190 = vsub.f32 %v7185, %v8189
    %v8191 = vand.u32 %v8190, 4294901760
    %v8192 = vsub.f32 %v8190, %v8191
    %v8193 = vand.u32 %v8192, 4294901760
    %8194 = vmatpush1.msra.mxu0 %v8193
    %8195 = vmatprep.subr.mxu0 0.0
    %8196 = vmatpush1.msra.mxu0 0.0
    %8197 = vmatprep.subr.mxu0 0.0
    %8198 = vmatpush1.msra.mxu0 0.0
    %8199 = vmatprep.subr.mxu0 0.0
    %8200 = vmatpush1.msra.mxu0 0.0
    %8201 = vmatprep.subr.mxu0 0.0
    %8202 = vmatpush1.msra.mxu0 0.0
    %8203 = vmatprep.subr.mxu0 0.0
    %8204 = vmatpush1.msra.mxu0 0.0
    %8205 = vmatprep.subr.mxu0 0.0
    %8206 = vmatpush1.msra.mxu0 0.0
    %8207 = vmatprep.subr.mxu0 0.0
    %8208 = vmatpush1.msra.mxu0 0.0
    %8209 = vmatprep.subr.mxu0 0.0
    %8210 = vmatpush1.msra.mxu0 0.0
    %8211 = vmatprep.subr.mxu0 0.0
    %8212 = vmatpush1.msra.mxu0 0.0
    %8213 = vmatprep.subr.mxu0 0.0
    %8214 = vmatpush1.msra.mxu0 0.0
    %8215 = vmatprep.subr.mxu0 0.0
    %8216 = vmatpush1.msra.mxu0 0.0
    %8217 = vmatprep.subr.mxu0 0.0
    %8218 = vmatpush1.msra.mxu0 0.0
    %8219 = vmatprep.subr.mxu0 0.0
    %8220 = vmatpush1.msra.mxu0 0.0
    %8221 = vmatprep.subr.mxu0 0.0
    %8222 = vmatpush1.msra.mxu0 0.0
    %8223 = vmatprep.subr.mxu0 0.0
    %8224 = vmatpush1.msra.mxu0 0.0
    %8225 = vmatprep.subr.mxu0 0.0
    %8226 = vmatpush1.msra.mxu0 0.0
    %8227 = vmatprep.subr.mxu0 0.0
    %8228 = vmatpush1.msra.mxu0 0.0
    %8229 = vmatprep.subr.mxu0 0.0
    %8230 = vmatpush1.msra.mxu0 0.0
    %8231 = vmatprep.subr.mxu0 0.0
    %8232 = vmatpush1.msra.mxu0 0.0
    %8233 = vmatprep.subr.mxu0 0.0
    %8234 = vmatpush1.msra.mxu0 0.0
    %8235 = vmatprep.subr.mxu0 0.0
    %8236 = vmatpush1.msra.mxu0 0.0
    %8237 = vmatprep.subr.mxu0 0.0
    %8238 = vmatpush1.msra.mxu0 0.0
    %8239 = vmatprep.subr.mxu0 0.0
    %8240 = vmatpush1.msra.mxu0 0.0
    %8241 = vmatprep.subr.mxu0 0.0
    %8242 = vmatpush1.msra.mxu0 0.0
    %8243 = vmatprep.subr.mxu0 0.0
    %8244 = vmatpush1.msra.mxu0 0.0
    %8245 = vmatprep.subr.mxu0 0.0
    %8246 = vmatpush1.msra.mxu0 0.0
    %8247 = vmatprep.subr.mxu0 0.0
    %8248 = vmatpush1.msra.mxu0 0.0
    %8249 = vmatprep.subr.mxu0 0.0
    %8250 = vmatpush1.msra.mxu0 0.0
    %8251 = vmatprep.subr.mxu0 0.0
    %8252 = vmatpush1.msra.mxu0 0.0
    %8253 = vmatprep.subr.mxu0 0.0
    %8254 = vmatpush1.msra.mxu0 0.0
    %8255 = vmatprep.subr.mxu0 0.0
    %8256 = vmatpush1.msra.mxu0 0.0
    %8257 = vmatprep.mubr.f32.mxu0 0.0
    %v8258 = vand.u32 %v8110, 4294901760
    %8259 = vmatmul.mubr.f32.gmra.mrb[0].mxu0 %v8258
    %v8260 = vpop.f32.mrb[0].mxu0
    %v8261 = vadd.f32 %v8185, %v8260
    %v8262 = vpop.f32.mrb[0].mxu0
    %8263 = vdwg.mxu0
    %8264 = vmatprep.subr.mxu0 0.0
    %v8265 = vand.u32 %v7185, 4294901760
    %v8266 = vsub.f32 %v7185, %v8265
    %8267 = vmatpush1.msra.mxu0 %v8266
    %8268 = vmatprep.subr.mxu0 0.0
    %8269 = vmatpush1.msra.mxu0 0.0
    %8270 = vmatprep.subr.mxu0 0.0
    %8271 = vmatpush1.msra.mxu0 0.0
    %8272 = vmatprep.subr.mxu0 0.0
    %8273 = vmatpush1.msra.mxu0 0.0
    %8274 = vmatprep.subr.mxu0 0.0
    %8275 = vmatpush1.msra.mxu0 0.0
    %8276 = vmatprep.subr.mxu0 0.0
    %8277 = vmatpush1.msra.mxu0 0.0
    %8278 = vmatprep.subr.mxu0 0.0
    %8279 = vmatpush1.msra.mxu0 0.0
    %8280 = vmatprep.subr.mxu0 0.0
    %8281 = vmatpush1.msra.mxu0 0.0
    %8282 = vmatprep.subr.mxu0 0.0
    %8283 = vmatpush1.msra.mxu0 0.0
    %8284 = vmatprep.subr.mxu0 0.0
    %8285 = vmatpush1.msra.mxu0 0.0
    %8286 = vmatprep.subr.mxu0 0.0
    %8287 = vmatpush1.msra.mxu0 0.0
    %8288 = vmatprep.subr.mxu0 0.0
    %8289 = vmatpush1.msra.mxu0 0.0
    %8290 = vmatprep.subr.mxu0 0.0
    %8291 = vmatpush1.msra.mxu0 0.0
    %8292 = vmatprep.subr.mxu0 0.0
    %8293 = vmatpush1.msra.mxu0 0.0
    %8294 = vmatprep.subr.mxu0 0.0
    %8295 = vmatpush1.msra.mxu0 0.0
    %8296 = vmatprep.subr.mxu0 0.0
    %8297 = vmatpush1.msra.mxu0 0.0
    %8298 = vmatprep.subr.mxu0 0.0
    %8299 = vmatpush1.msra.mxu0 0.0
    %8300 = vmatprep.subr.mxu0 0.0
    %8301 = vmatpush1.msra.mxu0 0.0
    %8302 = vmatprep.subr.mxu0 0.0
    %8303 = vmatpush1.msra.mxu0 0.0
    %8304 = vmatprep.subr.mxu0 0.0
    %8305 = vmatpush1.msra.mxu0 0.0
    %8306 = vmatprep.subr.mxu0 0.0
    %8307 = vmatpush1.msra.mxu0 0.0
    %8308 = vmatprep.subr.mxu0 0.0
    %8309 = vmatpush1.msra.mxu0 0.0
    %8310 = vmatprep.subr.mxu0 0.0
    %8311 = vmatpush1.msra.mxu0 0.0
    %8312 = vmatprep.subr.mxu0 0.0
    %8313 = vmatpush1.msra.mxu0 0.0
    %8314 = vmatprep.subr.mxu0 0.0
    %8315 = vmatpush1.msra.mxu0 0.0
    %8316 = vmatprep.subr.mxu0 0.0
    %8317 = vmatpush1.msra.mxu0 0.0
    %8318 = vmatprep.subr.mxu0 0.0
    %8319 = vmatpush1.msra.mxu0 0.0
    %8320 = vmatprep.subr.mxu0 0.0
    %8321 = vmatpush1.msra.mxu0 0.0
    %8322 = vmatprep.subr.mxu0 0.0
    %8323 = vmatpush1.msra.mxu0 0.0
    %8324 = vmatprep.subr.mxu0 0.0
    %8325 = vmatpush1.msra.mxu0 0.0
    %8326 = vmatprep.subr.mxu0 0.0
    %8327 = vmatpush1.msra.mxu0 0.0
    %8328 = vmatprep.subr.mxu0 0.0
    %8329 = vmatpush1.msra.mxu0 0.0
    %8330 = vmatprep.mubr.f32.mxu0 0.0
    %v8331 = vand.u32 %v8110, 4294901760
    %v8332 = vsub.f32 %v8110, %v8331
    %8333 = vmatmul.mubr.f32.gmra.mrb[0].mxu0 %v8332
    %v8334 = vpop.f32.mrb[0].mxu0
    %v8335 = vadd.f32 %v8261, %v8334
    %v8336 = vpop.f32.mrb[0].mxu0
    %8337 = vdwg.mxu0
    %8338 = vmatprep.subr.mxu0 0.0
    %v8339 = vand.u32 %v7185, 4294901760
    %8340 = vmatpush1.msra.mxu0 %v8339
    %8341 = vmatprep.subr.mxu0 0.0
    %8342 = vmatpush1.msra.mxu0 0.0
    %8343 = vmatprep.subr.mxu0 0.0
    %8344 = vmatpush1.msra.mxu0 0.0
    %8345 = vmatprep.subr.mxu0 0.0
    %8346 = vmatpush1.msra.mxu0 0.0
    %8347 = vmatprep.subr.mxu0 0.0
    %8348 = vmatpush1.msra.mxu0 0.0
    %8349 = vmatprep.subr.mxu0 0.0
    %8350 = vmatpush1.msra.mxu0 0.0
    %8351 = vmatprep.subr.mxu0 0.0
    %8352 = vmatpush1.msra.mxu0 0.0
    %8353 = vmatprep.subr.mxu0 0.0
    %8354 = vmatpush1.msra.mxu0 0.0
    %8355 = vmatprep.subr.mxu0 0.0
    %8356 = vmatpush1.msra.mxu0 0.0
    %8357 = vmatprep.subr.mxu0 0.0
    %8358 = vmatpush1.msra.mxu0 0.0
    %8359 = vmatprep.subr.mxu0 0.0
    %8360 = vmatpush1.msra.mxu0 0.0
    %8361 = vmatprep.subr.mxu0 0.0
    %8362 = vmatpush1.msra.mxu0 0.0
    %8363 = vmatprep.subr.mxu0 0.0
    %8364 = vmatpush1.msra.mxu0 0.0
    %8365 = vmatprep.subr.mxu0 0.0
    %8366 = vmatpush1.msra.mxu0 0.0
    %8367 = vmatprep.subr.mxu0 0.0
    %8368 = vmatpush1.msra.mxu0 0.0
    %8369 = vmatprep.subr.mxu0 0.0
    %8370 = vmatpush1.msra.mxu0 0.0
    %8371 = vmatprep.subr.mxu0 0.0
    %8372 = vmatpush1.msra.mxu0 0.0
    %8373 = vmatprep.subr.mxu0 0.0
    %8374 = vmatpush1.msra.mxu0 0.0
    %8375 = vmatprep.subr.mxu0 0.0
    %8376 = vmatpush1.msra.mxu0 0.0
    %8377 = vmatprep.subr.mxu0 0.0
    %8378 = vmatpush1.msra.mxu0 0.0
    %8379 = vmatprep.subr.mxu0 0.0
    %8380 = vmatpush1.msra.mxu0 0.0
    %8381 = vmatprep.subr.mxu0 0.0
    %8382 = vmatpush1.msra.mxu0 0.0
    %8383 = vmatprep.subr.mxu0 0.0
    %8384 = vmatpush1.msra.mxu0 0.0
    %8385 = vmatprep.subr.mxu0 0.0
    %8386 = vmatpush1.msra.mxu0 0.0
    %8387 = vmatprep.subr.mxu0 0.0
    %8388 = vmatpush1.msra.mxu0 0.0
    %8389 = vmatprep.subr.mxu0 0.0
    %8390 = vmatpush1.msra.mxu0 0.0
    %8391 = vmatprep.subr.mxu0 0.0
    %8392 = vmatpush1.msra.mxu0 0.0
    %8393 = vmatprep.subr.mxu0 0.0
    %8394 = vmatpush1.msra.mxu0 0.0
    %8395 = vmatprep.subr.mxu0 0.0
    %8396 = vmatpush1.msra.mxu0 0.0
    %8397 = vmatprep.subr.mxu0 0.0
    %8398 = vmatpush1.msra.mxu0 0.0
    %8399 = vmatprep.subr.mxu0 0.0
    %8400 = vmatpush1.msra.mxu0 0.0
    %8401 = vmatprep.subr.mxu0 0.0
    %8402 = vmatpush1.msra.mxu0 0.0
    %8403 = vmatprep.mubr.f32.mxu0 0.0
    %v8404 = vand.u32 %v8110, 4294901760
    %v8405 = vsub.f32 %v8110, %v8404
    %v8406 = vand.u32 %v8405, 4294901760
    %8407 = vmatmul.mubr.f32.gmra.mrb[0].mxu0 %v8406
    %v8408 = vpop.f32.mrb[0].mxu0
    %v8409 = vadd.f32 %v8335, %v8408
    %v8410 = vpop.f32.mrb[0].mxu0
    %8411 = vdwg.mxu0
    %8412 = vmatprep.subr.mxu0 0.0
    %v8413 = vand.u32 %v7185, 4294901760
    %v8414 = vsub.f32 %v7185, %v8413
    %v8415 = vand.u32 %v8414, 4294901760
    %8416 = vmatpush1.msra.mxu0 %v8415
    %8417 = vmatprep.subr.mxu0 0.0
    %8418 = vmatpush1.msra.mxu0 0.0
    %8419 = vmatprep.subr.mxu0 0.0
    %8420 = vmatpush1.msra.mxu0 0.0
    %8421 = vmatprep.subr.mxu0 0.0
    %8422 = vmatpush1.msra.mxu0 0.0
    %8423 = vmatprep.subr.mxu0 0.0
    %8424 = vmatpush1.msra.mxu0 0.0
    %8425 = vmatprep.subr.mxu0 0.0
    %8426 = vmatpush1.msra.mxu0 0.0
    %8427 = vmatprep.subr.mxu0 0.0
    %8428 = vmatpush1.msra.mxu0 0.0
    %8429 = vmatprep.subr.mxu0 0.0
    %8430 = vmatpush1.msra.mxu0 0.0
    %8431 = vmatprep.subr.mxu0 0.0
    %8432 = vmatpush1.msra.mxu0 0.0
    %8433 = vmatprep.subr.mxu0 0.0
    %8434 = vmatpush1.msra.mxu0 0.0
    %8435 = vmatprep.subr.mxu0 0.0
    %8436 = vmatpush1.msra.mxu0 0.0
    %8437 = vmatprep.subr.mxu0 0.0
    %8438 = vmatpush1.msra.mxu0 0.0
    %8439 = vmatprep.subr.mxu0 0.0
    %8440 = vmatpush1.msra.mxu0 0.0
    %8441 = vmatprep.subr.mxu0 0.0
    %8442 = vmatpush1.msra.mxu0 0.0
    %8443 = vmatprep.subr.mxu0 0.0
    %8444 = vmatpush1.msra.mxu0 0.0
    %8445 = vmatprep.subr.mxu0 0.0
    %8446 = vmatpush1.msra.mxu0 0.0
    %8447 = vmatprep.subr.mxu0 0.0
    %8448 = vmatpush1.msra.mxu0 0.0
    %8449 = vmatprep.subr.mxu0 0.0
    %8450 = vmatpush1.msra.mxu0 0.0
    %8451 = vmatprep.subr.mxu0 0.0
    %8452 = vmatpush1.msra.mxu0 0.0
    %8453 = vmatprep.subr.mxu0 0.0
    %8454 = vmatpush1.msra.mxu0 0.0
    %8455 = vmatprep.subr.mxu0 0.0
    %8456 = vmatpush1.msra.mxu0 0.0
    %8457 = vmatprep.subr.mxu0 0.0
    %8458 = vmatpush1.msra.mxu0 0.0
    %8459 = vmatprep.subr.mxu0 0.0
    %8460 = vmatpush1.msra.mxu0 0.0
    %8461 = vmatprep.subr.mxu0 0.0
    %8462 = vmatpush1.msra.mxu0 0.0
    %8463 = vmatprep.subr.mxu0 0.0
    %8464 = vmatpush1.msra.mxu0 0.0
    %8465 = vmatprep.subr.mxu0 0.0
    %8466 = vmatpush1.msra.mxu0 0.0
    %8467 = vmatprep.subr.mxu0 0.0
    %8468 = vmatpush1.msra.mxu0 0.0
    %8469 = vmatprep.subr.mxu0 0.0
    %8470 = vmatpush1.msra.mxu0 0.0
    %8471 = vmatprep.subr.mxu0 0.0
    %8472 = vmatpush1.msra.mxu0 0.0
    %8473 = vmatprep.subr.mxu0 0.0
    %8474 = vmatpush1.msra.mxu0 0.0
    %8475 = vmatprep.subr.mxu0 0.0
    %8476 = vmatpush1.msra.mxu0 0.0
    %8477 = vmatprep.subr.mxu0 0.0
    %8478 = vmatpush1.msra.mxu0 0.0
    %8479 = vmatprep.mubr.f32.mxu0 0.0
    %v8480 = vand.u32 %v8110, 4294901760
    %8481 = vmatmul.mubr.f32.gmra.mrb[0].mxu0 %v8480
    %v8482 = vpop.f32.mrb[0].mxu0
    %v8483 = vadd.f32 %v8409, %v8482
    %v8484 = vpop.f32.mrb[0].mxu0
    %8485 = vdwg.mxu0
    %8486 = vmatprep.subr.mxu0 0.0
    %v8487 = vand.u32 %v7185, 4294901760
    %8488 = vmatpush1.msra.mxu0 %v8487
    %8489 = vmatprep.subr.mxu0 0.0
    %8490 = vmatpush1.msra.mxu0 0.0
    %8491 = vmatprep.subr.mxu0 0.0
    %8492 = vmatpush1.msra.mxu0 0.0
    %8493 = vmatprep.subr.mxu0 0.0
    %8494 = vmatpush1.msra.mxu0 0.0
    %8495 = vmatprep.subr.mxu0 0.0
    %8496 = vmatpush1.msra.mxu0 0.0
    %8497 = vmatprep.subr.mxu0 0.0
    %8498 = vmatpush1.msra.mxu0 0.0
    %8499 = vmatprep.subr.mxu0 0.0
    %8500 = vmatpush1.msra.mxu0 0.0
    %8501 = vmatprep.subr.mxu0 0.0
    %8502 = vmatpush1.msra.mxu0 0.0
    %8503 = vmatprep.subr.mxu0 0.0
    %8504 = vmatpush1.msra.mxu0 0.0
    %8505 = vmatprep.subr.mxu0 0.0
    %8506 = vmatpush1.msra.mxu0 0.0
    %8507 = vmatprep.subr.mxu0 0.0
    %8508 = vmatpush1.msra.mxu0 0.0
    %8509 = vmatprep.subr.mxu0 0.0
    %8510 = vmatpush1.msra.mxu0 0.0
    %8511 = vmatprep.subr.mxu0 0.0
    %8512 = vmatpush1.msra.mxu0 0.0
    %8513 = vmatprep.subr.mxu0 0.0
    %8514 = vmatpush1.msra.mxu0 0.0
    %8515 = vmatprep.subr.mxu0 0.0
    %8516 = vmatpush1.msra.mxu0 0.0
    %8517 = vmatprep.subr.mxu0 0.0
    %8518 = vmatpush1.msra.mxu0 0.0
    %8519 = vmatprep.subr.mxu0 0.0
    %8520 = vmatpush1.msra.mxu0 0.0
    %8521 = vmatprep.subr.mxu0 0.0
    %8522 = vmatpush1.msra.mxu0 0.0
    %8523 = vmatprep.subr.mxu0 0.0
    %8524 = vmatpush1.msra.mxu0 0.0
    %8525 = vmatprep.subr.mxu0 0.0
    %8526 = vmatpush1.msra.mxu0 0.0
    %8527 = vmatprep.subr.mxu0 0.0
    %8528 = vmatpush1.msra.mxu0 0.0
    %8529 = vmatprep.subr.mxu0 0.0
    %8530 = vmatpush1.msra.mxu0 0.0
    %8531 = vmatprep.subr.mxu0 0.0
    %8532 = vmatpush1.msra.mxu0 0.0
    %8533 = vmatprep.subr.mxu0 0.0
    %8534 = vmatpush1.msra.mxu0 0.0
    %8535 = vmatprep.subr.mxu0 0.0
    %8536 = vmatpush1.msra.mxu0 0.0
    %8537 = vmatprep.subr.mxu0 0.0
    %8538 = vmatpush1.msra.mxu0 0.0
    %8539 = vmatprep.subr.mxu0 0.0
    %8540 = vmatpush1.msra.mxu0 0.0
    %8541 = vmatprep.subr.mxu0 0.0
    %8542 = vmatpush1.msra.mxu0 0.0
    %8543 = vmatprep.subr.mxu0 0.0
    %8544 = vmatpush1.msra.mxu0 0.0
    %8545 = vmatprep.subr.mxu0 0.0
    %8546 = vmatpush1.msra.mxu0 0.0
    %8547 = vmatprep.subr.mxu0 0.0
    %8548 = vmatpush1.msra.mxu0 0.0
    %8549 = vmatprep.subr.mxu0 0.0
    %8550 = vmatpush1.msra.mxu0 0.0
    %8551 = vmatprep.mubr.f32.mxu0 0.0
    %v8552 = vand.u32 %v8110, 4294901760
    %8553 = vmatmul.mubr.f32.gmra.mrb[0].mxu0 %v8552
    %v8554 = vpop.f32.mrb[0].mxu0
    %v8555 = vadd.f32 %v8483, %v8554
    %v8556 = vpop.f32.mrb[0].mxu0
    %8557 = vdwg.mxu0
    %v8560 = vsel %vm67, %v8107, 0
    %8562 = vmatprep.subr.mxu0 0.0
    %v8563 = vand.u32 %v7635, 4294901760
    %8564 = vmatpush1.msra.mxu0 %v8563
    %8565 = vmatprep.subr.mxu0 0.0
    %8566 = vmatpush1.msra.mxu0 0.0
    %8567 = vmatprep.subr.mxu0 0.0
    %8568 = vmatpush1.msra.mxu0 0.0
    %8569 = vmatprep.subr.mxu0 0.0
    %8570 = vmatpush1.msra.mxu0 0.0
    %8571 = vmatprep.subr.mxu0 0.0
    %8572 = vmatpush1.msra.mxu0 0.0
    %8573 = vmatprep.subr.mxu0 0.0
    %8574 = vmatpush1.msra.mxu0 0.0
    %8575 = vmatprep.subr.mxu0 0.0
    %8576 = vmatpush1.msra.mxu0 0.0
    %8577 = vmatprep.subr.mxu0 0.0
    %8578 = vmatpush1.msra.mxu0 0.0
    %8579 = vmatprep.subr.mxu0 0.0
    %8580 = vmatpush1.msra.mxu0 0.0
    %8581 = vmatprep.subr.mxu0 0.0
    %8582 = vmatpush1.msra.mxu0 0.0
    %8583 = vmatprep.subr.mxu0 0.0
    %8584 = vmatpush1.msra.mxu0 0.0
    %8585 = vmatprep.subr.mxu0 0.0
    %8586 = vmatpush1.msra.mxu0 0.0
    %8587 = vmatprep.subr.mxu0 0.0
    %8588 = vmatpush1.msra.mxu0 0.0
    %8589 = vmatprep.subr.mxu0 0.0
    %8590 = vmatpush1.msra.mxu0 0.0
    %8591 = vmatprep.subr.mxu0 0.0
    %8592 = vmatpush1.msra.mxu0 0.0
    %8593 = vmatprep.subr.mxu0 0.0
    %8594 = vmatpush1.msra.mxu0 0.0
    %8595 = vmatprep.subr.mxu0 0.0
    %8596 = vmatpush1.msra.mxu0 0.0
    %8597 = vmatprep.subr.mxu0 0.0
    %8598 = vmatpush1.msra.mxu0 0.0
    %8599 = vmatprep.subr.mxu0 0.0
    %8600 = vmatpush1.msra.mxu0 0.0
    %8601 = vmatprep.subr.mxu0 0.0
    %8602 = vmatpush1.msra.mxu0 0.0
    %8603 = vmatprep.subr.mxu0 0.0
    %8604 = vmatpush1.msra.mxu0 0.0
    %8605 = vmatprep.subr.mxu0 0.0
    %8606 = vmatpush1.msra.mxu0 0.0
    %8607 = vmatprep.subr.mxu0 0.0
    %8608 = vmatpush1.msra.mxu0 0.0
    %8609 = vmatprep.subr.mxu0 0.0
    %8610 = vmatpush1.msra.mxu0 0.0
    %8611 = vmatprep.subr.mxu0 0.0
    %8612 = vmatpush1.msra.mxu0 0.0
    %8613 = vmatprep.subr.mxu0 0.0
    %8614 = vmatpush1.msra.mxu0 0.0
    %8615 = vmatprep.subr.mxu0 0.0
    %8616 = vmatpush1.msra.mxu0 0.0
    %8617 = vmatprep.subr.mxu0 0.0
    %8618 = vmatpush1.msra.mxu0 0.0
    %8619 = vmatprep.subr.mxu0 0.0
    %8620 = vmatpush1.msra.mxu0 0.0
    %8621 = vmatprep.subr.mxu0 0.0
    %8622 = vmatpush1.msra.mxu0 0.0
    %8623 = vmatprep.subr.mxu0 0.0
    %8624 = vmatpush1.msra.mxu0 0.0
    %8625 = vmatprep.subr.mxu0 0.0
    %8626 = vmatpush1.msra.mxu0 0.0
    %8627 = vmatprep.mubr.f32.mxu0 0.0
    %v8628 = vand.u32 %v8560, 4294901760
    %v8629 = vsub.f32 %v8560, %v8628
    %v8630 = vand.u32 %v8629, 4294901760
    %v8631 = vsub.f32 %v8629, %v8630
    %v8632 = vand.u32 %v8631, 4294901760
    %8633 = vmatmul.mubr.f32.gmra.mrb[0].mxu0 %v8632
    %v8634 = vpop.f32.mrb[0].mxu0
    %v8635 = vadd.f32 0.0, %v8634
    %v8636 = vpop.f32.mrb[0].mxu0
    %8637 = vdwg.mxu0
    %8638 = vmatprep.subr.mxu0 0.0
    %v8639 = vand.u32 %v7635, 4294901760
    %v8640 = vsub.f32 %v7635, %v8639
    %v8641 = vand.u32 %v8640, 4294901760
    %v8642 = vsub.f32 %v8640, %v8641
    %v8643 = vand.u32 %v8642, 4294901760
    %8644 = vmatpush1.msra.mxu0 %v8643
    %8645 = vmatprep.subr.mxu0 0.0
    %8646 = vmatpush1.msra.mxu0 0.0
    %8647 = vmatprep.subr.mxu0 0.0
    %8648 = vmatpush1.msra.mxu0 0.0
    %8649 = vmatprep.subr.mxu0 0.0
    %8650 = vmatpush1.msra.mxu0 0.0
    %8651 = vmatprep.subr.mxu0 0.0
    %8652 = vmatpush1.msra.mxu0 0.0
    %8653 = vmatprep.subr.mxu0 0.0
    %8654 = vmatpush1.msra.mxu0 0.0
    %8655 = vmatprep.subr.mxu0 0.0
    %8656 = vmatpush1.msra.mxu0 0.0
    %8657 = vmatprep.subr.mxu0 0.0
    %8658 = vmatpush1.msra.mxu0 0.0
    %8659 = vmatprep.subr.mxu0 0.0
    %8660 = vmatpush1.msra.mxu0 0.0
    %8661 = vmatprep.subr.mxu0 0.0
    %8662 = vmatpush1.msra.mxu0 0.0
    %8663 = vmatprep.subr.mxu0 0.0
    %8664 = vmatpush1.msra.mxu0 0.0
    %8665 = vmatprep.subr.mxu0 0.0
    %8666 = vmatpush1.msra.mxu0 0.0
    %8667 = vmatprep.subr.mxu0 0.0
    %8668 = vmatpush1.msra.mxu0 0.0
    %8669 = vmatprep.subr.mxu0 0.0
    %8670 = vmatpush1.msra.mxu0 0.0
    %8671 = vmatprep.subr.mxu0 0.0
    %8672 = vmatpush1.msra.mxu0 0.0
    %8673 = vmatprep.subr.mxu0 0.0
    %8674 = vmatpush1.msra.mxu0 0.0
    %8675 = vmatprep.subr.mxu0 0.0
    %8676 = vmatpush1.msra.mxu0 0.0
    %8677 = vmatprep.subr.mxu0 0.0
    %8678 = vmatpush1.msra.mxu0 0.0
    %8679 = vmatprep.subr.mxu0 0.0
    %8680 = vmatpush1.msra.mxu0 0.0
    %8681 = vmatprep.subr.mxu0 0.0
    %8682 = vmatpush1.msra.mxu0 0.0
    %8683 = vmatprep.subr.mxu0 0.0
    %8684 = vmatpush1.msra.mxu0 0.0
    %8685 = vmatprep.subr.mxu0 0.0
    %8686 = vmatpush1.msra.mxu0 0.0
    %8687 = vmatprep.subr.mxu0 0.0
    %8688 = vmatpush1.msra.mxu0 0.0
    %8689 = vmatprep.subr.mxu0 0.0
    %8690 = vmatpush1.msra.mxu0 0.0
    %8691 = vmatprep.subr.mxu0 0.0
    %8692 = vmatpush1.msra.mxu0 0.0
    %8693 = vmatprep.subr.mxu0 0.0
    %8694 = vmatpush1.msra.mxu0 0.0
    %8695 = vmatprep.subr.mxu0 0.0
    %8696 = vmatpush1.msra.mxu0 0.0
    %8697 = vmatprep.subr.mxu0 0.0
    %8698 = vmatpush1.msra.mxu0 0.0
    %8699 = vmatprep.subr.mxu0 0.0
    %8700 = vmatpush1.msra.mxu0 0.0
    %8701 = vmatprep.subr.mxu0 0.0
    %8702 = vmatpush1.msra.mxu0 0.0
    %8703 = vmatprep.subr.mxu0 0.0
    %8704 = vmatpush1.msra.mxu0 0.0
    %8705 = vmatprep.subr.mxu0 0.0
    %8706 = vmatpush1.msra.mxu0 0.0
    %8707 = vmatprep.mubr.f32.mxu0 0.0
    %v8708 = vand.u32 %v8560, 4294901760
    %8709 = vmatmul.mubr.f32.gmra.mrb[0].mxu0 %v8708
    %v8710 = vpop.f32.mrb[0].mxu0
    %v8711 = vadd.f32 %v8635, %v8710
    %v8712 = vpop.f32.mrb[0].mxu0
    %8713 = vdwg.mxu0
    %8714 = vmatprep.subr.mxu0 0.0
    %v8715 = vand.u32 %v7635, 4294901760
    %v8716 = vsub.f32 %v7635, %v8715
    %8717 = vmatpush1.msra.mxu0 %v8716
    %8718 = vmatprep.subr.mxu0 0.0
    %8719 = vmatpush1.msra.mxu0 0.0
    %8720 = vmatprep.subr.mxu0 0.0
    %8721 = vmatpush1.msra.mxu0 0.0
    %8722 = vmatprep.subr.mxu0 0.0
    %8723 = vmatpush1.msra.mxu0 0.0
    %8724 = vmatprep.subr.mxu0 0.0
    %8725 = vmatpush1.msra.mxu0 0.0
    %8726 = vmatprep.subr.mxu0 0.0
    %8727 = vmatpush1.msra.mxu0 0.0
    %8728 = vmatprep.subr.mxu0 0.0
    %8729 = vmatpush1.msra.mxu0 0.0
    %8730 = vmatprep.subr.mxu0 0.0
    %8731 = vmatpush1.msra.mxu0 0.0
    %8732 = vmatprep.subr.mxu0 0.0
    %8733 = vmatpush1.msra.mxu0 0.0
    %8734 = vmatprep.subr.mxu0 0.0
    %8735 = vmatpush1.msra.mxu0 0.0
    %8736 = vmatprep.subr.mxu0 0.0
    %8737 = vmatpush1.msra.mxu0 0.0
    %8738 = vmatprep.subr.mxu0 0.0
    %8739 = vmatpush1.msra.mxu0 0.0
    %8740 = vmatprep.subr.mxu0 0.0
    %8741 = vmatpush1.msra.mxu0 0.0
    %8742 = vmatprep.subr.mxu0 0.0
    %8743 = vmatpush1.msra.mxu0 0.0
    %8744 = vmatprep.subr.mxu0 0.0
    %8745 = vmatpush1.msra.mxu0 0.0
    %8746 = vmatprep.subr.mxu0 0.0
    %8747 = vmatpush1.msra.mxu0 0.0
    %8748 = vmatprep.subr.mxu0 0.0
    %8749 = vmatpush1.msra.mxu0 0.0
    %8750 = vmatprep.subr.mxu0 0.0
    %8751 = vmatpush1.msra.mxu0 0.0
    %8752 = vmatprep.subr.mxu0 0.0
    %8753 = vmatpush1.msra.mxu0 0.0
    %8754 = vmatprep.subr.mxu0 0.0
    %8755 = vmatpush1.msra.mxu0 0.0
    %8756 = vmatprep.subr.mxu0 0.0
    %8757 = vmatpush1.msra.mxu0 0.0
    %8758 = vmatprep.subr.mxu0 0.0
    %8759 = vmatpush1.msra.mxu0 0.0
    %8760 = vmatprep.subr.mxu0 0.0
    %8761 = vmatpush1.msra.mxu0 0.0
    %8762 = vmatprep.subr.mxu0 0.0
    %8763 = vmatpush1.msra.mxu0 0.0
    %8764 = vmatprep.subr.mxu0 0.0
    %8765 = vmatpush1.msra.mxu0 0.0
    %8766 = vmatprep.subr.mxu0 0.0
    %8767 = vmatpush1.msra.mxu0 0.0
    %8768 = vmatprep.subr.mxu0 0.0
    %8769 = vmatpush1.msra.mxu0 0.0
    %8770 = vmatprep.subr.mxu0 0.0
    %8771 = vmatpush1.msra.mxu0 0.0
    %8772 = vmatprep.subr.mxu0 0.0
    %8773 = vmatpush1.msra.mxu0 0.0
    %8774 = vmatprep.subr.mxu0 0.0
    %8775 = vmatpush1.msra.mxu0 0.0
    %8776 = vmatprep.subr.mxu0 0.0
    %8777 = vmatpush1.msra.mxu0 0.0
    %8778 = vmatprep.subr.mxu0 0.0
    %8779 = vmatpush1.msra.mxu0 0.0
    %8780 = vmatprep.mubr.f32.mxu0 0.0
    %v8781 = vand.u32 %v8560, 4294901760
    %v8782 = vsub.f32 %v8560, %v8781
    %8783 = vmatmul.mubr.f32.gmra.mrb[0].mxu0 %v8782
    %v8784 = vpop.f32.mrb[0].mxu0
    %v8785 = vadd.f32 %v8711, %v8784
    %v8786 = vpop.f32.mrb[0].mxu0
    %8787 = vdwg.mxu0
    %8788 = vmatprep.subr.mxu0 0.0
    %v8789 = vand.u32 %v7635, 4294901760
    %8790 = vmatpush1.msra.mxu0 %v8789
    %8791 = vmatprep.subr.mxu0 0.0
    %8792 = vmatpush1.msra.mxu0 0.0
    %8793 = vmatprep.subr.mxu0 0.0
    %8794 = vmatpush1.msra.mxu0 0.0
    %8795 = vmatprep.subr.mxu0 0.0
    %8796 = vmatpush1.msra.mxu0 0.0
    %8797 = vmatprep.subr.mxu0 0.0
    %8798 = vmatpush1.msra.mxu0 0.0
    %8799 = vmatprep.subr.mxu0 0.0
    %8800 = vmatpush1.msra.mxu0 0.0
    %8801 = vmatprep.subr.mxu0 0.0
    %8802 = vmatpush1.msra.mxu0 0.0
    %8803 = vmatprep.subr.mxu0 0.0
    %8804 = vmatpush1.msra.mxu0 0.0
    %8805 = vmatprep.subr.mxu0 0.0
    %8806 = vmatpush1.msra.mxu0 0.0
    %8807 = vmatprep.subr.mxu0 0.0
    %8808 = vmatpush1.msra.mxu0 0.0
    %8809 = vmatprep.subr.mxu0 0.0
    %8810 = vmatpush1.msra.mxu0 0.0
    %8811 = vmatprep.subr.mxu0 0.0
    %8812 = vmatpush1.msra.mxu0 0.0
    %8813 = vmatprep.subr.mxu0 0.0
    %8814 = vmatpush1.msra.mxu0 0.0
    %8815 = vmatprep.subr.mxu0 0.0
    %8816 = vmatpush1.msra.mxu0 0.0
    %8817 = vmatprep.subr.mxu0 0.0
    %8818 = vmatpush1.msra.mxu0 0.0
    %8819 = vmatprep.subr.mxu0 0.0
    %8820 = vmatpush1.msra.mxu0 0.0
    %8821 = vmatprep.subr.mxu0 0.0
    %8822 = vmatpush1.msra.mxu0 0.0
    %8823 = vmatprep.subr.mxu0 0.0
    %8824 = vmatpush1.msra.mxu0 0.0
    %8825 = vmatprep.subr.mxu0 0.0
    %8826 = vmatpush1.msra.mxu0 0.0
    %8827 = vmatprep.subr.mxu0 0.0
    %8828 = vmatpush1.msra.mxu0 0.0
    %8829 = vmatprep.subr.mxu0 0.0
    %8830 = vmatpush1.msra.mxu0 0.0
    %8831 = vmatprep.subr.mxu0 0.0
    %8832 = vmatpush1.msra.mxu0 0.0
    %8833 = vmatprep.subr.mxu0 0.0
    %8834 = vmatpush1.msra.mxu0 0.0
    %8835 = vmatprep.subr.mxu0 0.0
    %8836 = vmatpush1.msra.mxu0 0.0
    %8837 = vmatprep.subr.mxu0 0.0
    %8838 = vmatpush1.msra.mxu0 0.0
    %8839 = vmatprep.subr.mxu0 0.0
    %8840 = vmatpush1.msra.mxu0 0.0
    %8841 = vmatprep.subr.mxu0 0.0
    %8842 = vmatpush1.msra.mxu0 0.0
    %8843 = vmatprep.subr.mxu0 0.0
    %8844 = vmatpush1.msra.mxu0 0.0
    %8845 = vmatprep.subr.mxu0 0.0
    %8846 = vmatpush1.msra.mxu0 0.0
    %8847 = vmatprep.subr.mxu0 0.0
    %8848 = vmatpush1.msra.mxu0 0.0
    %8849 = vmatprep.subr.mxu0 0.0
    %8850 = vmatpush1.msra.mxu0 0.0
    %8851 = vmatprep.subr.mxu0 0.0
    %8852 = vmatpush1.msra.mxu0 0.0
    %8853 = vmatprep.mubr.f32.mxu0 0.0
    %v8854 = vand.u32 %v8560, 4294901760
    %v8855 = vsub.f32 %v8560, %v8854
    %v8856 = vand.u32 %v8855, 4294901760
    %8857 = vmatmul.mubr.f32.gmra.mrb[0].mxu0 %v8856
    %v8858 = vpop.f32.mrb[0].mxu0
    %v8859 = vadd.f32 %v8785, %v8858
    %v8860 = vpop.f32.mrb[0].mxu0
    %8861 = vdwg.mxu0
    %8862 = vmatprep.subr.mxu0 0.0
    %v8863 = vand.u32 %v7635, 4294901760
    %v8864 = vsub.f32 %v7635, %v8863
    %v8865 = vand.u32 %v8864, 4294901760
    %8866 = vmatpush1.msra.mxu0 %v8865
    %8867 = vmatprep.subr.mxu0 0.0
    %8868 = vmatpush1.msra.mxu0 0.0
    %8869 = vmatprep.subr.mxu0 0.0
    %8870 = vmatpush1.msra.mxu0 0.0
    %8871 = vmatprep.subr.mxu0 0.0
    %8872 = vmatpush1.msra.mxu0 0.0
    %8873 = vmatprep.subr.mxu0 0.0
    %8874 = vmatpush1.msra.mxu0 0.0
    %8875 = vmatprep.subr.mxu0 0.0
    %8876 = vmatpush1.msra.mxu0 0.0
    %8877 = vmatprep.subr.mxu0 0.0
    %8878 = vmatpush1.msra.mxu0 0.0
    %8879 = vmatprep.subr.mxu0 0.0
    %8880 = vmatpush1.msra.mxu0 0.0
    %8881 = vmatprep.subr.mxu0 0.0
    %8882 = vmatpush1.msra.mxu0 0.0
    %8883 = vmatprep.subr.mxu0 0.0
    %8884 = vmatpush1.msra.mxu0 0.0
    %8885 = vmatprep.subr.mxu0 0.0
    %8886 = vmatpush1.msra.mxu0 0.0
    %8887 = vmatprep.subr.mxu0 0.0
    %8888 = vmatpush1.msra.mxu0 0.0
    %8889 = vmatprep.subr.mxu0 0.0
    %8890 = vmatpush1.msra.mxu0 0.0
    %8891 = vmatprep.subr.mxu0 0.0
    %8892 = vmatpush1.msra.mxu0 0.0
    %8893 = vmatprep.subr.mxu0 0.0
    %8894 = vmatpush1.msra.mxu0 0.0
    %8895 = vmatprep.subr.mxu0 0.0
    %8896 = vmatpush1.msra.mxu0 0.0
    %8897 = vmatprep.subr.mxu0 0.0
    %8898 = vmatpush1.msra.mxu0 0.0
    %8899 = vmatprep.subr.mxu0 0.0
    %8900 = vmatpush1.msra.mxu0 0.0
    %8901 = vmatprep.subr.mxu0 0.0
    %8902 = vmatpush1.msra.mxu0 0.0
    %8903 = vmatprep.subr.mxu0 0.0
    %8904 = vmatpush1.msra.mxu0 0.0
    %8905 = vmatprep.subr.mxu0 0.0
    %8906 = vmatpush1.msra.mxu0 0.0
    %8907 = vmatprep.subr.mxu0 0.0
    %8908 = vmatpush1.msra.mxu0 0.0
    %8909 = vmatprep.subr.mxu0 0.0
    %8910 = vmatpush1.msra.mxu0 0.0
    %8911 = vmatprep.subr.mxu0 0.0
    %8912 = vmatpush1.msra.mxu0 0.0
    %8913 = vmatprep.subr.mxu0 0.0
    %8914 = vmatpush1.msra.mxu0 0.0
    %8915 = vmatprep.subr.mxu0 0.0
    %8916 = vmatpush1.msra.mxu0 0.0
    %8917 = vmatprep.subr.mxu0 0.0
    %8918 = vmatpush1.msra.mxu0 0.0
    %8919 = vmatprep.subr.mxu0 0.0
    %8920 = vmatpush1.msra.mxu0 0.0
    %8921 = vmatprep.subr.mxu0 0.0
    %8922 = vmatpush1.msra.mxu0 0.0
    %8923 = vmatprep.subr.mxu0 0.0
    %8924 = vmatpush1.msra.mxu0 0.0
    %8925 = vmatprep.subr.mxu0 0.0
    %8926 = vmatpush1.msra.mxu0 0.0
    %8927 = vmatprep.subr.mxu0 0.0
    %8928 = vmatpush1.msra.mxu0 0.0
    %8929 = vmatprep.mubr.f32.mxu0 0.0
    %v8930 = vand.u32 %v8560, 4294901760
    %8931 = vmatmul.mubr.f32.gmra.mrb[0].mxu0 %v8930
    %v8932 = vpop.f32.mrb[0].mxu0
    %v8933 = vadd.f32 %v8859, %v8932
    %v8934 = vpop.f32.mrb[0].mxu0
    %8935 = vdwg.mxu0
    %8936 = vmatprep.subr.mxu0 0.0
    %v8937 = vand.u32 %v7635, 4294901760
    %8938 = vmatpush1.msra.mxu0 %v8937
    %8939 = vmatprep.subr.mxu0 0.0
    %8940 = vmatpush1.msra.mxu0 0.0
    %8941 = vmatprep.subr.mxu0 0.0
    %8942 = vmatpush1.msra.mxu0 0.0
    %8943 = vmatprep.subr.mxu0 0.0
    %8944 = vmatpush1.msra.mxu0 0.0
    %8945 = vmatprep.subr.mxu0 0.0
    %8946 = vmatpush1.msra.mxu0 0.0
    %8947 = vmatprep.subr.mxu0 0.0
    %8948 = vmatpush1.msra.mxu0 0.0
    %8949 = vmatprep.subr.mxu0 0.0
    %8950 = vmatpush1.msra.mxu0 0.0
    %8951 = vmatprep.subr.mxu0 0.0
    %8952 = vmatpush1.msra.mxu0 0.0
    %8953 = vmatprep.subr.mxu0 0.0
    %8954 = vmatpush1.msra.mxu0 0.0
    %8955 = vmatprep.subr.mxu0 0.0
    %8956 = vmatpush1.msra.mxu0 0.0
    %8957 = vmatprep.subr.mxu0 0.0
    %8958 = vmatpush1.msra.mxu0 0.0
    %8959 = vmatprep.subr.mxu0 0.0
    %8960 = vmatpush1.msra.mxu0 0.0
    %8961 = vmatprep.subr.mxu0 0.0
    %8962 = vmatpush1.msra.mxu0 0.0
    %8963 = vmatprep.subr.mxu0 0.0
    %8964 = vmatpush1.msra.mxu0 0.0
    %8965 = vmatprep.subr.mxu0 0.0
    %8966 = vmatpush1.msra.mxu0 0.0
    %8967 = vmatprep.subr.mxu0 0.0
    %8968 = vmatpush1.msra.mxu0 0.0
    %8969 = vmatprep.subr.mxu0 0.0
    %8970 = vmatpush1.msra.mxu0 0.0
    %8971 = vmatprep.subr.mxu0 0.0
    %8972 = vmatpush1.msra.mxu0 0.0
    %8973 = vmatprep.subr.mxu0 0.0
    %8974 = vmatpush1.msra.mxu0 0.0
    %8975 = vmatprep.subr.mxu0 0.0
    %8976 = vmatpush1.msra.mxu0 0.0
    %8977 = vmatprep.subr.mxu0 0.0
    %8978 = vmatpush1.msra.mxu0 0.0
    %8979 = vmatprep.subr.mxu0 0.0
    %8980 = vmatpush1.msra.mxu0 0.0
    %8981 = vmatprep.subr.mxu0 0.0
    %8982 = vmatpush1.msra.mxu0 0.0
    %8983 = vmatprep.subr.mxu0 0.0
    %8984 = vmatpush1.msra.mxu0 0.0
    %8985 = vmatprep.subr.mxu0 0.0
    %8986 = vmatpush1.msra.mxu0 0.0
    %8987 = vmatprep.subr.mxu0 0.0
    %8988 = vmatpush1.msra.mxu0 0.0
    %8989 = vmatprep.subr.mxu0 0.0
    %8990 = vmatpush1.msra.mxu0 0.0
    %8991 = vmatprep.subr.mxu0 0.0
    %8992 = vmatpush1.msra.mxu0 0.0
    %8993 = vmatprep.subr.mxu0 0.0
    %8994 = vmatpush1.msra.mxu0 0.0
    %8995 = vmatprep.subr.mxu0 0.0
    %8996 = vmatpush1.msra.mxu0 0.0
    %8997 = vmatprep.subr.mxu0 0.0
    %8998 = vmatpush1.msra.mxu0 0.0
    %8999 = vmatprep.subr.mxu0 0.0
    %9000 = vmatpush1.msra.mxu0 0.0
    %9001 = vmatprep.mubr.f32.mxu0 0.0
    %v9002 = vand.u32 %v8560, 4294901760
    %9003 = vmatmul.mubr.f32.gmra.mrb[0].mxu0 %v9002
    %v9004 = vpop.f32.mrb[0].mxu0
    %v9005 = vadd.f32 %v8933, %v9004
    %v9006 = vpop.f32.mrb[0].mxu0
    %9007 = vdwg.mxu0
    %9008 = vrot.lane.b32.xlu0 %v62, 104
    %v9009 = vpop.permute.xlu0 %9008
    %9010 = vrot.lane.b32.xlu0 %v63, 104
    %v9011 = vpop.permute.xlu0 %9010
    %9012 = vrot.lane.b32.xlu0 %v64, 104
    %v9013 = vpop.permute.xlu0 %9012
    %9014 = vrot.lane.b32.xlu0 %v65, 104
    %v9015 = vpop.permute.xlu0 %9014
    %v9017 = vsel %vm67, %v8555, 0
    %v9020 = vsel %vm67, %v9005, 0
    %v9022 = vsel %vm67, %v9009, 0
    %v9024 = vsel %vm67, %v9011, 0
    %v9026 = vsel %vm67, %v9013, 0
    %v9028 = vsel %vm67, %v9015, 0
    %9030 = vmatprep.subr.mxu0 0.0
    %v9031 = vand.u32 %v9022, 4294901760
    %9032 = vmatpush1.xpose.msra.mxu0 %v9031
    %9033 = vmatprep.subr.mxu0 0.0
    %v9034 = vand.u32 %v9024, 4294901760
    %9035 = vmatpush1.xpose.msra.mxu0 %v9034
    %9036 = vmatprep.subr.mxu0 0.0
    %v9037 = vand.u32 %v9026, 4294901760
    %9038 = vmatpush1.xpose.msra.mxu0 %v9037
    %9039 = vmatprep.subr.mxu0 0.0
    %v9040 = vand.u32 %v9028, 4294901760
    %9041 = vmatpush1.xpose.msra.mxu0 %v9040
    %9042 = vmatprep.subr.mxu0 0.0
    %9043 = vmatpush1.xpose.msra.mxu0 0.0
    %9044 = vmatprep.subr.mxu0 0.0
    %9045 = vmatpush1.xpose.msra.mxu0 0.0
    %9046 = vmatprep.subr.mxu0 0.0
    %9047 = vmatpush1.xpose.msra.mxu0 0.0
    %9048 = vmatprep.subr.mxu0 0.0
    %9049 = vmatpush1.xpose.msra.mxu0 0.0
    %9050 = vmatprep.subr.mxu0 0.0
    %9051 = vmatpush1.xpose.msra.mxu0 0.0
    %9052 = vmatprep.subr.mxu0 0.0
    %9053 = vmatpush1.xpose.msra.mxu0 0.0
    %9054 = vmatprep.subr.mxu0 0.0
    %9055 = vmatpush1.xpose.msra.mxu0 0.0
    %9056 = vmatprep.subr.mxu0 0.0
    %9057 = vmatpush1.xpose.msra.mxu0 0.0
    %9058 = vmatprep.subr.mxu0 0.0
    %9059 = vmatpush1.xpose.msra.mxu0 0.0
    %9060 = vmatprep.subr.mxu0 0.0
    %9061 = vmatpush1.xpose.msra.mxu0 0.0
    %9062 = vmatprep.subr.mxu0 0.0
    %9063 = vmatpush1.xpose.msra.mxu0 0.0
    %9064 = vmatprep.subr.mxu0 0.0
    %9065 = vmatpush1.xpose.msra.mxu0 0.0
    %9066 = vmatprep.subr.mxu0 0.0
    %9067 = vmatpush1.xpose.msra.mxu0 0.0
    %9068 = vmatprep.subr.mxu0 0.0
    %9069 = vmatpush1.xpose.msra.mxu0 0.0
    %9070 = vmatprep.subr.mxu0 0.0
    %9071 = vmatpush1.xpose.msra.mxu0 0.0
    %9072 = vmatprep.subr.mxu0 0.0
    %9073 = vmatpush1.xpose.msra.mxu0 0.0
    %9074 = vmatprep.subr.mxu0 0.0
    %9075 = vmatpush1.xpose.msra.mxu0 0.0
    %9076 = vmatprep.subr.mxu0 0.0
    %9077 = vmatpush1.xpose.msra.mxu0 0.0
    %9078 = vmatprep.subr.mxu0 0.0
    %9079 = vmatpush1.xpose.msra.mxu0 0.0
    %9080 = vmatprep.subr.mxu0 0.0
    %9081 = vmatpush1.xpose.msra.mxu0 0.0
    %9082 = vmatprep.subr.mxu0 0.0
    %9083 = vmatpush1.xpose.msra.mxu0 0.0
    %9084 = vmatprep.subr.mxu0 0.0
    %9085 = vmatpush1.xpose.msra.mxu0 0.0
    %9086 = vmatprep.subr.mxu0 0.0
    %9087 = vmatpush1.xpose.msra.mxu0 0.0
    %9088 = vmatprep.subr.mxu0 0.0
    %9089 = vmatpush1.xpose.msra.mxu0 0.0
    %9090 = vmatprep.subr.mxu0 0.0
    %9091 = vmatpush1.xpose.msra.mxu0 0.0
    %9092 = vmatprep.subr.mxu0 0.0
    %9093 = vmatpush1.xpose.msra.mxu0 0.0
    %9094 = vmatprep.subr.mxu0 0.0
    %9095 = vmatpush1.xpose.msra.mxu0 0.0
    %9096 = vmatprep.subr.mxu0 0.0
    %9097 = vmatpush1.xpose.msra.mxu0 0.0
    %9098 = vmatprep.mubr.f32.mxu0 0.0
    %v9099 = vand.u32 %v9017, 4294901760
    %v9100 = vsub.f32 %v9017, %v9099
    %v9101 = vand.u32 %v9100, 4294901760
    %v9102 = vsub.f32 %v9100, %v9101
    %v9103 = vand.u32 %v9102, 4294901760
    %9104 = vmatmul.mubr.f32.gmra.mrb[0].mxu0 %v9103
    %v9105 = vpop.f32.mrb[0].mxu0
    %v9106 = vadd.f32 0.0, %v9105
    %v9107 = vpop.f32.mrb[0].mxu0
    %9108 = vmatprep.mubr.f32.mxu0 0.0
    %v9109 = vand.u32 %v9020, 4294901760
    %v9110 = vsub.f32 %v9020, %v9109
    %v9111 = vand.u32 %v9110, 4294901760
    %v9112 = vsub.f32 %v9110, %v9111
    %v9113 = vand.u32 %v9112, 4294901760
    %9114 = vmatmul.mubr.f32.gmra.mrb[0].mxu0 %v9113
    %v9115 = vpop.f32.mrb[0].mxu0
    %v9116 = vadd.f32 0.0, %v9115
    %v9117 = vpop.f32.mrb[0].mxu0
    %9118 = vdwg.mxu0
    %9119 = vmatprep.subr.mxu0 0.0
    %v9120 = vand.u32 %v9022, 4294901760
    %v9121 = vsub.f32 %v9022, %v9120
    %v9122 = vand.u32 %v9121, 4294901760
    %v9123 = vsub.f32 %v9121, %v9122
    %v9124 = vand.u32 %v9123, 4294901760
    %9125 = vmatpush1.xpose.msra.mxu0 %v9124
    %9126 = vmatprep.subr.mxu0 0.0
    %v9127 = vand.u32 %v9024, 4294901760
    %v9128 = vsub.f32 %v9024, %v9127
    %v9129 = vand.u32 %v9128, 4294901760
    %v9130 = vsub.f32 %v9128, %v9129
    %v9131 = vand.u32 %v9130, 4294901760
    %9132 = vmatpush1.xpose.msra.mxu0 %v9131
    %9133 = vmatprep.subr.mxu0 0.0
    %v9134 = vand.u32 %v9026, 4294901760
    %v9135 = vsub.f32 %v9026, %v9134
    %v9136 = vand.u32 %v9135, 4294901760
    %v9137 = vsub.f32 %v9135, %v9136
    %v9138 = vand.u32 %v9137, 4294901760
    %9139 = vmatpush1.xpose.msra.mxu0 %v9138
    %9140 = vmatprep.subr.mxu0 0.0
    %v9141 = vand.u32 %v9028, 4294901760
    %v9142 = vsub.f32 %v9028, %v9141
    %v9143 = vand.u32 %v9142, 4294901760
    %v9144 = vsub.f32 %v9142, %v9143
    %v9145 = vand.u32 %v9144, 4294901760
    %9146 = vmatpush1.xpose.msra.mxu0 %v9145
    %9147 = vmatprep.subr.mxu0 0.0
    %9148 = vmatpush1.xpose.msra.mxu0 0.0
    %9149 = vmatprep.subr.mxu0 0.0
    %9150 = vmatpush1.xpose.msra.mxu0 0.0
    %9151 = vmatprep.subr.mxu0 0.0
    %9152 = vmatpush1.xpose.msra.mxu0 0.0
    %9153 = vmatprep.subr.mxu0 0.0
    %9154 = vmatpush1.xpose.msra.mxu0 0.0
    %9155 = vmatprep.subr.mxu0 0.0
    %9156 = vmatpush1.xpose.msra.mxu0 0.0
    %9157 = vmatprep.subr.mxu0 0.0
    %9158 = vmatpush1.xpose.msra.mxu0 0.0
    %9159 = vmatprep.subr.mxu0 0.0
    %9160 = vmatpush1.xpose.msra.mxu0 0.0
    %9161 = vmatprep.subr.mxu0 0.0
    %9162 = vmatpush1.xpose.msra.mxu0 0.0
    %9163 = vmatprep.subr.mxu0 0.0
    %9164 = vmatpush1.xpose.msra.mxu0 0.0
    %9165 = vmatprep.subr.mxu0 0.0
    %9166 = vmatpush1.xpose.msra.mxu0 0.0
    %9167 = vmatprep.subr.mxu0 0.0
    %9168 = vmatpush1.xpose.msra.mxu0 0.0
    %9169 = vmatprep.subr.mxu0 0.0
    %9170 = vmatpush1.xpose.msra.mxu0 0.0
    %9171 = vmatprep.subr.mxu0 0.0
    %9172 = vmatpush1.xpose.msra.mxu0 0.0
    %9173 = vmatprep.subr.mxu0 0.0
    %9174 = vmatpush1.xpose.msra.mxu0 0.0
    %9175 = vmatprep.subr.mxu0 0.0
    %9176 = vmatpush1.xpose.msra.mxu0 0.0
    %9177 = vmatprep.subr.mxu0 0.0
    %9178 = vmatpush1.xpose.msra.mxu0 0.0
    %9179 = vmatprep.subr.mxu0 0.0
    %9180 = vmatpush1.xpose.msra.mxu0 0.0
    %9181 = vmatprep.subr.mxu0 0.0
    %9182 = vmatpush1.xpose.msra.mxu0 0.0
    %9183 = vmatprep.subr.mxu0 0.0
    %9184 = vmatpush1.xpose.msra.mxu0 0.0
    %9185 = vmatprep.subr.mxu0 0.0
    %9186 = vmatpush1.xpose.msra.mxu0 0.0
    %9187 = vmatprep.subr.mxu0 0.0
    %9188 = vmatpush1.xpose.msra.mxu0 0.0
    %9189 = vmatprep.subr.mxu0 0.0
    %9190 = vmatpush1.xpose.msra.mxu0 0.0
    %9191 = vmatprep.subr.mxu0 0.0
    %9192 = vmatpush1.xpose.msra.mxu0 0.0
    %9193 = vmatprep.subr.mxu0 0.0
    %9194 = vmatpush1.xpose.msra.mxu0 0.0
    %9195 = vmatprep.subr.mxu0 0.0
    %9196 = vmatpush1.xpose.msra.mxu0 0.0
    %9197 = vmatprep.subr.mxu0 0.0
    %9198 = vmatpush1.xpose.msra.mxu0 0.0
    %9199 = vmatprep.subr.mxu0 0.0
    %9200 = vmatpush1.xpose.msra.mxu0 0.0
    %9201 = vmatprep.subr.mxu0 0.0
    %9202 = vmatpush1.xpose.msra.mxu0 0.0
    %9203 = vmatprep.mubr.f32.mxu0 0.0
    %v9204 = vand.u32 %v9017, 4294901760
    %9205 = vmatmul.mubr.f32.gmra.mrb[0].mxu0 %v9204
    %v9206 = vpop.f32.mrb[0].mxu0
    %v9207 = vadd.f32 %v9106, %v9206
    %v9208 = vpop.f32.mrb[0].mxu0
    %9209 = vmatprep.mubr.f32.mxu0 0.0
    %v9210 = vand.u32 %v9020, 4294901760
    %9211 = vmatmul.mubr.f32.gmra.mrb[0].mxu0 %v9210
    %v9212 = vpop.f32.mrb[0].mxu0
    %v9213 = vadd.f32 %v9116, %v9212
    %v9214 = vpop.f32.mrb[0].mxu0
    %9215 = vdwg.mxu0
    %9216 = vmatprep.subr.mxu0 0.0
    %v9217 = vand.u32 %v9022, 4294901760
    %v9218 = vsub.f32 %v9022, %v9217
    %9219 = vmatpush1.xpose.msra.mxu0 %v9218
    %9220 = vmatprep.subr.mxu0 0.0
    %v9221 = vand.u32 %v9024, 4294901760
    %v9222 = vsub.f32 %v9024, %v9221
    %9223 = vmatpush1.xpose.msra.mxu0 %v9222
    %9224 = vmatprep.subr.mxu0 0.0
    %v9225 = vand.u32 %v9026, 4294901760
    %v9226 = vsub.f32 %v9026, %v9225
    %9227 = vmatpush1.xpose.msra.mxu0 %v9226
    %9228 = vmatprep.subr.mxu0 0.0
    %v9229 = vand.u32 %v9028, 4294901760
    %v9230 = vsub.f32 %v9028, %v9229
    %9231 = vmatpush1.xpose.msra.mxu0 %v9230
    %9232 = vmatprep.subr.mxu0 0.0
    %9233 = vmatpush1.xpose.msra.mxu0 0.0
    %9234 = vmatprep.subr.mxu0 0.0
    %9235 = vmatpush1.xpose.msra.mxu0 0.0
    %9236 = vmatprep.subr.mxu0 0.0
    %9237 = vmatpush1.xpose.msra.mxu0 0.0
    %9238 = vmatprep.subr.mxu0 0.0
    %9239 = vmatpush1.xpose.msra.mxu0 0.0
    %9240 = vmatprep.subr.mxu0 0.0
    %9241 = vmatpush1.xpose.msra.mxu0 0.0
    %9242 = vmatprep.subr.mxu0 0.0
    %9243 = vmatpush1.xpose.msra.mxu0 0.0
    %9244 = vmatprep.subr.mxu0 0.0
    %9245 = vmatpush1.xpose.msra.mxu0 0.0
    %9246 = vmatprep.subr.mxu0 0.0
    %9247 = vmatpush1.xpose.msra.mxu0 0.0
    %9248 = vmatprep.subr.mxu0 0.0
    %9249 = vmatpush1.xpose.msra.mxu0 0.0
    %9250 = vmatprep.subr.mxu0 0.0
    %9251 = vmatpush1.xpose.msra.mxu0 0.0
    %9252 = vmatprep.subr.mxu0 0.0
    %9253 = vmatpush1.xpose.msra.mxu0 0.0
    %9254 = vmatprep.subr.mxu0 0.0
    %9255 = vmatpush1.xpose.msra.mxu0 0.0
    %9256 = vmatprep.subr.mxu0 0.0
    %9257 = vmatpush1.xpose.msra.mxu0 0.0
    %9258 = vmatprep.subr.mxu0 0.0
    %9259 = vmatpush1.xpose.msra.mxu0 0.0
    %9260 = vmatprep.subr.mxu0 0.0
    %9261 = vmatpush1.xpose.msra.mxu0 0.0
    %9262 = vmatprep.subr.mxu0 0.0
    %9263 = vmatpush1.xpose.msra.mxu0 0.0
    %9264 = vmatprep.subr.mxu0 0.0
    %9265 = vmatpush1.xpose.msra.mxu0 0.0
    %9266 = vmatprep.subr.mxu0 0.0
    %9267 = vmatpush1.xpose.msra.mxu0 0.0
    %9268 = vmatprep.subr.mxu0 0.0
    %9269 = vmatpush1.xpose.msra.mxu0 0.0
    %9270 = vmatprep.subr.mxu0 0.0
    %9271 = vmatpush1.xpose.msra.mxu0 0.0
    %9272 = vmatprep.subr.mxu0 0.0
    %9273 = vmatpush1.xpose.msra.mxu0 0.0
    %9274 = vmatprep.subr.mxu0 0.0
    %9275 = vmatpush1.xpose.msra.mxu0 0.0
    %9276 = vmatprep.subr.mxu0 0.0
    %9277 = vmatpush1.xpose.msra.mxu0 0.0
    %9278 = vmatprep.subr.mxu0 0.0
    %9279 = vmatpush1.xpose.msra.mxu0 0.0
    %9280 = vmatprep.subr.mxu0 0.0
    %9281 = vmatpush1.xpose.msra.mxu0 0.0
    %9282 = vmatprep.subr.mxu0 0.0
    %9283 = vmatpush1.xpose.msra.mxu0 0.0
    %9284 = vmatprep.subr.mxu0 0.0
    %9285 = vmatpush1.xpose.msra.mxu0 0.0
    %9286 = vmatprep.subr.mxu0 0.0
    %9287 = vmatpush1.xpose.msra.mxu0 0.0
    %9288 = vmatprep.mubr.f32.mxu0 0.0
    %v9289 = vand.u32 %v9017, 4294901760
    %v9290 = vsub.f32 %v9017, %v9289
    %9291 = vmatmul.mubr.f32.gmra.mrb[0].mxu0 %v9290
    %v9292 = vpop.f32.mrb[0].mxu0
    %v9293 = vadd.f32 %v9207, %v9292
    %v9294 = vpop.f32.mrb[0].mxu0
    %9295 = vmatprep.mubr.f32.mxu0 0.0
    %v9296 = vand.u32 %v9020, 4294901760
    %v9297 = vsub.f32 %v9020, %v9296
    %9298 = vmatmul.mubr.f32.gmra.mrb[0].mxu0 %v9297
    %v9299 = vpop.f32.mrb[0].mxu0
    %v9300 = vadd.f32 %v9213, %v9299
    %v9301 = vpop.f32.mrb[0].mxu0
    %9302 = vdwg.mxu0
    %9303 = vmatprep.subr.mxu0 0.0
    %v9304 = vand.u32 %v9022, 4294901760
    %9305 = vmatpush1.xpose.msra.mxu0 %v9304
    %9306 = vmatprep.subr.mxu0 0.0
    %v9307 = vand.u32 %v9024, 4294901760
    %9308 = vmatpush1.xpose.msra.mxu0 %v9307
    %9309 = vmatprep.subr.mxu0 0.0
    %v9310 = vand.u32 %v9026, 4294901760
    %9311 = vmatpush1.xpose.msra.mxu0 %v9310
    %9312 = vmatprep.subr.mxu0 0.0
    %v9313 = vand.u32 %v9028, 4294901760
    %9314 = vmatpush1.xpose.msra.mxu0 %v9313
    %9315 = vmatprep.subr.mxu0 0.0
    %9316 = vmatpush1.xpose.msra.mxu0 0.0
    %9317 = vmatprep.subr.mxu0 0.0
    %9318 = vmatpush1.xpose.msra.mxu0 0.0
    %9319 = vmatprep.subr.mxu0 0.0
    %9320 = vmatpush1.xpose.msra.mxu0 0.0
    %9321 = vmatprep.subr.mxu0 0.0
    %9322 = vmatpush1.xpose.msra.mxu0 0.0
    %9323 = vmatprep.subr.mxu0 0.0
    %9324 = vmatpush1.xpose.msra.mxu0 0.0
    %9325 = vmatprep.subr.mxu0 0.0
    %9326 = vmatpush1.xpose.msra.mxu0 0.0
    %9327 = vmatprep.subr.mxu0 0.0
    %9328 = vmatpush1.xpose.msra.mxu0 0.0
    %9329 = vmatprep.subr.mxu0 0.0
    %9330 = vmatpush1.xpose.msra.mxu0 0.0
    %9331 = vmatprep.subr.mxu0 0.0
    %9332 = vmatpush1.xpose.msra.mxu0 0.0
    %9333 = vmatprep.subr.mxu0 0.0
    %9334 = vmatpush1.xpose.msra.mxu0 0.0
    %9335 = vmatprep.subr.mxu0 0.0
    %9336 = vmatpush1.xpose.msra.mxu0 0.0
    %9337 = vmatprep.subr.mxu0 0.0
    %9338 = vmatpush1.xpose.msra.mxu0 0.0
    %9339 = vmatprep.subr.mxu0 0.0
    %9340 = vmatpush1.xpose.msra.mxu0 0.0
    %9341 = vmatprep.subr.mxu0 0.0
    %9342 = vmatpush1.xpose.msra.mxu0 0.0
    %9343 = vmatprep.subr.mxu0 0.0
    %9344 = vmatpush1.xpose.msra.mxu0 0.0
    %9345 = vmatprep.subr.mxu0 0.0
    %9346 = vmatpush1.xpose.msra.mxu0 0.0
    %9347 = vmatprep.subr.mxu0 0.0
    %9348 = vmatpush1.xpose.msra.mxu0 0.0
    %9349 = vmatprep.subr.mxu0 0.0
    %9350 = vmatpush1.xpose.msra.mxu0 0.0
    %9351 = vmatprep.subr.mxu0 0.0
    %9352 = vmatpush1.xpose.msra.mxu0 0.0
    %9353 = vmatprep.subr.mxu0 0.0
    %9354 = vmatpush1.xpose.msra.mxu0 0.0
    %9355 = vmatprep.subr.mxu0 0.0
    %9356 = vmatpush1.xpose.msra.mxu0 0.0
    %9357 = vmatprep.subr.mxu0 0.0
    %9358 = vmatpush1.xpose.msra.mxu0 0.0
    %9359 = vmatprep.subr.mxu0 0.0
    %9360 = vmatpush1.xpose.msra.mxu0 0.0
    %9361 = vmatprep.subr.mxu0 0.0
    %9362 = vmatpush1.xpose.msra.mxu0 0.0
    %9363 = vmatprep.subr.mxu0 0.0
    %9364 = vmatpush1.xpose.msra.mxu0 0.0
    %9365 = vmatprep.subr.mxu0 0.0
    %9366 = vmatpush1.xpose.msra.mxu0 0.0
    %9367 = vmatprep.subr.mxu0 0.0
    %9368 = vmatpush1.xpose.msra.mxu0 0.0
    %9369 = vmatprep.subr.mxu0 0.0
    %9370 = vmatpush1.xpose.msra.mxu0 0.0
    %9371 = vmatprep.mubr.f32.mxu0 0.0
    %v9372 = vand.u32 %v9017, 4294901760
    %v9373 = vsub.f32 %v9017, %v9372
    %v9374 = vand.u32 %v9373, 4294901760
    %9375 = vmatmul.mubr.f32.gmra.mrb[0].mxu0 %v9374
    %v9376 = vpop.f32.mrb[0].mxu0
    %v9377 = vadd.f32 %v9293, %v9376
    %v9378 = vpop.f32.mrb[0].mxu0
    %9379 = vmatprep.mubr.f32.mxu0 0.0
    %v9380 = vand.u32 %v9020, 4294901760
    %v9381 = vsub.f32 %v9020, %v9380
    %v9382 = vand.u32 %v9381, 4294901760
    %9383 = vmatmul.mubr.f32.gmra.mrb[0].mxu0 %v9382
    %v9384 = vpop.f32.mrb[0].mxu0
    %v9385 = vadd.f32 %v9300, %v9384
    %v9386 = vpop.f32.mrb[0].mxu0
    %9387 = vdwg.mxu0
    %9388 = vmatprep.subr.mxu0 0.0
    %v9389 = vand.u32 %v9022, 4294901760
    %v9390 = vsub.f32 %v9022, %v9389
    %v9391 = vand.u32 %v9390, 4294901760
    %9392 = vmatpush1.xpose.msra.mxu0 %v9391
    %9393 = vmatprep.subr.mxu0 0.0
    %v9394 = vand.u32 %v9024, 4294901760
    %v9395 = vsub.f32 %v9024, %v9394
    %v9396 = vand.u32 %v9395, 4294901760
    %9397 = vmatpush1.xpose.msra.mxu0 %v9396
    %9398 = vmatprep.subr.mxu0 0.0
    %v9399 = vand.u32 %v9026, 4294901760
    %v9400 = vsub.f32 %v9026, %v9399
    %v9401 = vand.u32 %v9400, 4294901760
    %9402 = vmatpush1.xpose.msra.mxu0 %v9401
    %9403 = vmatprep.subr.mxu0 0.0
    %v9404 = vand.u32 %v9028, 4294901760
    %v9405 = vsub.f32 %v9028, %v9404
    %v9406 = vand.u32 %v9405, 4294901760
    %9407 = vmatpush1.xpose.msra.mxu0 %v9406
    %9408 = vmatprep.subr.mxu0 0.0
    %9409 = vmatpush1.xpose.msra.mxu0 0.0
    %9410 = vmatprep.subr.mxu0 0.0
    %9411 = vmatpush1.xpose.msra.mxu0 0.0
    %9412 = vmatprep.subr.mxu0 0.0
    %9413 = vmatpush1.xpose.msra.mxu0 0.0
    %9414 = vmatprep.subr.mxu0 0.0
    %9415 = vmatpush1.xpose.msra.mxu0 0.0
    %9416 = vmatprep.subr.mxu0 0.0
    %9417 = vmatpush1.xpose.msra.mxu0 0.0
    %9418 = vmatprep.subr.mxu0 0.0
    %9419 = vmatpush1.xpose.msra.mxu0 0.0
    %9420 = vmatprep.subr.mxu0 0.0
    %9421 = vmatpush1.xpose.msra.mxu0 0.0
    %9422 = vmatprep.subr.mxu0 0.0
    %9423 = vmatpush1.xpose.msra.mxu0 0.0
    %9424 = vmatprep.subr.mxu0 0.0
    %9425 = vmatpush1.xpose.msra.mxu0 0.0
    %9426 = vmatprep.subr.mxu0 0.0
    %9427 = vmatpush1.xpose.msra.mxu0 0.0
    %9428 = vmatprep.subr.mxu0 0.0
    %9429 = vmatpush1.xpose.msra.mxu0 0.0
    %9430 = vmatprep.subr.mxu0 0.0
    %9431 = vmatpush1.xpose.msra.mxu0 0.0
    %9432 = vmatprep.subr.mxu0 0.0
    %9433 = vmatpush1.xpose.msra.mxu0 0.0
    %9434 = vmatprep.subr.mxu0 0.0
    %9435 = vmatpush1.xpose.msra.mxu0 0.0
    %9436 = vmatprep.subr.mxu0 0.0
    %9437 = vmatpush1.xpose.msra.mxu0 0.0
    %9438 = vmatprep.subr.mxu0 0.0
    %9439 = vmatpush1.xpose.msra.mxu0 0.0
    %9440 = vmatprep.subr.mxu0 0.0
    %9441 = vmatpush1.xpose.msra.mxu0 0.0
    %9442 = vmatprep.subr.mxu0 0.0
    %9443 = vmatpush1.xpose.msra.mxu0 0.0
    %9444 = vmatprep.subr.mxu0 0.0
    %9445 = vmatpush1.xpose.msra.mxu0 0.0
    %9446 = vmatprep.subr.mxu0 0.0
    %9447 = vmatpush1.xpose.msra.mxu0 0.0
    %9448 = vmatprep.subr.mxu0 0.0
    %9449 = vmatpush1.xpose.msra.mxu0 0.0
    %9450 = vmatprep.subr.mxu0 0.0
    %9451 = vmatpush1.xpose.msra.mxu0 0.0
    %9452 = vmatprep.subr.mxu0 0.0
    %9453 = vmatpush1.xpose.msra.mxu0 0.0
    %9454 = vmatprep.subr.mxu0 0.0
    %9455 = vmatpush1.xpose.msra.mxu0 0.0
    %9456 = vmatprep.subr.mxu0 0.0
    %9457 = vmatpush1.xpose.msra.mxu0 0.0
    %9458 = vmatprep.subr.mxu0 0.0
    %9459 = vmatpush1.xpose.msra.mxu0 0.0
    %9460 = vmatprep.subr.mxu0 0.0
    %9461 = vmatpush1.xpose.msra.mxu0 0.0
    %9462 = vmatprep.subr.mxu0 0.0
    %9463 = vmatpush1.xpose.msra.mxu0 0.0
    %9464 = vmatprep.mubr.f32.mxu0 0.0
    %v9465 = vand.u32 %v9017, 4294901760
    %9466 = vmatmul.mubr.f32.gmra.mrb[0].mxu0 %v9465
    %v9467 = vpop.f32.mrb[0].mxu0
    %v9468 = vadd.f32 %v9377, %v9467
    %v9469 = vpop.f32.mrb[0].mxu0
    %9470 = vmatprep.mubr.f32.mxu0 0.0
    %v9471 = vand.u32 %v9020, 4294901760
    %9472 = vmatmul.mubr.f32.gmra.mrb[0].mxu0 %v9471
    %v9473 = vpop.f32.mrb[0].mxu0
    %v9474 = vadd.f32 %v9385, %v9473
    %v9475 = vpop.f32.mrb[0].mxu0
    %9476 = vdwg.mxu0
    %9477 = vmatprep.subr.mxu0 0.0
    %v9478 = vand.u32 %v9022, 4294901760
    %9479 = vmatpush1.xpose.msra.mxu0 %v9478
    %9480 = vmatprep.subr.mxu0 0.0
    %v9481 = vand.u32 %v9024, 4294901760
    %9482 = vmatpush1.xpose.msra.mxu0 %v9481
    %9483 = vmatprep.subr.mxu0 0.0
    %v9484 = vand.u32 %v9026, 4294901760
    %9485 = vmatpush1.xpose.msra.mxu0 %v9484
    %9486 = vmatprep.subr.mxu0 0.0
    %v9487 = vand.u32 %v9028, 4294901760
    %9488 = vmatpush1.xpose.msra.mxu0 %v9487
    %9489 = vmatprep.subr.mxu0 0.0
    %9490 = vmatpush1.xpose.msra.mxu0 0.0
    %9491 = vmatprep.subr.mxu0 0.0
    %9492 = vmatpush1.xpose.msra.mxu0 0.0
    %9493 = vmatprep.subr.mxu0 0.0
    %9494 = vmatpush1.xpose.msra.mxu0 0.0
    %9495 = vmatprep.subr.mxu0 0.0
    %9496 = vmatpush1.xpose.msra.mxu0 0.0
    %9497 = vmatprep.subr.mxu0 0.0
    %9498 = vmatpush1.xpose.msra.mxu0 0.0
    %9499 = vmatprep.subr.mxu0 0.0
    %9500 = vmatpush1.xpose.msra.mxu0 0.0
    %9501 = vmatprep.subr.mxu0 0.0
    %9502 = vmatpush1.xpose.msra.mxu0 0.0
    %9503 = vmatprep.subr.mxu0 0.0
    %9504 = vmatpush1.xpose.msra.mxu0 0.0
    %9505 = vmatprep.subr.mxu0 0.0
    %9506 = vmatpush1.xpose.msra.mxu0 0.0
    %9507 = vmatprep.subr.mxu0 0.0
    %9508 = vmatpush1.xpose.msra.mxu0 0.0
    %9509 = vmatprep.subr.mxu0 0.0
    %9510 = vmatpush1.xpose.msra.mxu0 0.0
    %9511 = vmatprep.subr.mxu0 0.0
    %9512 = vmatpush1.xpose.msra.mxu0 0.0
    %9513 = vmatprep.subr.mxu0 0.0
    %9514 = vmatpush1.xpose.msra.mxu0 0.0
    %9515 = vmatprep.subr.mxu0 0.0
    %9516 = vmatpush1.xpose.msra.mxu0 0.0
    %9517 = vmatprep.subr.mxu0 0.0
    %9518 = vmatpush1.xpose.msra.mxu0 0.0
    %9519 = vmatprep.subr.mxu0 0.0
    %9520 = vmatpush1.xpose.msra.mxu0 0.0
    %9521 = vmatprep.subr.mxu0 0.0
    %9522 = vmatpush1.xpose.msra.mxu0 0.0
    %9523 = vmatprep.subr.mxu0 0.0
    %9524 = vmatpush1.xpose.msra.mxu0 0.0
    %9525 = vmatprep.subr.mxu0 0.0
    %9526 = vmatpush1.xpose.msra.mxu0 0.0
    %9527 = vmatprep.subr.mxu0 0.0
    %9528 = vmatpush1.xpose.msra.mxu0 0.0
    %9529 = vmatprep.subr.mxu0 0.0
    %9530 = vmatpush1.xpose.msra.mxu0 0.0
    %9531 = vmatprep.subr.mxu0 0.0
    %9532 = vmatpush1.xpose.msra.mxu0 0.0
    %9533 = vmatprep.subr.mxu0 0.0
    %9534 = vmatpush1.xpose.msra.mxu0 0.0
    %9535 = vmatprep.subr.mxu0 0.0
    %9536 = vmatpush1.xpose.msra.mxu0 0.0
    %9537 = vmatprep.subr.mxu0 0.0
    %9538 = vmatpush1.xpose.msra.mxu0 0.0
    %9539 = vmatprep.subr.mxu0 0.0
    %9540 = vmatpush1.xpose.msra.mxu0 0.0
    %9541 = vmatprep.subr.mxu0 0.0
    %9542 = vmatpush1.xpose.msra.mxu0 0.0
    %9543 = vmatprep.subr.mxu0 0.0
    %9544 = vmatpush1.xpose.msra.mxu0 0.0
    %9545 = vmatprep.mubr.f32.mxu0 0.0
    %v9546 = vand.u32 %v9017, 4294901760
    %9547 = vmatmul.mubr.f32.gmra.mrb[0].mxu0 %v9546
    %v9548 = vpop.f32.mrb[0].mxu0
    %v9549 = vadd.f32 %v9468, %v9548
    %v9550 = vpop.f32.mrb[0].mxu0
    %9551 = vmatprep.mubr.f32.mxu0 0.0
    %v9552 = vand.u32 %v9020, 4294901760
    %9553 = vmatmul.mubr.f32.gmra.mrb[0].mxu0 %v9552
    %v9554 = vpop.f32.mrb[0].mxu0
    %v9555 = vadd.f32 %v9474, %v9554
    %v9556 = vpop.f32.mrb[0].mxu0
    %9557 = vdwg.mxu0
    %v9558 = vadd.f32 %v7182, %v9549
    %v9559 = vadd.f32 %v7183, %v9555
    %v9560 = vlaneseq
    %v9561 = vshrl.u32 %v9560, 7
    %v9562 = vsub.s32 0, %v9561
    %v9563 = vrot.slane %v66, %v9562
    %v9564 = vadd.f32 %v9558, %v9563
    %v9565 = vadd.f32 %v9559, %v9563
    %v9566 = vadd.f32 %v9564, %v60
    %v9567 = vadd.f32 %v9565, %v61
    %vm9568 = vcmask 261120
    %v9569 = vsel %vm9568, %v9566, 0.0
    %9570 = vadd.xlane.f32.xlu0 %v9569
    %v9571 = vpop.xlane.xlu0 %9570
    %v9572 = vsel %vm9568, %v9567, 0.0
    %9573 = vadd.xlane.f32.xlu0 %v9572
    %v9574 = vpop.xlane.xlu0 %9573
    %v9575 = vrcp.pop 32.0
    %v9576 = vmul.f32 %v9571, %v9575
    %v9577 = vmul.f32 %v9574, %v9575
    %v9578 = vsub.f32 %v9566, %v9576
    %v9579 = vsub.f32 %v9567, %v9577
    %v9580 = vmul.f32 %v9578, %v9578
    %v9581 = vmul.f32 %v9579, %v9579
    %v9582 = vsel %vm9568, %v9580, 0.0
    %9583 = vadd.xlane.f32.xlu0 %v9582
    %v9584 = vpop.xlane.xlu0 %9583
    %v9585 = vsel %vm9568, %v9581, 0.0
    %9586 = vadd.xlane.f32.xlu0 %v9585
    %v9587 = vpop.xlane.xlu0 %9586
    %v9588 = vmul.f32 %v9584, %v9575
    %v9589 = vmul.f32 %v9587, %v9575
    %v9590 = vadd.f32 %v9588, 1e-05
    %v9591 = vadd.f32 %v9589, 1e-05
    %v9592 = vrsqrt.pop %v9590
    %v9593 = vrsqrt.pop %v9591
    %v9594 = vmul.f32 %v9578, %v9592
    %v9595 = vmul.f32 %v9579, %v9593
    %v9596 = vlaneseq
    %v9597 = vshrl.u32 %v9596, 7
    %v9598 = vsub.s32 1, %v9597
    %v9599 = vrot.slane %v66, %v9598
    %v9600 = vmul.f32 %v9594, %v9599
    %v9601 = vmul.f32 %v9595, %v9599
    %v9602 = vlaneseq
    %v9603 = vshrl.u32 %v9602, 7
    %v9604 = vsub.s32 2, %v9603
    %v9605 = vrot.slane %v66, %v9604
    %v9606 = vadd.f32 %v9600, %v9605
    %v9607 = vadd.f32 %v9601, %v9605
    %9608 = vst.msk [vmem:[#allocation8] sm:$0xff] %vm9568, %v9606
    %9609 = vst.msk [vmem:[#allocation8 + $0x8] sm:$0xff] %vm9568, %v9607
    // Predicated region
    $region30: #{tpu_custom_call.1} parent=1 // pred_check
      _
    $region31: #{tpu_custom_call.1} parent=1 // pred_check_branch
      %9611 = sbr.rel (0) target = $region33
    $region32: #{tpu_custom_call.1} parent=1 // pred_region
      %s9613 = ssub.s32 256, 256
      %9614 = vsyncadd [#allocation4], %s9613
      %s9615 = sshll.u32 [#allocation8], 4
      %s9616 = int_to_ptr.vmem [resolvable:$true] %s9615
      %9621 = dma.vmem_to_hbm [thread:$0]  %s9616, 256, %s4, [#allocation4], 128, 128, 8
    $region33: #{tpu_custom_call.1} parent=1 // pred_fallthru
      _
    // Predicated region
    $region34: #{tpu_custom_call.1} parent=1 // pred_check
      _
    $region35: #{tpu_custom_call.1} parent=1 // pred_check_branch
      %9623 = sbr.rel (0) target = $region37
    $region36: #{tpu_custom_call.1} parent=1 // pred_region
      %9624 = dma.done [#allocation4], 256
    $region37: #{tpu_custom_call.1} parent=1 // pred_fallthru
      _
    %9625 = vsyncpa [#allocation3], 1
    %9626 = vsyncpa [#allocation6], 1
    %9627 = vsyncpa [#allocation4], 1

</llo_original>
